<compile_context>
chip_gen: v5e
topology: v5e:2x2
jax: 0.10.0
libtpu: 0.0.40
codegen_flags: <defaults>
</compile_context>

<pallas_src>
import functools
import numpy as np

import jax
import jax.numpy as jnp
from jax.experimental import pallas as pl
from jax.experimental.pallas import tpu as pltpu


N_BLOCK_ARGS = 14          # per-block tensor count passed to the kernel
_NEG = -1.0e5              # "excluded pair" bias (exp underflows to exactly 0.0 in f32)


# ----------------------------------------------------------------------------- kernel

def _erf_f32(x):
    # Abramowitz & Stegun 7.1.26 rational approximation, |abs err| <= 1.5e-7.
    ax = jnp.abs(x)
    t = 1.0 / (1.0 + 0.3275911 * ax)
    poly = t * (0.254829592 + t * (-0.284496736 + t * (1.421413741 +
                t * (-1.453152027 + t * 1.061405429))))
    y = 1.0 - poly * jnp.exp(-ax * ax)
    return jnp.where(x < 0.0, -y, y)


def _gelu_exact(x):
    return 0.5 * x * (1.0 + _erf_f32(x * 0.7071067811865476))


def _basic_layer_kernel(*refs, num_heads, n_block_args):
    x_ref, gmat_ref, hmask_ref = refs[0], refs[1], refs[2]
    o_ref = refs[-1]
    block_refs = refs[3:-1]
    num_blocks = len(block_refs) // n_block_args

    x = x_ref[...]                       # (M, C), M = B*H*W tokens, C on the lane axis
    M, C = x.shape
    gmat = gmat_ref[...]                 # (C, C) block-diagonal ones (head groups)
    hmask = hmask_ref[...]               # (num_heads*M, C) head one-hot lane mask

    for blk in range(num_blocks):
        (wqkv, bqkv, qscale, bias_stack, wproj, bproj, g1, b1,
         w1, bf1, w2, bf2, g2, b2) = (r[...] for r in
                                      block_refs[blk * n_block_args:(blk + 1) * n_block_args])

        # ---- fused qkv projection (C stays lane-resident) ----
        qkv = jnp.dot(x, wqkv, preferred_element_type=jnp.float32) + bqkv      # (M, 3C)
        q = qkv[:, :C]
        k = qkv[:, C:2 * C]
        v = qkv[:, 2 * C:]

        # ---- per-head L2 normalisation (cosine attention) ----
        # per-head sum-of-squares via a block-diagonal ones matmul: no head reshapes.
        qss = jnp.dot(q * q, gmat, preferred_element_type=jnp.float32)
        kss = jnp.dot(k * k, gmat, preferred_element_type=jnp.float32)
        # F.normalize(dim=-1, eps=1e-12) == x * rsqrt(max(sumsq, 1e-24));
        # the clamped per-head logit scale is folded into q as a per-lane vector.
        qn = q * (qscale * jax.lax.rsqrt(jnp.maximum(qss, 1e-24)))
        kn = k * jax.lax.rsqrt(jnp.maximum(kss, 1e-24))

        # ---- head-stacked attention: all heads / windows / batches in 2 MXU matmuls ----
        qstack = jnp.concatenate([qn] * num_heads, axis=0) * hmask             # (nh*M, C)
        s = jax.lax.dot_general(qstack, kn, (((1,), (1,)), ((), ())),
                                preferred_element_type=jnp.float32)            # (nh*M, M)
        a = s + bias_stack          # rel-pos bias + shift mask + window/batch structure
        a = a - jnp.max(a, axis=-1, keepdims=True)
        p = jnp.exp(a)
        p = p * pl.reciprocal(jnp.sum(p, axis=-1, keepdims=True), approx=False)
        o = jnp.dot(p, v, preferred_element_type=jnp.float32)                  # (nh*M, C)

        # gather each head's lanes from its row-block and merge -> (M, C)
        om = o * hmask
        attn = om[0:M, :]
        for h in range(1, num_heads):
            attn = attn + om[h * M:(h + 1) * M, :]
        proj = jnp.dot(attn, wproj, preferred_element_type=jnp.float32) + bproj

        # ---- post-norm residual 1:  x <- x + LN(attn_proj) ----
        mu1 = jnp.mean(proj, axis=-1, keepdims=True)
        pc = proj - mu1
        var1 = jnp.mean(pc * pc, axis=-1, keepdims=True)
        x = x + (pc * jax.lax.rsqrt(var1 + 1e-5)) * g1 + b1

        # ---- MLP: fc1 -> exact GELU -> fc2 ----
        hmid = jnp.dot(x, w1, preferred_element_type=jnp.float32) + bf1
        hmid = _gelu_exact(hmid)
        y = jnp.dot(hmid, w2, preferred_element_type=jnp.float32) + bf2

        # ---- post-norm residual 2:  x <- x + LN(mlp_out) ----
        mu2 = jnp.mean(y, axis=-1, keepdims=True)
        yc = y - mu2
        var2 = jnp.mean(yc * yc, axis=-1, keepdims=True)
        x = x + (yc * jax.lax.rsqrt(var2 + 1e-5)) * g2 + b2

    o_ref[...] = x.astype(o_ref.dtype)


def basic_layer_forward(x, flat_args, *, num_heads):
    """x: (B, L, C).  flat_args = (gmat, hmask_full, *block0_params, *block1_params)."""
    B, L, C = x.shape
    xf = x.reshape(B * L, C)
    n_in = 1 + len(flat_args)
    kernel = functools.partial(_basic_layer_kernel, num_heads=num_heads,
                               n_block_args=N_BLOCK_ARGS)
    out = pl.pallas_call(
        kernel,
        out_shape=jax.ShapeDtypeStruct((B * L, C), x.dtype),
        in_specs=[pl.BlockSpec(memory_space=pltpu.MemorySpace.VMEM)] * n_in,
        out_specs=pl.BlockSpec(memory_space=pltpu.MemorySpace.VMEM),
    )(xf, *flat_args)
    return out.reshape(B, L, C)


# ----------------------------------------------------------------------------- prep (one-time, host/XLA)

def make_rel_coords_table(ws):
    rch = np.arange(-(ws - 1), ws, dtype=np.float32)
    rcw = np.arange(-(ws - 1), ws, dtype=np.float32)
    table = np.stack(np.meshgrid(rch, rcw, indexing='ij'), axis=0)       # (2, 2ws-1, 2ws-1)
    table = table.transpose(1, 2, 0)[None]                               # (1, 2ws-1, 2ws-1, 2)
    table = table / float(ws - 1)
    table = np.sign(table) * np.log2(8.0 * np.abs(table) + 1.0) / 3.0
    return jnp.asarray(table, jnp.float32)


def make_rel_pos_index(ws):
    coords = np.stack(np.meshgrid(np.arange(ws), np.arange(ws), indexing='ij'))
    cf = coords.reshape(2, -1)
    rel = cf[:, :, None] - cf[:, None, :]
    rel = rel.transpose(1, 2, 0).astype(np.int64)
    rel[:, :, 0] += ws - 1
    rel[:, :, 1] += ws - 1
    rel[:, :, 0] *= 2 * ws - 1
    return jnp.asarray(rel.sum(-1), jnp.int32)                           # (N, N)


def build_bias_stack(rel_bias, shift, H, W, ws, batch, neg=_NEG):
    """Fold rel-pos bias + SW-MSA shift mask + (shifted-)window/batch block structure into
    one additive bias of shape (nh*B*L, B*L) matching the head-stacked score layout."""
    nh = rel_bias.shape[0]
    L = H * W
    hh, ww = np.meshgrid(np.arange(H), np.arange(W), indexing='ij')
    hs = (hh - shift) % H                 # coordinates after roll(-shift)
    wsft = (ww - shift) % W
    win_id = (hs // ws) * (W // ws) + (wsft // ws)
    loc = (hs % ws) * ws + (wsft % ws)    # local (row-major) position inside the window
    if shift > 0:
        def region(c, size):
            r = np.zeros_like(c)
            r = np.where(c >= size - ws, 1, r)
            r = np.where(c >= size - shift, 2, r)
            return r
        reg = region(hs, H) * 3 + region(wsft, W)
    else:
        reg = np.zeros((H, W), np.int64)
    win_id, loc, reg = win_id.reshape(L), loc.reshape(L), reg.reshape(L)

    same_win = win_id[:, None] == win_id[None, :]
    mask_add = np.where(reg[:, None] == reg[None, :], 0.0, -100.0).astype(np.float32)
    bias_ll = rel_bias[:, loc[:, None], loc[None, :]]                    # (nh, L, L)
    bias_ll = np.where(same_win[None], bias_ll + mask_add[None], np.float32(neg))

    M = batch * L
    full = np.full((nh, M, M), np.float32(neg), np.float32)
    for b in range(batch):
        full[:, b * L:(b + 1) * L, b * L:(b + 1) * L] = bias_ll
    return full.reshape(nh * M, M)


def init_block_params(key, dim, num_heads, mlp_ratio):
    hidden = int(dim * mlp_ratio)
    ks = jax.random.split(key, 6)
    w = lambda k, s: 0.02 * jax.random.normal(k, s, jnp.float32)
    return dict(
        norm1_g=jnp.ones((dim,), jnp.float32), norm1_b=jnp.zeros((dim,), jnp.float32),
        norm2_g=jnp.ones((dim,), jnp.float32), norm2_b=jnp.zeros((dim,), jnp.float32),
        logit_scale=jnp.log(10.0) * jnp.ones((num_heads, 1, 1), jnp.float32),
        cpb_w1=w(ks[0], (512, 2)), cpb_b1=jnp.zeros((512,), jnp.float32),
        cpb_w2=w(ks[1], (num_heads, 512)),
        qkv_w=w(ks[2], (3 * dim, dim)),
        q_bias=jnp.zeros((dim,), jnp.float32), v_bias=jnp.zeros((dim,), jnp.float32),
        proj_w=w(ks[3], (dim, dim)), proj_b=jnp.zeros((dim,), jnp.float32),
        fc1_w=w(ks[4], (hidden, dim)), fc1_b=jnp.zeros((hidden,), jnp.float32),
        fc2_w=w(ks[5], (dim, hidden)), fc2_b=jnp.zeros((dim,), jnp.float32),
    )


def prepare_basic_layer(params_list, *, H, W, dim, num_heads, window_size, batch):
    """One-time prep: transposes, qkv-bias concat, CPB bias, clamped logit scale, fused
    attention bias, head masks.  Returns the flat tuple consumed by the kernel."""
    hd = dim // num_heads
    N = window_size * window_size
    L = H * W
    M = batch * L

    rel_table = make_rel_coords_table(window_size)
    rel_index = make_rel_pos_index(window_size)

    gmat = jnp.asarray(np.kron(np.eye(num_heads, dtype=np.float32),
                               np.ones((hd, hd), np.float32)))            # (C, C)
    head_onehot = np.repeat(np.eye(num_heads, dtype=np.float32), hd, axis=1)   # (nh, C)
    hmask_full = jnp.asarray(np.repeat(head_onehot, M, axis=0))           # (nh*M, C)

    flat = [gmat, hmask_full]
    for i, p in enumerate(params_list):
        shift = 0 if i % 2 == 0 else window_size // 2

        # CPB-MLP relative position bias (parameter-only)
        t = rel_table.reshape(-1, 2)
        hc = jax.nn.relu(t @ p['cpb_w1'].T + p['cpb_b1'])
        tbl = hc @ p['cpb_w2'].T                                          # ((2ws-1)^2, nh)
        rb = tbl[rel_index.reshape(-1)].reshape(N, N, num_heads)
        rel_bias = 16.0 * jax.nn.sigmoid(jnp.transpose(rb, (2, 0, 1)))    # (nh, N, N)
        bias_stack = jnp.asarray(build_bias_stack(np.asarray(rel_bias), shift,
                                                  H, W, window_size, batch))

        scale = jnp.exp(jnp.minimum(p['logit_scale'].reshape(num_heads),
                                    4.605170185988091))                   # clamp(max=ln 100)
        scale_lanes = jnp.repeat(scale, hd).reshape(1, dim)               # per-lane head scale

        qkv_bias = jnp.concatenate([p['q_bias'], jnp.zeros_like(p['v_bias']),
                                    p['v_bias']]).reshape(1, 3 * dim)
        hidden = p['fc1_w'].shape[0]

        flat += [
            jnp.transpose(p['qkv_w']),                # (C, 3C)
            qkv_bias,                                 # (1, 3C)
            scale_lanes,                              # (1, C)
            bias_stack,                               # (nh*M, M)
            jnp.transpose(p['proj_w']),               # (C, C)
            p['proj_b'].reshape(1, dim),
            p['norm1_g'].reshape(1, dim), p['norm1_b'].reshape(1, dim),
            jnp.transpose(p['fc1_w']),                # (C, hidden)
            p['fc1_b'].reshape(1, hidden),
            jnp.transpose(p['fc2_w']),                # (hidden, C)
            p['fc2_b'].reshape(1, dim),
            p['norm2_g'].reshape(1, dim), p['norm2_b'].reshape(1, dim),
        ]
    return tuple(flat)


# ----------------------------------------------------------------------------- main

if __name__ == "__main__":
    B, H, W, C = 2, 8, 8, 32
    num_heads, window_size, depth, mlp_ratio = 4, 4, 2, 4.0
    L = H * W

    key = jax.random.PRNGKey(0)
    kx, kp = jax.random.split(key)
    x = jax.random.normal(kx, (B, L, C), jnp.float32)

    block_keys = jax.random.split(kp, depth)
    block_params = [init_block_params(k, C, num_heads, mlp_ratio) for k in block_keys]

    prepped = prepare_basic_layer(block_params, H=H, W=W, dim=C, num_heads=num_heads,
                                  window_size=window_size, batch=B)

    @jax.jit
    def fwd(x_in, args):
        return basic_layer_forward(x_in, args, num_heads=num_heads)

    out = jax.block_until_ready(fwd(x, prepped))
    assert out.shape == (B, L, C) and out.dtype == jnp.float32
    assert bool(jnp.all(jnp.isfinite(out)))
    print("KERNEL_OK")
</pallas_src>

<mosaic_0001>
module attributes {stable_mosaic.version = 11 : i64} {
  func.func @_basic_layer_kernel(%arg0: memref<128x32xf32, #tpu.memory_space<vmem>>, %arg1: memref<32x32xf32, #tpu.memory_space<vmem>>, %arg2: memref<512x32xf32, #tpu.memory_space<vmem>>, %arg3: memref<32x96xf32, #tpu.memory_space<vmem>>, %arg4: memref<1x96xf32, #tpu.memory_space<vmem>>, %arg5: memref<1x32xf32, #tpu.memory_space<vmem>>, %arg6: memref<512x128xf32, #tpu.memory_space<vmem>>, %arg7: memref<32x32xf32, #tpu.memory_space<vmem>>, %arg8: memref<1x32xf32, #tpu.memory_space<vmem>>, %arg9: memref<1x32xf32, #tpu.memory_space<vmem>>, %arg10: memref<1x32xf32, #tpu.memory_space<vmem>>, %arg11: memref<32x128xf32, #tpu.memory_space<vmem>>, %arg12: memref<1x128xf32, #tpu.memory_space<vmem>>, %arg13: memref<128x32xf32, #tpu.memory_space<vmem>>, %arg14: memref<1x32xf32, #tpu.memory_space<vmem>>, %arg15: memref<1x32xf32, #tpu.memory_space<vmem>>, %arg16: memref<1x32xf32, #tpu.memory_space<vmem>>, %arg17: memref<32x96xf32, #tpu.memory_space<vmem>>, %arg18: memref<1x96xf32, #tpu.memory_space<vmem>>, %arg19: memref<1x32xf32, #tpu.memory_space<vmem>>, %arg20: memref<512x128xf32, #tpu.memory_space<vmem>>, %arg21: memref<32x32xf32, #tpu.memory_space<vmem>>, %arg22: memref<1x32xf32, #tpu.memory_space<vmem>>, %arg23: memref<1x32xf32, #tpu.memory_space<vmem>>, %arg24: memref<1x32xf32, #tpu.memory_space<vmem>>, %arg25: memref<32x128xf32, #tpu.memory_space<vmem>>, %arg26: memref<1x128xf32, #tpu.memory_space<vmem>>, %arg27: memref<128x32xf32, #tpu.memory_space<vmem>>, %arg28: memref<1x32xf32, #tpu.memory_space<vmem>>, %arg29: memref<1x32xf32, #tpu.memory_space<vmem>>, %arg30: memref<1x32xf32, #tpu.memory_space<vmem>>, %arg31: memref<128x32xf32, #tpu.memory_space<vmem>>) attributes {dimension_semantics = [], scalar_prefetch = 0 : i64, scratch_operands = 0 : i64, tpu.core_type = #tpu.core_type<tc>} {
    %c0 = arith.constant 0 : index
    %c0_0 = arith.constant 0 : index
    %0 = vector.load %arg0[%c0, %c0_0] : memref<128x32xf32, #tpu.memory_space<vmem>>, vector<128x32xf32>
    %c0_1 = arith.constant 0 : index
    %c0_2 = arith.constant 0 : index
    %1 = vector.load %arg1[%c0_1, %c0_2] : memref<32x32xf32, #tpu.memory_space<vmem>>, vector<32x32xf32>
    %c0_3 = arith.constant 0 : index
    %c0_4 = arith.constant 0 : index
    %2 = vector.load %arg2[%c0_3, %c0_4] : memref<512x32xf32, #tpu.memory_space<vmem>>, vector<512x32xf32>
    %c0_5 = arith.constant 0 : index
    %c0_6 = arith.constant 0 : index
    %3 = vector.load %arg3[%c0_5, %c0_6] : memref<32x96xf32, #tpu.memory_space<vmem>>, vector<32x96xf32>
    %c0_7 = arith.constant 0 : index
    %c0_8 = arith.constant 0 : index
    %4 = vector.load %arg4[%c0_7, %c0_8] : memref<1x96xf32, #tpu.memory_space<vmem>>, vector<1x96xf32>
    %c0_9 = arith.constant 0 : index
    %c0_10 = arith.constant 0 : index
    %5 = vector.load %arg5[%c0_9, %c0_10] : memref<1x32xf32, #tpu.memory_space<vmem>>, vector<1x32xf32>
    %c0_11 = arith.constant 0 : index
    %c0_12 = arith.constant 0 : index
    %6 = vector.load %arg6[%c0_11, %c0_12] : memref<512x128xf32, #tpu.memory_space<vmem>>, vector<512x128xf32>
    %c0_13 = arith.constant 0 : index
    %c0_14 = arith.constant 0 : index
    %7 = vector.load %arg7[%c0_13, %c0_14] : memref<32x32xf32, #tpu.memory_space<vmem>>, vector<32x32xf32>
    %c0_15 = arith.constant 0 : index
    %c0_16 = arith.constant 0 : index
    %8 = vector.load %arg8[%c0_15, %c0_16] : memref<1x32xf32, #tpu.memory_space<vmem>>, vector<1x32xf32>
    %c0_17 = arith.constant 0 : index
    %c0_18 = arith.constant 0 : index
    %9 = vector.load %arg9[%c0_17, %c0_18] : memref<1x32xf32, #tpu.memory_space<vmem>>, vector<1x32xf32>
    %c0_19 = arith.constant 0 : index
    %c0_20 = arith.constant 0 : index
    %10 = vector.load %arg10[%c0_19, %c0_20] : memref<1x32xf32, #tpu.memory_space<vmem>>, vector<1x32xf32>
    %c0_21 = arith.constant 0 : index
    %c0_22 = arith.constant 0 : index
    %11 = vector.load %arg11[%c0_21, %c0_22] : memref<32x128xf32, #tpu.memory_space<vmem>>, vector<32x128xf32>
    %c0_23 = arith.constant 0 : index
    %c0_24 = arith.constant 0 : index
    %12 = vector.load %arg12[%c0_23, %c0_24] : memref<1x128xf32, #tpu.memory_space<vmem>>, vector<1x128xf32>
    %c0_25 = arith.constant 0 : index
    %c0_26 = arith.constant 0 : index
    %13 = vector.load %arg13[%c0_25, %c0_26] : memref<128x32xf32, #tpu.memory_space<vmem>>, vector<128x32xf32>
    %c0_27 = arith.constant 0 : index
    %c0_28 = arith.constant 0 : index
    %14 = vector.load %arg14[%c0_27, %c0_28] : memref<1x32xf32, #tpu.memory_space<vmem>>, vector<1x32xf32>
    %c0_29 = arith.constant 0 : index
    %c0_30 = arith.constant 0 : index
    %15 = vector.load %arg15[%c0_29, %c0_30] : memref<1x32xf32, #tpu.memory_space<vmem>>, vector<1x32xf32>
    %c0_31 = arith.constant 0 : index
    %c0_32 = arith.constant 0 : index
    %16 = vector.load %arg16[%c0_31, %c0_32] : memref<1x32xf32, #tpu.memory_space<vmem>>, vector<1x32xf32>
    %cst = arith.constant dense<0.000000e+00> : vector<128x96xf32>
    %17 = tpu.matmul %0, %3, %cst {dimension_numbers = #tpu.dot_dimension_numbers<[1], [0], [0], [1], [0, 0, 1, 1], [], []>} : vector<128x32xf32>, vector<32x96xf32>, vector<128x96xf32> -> vector<128x96xf32>
    %18 = vector.broadcast %4 : vector<1x96xf32> to vector<128x96xf32>
    %19 = arith.addf %17, %18 : vector<128x96xf32>
    %20 = vector.extract_strided_slice %19 {offsets = [0, 0], sizes = [128, 32], strides = [1, 1]} : vector<128x96xf32> to vector<128x32xf32>
    %21 = vector.extract_strided_slice %19 {offsets = [0, 32], sizes = [128, 32], strides = [1, 1]} : vector<128x96xf32> to vector<128x32xf32>
    %22 = vector.extract_strided_slice %19 {offsets = [0, 64], sizes = [128, 32], strides = [1, 1]} : vector<128x96xf32> to vector<128x32xf32>
    %23 = arith.mulf %20, %20 : vector<128x32xf32>
    %cst_33 = arith.constant dense<0.000000e+00> : vector<128x32xf32>
    %24 = tpu.matmul %23, %1, %cst_33 {dimension_numbers = #tpu.dot_dimension_numbers<[1], [0], [0], [1], [0, 0, 1, 1], [], []>} : vector<128x32xf32>, vector<32x32xf32>, vector<128x32xf32> -> vector<128x32xf32>
    %25 = arith.mulf %21, %21 : vector<128x32xf32>
    %cst_34 = arith.constant dense<0.000000e+00> : vector<128x32xf32>
    %26 = tpu.matmul %25, %1, %cst_34 {dimension_numbers = #tpu.dot_dimension_numbers<[1], [0], [0], [1], [0, 0, 1, 1], [], []>} : vector<128x32xf32>, vector<32x32xf32>, vector<128x32xf32> -> vector<128x32xf32>
    %cst_35 = arith.constant 1.000000e-24 : f32
    %27 = vector.broadcast %cst_35 : f32 to vector<128x32xf32>
    %28 = arith.maximumf %24, %27 : vector<128x32xf32>
    %29 = math.rsqrt %28 : vector<128x32xf32>
    %30 = vector.broadcast %5 : vector<1x32xf32> to vector<128x32xf32>
    %31 = arith.mulf %30, %29 : vector<128x32xf32>
    %32 = arith.mulf %20, %31 : vector<128x32xf32>
    %cst_36 = arith.constant 1.000000e-24 : f32
    %33 = vector.broadcast %cst_36 : f32 to vector<128x32xf32>
    %34 = arith.maximumf %26, %33 : vector<128x32xf32>
    %35 = math.rsqrt %34 : vector<128x32xf32>
    %36 = arith.mulf %21, %35 : vector<128x32xf32>
    %37 = tpu.concatenate %32, %32, %32, %32 in 0 : vector<128x32xf32>, vector<128x32xf32>, vector<128x32xf32>, vector<128x32xf32> -> vector<512x32xf32>
    %38 = arith.mulf %37, %2 : vector<512x32xf32>
    %cst_37 = arith.constant dense<0.000000e+00> : vector<512x128xf32>
    %39 = tpu.matmul %38, %36, %cst_37 {dimension_numbers = #tpu.dot_dimension_numbers<[1], [1], [0], [0], [0, 0, 1, 0], [], []>} : vector<512x32xf32>, vector<128x32xf32>, vector<512x128xf32> -> vector<512x128xf32>
    %40 = arith.addf %39, %6 : vector<512x128xf32>
    %cst_38 = arith.constant dense<0xFF800000> : vector<512xf32>
    %41 = vector.multi_reduction <maximumf>, %40, %cst_38 [1] : vector<512x128xf32> to vector<512xf32>
    %42 = vector.shape_cast %41 : vector<512xf32> to vector<512x1xf32>
    %43 = vector.broadcast %42 : vector<512x1xf32> to vector<512x128xf32>
    %44 = arith.subf %40, %43 : vector<512x128xf32>
    %45 = math.exp %44 : vector<512x128xf32>
    %cst_39 = arith.constant dense<0.000000e+00> : vector<512xf32>
    %46 = vector.multi_reduction <add>, %45, %cst_39 [1] : vector<512x128xf32> to vector<512xf32>
    %47 = vector.shape_cast %46 : vector<512xf32> to vector<512x1xf32>
    %48 = tpu.reciprocal %47 : vector<512x1xf32> -> vector<512x1xf32>
    %49 = vector.broadcast %48 : vector<512x1xf32> to vector<512x128xf32>
    %50 = arith.mulf %45, %49 : vector<512x128xf32>
    %cst_40 = arith.constant dense<0.000000e+00> : vector<512x32xf32>
    %51 = tpu.matmul %50, %22, %cst_40 {dimension_numbers = #tpu.dot_dimension_numbers<[1], [0], [0], [1], [0, 0, 1, 1], [], []>} : vector<512x128xf32>, vector<128x32xf32>, vector<512x32xf32> -> vector<512x32xf32>
    %52 = arith.mulf %51, %2 : vector<512x32xf32>
    %53 = vector.extract_strided_slice %52 {offsets = [0, 0], sizes = [128, 32], strides = [1, 1]} : vector<512x32xf32> to vector<128x32xf32>
    %54 = vector.extract_strided_slice %52 {offsets = [128, 0], sizes = [128, 32], strides = [1, 1]} : vector<512x32xf32> to vector<128x32xf32>
    %55 = arith.addf %53, %54 : vector<128x32xf32>
    %56 = vector.extract_strided_slice %52 {offsets = [256, 0], sizes = [128, 32], strides = [1, 1]} : vector<512x32xf32> to vector<128x32xf32>
    %57 = arith.addf %55, %56 : vector<128x32xf32>
    %58 = vector.extract_strided_slice %52 {offsets = [384, 0], sizes = [128, 32], strides = [1, 1]} : vector<512x32xf32> to vector<128x32xf32>
    %59 = arith.addf %57, %58 : vector<128x32xf32>
    %cst_41 = arith.constant dense<0.000000e+00> : vector<128x32xf32>
    %60 = tpu.matmul %59, %7, %cst_41 {dimension_numbers = #tpu.dot_dimension_numbers<[1], [0], [0], [1], [0, 0, 1, 1], [], []>} : vector<128x32xf32>, vector<32x32xf32>, vector<128x32xf32> -> vector<128x32xf32>
    %61 = vector.broadcast %8 : vector<1x32xf32> to vector<128x32xf32>
    %62 = arith.addf %60, %61 : vector<128x32xf32>
    %cst_42 = arith.constant dense<0.000000e+00> : vector<128xf32>
    %63 = vector.multi_reduction <add>, %62, %cst_42 [1] : vector<128x32xf32> to vector<128xf32>
    %64 = vector.shape_cast %63 : vector<128xf32> to vector<128x1xf32>
    %cst_43 = arith.constant 3.200000e+01 : f32
    %65 = vector.broadcast %cst_43 : f32 to vector<128x1xf32>
    %66 = arith.divf %64, %65 : vector<128x1xf32>
    %67 = vector.broadcast %66 : vector<128x1xf32> to vector<128x32xf32>
    %68 = arith.subf %62, %67 : vector<128x32xf32>
    %69 = arith.mulf %68, %68 : vector<128x32xf32>
    %cst_44 = arith.constant dense<0.000000e+00> : vector<128xf32>
    %70 = vector.multi_reduction <add>, %69, %cst_44 [1] : vector<128x32xf32> to vector<128xf32>
    %71 = vector.shape_cast %70 : vector<128xf32> to vector<128x1xf32>
    %cst_45 = arith.constant 3.200000e+01 : f32
    %72 = vector.broadcast %cst_45 : f32 to vector<128x1xf32>
    %73 = arith.divf %71, %72 : vector<128x1xf32>
    %cst_46 = arith.constant 9.99999974E-6 : f32
    %74 = vector.broadcast %cst_46 : f32 to vector<128x1xf32>
    %75 = arith.addf %73, %74 : vector<128x1xf32>
    %76 = math.rsqrt %75 : vector<128x1xf32>
    %77 = vector.broadcast %76 : vector<128x1xf32> to vector<128x32xf32>
    %78 = arith.mulf %68, %77 : vector<128x32xf32>
    %79 = vector.broadcast %9 : vector<1x32xf32> to vector<128x32xf32>
    %80 = arith.mulf %78, %79 : vector<128x32xf32>
    %81 = arith.addf %0, %80 : vector<128x32xf32>
    %82 = vector.broadcast %10 : vector<1x32xf32> to vector<128x32xf32>
    %83 = arith.addf %81, %82 : vector<128x32xf32>
    %cst_47 = arith.constant dense<0.000000e+00> : vector<128x128xf32>
    %84 = tpu.matmul %83, %11, %cst_47 {dimension_numbers = #tpu.dot_dimension_numbers<[1], [0], [0], [1], [0, 0, 1, 1], [], []>} : vector<128x32xf32>, vector<32x128xf32>, vector<128x128xf32> -> vector<128x128xf32>
    %85 = vector.broadcast %12 : vector<1x128xf32> to vector<128x128xf32>
    %86 = arith.addf %84, %85 : vector<128x128xf32>
    %cst_48 = arith.constant 5.000000e-01 : f32
    %87 = vector.broadcast %cst_48 : f32 to vector<128x128xf32>
    %88 = arith.mulf %87, %86 : vector<128x128xf32>
    %cst_49 = arith.constant 0.707106769 : f32
    %89 = vector.broadcast %cst_49 : f32 to vector<128x128xf32>
    %90 = arith.mulf %86, %89 : vector<128x128xf32>
    %91 = math.absf %90 : vector<128x128xf32>
    %cst_50 = arith.constant 0.327591091 : f32
    %92 = vector.broadcast %cst_50 : f32 to vector<128x128xf32>
    %93 = arith.mulf %92, %91 : vector<128x128xf32>
    %cst_51 = arith.constant 1.000000e+00 : f32
    %94 = vector.broadcast %cst_51 : f32 to vector<128x128xf32>
    %95 = arith.addf %94, %93 : vector<128x128xf32>
    %cst_52 = arith.constant 1.000000e+00 : f32
    %96 = vector.broadcast %cst_52 : f32 to vector<128x128xf32>
    %97 = arith.divf %96, %95 : vector<128x128xf32>
    %cst_53 = arith.constant 1.06140542 : f32
    %98 = vector.broadcast %cst_53 : f32 to vector<128x128xf32>
    %99 = arith.mulf %97, %98 : vector<128x128xf32>
    %cst_54 = arith.constant -1.45315206 : f32
    %100 = vector.broadcast %cst_54 : f32 to vector<128x128xf32>
    %101 = arith.addf %100, %99 : vector<128x128xf32>
    %102 = arith.mulf %97, %101 : vector<128x128xf32>
    %cst_55 = arith.constant 1.42141378 : f32
    %103 = vector.broadcast %cst_55 : f32 to vector<128x128xf32>
    %104 = arith.addf %103, %102 : vector<128x128xf32>
    %105 = arith.mulf %97, %104 : vector<128x128xf32>
    %cst_56 = arith.constant -0.284496725 : f32
    %106 = vector.broadcast %cst_56 : f32 to vector<128x128xf32>
    %107 = arith.addf %106, %105 : vector<128x128xf32>
    %108 = arith.mulf %97, %107 : vector<128x128xf32>
    %cst_57 = arith.constant 0.254829586 : f32
    %109 = vector.broadcast %cst_57 : f32 to vector<128x128xf32>
    %110 = arith.addf %109, %108 : vector<128x128xf32>
    %111 = arith.mulf %97, %110 : vector<128x128xf32>
    %cst_58 = arith.constant 0.000000e+00 : f32
    %112 = vector.broadcast %cst_58 : f32 to vector<128x128xf32>
    %113 = arith.subf %112, %91 : vector<128x128xf32>
    %114 = arith.mulf %113, %91 : vector<128x128xf32>
    %115 = math.exp %114 : vector<128x128xf32>
    %116 = arith.mulf %111, %115 : vector<128x128xf32>
    %cst_59 = arith.constant 1.000000e+00 : f32
    %117 = vector.broadcast %cst_59 : f32 to vector<128x128xf32>
    %118 = arith.subf %117, %116 : vector<128x128xf32>
    %cst_60 = arith.constant 0.000000e+00 : f32
    %119 = vector.broadcast %cst_60 : f32 to vector<128x128xf32>
    %120 = arith.cmpf olt, %90, %119 : vector<128x128xf32>
    %cst_61 = arith.constant 0.000000e+00 : f32
    %121 = vector.broadcast %cst_61 : f32 to vector<128x128xf32>
    %122 = arith.subf %121, %118 : vector<128x128xf32>
    %123 = arith.select %120, %122, %118 : vector<128x128xi1>, vector<128x128xf32>
    %cst_62 = arith.constant 1.000000e+00 : f32
    %124 = vector.broadcast %cst_62 : f32 to vector<128x128xf32>
    %125 = arith.addf %124, %123 : vector<128x128xf32>
    %126 = arith.mulf %88, %125 : vector<128x128xf32>
    %cst_63 = arith.constant dense<0.000000e+00> : vector<128x32xf32>
    %127 = tpu.matmul %126, %13, %cst_63 {dimension_numbers = #tpu.dot_dimension_numbers<[1], [0], [0], [1], [0, 0, 1, 1], [], []>} : vector<128x128xf32>, vector<128x32xf32>, vector<128x32xf32> -> vector<128x32xf32>
    %128 = vector.broadcast %14 : vector<1x32xf32> to vector<128x32xf32>
    %129 = arith.addf %127, %128 : vector<128x32xf32>
    %cst_64 = arith.constant dense<0.000000e+00> : vector<128xf32>
    %130 = vector.multi_reduction <add>, %129, %cst_64 [1] : vector<128x32xf32> to vector<128xf32>
    %131 = vector.shape_cast %130 : vector<128xf32> to vector<128x1xf32>
    %cst_65 = arith.constant 3.200000e+01 : f32
    %132 = vector.broadcast %cst_65 : f32 to vector<128x1xf32>
    %133 = arith.divf %131, %132 : vector<128x1xf32>
    %134 = vector.broadcast %133 : vector<128x1xf32> to vector<128x32xf32>
    %135 = arith.subf %129, %134 : vector<128x32xf32>
    %136 = arith.mulf %135, %135 : vector<128x32xf32>
    %cst_66 = arith.constant dense<0.000000e+00> : vector<128xf32>
    %137 = vector.multi_reduction <add>, %136, %cst_66 [1] : vector<128x32xf32> to vector<128xf32>
    %138 = vector.shape_cast %137 : vector<128xf32> to vector<128x1xf32>
    %cst_67 = arith.constant 3.200000e+01 : f32
    %139 = vector.broadcast %cst_67 : f32 to vector<128x1xf32>
    %140 = arith.divf %138, %139 : vector<128x1xf32>
    %cst_68 = arith.constant 9.99999974E-6 : f32
    %141 = vector.broadcast %cst_68 : f32 to vector<128x1xf32>
    %142 = arith.addf %140, %141 : vector<128x1xf32>
    %143 = math.rsqrt %142 : vector<128x1xf32>
    %144 = vector.broadcast %143 : vector<128x1xf32> to vector<128x32xf32>
    %145 = arith.mulf %135, %144 : vector<128x32xf32>
    %146 = vector.broadcast %15 : vector<1x32xf32> to vector<128x32xf32>
    %147 = arith.mulf %145, %146 : vector<128x32xf32>
    %148 = arith.addf %83, %147 : vector<128x32xf32>
    %149 = vector.broadcast %16 : vector<1x32xf32> to vector<128x32xf32>
    %150 = arith.addf %148, %149 : vector<128x32xf32>
    %c0_69 = arith.constant 0 : index
    %c0_70 = arith.constant 0 : index
    %151 = vector.load %arg17[%c0_69, %c0_70] : memref<32x96xf32, #tpu.memory_space<vmem>>, vector<32x96xf32>
    %c0_71 = arith.constant 0 : index
    %c0_72 = arith.constant 0 : index
    %152 = vector.load %arg18[%c0_71, %c0_72] : memref<1x96xf32, #tpu.memory_space<vmem>>, vector<1x96xf32>
    %c0_73 = arith.constant 0 : index
    %c0_74 = arith.constant 0 : index
    %153 = vector.load %arg19[%c0_73, %c0_74] : memref<1x32xf32, #tpu.memory_space<vmem>>, vector<1x32xf32>
    %c0_75 = arith.constant 0 : index
    %c0_76 = arith.constant 0 : index
    %154 = vector.load %arg20[%c0_75, %c0_76] : memref<512x128xf32, #tpu.memory_space<vmem>>, vector<512x128xf32>
    %c0_77 = arith.constant 0 : index
    %c0_78 = arith.constant 0 : index
    %155 = vector.load %arg21[%c0_77, %c0_78] : memref<32x32xf32, #tpu.memory_space<vmem>>, vector<32x32xf32>
    %c0_79 = arith.constant 0 : index
    %c0_80 = arith.constant 0 : index
    %156 = vector.load %arg22[%c0_79, %c0_80] : memref<1x32xf32, #tpu.memory_space<vmem>>, vector<1x32xf32>
    %c0_81 = arith.constant 0 : index
    %c0_82 = arith.constant 0 : index
    %157 = vector.load %arg23[%c0_81, %c0_82] : memref<1x32xf32, #tpu.memory_space<vmem>>, vector<1x32xf32>
    %c0_83 = arith.constant 0 : index
    %c0_84 = arith.constant 0 : index
    %158 = vector.load %arg24[%c0_83, %c0_84] : memref<1x32xf32, #tpu.memory_space<vmem>>, vector<1x32xf32>
    %c0_85 = arith.constant 0 : index
    %c0_86 = arith.constant 0 : index
    %159 = vector.load %arg25[%c0_85, %c0_86] : memref<32x128xf32, #tpu.memory_space<vmem>>, vector<32x128xf32>
    %c0_87 = arith.constant 0 : index
    %c0_88 = arith.constant 0 : index
    %160 = vector.load %arg26[%c0_87, %c0_88] : memref<1x128xf32, #tpu.memory_space<vmem>>, vector<1x128xf32>
    %c0_89 = arith.constant 0 : index
    %c0_90 = arith.constant 0 : index
    %161 = vector.load %arg27[%c0_89, %c0_90] : memref<128x32xf32, #tpu.memory_space<vmem>>, vector<128x32xf32>
    %c0_91 = arith.constant 0 : index
    %c0_92 = arith.constant 0 : index
    %162 = vector.load %arg28[%c0_91, %c0_92] : memref<1x32xf32, #tpu.memory_space<vmem>>, vector<1x32xf32>
    %c0_93 = arith.constant 0 : index
    %c0_94 = arith.constant 0 : index
    %163 = vector.load %arg29[%c0_93, %c0_94] : memref<1x32xf32, #tpu.memory_space<vmem>>, vector<1x32xf32>
    %c0_95 = arith.constant 0 : index
    %c0_96 = arith.constant 0 : index
    %164 = vector.load %arg30[%c0_95, %c0_96] : memref<1x32xf32, #tpu.memory_space<vmem>>, vector<1x32xf32>
    %cst_97 = arith.constant dense<0.000000e+00> : vector<128x96xf32>
    %165 = tpu.matmul %150, %151, %cst_97 {dimension_numbers = #tpu.dot_dimension_numbers<[1], [0], [0], [1], [0, 0, 1, 1], [], []>} : vector<128x32xf32>, vector<32x96xf32>, vector<128x96xf32> -> vector<128x96xf32>
    %166 = vector.broadcast %152 : vector<1x96xf32> to vector<128x96xf32>
    %167 = arith.addf %165, %166 : vector<128x96xf32>
    %168 = vector.extract_strided_slice %167 {offsets = [0, 0], sizes = [128, 32], strides = [1, 1]} : vector<128x96xf32> to vector<128x32xf32>
    %169 = vector.extract_strided_slice %167 {offsets = [0, 32], sizes = [128, 32], strides = [1, 1]} : vector<128x96xf32> to vector<128x32xf32>
    %170 = vector.extract_strided_slice %167 {offsets = [0, 64], sizes = [128, 32], strides = [1, 1]} : vector<128x96xf32> to vector<128x32xf32>
    %171 = arith.mulf %168, %168 : vector<128x32xf32>
    %cst_98 = arith.constant dense<0.000000e+00> : vector<128x32xf32>
    %172 = tpu.matmul %171, %1, %cst_98 {dimension_numbers = #tpu.dot_dimension_numbers<[1], [0], [0], [1], [0, 0, 1, 1], [], []>} : vector<128x32xf32>, vector<32x32xf32>, vector<128x32xf32> -> vector<128x32xf32>
    %173 = arith.mulf %169, %169 : vector<128x32xf32>
    %cst_99 = arith.constant dense<0.000000e+00> : vector<128x32xf32>
    %174 = tpu.matmul %173, %1, %cst_99 {dimension_numbers = #tpu.dot_dimension_numbers<[1], [0], [0], [1], [0, 0, 1, 1], [], []>} : vector<128x32xf32>, vector<32x32xf32>, vector<128x32xf32> -> vector<128x32xf32>
    %cst_100 = arith.constant 1.000000e-24 : f32
    %175 = vector.broadcast %cst_100 : f32 to vector<128x32xf32>
    %176 = arith.maximumf %172, %175 : vector<128x32xf32>
    %177 = math.rsqrt %176 : vector<128x32xf32>
    %178 = vector.broadcast %153 : vector<1x32xf32> to vector<128x32xf32>
    %179 = arith.mulf %178, %177 : vector<128x32xf32>
    %180 = arith.mulf %168, %179 : vector<128x32xf32>
    %cst_101 = arith.constant 1.000000e-24 : f32
    %181 = vector.broadcast %cst_101 : f32 to vector<128x32xf32>
    %182 = arith.maximumf %174, %181 : vector<128x32xf32>
    %183 = math.rsqrt %182 : vector<128x32xf32>
    %184 = arith.mulf %169, %183 : vector<128x32xf32>
    %185 = tpu.concatenate %180, %180, %180, %180 in 0 : vector<128x32xf32>, vector<128x32xf32>, vector<128x32xf32>, vector<128x32xf32> -> vector<512x32xf32>
    %186 = arith.mulf %185, %2 : vector<512x32xf32>
    %cst_102 = arith.constant dense<0.000000e+00> : vector<512x128xf32>
    %187 = tpu.matmul %186, %184, %cst_102 {dimension_numbers = #tpu.dot_dimension_numbers<[1], [1], [0], [0], [0, 0, 1, 0], [], []>} : vector<512x32xf32>, vector<128x32xf32>, vector<512x128xf32> -> vector<512x128xf32>
    %188 = arith.addf %187, %154 : vector<512x128xf32>
    %cst_103 = arith.constant dense<0xFF800000> : vector<512xf32>
    %189 = vector.multi_reduction <maximumf>, %188, %cst_103 [1] : vector<512x128xf32> to vector<512xf32>
    %190 = vector.shape_cast %189 : vector<512xf32> to vector<512x1xf32>
    %191 = vector.broadcast %190 : vector<512x1xf32> to vector<512x128xf32>
    %192 = arith.subf %188, %191 : vector<512x128xf32>
    %193 = math.exp %192 : vector<512x128xf32>
    %cst_104 = arith.constant dense<0.000000e+00> : vector<512xf32>
    %194 = vector.multi_reduction <add>, %193, %cst_104 [1] : vector<512x128xf32> to vector<512xf32>
    %195 = vector.shape_cast %194 : vector<512xf32> to vector<512x1xf32>
    %196 = tpu.reciprocal %195 : vector<512x1xf32> -> vector<512x1xf32>
    %197 = vector.broadcast %196 : vector<512x1xf32> to vector<512x128xf32>
    %198 = arith.mulf %193, %197 : vector<512x128xf32>
    %cst_105 = arith.constant dense<0.000000e+00> : vector<512x32xf32>
    %199 = tpu.matmul %198, %170, %cst_105 {dimension_numbers = #tpu.dot_dimension_numbers<[1], [0], [0], [1], [0, 0, 1, 1], [], []>} : vector<512x128xf32>, vector<128x32xf32>, vector<512x32xf32> -> vector<512x32xf32>
    %200 = arith.mulf %199, %2 : vector<512x32xf32>
    %201 = vector.extract_strided_slice %200 {offsets = [0, 0], sizes = [128, 32], strides = [1, 1]} : vector<512x32xf32> to vector<128x32xf32>
    %202 = vector.extract_strided_slice %200 {offsets = [128, 0], sizes = [128, 32], strides = [1, 1]} : vector<512x32xf32> to vector<128x32xf32>
    %203 = arith.addf %201, %202 : vector<128x32xf32>
    %204 = vector.extract_strided_slice %200 {offsets = [256, 0], sizes = [128, 32], strides = [1, 1]} : vector<512x32xf32> to vector<128x32xf32>
    %205 = arith.addf %203, %204 : vector<128x32xf32>
    %206 = vector.extract_strided_slice %200 {offsets = [384, 0], sizes = [128, 32], strides = [1, 1]} : vector<512x32xf32> to vector<128x32xf32>
    %207 = arith.addf %205, %206 : vector<128x32xf32>
    %cst_106 = arith.constant dense<0.000000e+00> : vector<128x32xf32>
    %208 = tpu.matmul %207, %155, %cst_106 {dimension_numbers = #tpu.dot_dimension_numbers<[1], [0], [0], [1], [0, 0, 1, 1], [], []>} : vector<128x32xf32>, vector<32x32xf32>, vector<128x32xf32> -> vector<128x32xf32>
    %209 = vector.broadcast %156 : vector<1x32xf32> to vector<128x32xf32>
    %210 = arith.addf %208, %209 : vector<128x32xf32>
    %cst_107 = arith.constant dense<0.000000e+00> : vector<128xf32>
    %211 = vector.multi_reduction <add>, %210, %cst_107 [1] : vector<128x32xf32> to vector<128xf32>
    %212 = vector.shape_cast %211 : vector<128xf32> to vector<128x1xf32>
    %cst_108 = arith.constant 3.200000e+01 : f32
    %213 = vector.broadcast %cst_108 : f32 to vector<128x1xf32>
    %214 = arith.divf %212, %213 : vector<128x1xf32>
    %215 = vector.broadcast %214 : vector<128x1xf32> to vector<128x32xf32>
    %216 = arith.subf %210, %215 : vector<128x32xf32>
    %217 = arith.mulf %216, %216 : vector<128x32xf32>
    %cst_109 = arith.constant dense<0.000000e+00> : vector<128xf32>
    %218 = vector.multi_reduction <add>, %217, %cst_109 [1] : vector<128x32xf32> to vector<128xf32>
    %219 = vector.shape_cast %218 : vector<128xf32> to vector<128x1xf32>
    %cst_110 = arith.constant 3.200000e+01 : f32
    %220 = vector.broadcast %cst_110 : f32 to vector<128x1xf32>
    %221 = arith.divf %219, %220 : vector<128x1xf32>
    %cst_111 = arith.constant 9.99999974E-6 : f32
    %222 = vector.broadcast %cst_111 : f32 to vector<128x1xf32>
    %223 = arith.addf %221, %222 : vector<128x1xf32>
    %224 = math.rsqrt %223 : vector<128x1xf32>
    %225 = vector.broadcast %224 : vector<128x1xf32> to vector<128x32xf32>
    %226 = arith.mulf %216, %225 : vector<128x32xf32>
    %227 = vector.broadcast %157 : vector<1x32xf32> to vector<128x32xf32>
    %228 = arith.mulf %226, %227 : vector<128x32xf32>
    %229 = arith.addf %150, %228 : vector<128x32xf32>
    %230 = vector.broadcast %158 : vector<1x32xf32> to vector<128x32xf32>
    %231 = arith.addf %229, %230 : vector<128x32xf32>
    %cst_112 = arith.constant dense<0.000000e+00> : vector<128x128xf32>
    %232 = tpu.matmul %231, %159, %cst_112 {dimension_numbers = #tpu.dot_dimension_numbers<[1], [0], [0], [1], [0, 0, 1, 1], [], []>} : vector<128x32xf32>, vector<32x128xf32>, vector<128x128xf32> -> vector<128x128xf32>
    %233 = vector.broadcast %160 : vector<1x128xf32> to vector<128x128xf32>
    %234 = arith.addf %232, %233 : vector<128x128xf32>
    %cst_113 = arith.constant 5.000000e-01 : f32
    %235 = vector.broadcast %cst_113 : f32 to vector<128x128xf32>
    %236 = arith.mulf %235, %234 : vector<128x128xf32>
    %cst_114 = arith.constant 0.707106769 : f32
    %237 = vector.broadcast %cst_114 : f32 to vector<128x128xf32>
    %238 = arith.mulf %234, %237 : vector<128x128xf32>
    %239 = math.absf %238 : vector<128x128xf32>
    %cst_115 = arith.constant 0.327591091 : f32
    %240 = vector.broadcast %cst_115 : f32 to vector<128x128xf32>
    %241 = arith.mulf %240, %239 : vector<128x128xf32>
    %cst_116 = arith.constant 1.000000e+00 : f32
    %242 = vector.broadcast %cst_116 : f32 to vector<128x128xf32>
    %243 = arith.addf %242, %241 : vector<128x128xf32>
    %cst_117 = arith.constant 1.000000e+00 : f32
    %244 = vector.broadcast %cst_117 : f32 to vector<128x128xf32>
    %245 = arith.divf %244, %243 : vector<128x128xf32>
    %cst_118 = arith.constant 1.06140542 : f32
    %246 = vector.broadcast %cst_118 : f32 to vector<128x128xf32>
    %247 = arith.mulf %245, %246 : vector<128x128xf32>
    %cst_119 = arith.constant -1.45315206 : f32
    %248 = vector.broadcast %cst_119 : f32 to vector<128x128xf32>
    %249 = arith.addf %248, %247 : vector<128x128xf32>
    %250 = arith.mulf %245, %249 : vector<128x128xf32>
    %cst_120 = arith.constant 1.42141378 : f32
    %251 = vector.broadcast %cst_120 : f32 to vector<128x128xf32>
    %252 = arith.addf %251, %250 : vector<128x128xf32>
    %253 = arith.mulf %245, %252 : vector<128x128xf32>
    %cst_121 = arith.constant -0.284496725 : f32
    %254 = vector.broadcast %cst_121 : f32 to vector<128x128xf32>
    %255 = arith.addf %254, %253 : vector<128x128xf32>
    %256 = arith.mulf %245, %255 : vector<128x128xf32>
    %cst_122 = arith.constant 0.254829586 : f32
    %257 = vector.broadcast %cst_122 : f32 to vector<128x128xf32>
    %258 = arith.addf %257, %256 : vector<128x128xf32>
    %259 = arith.mulf %245, %258 : vector<128x128xf32>
    %cst_123 = arith.constant 0.000000e+00 : f32
    %260 = vector.broadcast %cst_123 : f32 to vector<128x128xf32>
    %261 = arith.subf %260, %239 : vector<128x128xf32>
    %262 = arith.mulf %261, %239 : vector<128x128xf32>
    %263 = math.exp %262 : vector<128x128xf32>
    %264 = arith.mulf %259, %263 : vector<128x128xf32>
    %cst_124 = arith.constant 1.000000e+00 : f32
    %265 = vector.broadcast %cst_124 : f32 to vector<128x128xf32>
    %266 = arith.subf %265, %264 : vector<128x128xf32>
    %cst_125 = arith.constant 0.000000e+00 : f32
    %267 = vector.broadcast %cst_125 : f32 to vector<128x128xf32>
    %268 = arith.cmpf olt, %238, %267 : vector<128x128xf32>
    %cst_126 = arith.constant 0.000000e+00 : f32
    %269 = vector.broadcast %cst_126 : f32 to vector<128x128xf32>
    %270 = arith.subf %269, %266 : vector<128x128xf32>
    %271 = arith.select %268, %270, %266 : vector<128x128xi1>, vector<128x128xf32>
    %cst_127 = arith.constant 1.000000e+00 : f32
    %272 = vector.broadcast %cst_127 : f32 to vector<128x128xf32>
    %273 = arith.addf %272, %271 : vector<128x128xf32>
    %274 = arith.mulf %236, %273 : vector<128x128xf32>
    %cst_128 = arith.constant dense<0.000000e+00> : vector<128x32xf32>
    %275 = tpu.matmul %274, %161, %cst_128 {dimension_numbers = #tpu.dot_dimension_numbers<[1], [0], [0], [1], [0, 0, 1, 1], [], []>} : vector<128x128xf32>, vector<128x32xf32>, vector<128x32xf32> -> vector<128x32xf32>
    %276 = vector.broadcast %162 : vector<1x32xf32> to vector<128x32xf32>
    %277 = arith.addf %275, %276 : vector<128x32xf32>
    %cst_129 = arith.constant dense<0.000000e+00> : vector<128xf32>
    %278 = vector.multi_reduction <add>, %277, %cst_129 [1] : vector<128x32xf32> to vector<128xf32>
    %279 = vector.shape_cast %278 : vector<128xf32> to vector<128x1xf32>
    %cst_130 = arith.constant 3.200000e+01 : f32
    %280 = vector.broadcast %cst_130 : f32 to vector<128x1xf32>
    %281 = arith.divf %279, %280 : vector<128x1xf32>
    %282 = vector.broadcast %281 : vector<128x1xf32> to vector<128x32xf32>
    %283 = arith.subf %277, %282 : vector<128x32xf32>
    %284 = arith.mulf %283, %283 : vector<128x32xf32>
    %cst_131 = arith.constant dense<0.000000e+00> : vector<128xf32>
    %285 = vector.multi_reduction <add>, %284, %cst_131 [1] : vector<128x32xf32> to vector<128xf32>
    %286 = vector.shape_cast %285 : vector<128xf32> to vector<128x1xf32>
    %cst_132 = arith.constant 3.200000e+01 : f32
    %287 = vector.broadcast %cst_132 : f32 to vector<128x1xf32>
    %288 = arith.divf %286, %287 : vector<128x1xf32>
    %cst_133 = arith.constant 9.99999974E-6 : f32
    %289 = vector.broadcast %cst_133 : f32 to vector<128x1xf32>
    %290 = arith.addf %288, %289 : vector<128x1xf32>
    %291 = math.rsqrt %290 : vector<128x1xf32>
    %292 = vector.broadcast %291 : vector<128x1xf32> to vector<128x32xf32>
    %293 = arith.mulf %283, %292 : vector<128x32xf32>
    %294 = vector.broadcast %163 : vector<1x32xf32> to vector<128x32xf32>
    %295 = arith.mulf %293, %294 : vector<128x32xf32>
    %296 = arith.addf %231, %295 : vector<128x32xf32>
    %297 = vector.broadcast %164 : vector<1x32xf32> to vector<128x32xf32>
    %298 = arith.addf %296, %297 : vector<128x32xf32>
    %c0_134 = arith.constant 0 : index
    %c0_135 = arith.constant 0 : index
    %299 = vector.load %arg31[%c0_134, %c0_135] : memref<128x32xf32, #tpu.memory_space<vmem>>, vector<128x32xf32>
    tpu.vector_store %arg31[%c0_134, %c0_135], %298 {strides = array<i32>} : memref<128x32xf32, #tpu.memory_space<vmem>>, vector<128x32xf32>,
    return
  }
}

</mosaic_0001>

<llo_original>
// kernel: fwd.1
$region0: #{fwd.1}
  #allocation0 [shape = 'u32[]', space=smem, size = 0x4, offset = 0x4, fixed_abs, tag = 'smem constant byte address 0x4 - core index']
  #allocation1 [shape = 'u32[72,128]{1,0:T(1,128)}', space=vmem, size = 0x9000, scoped, tag = 'internal scratch']
  %s0 = inlined_call_operand.smem [shape: u32[32], index: -1, kind: input, shape index: {}]
  %s1 = sld [smem:[%s0]]
  %s2 = scalar_lea.smem %s0, 1
  %s3 = sld [smem:[%s2]]
  %s4 = scalar_lea.smem %s0, 2
  %s5 = sld [smem:[%s4]]
  %s6 = scalar_lea.smem %s0, 3
  %s7 = sld [smem:[%s6]]
  %s8 = scalar_lea.smem %s0, 4
  %s9 = sld [smem:[%s8]]
  %s10 = scalar_lea.smem %s0, 5
  %s11 = sld [smem:[%s10]]
  %s12 = scalar_lea.smem %s0, 6
  %s13 = sld [smem:[%s12]]
  %s14 = scalar_lea.smem %s0, 7
  %s15 = sld [smem:[%s14]]
  %s16 = scalar_lea.smem %s0, 8
  %s17 = sld [smem:[%s16]]
  %s18 = scalar_lea.smem %s0, 9
  %s19 = sld [smem:[%s18]]
  %s20 = scalar_lea.smem %s0, 10
  %s21 = sld [smem:[%s20]]
  %s22 = scalar_lea.smem %s0, 11
  %s23 = sld [smem:[%s22]]
  %s24 = scalar_lea.smem %s0, 12
  %s25 = sld [smem:[%s24]]
  %s26 = scalar_lea.smem %s0, 13
  %s27 = sld [smem:[%s26]]
  %s28 = scalar_lea.smem %s0, 14
  %s29 = sld [smem:[%s28]]
  %s30 = scalar_lea.smem %s0, 15
  %s31 = sld [smem:[%s30]]
  %s32 = scalar_lea.smem %s0, 16
  %s33 = sld [smem:[%s32]]
  %s34 = scalar_lea.smem %s0, 17
  %s35 = sld [smem:[%s34]]
  %s36 = scalar_lea.smem %s0, 18
  %s37 = sld [smem:[%s36]]
  %s38 = scalar_lea.smem %s0, 19
  %s39 = sld [smem:[%s38]]
  %s40 = scalar_lea.smem %s0, 20
  %s41 = sld [smem:[%s40]]
  %s42 = scalar_lea.smem %s0, 21
  %s43 = sld [smem:[%s42]]
  %s44 = scalar_lea.smem %s0, 22
  %s45 = sld [smem:[%s44]]
  %s46 = scalar_lea.smem %s0, 23
  %s47 = sld [smem:[%s46]]
  %s48 = scalar_lea.smem %s0, 24
  %s49 = sld [smem:[%s48]]
  %s50 = scalar_lea.smem %s0, 25
  %s51 = sld [smem:[%s50]]
  %s52 = scalar_lea.smem %s0, 26
  %s53 = sld [smem:[%s52]]
  %s54 = scalar_lea.smem %s0, 27
  %s55 = sld [smem:[%s54]]
  %s56 = scalar_lea.smem %s0, 28
  %s57 = sld [smem:[%s56]]
  %s58 = scalar_lea.smem %s0, 29
  %s59 = sld [smem:[%s58]]
  %s60 = scalar_lea.smem %s0, 30
  %s61 = sld [smem:[%s60]]
  %s62 = scalar_lea.smem %s0, 31
  %s63 = sld [smem:[%s62]]
  %s64 = sld [smem:[#allocation0]]
  $region138: #{fwd.1} parent=0
    _
  %s66 = ssub.s32 1, %s64
  %s67 = scalar_select 0, %s66, %s64
  $region1: #{fwd.1} parent=0
    #allocation2 [shape = 'u8[262144]{0}', space=vmem, size = 0x40000, scoped, tag = 'input window, operand 20, single buffered']
    #allocation3 [shape = 's32[1]{0}', space=sflag, size = 0x4, scoped, tag = 'scoped memory for fwd.1']
    %68 = vsyncpa [#allocation3], 0
    // Predicated region
    $region2: #{fwd.1} parent=1 // pred_check
      _
    $region3: #{fwd.1} parent=1 // pred_check_branch
      %70 = sbr.rel (0) target = $region5
    $region4: #{fwd.1} parent=1 // pred_region
      _
    $region5: #{fwd.1} parent=1 // pred_fallthru
      _
    // Predicated region
    $region6: #{fwd.1} parent=1 // pred_check
      _
    $region7: #{fwd.1} parent=1 // pred_check_branch
      %72 = sbr.rel (0) target = $region9
    $region8: #{fwd.1} parent=1 // pred_region
      _
    $region9: #{fwd.1} parent=1 // pred_fallthru
      _
    // Predicated region
    $region10: #{fwd.1} parent=1 // pred_check
      _
    $region11: #{fwd.1} parent=1 // pred_check_branch
      %74 = sbr.rel (0) target = $region13
    $region12: #{fwd.1} parent=1 // pred_region
      _
    $region13: #{fwd.1} parent=1 // pred_fallthru
      _
    // Predicated region
    $region14: #{fwd.1} parent=1 // pred_check
      _
    $region15: #{fwd.1} parent=1 // pred_check_branch
      %76 = sbr.rel (0) target = $region17
    $region16: #{fwd.1} parent=1 // pred_region
      _
    $region17: #{fwd.1} parent=1 // pred_fallthru
      _
    // Predicated region
    $region18: #{fwd.1} parent=1 // pred_check
      _
    $region19: #{fwd.1} parent=1 // pred_check_branch
      %78 = sbr.rel (0) target = $region21
    $region20: #{fwd.1} parent=1 // pred_region
      _
    $region21: #{fwd.1} parent=1 // pred_fallthru
      _
    // Predicated region
    $region22: #{fwd.1} parent=1 // pred_check
      _
    $region23: #{fwd.1} parent=1 // pred_check_branch
      %80 = sbr.rel (0) target = $region25
    $region24: #{fwd.1} parent=1 // pred_region
      _
    $region25: #{fwd.1} parent=1 // pred_fallthru
      _
    // Predicated region
    $region26: #{fwd.1} parent=1 // pred_check
      _
    $region27: #{fwd.1} parent=1 // pred_check_branch
      %82 = sbr.rel (0) target = $region29
    $region28: #{fwd.1} parent=1 // pred_region
      _
    $region29: #{fwd.1} parent=1 // pred_fallthru
      _
    // Predicated region
    $region30: #{fwd.1} parent=1 // pred_check
      _
    $region31: #{fwd.1} parent=1 // pred_check_branch
      %84 = sbr.rel (0) target = $region33
    $region32: #{fwd.1} parent=1 // pred_region
      _
    $region33: #{fwd.1} parent=1 // pred_fallthru
      _
    // Predicated region
    $region34: #{fwd.1} parent=1 // pred_check
      _
    $region35: #{fwd.1} parent=1 // pred_check_branch
      %86 = sbr.rel (0) target = $region37
    $region36: #{fwd.1} parent=1 // pred_region
      _
    $region37: #{fwd.1} parent=1 // pred_fallthru
      _
    // Predicated region
    $region38: #{fwd.1} parent=1 // pred_check
      _
    $region39: #{fwd.1} parent=1 // pred_check_branch
      %88 = sbr.rel (0) target = $region41
    $region40: #{fwd.1} parent=1 // pred_region
      _
    $region41: #{fwd.1} parent=1 // pred_fallthru
      _
    // Predicated region
    $region42: #{fwd.1} parent=1 // pred_check
      _
    $region43: #{fwd.1} parent=1 // pred_check_branch
      %90 = sbr.rel (0) target = $region45
    $region44: #{fwd.1} parent=1 // pred_region
      _
    $region45: #{fwd.1} parent=1 // pred_fallthru
      _
    // Predicated region
    $region46: #{fwd.1} parent=1 // pred_check
      _
    $region47: #{fwd.1} parent=1 // pred_check_branch
      %92 = sbr.rel (0) target = $region49
    $region48: #{fwd.1} parent=1 // pred_region
      _
    $region49: #{fwd.1} parent=1 // pred_fallthru
      _
    // Predicated region
    $region50: #{fwd.1} parent=1 // pred_check
      _
    $region51: #{fwd.1} parent=1 // pred_check_branch
      %94 = sbr.rel (0) target = $region53
    $region52: #{fwd.1} parent=1 // pred_region
      _
    $region53: #{fwd.1} parent=1 // pred_fallthru
      _
    // Predicated region
    $region54: #{fwd.1} parent=1 // pred_check
      _
    $region55: #{fwd.1} parent=1 // pred_check_branch
      %96 = sbr.rel (0) target = $region57
    $region56: #{fwd.1} parent=1 // pred_region
      _
    $region57: #{fwd.1} parent=1 // pred_fallthru
      _
    // Predicated region
    $region58: #{fwd.1} parent=1 // pred_check
      _
    $region59: #{fwd.1} parent=1 // pred_check_branch
      %98 = sbr.rel (0) target = $region61
    $region60: #{fwd.1} parent=1 // pred_region
      _
    $region61: #{fwd.1} parent=1 // pred_fallthru
      _
    // Predicated region
    $region62: #{fwd.1} parent=1 // pred_check
      _
    $region63: #{fwd.1} parent=1 // pred_check_branch
      %100 = sbr.rel (0) target = $region65
    $region64: #{fwd.1} parent=1 // pred_region
      _
    $region65: #{fwd.1} parent=1 // pred_fallthru
      _
    // Predicated region
    $region66: #{fwd.1} parent=1 // pred_check
      _
    $region67: #{fwd.1} parent=1 // pred_check_branch
      %102 = sbr.rel (0) target = $region69
    $region68: #{fwd.1} parent=1 // pred_region
      _
    $region69: #{fwd.1} parent=1 // pred_fallthru
      _
    // Predicated region
    $region70: #{fwd.1} parent=1 // pred_check
      _
    $region71: #{fwd.1} parent=1 // pred_check_branch
      %104 = sbr.rel (0) target = $region73
    $region72: #{fwd.1} parent=1 // pred_region
      _
    $region73: #{fwd.1} parent=1 // pred_fallthru
      _
    // Predicated region
    $region74: #{fwd.1} parent=1 // pred_check
      _
    $region75: #{fwd.1} parent=1 // pred_check_branch
      %106 = sbr.rel (0) target = $region77
    $region76: #{fwd.1} parent=1 // pred_region
      _
    $region77: #{fwd.1} parent=1 // pred_fallthru
      _
    // Predicated region
    $region78: #{fwd.1} parent=1 // pred_check
      _
    $region79: #{fwd.1} parent=1 // pred_check_branch
      %108 = sbr.rel (0) target = $region81
    $region80: #{fwd.1} parent=1 // pred_region
      _
    $region81: #{fwd.1} parent=1 // pred_fallthru
      _
    // Predicated region
    $region82: #{fwd.1} parent=1 // pred_check
      _
    $region83: #{fwd.1} parent=1 // pred_check_branch
      %110 = sbr.rel (0) target = $region85
    $region84: #{fwd.1} parent=1 // pred_region
      %112 = vsyncadd [#allocation3], 0
      %s113 = sshll.u32 %s41, 4
      %s114 = int_to_ptr.hbm [resolvable:$true] %s113
      %s115 = sshll.u32 [#allocation2], 4
      %s116 = int_to_ptr.vmem [resolvable:$true] %s115
      %121 = dma.hbm_to_vmem [thread:$0]  %s114, 8192, %s116, [#allocation3], 128, 128, 8
    $region85: #{fwd.1} parent=1 // pred_fallthru
      _
    // Predicated region
    $region86: #{fwd.1} parent=1 // pred_check
      _
    $region87: #{fwd.1} parent=1 // pred_check_branch
      %123 = sbr.rel (0) target = $region89
    $region88: #{fwd.1} parent=1 // pred_region
      _
    $region89: #{fwd.1} parent=1 // pred_fallthru
      _
    // Predicated region
    $region90: #{fwd.1} parent=1 // pred_check
      _
    $region91: #{fwd.1} parent=1 // pred_check_branch
      %125 = sbr.rel (0) target = $region93
    $region92: #{fwd.1} parent=1 // pred_region
      _
    $region93: #{fwd.1} parent=1 // pred_fallthru
      _
    // Predicated region
    $region94: #{fwd.1} parent=1 // pred_check
      _
    $region95: #{fwd.1} parent=1 // pred_check_branch
      %127 = sbr.rel (0) target = $region97
    $region96: #{fwd.1} parent=1 // pred_region
      _
    $region97: #{fwd.1} parent=1 // pred_fallthru
      _
    // Predicated region
    $region98: #{fwd.1} parent=1 // pred_check
      _
    $region99: #{fwd.1} parent=1 // pred_check_branch
      %129 = sbr.rel (0) target = $region101
    $region100: #{fwd.1} parent=1 // pred_region
      _
    $region101: #{fwd.1} parent=1 // pred_fallthru
      _
    // Predicated region
    $region102: #{fwd.1} parent=1 // pred_check
      _
    $region103: #{fwd.1} parent=1 // pred_check_branch
      %131 = sbr.rel (0) target = $region105
    $region104: #{fwd.1} parent=1 // pred_region
      _
    $region105: #{fwd.1} parent=1 // pred_fallthru
      _
    // Predicated region
    $region106: #{fwd.1} parent=1 // pred_check
      _
    $region107: #{fwd.1} parent=1 // pred_check_branch
      %133 = sbr.rel (0) target = $region109
    $region108: #{fwd.1} parent=1 // pred_region
      _
    $region109: #{fwd.1} parent=1 // pred_fallthru
      _
    // Predicated region
    $region110: #{fwd.1} parent=1 // pred_check
      _
    $region111: #{fwd.1} parent=1 // pred_check_branch
      %135 = sbr.rel (0) target = $region113
    $region112: #{fwd.1} parent=1 // pred_region
      _
    $region113: #{fwd.1} parent=1 // pred_fallthru
      _
    // Predicated region
    $region114: #{fwd.1} parent=1 // pred_check
      _
    $region115: #{fwd.1} parent=1 // pred_check_branch
      %137 = sbr.rel (0) target = $region117
    $region116: #{fwd.1} parent=1 // pred_region
      _
    $region117: #{fwd.1} parent=1 // pred_fallthru
      _
    // Predicated region
    $region118: #{fwd.1} parent=1 // pred_check
      _
    $region119: #{fwd.1} parent=1 // pred_check_branch
      %139 = sbr.rel (0) target = $region121
    $region120: #{fwd.1} parent=1 // pred_region
      _
    $region121: #{fwd.1} parent=1 // pred_fallthru
      _
    // Predicated region
    $region122: #{fwd.1} parent=1 // pred_check
      _
    $region123: #{fwd.1} parent=1 // pred_check_branch
      %141 = sbr.rel (0) target = $region125
    $region124: #{fwd.1} parent=1 // pred_region
      _
    $region125: #{fwd.1} parent=1 // pred_fallthru
      _
    // Predicated region
    $region126: #{fwd.1} parent=1 // pred_check
      _
    $region127: #{fwd.1} parent=1 // pred_check_branch
      %143 = sbr.rel (0) target = $region129
    $region128: #{fwd.1} parent=1 // pred_region
      %145 = dma.done [#allocation3], 8192
    $region129: #{fwd.1} parent=1 // pred_fallthru
      _
    %v146 = vld [vmem:[%s1] sm:$0xff]
    %v147 = vld [vmem:[%s1 + $0x8] sm:$0xff]
    %v148 = vld [vmem:[%s1 + $0x10] sm:$0xff]
    %v149 = vld [vmem:[%s1 + $0x18] sm:$0xff]
    %v150 = vld [vmem:[%s1 + $0x20] sm:$0xff]
    %v151 = vld [vmem:[%s1 + $0x28] sm:$0xff]
    %v152 = vld [vmem:[%s1 + $0x30] sm:$0xff]
    %v153 = vld [vmem:[%s1 + $0x38] sm:$0xff]
    %v154 = vld [vmem:[%s1 + $0x40] sm:$0xff]
    %v155 = vld [vmem:[%s1 + $0x48] sm:$0xff]
    %v156 = vld [vmem:[%s1 + $0x50] sm:$0xff]
    %v157 = vld [vmem:[%s1 + $0x58] sm:$0xff]
    %v158 = vld [vmem:[%s1 + $0x60] sm:$0xff]
    %v159 = vld [vmem:[%s1 + $0x68] sm:$0xff]
    %v160 = vld [vmem:[%s1 + $0x70] sm:$0xff]
    %v161 = vld [vmem:[%s1 + $0x78] sm:$0xff]
    %v162 = vld [vmem:[%s3] sm:$0xff]
    %v163 = vld [vmem:[%s3 + $0x8] sm:$0xff]
    %v164 = vld [vmem:[%s3 + $0x10] sm:$0xff]
    %v165 = vld [vmem:[%s3 + $0x18] sm:$0xff]
    %v166 = vld [vmem:[%s5] sm:$0xff]
    %v167 = vld [vmem:[%s5 + $0x8] sm:$0xff]
    %v168 = vld [vmem:[%s5 + $0x10] sm:$0xff]
    %v169 = vld [vmem:[%s5 + $0x18] sm:$0xff]
    %v170 = vld [vmem:[%s5 + $0x20] sm:$0xff]
    %v171 = vld [vmem:[%s5 + $0x28] sm:$0xff]
    %v172 = vld [vmem:[%s5 + $0x30] sm:$0xff]
    %v173 = vld [vmem:[%s5 + $0x38] sm:$0xff]
    %v174 = vld [vmem:[%s5 + $0x40] sm:$0xff]
    %v175 = vld [vmem:[%s5 + $0x48] sm:$0xff]
    %v176 = vld [vmem:[%s5 + $0x50] sm:$0xff]
    %v177 = vld [vmem:[%s5 + $0x58] sm:$0xff]
    %v178 = vld [vmem:[%s5 + $0x60] sm:$0xff]
    %v179 = vld [vmem:[%s5 + $0x68] sm:$0xff]
    %v180 = vld [vmem:[%s5 + $0x70] sm:$0xff]
    %v181 = vld [vmem:[%s5 + $0x78] sm:$0xff]
    %v182 = vld [vmem:[%s5 + $0x80] sm:$0xff]
    %v183 = vld [vmem:[%s5 + $0x88] sm:$0xff]
    %v184 = vld [vmem:[%s5 + $0x90] sm:$0xff]
    %v185 = vld [vmem:[%s5 + $0x98] sm:$0xff]
    %v186 = vld [vmem:[%s5 + $0xa0] sm:$0xff]
    %v187 = vld [vmem:[%s5 + $0xa8] sm:$0xff]
    %v188 = vld [vmem:[%s5 + $0xb0] sm:$0xff]
    %v189 = vld [vmem:[%s5 + $0xb8] sm:$0xff]
    %v190 = vld [vmem:[%s5 + $0xc0] sm:$0xff]
    %v191 = vld [vmem:[%s5 + $0xc8] sm:$0xff]
    %v192 = vld [vmem:[%s5 + $0xd0] sm:$0xff]
    %v193 = vld [vmem:[%s5 + $0xd8] sm:$0xff]
    %v194 = vld [vmem:[%s5 + $0xe0] sm:$0xff]
    %v195 = vld [vmem:[%s5 + $0xe8] sm:$0xff]
    %v196 = vld [vmem:[%s5 + $0xf0] sm:$0xff]
    %v197 = vld [vmem:[%s5 + $0xf8] sm:$0xff]
    %v198 = vld [vmem:[%s5 + $0x100] sm:$0xff]
    %v199 = vld [vmem:[%s5 + $0x108] sm:$0xff]
    %v200 = vld [vmem:[%s5 + $0x110] sm:$0xff]
    %v201 = vld [vmem:[%s5 + $0x118] sm:$0xff]
    %v202 = vld [vmem:[%s5 + $0x120] sm:$0xff]
    %v203 = vld [vmem:[%s5 + $0x128] sm:$0xff]
    %v204 = vld [vmem:[%s5 + $0x130] sm:$0xff]
    %v205 = vld [vmem:[%s5 + $0x138] sm:$0xff]
    %v206 = vld [vmem:[%s5 + $0x140] sm:$0xff]
    %v207 = vld [vmem:[%s5 + $0x148] sm:$0xff]
    %v208 = vld [vmem:[%s5 + $0x150] sm:$0xff]
    %v209 = vld [vmem:[%s5 + $0x158] sm:$0xff]
    %v210 = vld [vmem:[%s5 + $0x160] sm:$0xff]
    %v211 = vld [vmem:[%s5 + $0x168] sm:$0xff]
    %v212 = vld [vmem:[%s5 + $0x170] sm:$0xff]
    %v213 = vld [vmem:[%s5 + $0x178] sm:$0xff]
    %v214 = vld [vmem:[%s5 + $0x180] sm:$0xff]
    %v215 = vld [vmem:[%s5 + $0x188] sm:$0xff]
    %v216 = vld [vmem:[%s5 + $0x190] sm:$0xff]
    %v217 = vld [vmem:[%s5 + $0x198] sm:$0xff]
    %v218 = vld [vmem:[%s5 + $0x1a0] sm:$0xff]
    %v219 = vld [vmem:[%s5 + $0x1a8] sm:$0xff]
    %v220 = vld [vmem:[%s5 + $0x1b0] sm:$0xff]
    %v221 = vld [vmem:[%s5 + $0x1b8] sm:$0xff]
    %v222 = vld [vmem:[%s5 + $0x1c0] sm:$0xff]
    %v223 = vld [vmem:[%s5 + $0x1c8] sm:$0xff]
    %v224 = vld [vmem:[%s5 + $0x1d0] sm:$0xff]
    %v225 = vld [vmem:[%s5 + $0x1d8] sm:$0xff]
    %v226 = vld [vmem:[%s5 + $0x1e0] sm:$0xff]
    %v227 = vld [vmem:[%s5 + $0x1e8] sm:$0xff]
    %v228 = vld [vmem:[%s5 + $0x1f0] sm:$0xff]
    %v229 = vld [vmem:[%s5 + $0x1f8] sm:$0xff]
    %v230 = vld [vmem:[%s7] sm:$0xff]
    %v231 = vld [vmem:[%s7 + $0x8] sm:$0xff]
    %v232 = vld [vmem:[%s7 + $0x10] sm:$0xff]
    %v233 = vld [vmem:[%s7 + $0x18] sm:$0xff]
    %v234 = vld [vmem:[%s9] sm:$0x1]
    %v235 = vld [vmem:[%s11] sm:$0x1]
    %v236 = vld [vmem:[%s13] sm:$0xff]
    %v237 = vld [vmem:[%s13 + $0x8] sm:$0xff]
    %v238 = vld [vmem:[%s13 + $0x10] sm:$0xff]
    %v239 = vld [vmem:[%s13 + $0x18] sm:$0xff]
    %v240 = vld [vmem:[%s13 + $0x20] sm:$0xff]
    %v241 = vld [vmem:[%s13 + $0x28] sm:$0xff]
    %v242 = vld [vmem:[%s13 + $0x30] sm:$0xff]
    %v243 = vld [vmem:[%s13 + $0x38] sm:$0xff]
    %v244 = vld [vmem:[%s13 + $0x40] sm:$0xff]
    %v245 = vld [vmem:[%s13 + $0x48] sm:$0xff]
    %v246 = vld [vmem:[%s13 + $0x50] sm:$0xff]
    %v247 = vld [vmem:[%s13 + $0x58] sm:$0xff]
    %v248 = vld [vmem:[%s13 + $0x60] sm:$0xff]
    %v249 = vld [vmem:[%s13 + $0x68] sm:$0xff]
    %v250 = vld [vmem:[%s13 + $0x70] sm:$0xff]
    %v251 = vld [vmem:[%s13 + $0x78] sm:$0xff]
    %v252 = vld [vmem:[%s13 + $0x80] sm:$0xff]
    %v253 = vld [vmem:[%s13 + $0x88] sm:$0xff]
    %v254 = vld [vmem:[%s13 + $0x90] sm:$0xff]
    %v255 = vld [vmem:[%s13 + $0x98] sm:$0xff]
    %v256 = vld [vmem:[%s13 + $0xa0] sm:$0xff]
    %v257 = vld [vmem:[%s13 + $0xa8] sm:$0xff]
    %v258 = vld [vmem:[%s13 + $0xb0] sm:$0xff]
    %v259 = vld [vmem:[%s13 + $0xb8] sm:$0xff]
    %v260 = vld [vmem:[%s13 + $0xc0] sm:$0xff]
    %v261 = vld [vmem:[%s13 + $0xc8] sm:$0xff]
    %v262 = vld [vmem:[%s13 + $0xd0] sm:$0xff]
    %v263 = vld [vmem:[%s13 + $0xd8] sm:$0xff]
    %v264 = vld [vmem:[%s13 + $0xe0] sm:$0xff]
    %v265 = vld [vmem:[%s13 + $0xe8] sm:$0xff]
    %v266 = vld [vmem:[%s13 + $0xf0] sm:$0xff]
    %v267 = vld [vmem:[%s13 + $0xf8] sm:$0xff]
    %v268 = vld [vmem:[%s13 + $0x100] sm:$0xff]
    %v269 = vld [vmem:[%s13 + $0x108] sm:$0xff]
    %v270 = vld [vmem:[%s13 + $0x110] sm:$0xff]
    %v271 = vld [vmem:[%s13 + $0x118] sm:$0xff]
    %v272 = vld [vmem:[%s13 + $0x120] sm:$0xff]
    %v273 = vld [vmem:[%s13 + $0x128] sm:$0xff]
    %v274 = vld [vmem:[%s13 + $0x130] sm:$0xff]
    %v275 = vld [vmem:[%s13 + $0x138] sm:$0xff]
    %v276 = vld [vmem:[%s13 + $0x140] sm:$0xff]
    %v277 = vld [vmem:[%s13 + $0x148] sm:$0xff]
    %v278 = vld [vmem:[%s13 + $0x150] sm:$0xff]
    %v279 = vld [vmem:[%s13 + $0x158] sm:$0xff]
    %v280 = vld [vmem:[%s13 + $0x160] sm:$0xff]
    %v281 = vld [vmem:[%s13 + $0x168] sm:$0xff]
    %v282 = vld [vmem:[%s13 + $0x170] sm:$0xff]
    %v283 = vld [vmem:[%s13 + $0x178] sm:$0xff]
    %v284 = vld [vmem:[%s13 + $0x180] sm:$0xff]
    %v285 = vld [vmem:[%s13 + $0x188] sm:$0xff]
    %v286 = vld [vmem:[%s13 + $0x190] sm:$0xff]
    %v287 = vld [vmem:[%s13 + $0x198] sm:$0xff]
    %v288 = vld [vmem:[%s13 + $0x1a0] sm:$0xff]
    %v289 = vld [vmem:[%s13 + $0x1a8] sm:$0xff]
    %v290 = vld [vmem:[%s13 + $0x1b0] sm:$0xff]
    %v291 = vld [vmem:[%s13 + $0x1b8] sm:$0xff]
    %v292 = vld [vmem:[%s13 + $0x1c0] sm:$0xff]
    %v293 = vld [vmem:[%s13 + $0x1c8] sm:$0xff]
    %v294 = vld [vmem:[%s13 + $0x1d0] sm:$0xff]
    %v295 = vld [vmem:[%s13 + $0x1d8] sm:$0xff]
    %v296 = vld [vmem:[%s13 + $0x1e0] sm:$0xff]
    %v297 = vld [vmem:[%s13 + $0x1e8] sm:$0xff]
    %v298 = vld [vmem:[%s13 + $0x1f0] sm:$0xff]
    %v299 = vld [vmem:[%s13 + $0x1f8] sm:$0xff]
    %v300 = vld [vmem:[%s15] sm:$0xff]
    %v301 = vld [vmem:[%s15 + $0x8] sm:$0xff]
    %v302 = vld [vmem:[%s15 + $0x10] sm:$0xff]
    %v303 = vld [vmem:[%s15 + $0x18] sm:$0xff]
    %v304 = vld [vmem:[%s17] sm:$0x1]
    %v305 = vld [vmem:[%s19] sm:$0x1]
    %v306 = vld [vmem:[%s21] sm:$0x1]
    %v307 = vld [vmem:[%s23] sm:$0xff]
    %v308 = vld [vmem:[%s23 + $0x8] sm:$0xff]
    %v309 = vld [vmem:[%s23 + $0x10] sm:$0xff]
    %v310 = vld [vmem:[%s23 + $0x18] sm:$0xff]
    %v311 = vld [vmem:[%s25] sm:$0x1]
    %v312 = vld [vmem:[%s27] sm:$0xff]
    %v313 = vld [vmem:[%s27 + $0x8] sm:$0xff]
    %v314 = vld [vmem:[%s27 + $0x10] sm:$0xff]
    %v315 = vld [vmem:[%s27 + $0x18] sm:$0xff]
    %v316 = vld [vmem:[%s27 + $0x20] sm:$0xff]
    %v317 = vld [vmem:[%s27 + $0x28] sm:$0xff]
    %v318 = vld [vmem:[%s27 + $0x30] sm:$0xff]
    %v319 = vld [vmem:[%s27 + $0x38] sm:$0xff]
    %v320 = vld [vmem:[%s27 + $0x40] sm:$0xff]
    %v321 = vld [vmem:[%s27 + $0x48] sm:$0xff]
    %v322 = vld [vmem:[%s27 + $0x50] sm:$0xff]
    %v323 = vld [vmem:[%s27 + $0x58] sm:$0xff]
    %v324 = vld [vmem:[%s27 + $0x60] sm:$0xff]
    %v325 = vld [vmem:[%s27 + $0x68] sm:$0xff]
    %v326 = vld [vmem:[%s27 + $0x70] sm:$0xff]
    %v327 = vld [vmem:[%s27 + $0x78] sm:$0xff]
    %v328 = vld [vmem:[%s29] sm:$0x1]
    %v329 = vld [vmem:[%s31] sm:$0x1]
    %v330 = vld [vmem:[%s33] sm:$0x1]
    %v332 = vperm.slane %v234, 0
    %vm334 = vcmask 261120
    %v336 = vsel %vm334, %v146, 0
    %v339 = vsel %vm334, %v147, 0
    %v342 = vsel %vm334, %v148, 0
    %v345 = vsel %vm334, %v149, 0
    %v348 = vsel %vm334, %v150, 0
    %v351 = vsel %vm334, %v151, 0
    %v354 = vsel %vm334, %v152, 0
    %v357 = vsel %vm334, %v153, 0
    %v360 = vsel %vm334, %v154, 0
    %v363 = vsel %vm334, %v155, 0
    %v366 = vsel %vm334, %v156, 0
    %v369 = vsel %vm334, %v157, 0
    %v372 = vsel %vm334, %v158, 0
    %v375 = vsel %vm334, %v159, 0
    %v378 = vsel %vm334, %v160, 0
    %v381 = vsel %vm334, %v161, 0
    %383 = vmatpush.msra.mxu0 0.0
    %384 = vmatpush.msra.mxu0 0.0
    %385 = vmatpush.msra.mxu0 0.0
    %386 = vmatpush.msra.mxu0 0.0
    %387 = vmatpush.msra.mxu0 0.0
    %388 = vmatpush.msra.mxu0 0.0
    %389 = vmatpush.msra.mxu0 0.0
    %390 = vmatpush.msra.mxu0 0.0
    %391 = vmatpush.msra.mxu0 0.0
    %392 = vmatpush.msra.mxu0 0.0
    %393 = vmatpush.msra.mxu0 0.0
    %394 = vmatpush.msra.mxu0 0.0
    %395 = vmatpush.msra.mxu0 %v233
    %396 = vmatpush.msra.mxu0 %v232
    %397 = vmatpush.msra.mxu0 %v231
    %398 = vmatpush.msra.mxu0 %v230
    %399 = vmatmul.f32.gmra.mxu0 %v336
    %v400 = vpop.f32.mrf.mxu0
    %v401 = vadd.f32 %v332, %v400
    %402 = vmatmul.f32.gmra.mxu0 %v339
    %v403 = vpop.f32.mrf.mxu0
    %v404 = vadd.f32 %v332, %v403
    %405 = vmatmul.f32.gmra.mxu0 %v342
    %v406 = vpop.f32.mrf.mxu0
    %v407 = vadd.f32 %v332, %v406
    %408 = vmatmul.f32.gmra.mxu0 %v345
    %v409 = vpop.f32.mrf.mxu0
    %v410 = vadd.f32 %v332, %v409
    %411 = vmatmul.f32.gmra.mxu0 %v348
    %v412 = vpop.f32.mrf.mxu0
    %v413 = vadd.f32 %v332, %v412
    %414 = vmatmul.f32.gmra.mxu0 %v351
    %v415 = vpop.f32.mrf.mxu0
    %v416 = vadd.f32 %v332, %v415
    %417 = vmatmul.f32.gmra.mxu0 %v354
    %v418 = vpop.f32.mrf.mxu0
    %v419 = vadd.f32 %v332, %v418
    %420 = vmatmul.f32.gmra.mxu0 %v357
    %v421 = vpop.f32.mrf.mxu0
    %v422 = vadd.f32 %v332, %v421
    %423 = vmatmul.f32.gmra.mxu0 %v360
    %v424 = vpop.f32.mrf.mxu0
    %v425 = vadd.f32 %v332, %v424
    %426 = vmatmul.f32.gmra.mxu0 %v363
    %v427 = vpop.f32.mrf.mxu0
    %v428 = vadd.f32 %v332, %v427
    %429 = vmatmul.f32.gmra.mxu0 %v366
    %v430 = vpop.f32.mrf.mxu0
    %v431 = vadd.f32 %v332, %v430
    %432 = vmatmul.f32.gmra.mxu0 %v369
    %v433 = vpop.f32.mrf.mxu0
    %v434 = vadd.f32 %v332, %v433
    %435 = vmatmul.f32.gmra.mxu0 %v372
    %v436 = vpop.f32.mrf.mxu0
    %v437 = vadd.f32 %v332, %v436
    %438 = vmatmul.f32.gmra.mxu0 %v375
    %v439 = vpop.f32.mrf.mxu0
    %v440 = vadd.f32 %v332, %v439
    %441 = vmatmul.f32.gmra.mxu0 %v378
    %v442 = vpop.f32.mrf.mxu0
    %v443 = vadd.f32 %v332, %v442
    %444 = vmatmul.f32.gmra.mxu0 %v381
    %v445 = vpop.f32.mrf.mxu0
    %v446 = vadd.f32 %v332, %v445
    %447 = vdwg.mxu0
    %v448 = vmul.f32 %v401, %v401
    %v449 = vmul.f32 %v404, %v404
    %v450 = vmul.f32 %v407, %v407
    %v451 = vmul.f32 %v410, %v410
    %v452 = vmul.f32 %v413, %v413
    %v453 = vmul.f32 %v416, %v416
    %v454 = vmul.f32 %v419, %v419
    %v455 = vmul.f32 %v422, %v422
    %v456 = vmul.f32 %v425, %v425
    %v457 = vmul.f32 %v428, %v428
    %v458 = vmul.f32 %v431, %v431
    %v459 = vmul.f32 %v434, %v434
    %v460 = vmul.f32 %v437, %v437
    %v461 = vmul.f32 %v440, %v440
    %v462 = vmul.f32 %v443, %v443
    %v463 = vmul.f32 %v446, %v446
    %v465 = vsel %vm334, %v448, 0
    %v468 = vsel %vm334, %v449, 0
    %v471 = vsel %vm334, %v450, 0
    %v474 = vsel %vm334, %v451, 0
    %v477 = vsel %vm334, %v452, 0
    %v480 = vsel %vm334, %v453, 0
    %v483 = vsel %vm334, %v454, 0
    %v486 = vsel %vm334, %v455, 0
    %v489 = vsel %vm334, %v456, 0
    %v492 = vsel %vm334, %v457, 0
    %v495 = vsel %vm334, %v458, 0
    %v498 = vsel %vm334, %v459, 0
    %v501 = vsel %vm334, %v460, 0
    %v504 = vsel %vm334, %v461, 0
    %v507 = vsel %vm334, %v462, 0
    %v510 = vsel %vm334, %v463, 0
    %512 = vmatpush.msra.mxu0 0.0
    %513 = vmatpush.msra.mxu0 0.0
    %514 = vmatpush.msra.mxu0 0.0
    %515 = vmatpush.msra.mxu0 0.0
    %516 = vmatpush.msra.mxu0 0.0
    %517 = vmatpush.msra.mxu0 0.0
    %518 = vmatpush.msra.mxu0 0.0
    %519 = vmatpush.msra.mxu0 0.0
    %520 = vmatpush.msra.mxu0 0.0
    %521 = vmatpush.msra.mxu0 0.0
    %522 = vmatpush.msra.mxu0 0.0
    %523 = vmatpush.msra.mxu0 0.0
    %524 = vmatpush.msra.mxu0 %v165
    %525 = vmatpush.msra.mxu0 %v164
    %526 = vmatpush.msra.mxu0 %v163
    %527 = vmatpush.msra.mxu0 %v162
    %528 = vmatmul.f32.gmra.mxu0 %v465
    %v529 = vpop.f32.mrf.mxu0
    %v530 = vadd.f32 0.0, %v529
    %531 = vmatmul.f32.gmra.mxu0 %v468
    %v532 = vpop.f32.mrf.mxu0
    %v533 = vadd.f32 0.0, %v532
    %534 = vmatmul.f32.gmra.mxu0 %v471
    %v535 = vpop.f32.mrf.mxu0
    %v536 = vadd.f32 0.0, %v535
    %537 = vmatmul.f32.gmra.mxu0 %v474
    %v538 = vpop.f32.mrf.mxu0
    %v539 = vadd.f32 0.0, %v538
    %540 = vmatmul.f32.gmra.mxu0 %v477
    %v541 = vpop.f32.mrf.mxu0
    %v542 = vadd.f32 0.0, %v541
    %543 = vmatmul.f32.gmra.mxu0 %v480
    %v544 = vpop.f32.mrf.mxu0
    %v545 = vadd.f32 0.0, %v544
    %546 = vmatmul.f32.gmra.mxu0 %v483
    %v547 = vpop.f32.mrf.mxu0
    %v548 = vadd.f32 0.0, %v547
    %549 = vmatmul.f32.gmra.mxu0 %v486
    %v550 = vpop.f32.mrf.mxu0
    %v551 = vadd.f32 0.0, %v550
    %552 = vmatmul.f32.gmra.mxu0 %v489
    %v553 = vpop.f32.mrf.mxu0
    %v554 = vadd.f32 0.0, %v553
    %555 = vmatmul.f32.gmra.mxu0 %v492
    %v556 = vpop.f32.mrf.mxu0
    %v557 = vadd.f32 0.0, %v556
    %558 = vmatmul.f32.gmra.mxu0 %v495
    %v559 = vpop.f32.mrf.mxu0
    %v560 = vadd.f32 0.0, %v559
    %561 = vmatmul.f32.gmra.mxu0 %v498
    %v562 = vpop.f32.mrf.mxu0
    %v563 = vadd.f32 0.0, %v562
    %564 = vmatmul.f32.gmra.mxu0 %v501
    %v565 = vpop.f32.mrf.mxu0
    %v566 = vadd.f32 0.0, %v565
    %567 = vmatmul.f32.gmra.mxu0 %v504
    %v568 = vpop.f32.mrf.mxu0
    %v569 = vadd.f32 0.0, %v568
    %570 = vmatmul.f32.gmra.mxu0 %v507
    %v571 = vpop.f32.mrf.mxu0
    %v572 = vadd.f32 0.0, %v571
    %573 = vmatmul.f32.gmra.mxu0 %v510
    %v574 = vpop.f32.mrf.mxu0
    %v575 = vadd.f32 0.0, %v574
    %576 = vdwg.mxu0
    %577 = vrot.lane.b32.xlu0 %v448, 96
    %v578 = vpop.permute.xlu0 %577
    %579 = vrot.lane.b32.xlu0 %v449, 96
    %v580 = vpop.permute.xlu0 %579
    %581 = vrot.lane.b32.xlu0 %v450, 96
    %v582 = vpop.permute.xlu0 %581
    %583 = vrot.lane.b32.xlu0 %v451, 96
    %v584 = vpop.permute.xlu0 %583
    %585 = vrot.lane.b32.xlu0 %v452, 96
    %v586 = vpop.permute.xlu0 %585
    %587 = vrot.lane.b32.xlu0 %v453, 96
    %v588 = vpop.permute.xlu0 %587
    %589 = vrot.lane.b32.xlu0 %v454, 96
    %v590 = vpop.permute.xlu0 %589
    %591 = vrot.lane.b32.xlu0 %v455, 96
    %v592 = vpop.permute.xlu0 %591
    %593 = vrot.lane.b32.xlu0 %v456, 96
    %v594 = vpop.permute.xlu0 %593
    %595 = vrot.lane.b32.xlu0 %v457, 96
    %v596 = vpop.permute.xlu0 %595
    %597 = vrot.lane.b32.xlu0 %v458, 96
    %v598 = vpop.permute.xlu0 %597
    %599 = vrot.lane.b32.xlu0 %v459, 96
    %v600 = vpop.permute.xlu0 %599
    %601 = vrot.lane.b32.xlu0 %v460, 96
    %v602 = vpop.permute.xlu0 %601
    %603 = vrot.lane.b32.xlu0 %v461, 96
    %v604 = vpop.permute.xlu0 %603
    %605 = vrot.lane.b32.xlu0 %v462, 96
    %v606 = vpop.permute.xlu0 %605
    %607 = vrot.lane.b32.xlu0 %v463, 96
    %v608 = vpop.permute.xlu0 %607
    %v609 = vsel %vm334, %v578, 0
    %v611 = vsel %vm334, %v580, 0
    %v613 = vsel %vm334, %v582, 0
    %v615 = vsel %vm334, %v584, 0
    %v617 = vsel %vm334, %v586, 0
    %v619 = vsel %vm334, %v588, 0
    %v621 = vsel %vm334, %v590, 0
    %v623 = vsel %vm334, %v592, 0
    %v625 = vsel %vm334, %v594, 0
    %v627 = vsel %vm334, %v596, 0
    %v629 = vsel %vm334, %v598, 0
    %v631 = vsel %vm334, %v600, 0
    %v633 = vsel %vm334, %v602, 0
    %v635 = vsel %vm334, %v604, 0
    %v637 = vsel %vm334, %v606, 0
    %v639 = vsel %vm334, %v608, 0
    %641 = vmatpush.msra.mxu0 0.0
    %642 = vmatpush.msra.mxu0 0.0
    %643 = vmatpush.msra.mxu0 0.0
    %644 = vmatpush.msra.mxu0 0.0
    %645 = vmatpush.msra.mxu0 0.0
    %646 = vmatpush.msra.mxu0 0.0
    %647 = vmatpush.msra.mxu0 0.0
    %648 = vmatpush.msra.mxu0 0.0
    %649 = vmatpush.msra.mxu0 0.0
    %650 = vmatpush.msra.mxu0 0.0
    %651 = vmatpush.msra.mxu0 0.0
    %652 = vmatpush.msra.mxu0 0.0
    %653 = vmatpush.msra.mxu0 %v165
    %654 = vmatpush.msra.mxu0 %v164
    %655 = vmatpush.msra.mxu0 %v163
    %656 = vmatpush.msra.mxu0 %v162
    %657 = vmatmul.f32.gmra.mxu0 %v609
    %v658 = vpop.f32.mrf.mxu0
    %v659 = vadd.f32 0.0, %v658
    %660 = vmatmul.f32.gmra.mxu0 %v611
    %v661 = vpop.f32.mrf.mxu0
    %v662 = vadd.f32 0.0, %v661
    %663 = vmatmul.f32.gmra.mxu0 %v613
    %v664 = vpop.f32.mrf.mxu0
    %v665 = vadd.f32 0.0, %v664
    %666 = vmatmul.f32.gmra.mxu0 %v615
    %v667 = vpop.f32.mrf.mxu0
    %v668 = vadd.f32 0.0, %v667
    %669 = vmatmul.f32.gmra.mxu0 %v617
    %v670 = vpop.f32.mrf.mxu0
    %v671 = vadd.f32 0.0, %v670
    %672 = vmatmul.f32.gmra.mxu0 %v619
    %v673 = vpop.f32.mrf.mxu0
    %v674 = vadd.f32 0.0, %v673
    %675 = vmatmul.f32.gmra.mxu0 %v621
    %v676 = vpop.f32.mrf.mxu0
    %v677 = vadd.f32 0.0, %v676
    %678 = vmatmul.f32.gmra.mxu0 %v623
    %v679 = vpop.f32.mrf.mxu0
    %v680 = vadd.f32 0.0, %v679
    %681 = vmatmul.f32.gmra.mxu0 %v625
    %v682 = vpop.f32.mrf.mxu0
    %v683 = vadd.f32 0.0, %v682
    %684 = vmatmul.f32.gmra.mxu0 %v627
    %v685 = vpop.f32.mrf.mxu0
    %v686 = vadd.f32 0.0, %v685
    %687 = vmatmul.f32.gmra.mxu0 %v629
    %v688 = vpop.f32.mrf.mxu0
    %v689 = vadd.f32 0.0, %v688
    %690 = vmatmul.f32.gmra.mxu0 %v631
    %v691 = vpop.f32.mrf.mxu0
    %v692 = vadd.f32 0.0, %v691
    %693 = vmatmul.f32.gmra.mxu0 %v633
    %v694 = vpop.f32.mrf.mxu0
    %v695 = vadd.f32 0.0, %v694
    %696 = vmatmul.f32.gmra.mxu0 %v635
    %v697 = vpop.f32.mrf.mxu0
    %v698 = vadd.f32 0.0, %v697
    %699 = vmatmul.f32.gmra.mxu0 %v637
    %v700 = vpop.f32.mrf.mxu0
    %v701 = vadd.f32 0.0, %v700
    %702 = vmatmul.f32.gmra.mxu0 %v639
    %v703 = vpop.f32.mrf.mxu0
    %v704 = vadd.f32 0.0, %v703
    %705 = vdwg.mxu0
    %v706 = vmax.f32 %v530, 1e-24
    %v707 = vmax.f32 %v533, 1e-24
    %v708 = vmax.f32 %v536, 1e-24
    %v709 = vmax.f32 %v539, 1e-24
    %v710 = vmax.f32 %v542, 1e-24
    %v711 = vmax.f32 %v545, 1e-24
    %v712 = vmax.f32 %v548, 1e-24
    %v713 = vmax.f32 %v551, 1e-24
    %v714 = vmax.f32 %v554, 1e-24
    %v715 = vmax.f32 %v557, 1e-24
    %v716 = vmax.f32 %v560, 1e-24
    %v717 = vmax.f32 %v563, 1e-24
    %v718 = vmax.f32 %v566, 1e-24
    %v719 = vmax.f32 %v569, 1e-24
    %v720 = vmax.f32 %v572, 1e-24
    %v721 = vmax.f32 %v575, 1e-24
    %v722 = vrsqrt.pop %v706
    %v723 = vmul.f32 %v722, %v706
    %v724 = vmul.f32 %v723, %v722
    %v725 = vmul.f32 0.5, %v724
    %v726 = vsub.f32 1.5, %v725
    %v727 = vmul.f32 %v722, %v726
    %vm728 = vweird.f32 %v706
    %vm729 = vweird.f32 %v722
    %vm730 = vmor %vm728, %vm729
    %v731 = vsel %vm730, %v722, %v727
    %v732 = vrsqrt.pop %v707
    %v733 = vmul.f32 %v732, %v707
    %v734 = vmul.f32 %v733, %v732
    %v735 = vmul.f32 0.5, %v734
    %v736 = vsub.f32 1.5, %v735
    %v737 = vmul.f32 %v732, %v736
    %vm738 = vweird.f32 %v707
    %vm739 = vweird.f32 %v732
    %vm740 = vmor %vm738, %vm739
    %v741 = vsel %vm740, %v732, %v737
    %v742 = vrsqrt.pop %v708
    %v743 = vmul.f32 %v742, %v708
    %v744 = vmul.f32 %v743, %v742
    %v745 = vmul.f32 0.5, %v744
    %v746 = vsub.f32 1.5, %v745
    %v747 = vmul.f32 %v742, %v746
    %vm748 = vweird.f32 %v708
    %vm749 = vweird.f32 %v742
    %vm750 = vmor %vm748, %vm749
    %v751 = vsel %vm750, %v742, %v747
    %v752 = vrsqrt.pop %v709
    %v753 = vmul.f32 %v752, %v709
    %v754 = vmul.f32 %v753, %v752
    %v755 = vmul.f32 0.5, %v754
    %v756 = vsub.f32 1.5, %v755
    %v757 = vmul.f32 %v752, %v756
    %vm758 = vweird.f32 %v709
    %vm759 = vweird.f32 %v752
    %vm760 = vmor %vm758, %vm759
    %v761 = vsel %vm760, %v752, %v757
    %v762 = vrsqrt.pop %v710
    %v763 = vmul.f32 %v762, %v710
    %v764 = vmul.f32 %v763, %v762
    %v765 = vmul.f32 0.5, %v764
    %v766 = vsub.f32 1.5, %v765
    %v767 = vmul.f32 %v762, %v766
    %vm768 = vweird.f32 %v710
    %vm769 = vweird.f32 %v762
    %vm770 = vmor %vm768, %vm769
    %v771 = vsel %vm770, %v762, %v767
    %v772 = vrsqrt.pop %v711
    %v773 = vmul.f32 %v772, %v711
    %v774 = vmul.f32 %v773, %v772
    %v775 = vmul.f32 0.5, %v774
    %v776 = vsub.f32 1.5, %v775
    %v777 = vmul.f32 %v772, %v776
    %vm778 = vweird.f32 %v711
    %vm779 = vweird.f32 %v772
    %vm780 = vmor %vm778, %vm779
    %v781 = vsel %vm780, %v772, %v777
    %v782 = vrsqrt.pop %v712
    %v783 = vmul.f32 %v782, %v712
    %v784 = vmul.f32 %v783, %v782
    %v785 = vmul.f32 0.5, %v784
    %v786 = vsub.f32 1.5, %v785
    %v787 = vmul.f32 %v782, %v786
    %vm788 = vweird.f32 %v712
    %vm789 = vweird.f32 %v782
    %vm790 = vmor %vm788, %vm789
    %v791 = vsel %vm790, %v782, %v787
    %v792 = vrsqrt.pop %v713
    %v793 = vmul.f32 %v792, %v713
    %v794 = vmul.f32 %v793, %v792
    %v795 = vmul.f32 0.5, %v794
    %v796 = vsub.f32 1.5, %v795
    %v797 = vmul.f32 %v792, %v796
    %vm798 = vweird.f32 %v713
    %vm799 = vweird.f32 %v792
    %vm800 = vmor %vm798, %vm799
    %v801 = vsel %vm800, %v792, %v797
    %v802 = vrsqrt.pop %v714
    %v803 = vmul.f32 %v802, %v714
    %v804 = vmul.f32 %v803, %v802
    %v805 = vmul.f32 0.5, %v804
    %v806 = vsub.f32 1.5, %v805
    %v807 = vmul.f32 %v802, %v806
    %vm808 = vweird.f32 %v714
    %vm809 = vweird.f32 %v802
    %vm810 = vmor %vm808, %vm809
    %v811 = vsel %vm810, %v802, %v807
    %v812 = vrsqrt.pop %v715
    %v813 = vmul.f32 %v812, %v715
    %v814 = vmul.f32 %v813, %v812
    %v815 = vmul.f32 0.5, %v814
    %v816 = vsub.f32 1.5, %v815
    %v817 = vmul.f32 %v812, %v816
    %vm818 = vweird.f32 %v715
    %vm819 = vweird.f32 %v812
    %vm820 = vmor %vm818, %vm819
    %v821 = vsel %vm820, %v812, %v817
    %v822 = vrsqrt.pop %v716
    %v823 = vmul.f32 %v822, %v716
    %v824 = vmul.f32 %v823, %v822
    %v825 = vmul.f32 0.5, %v824
    %v826 = vsub.f32 1.5, %v825
    %v827 = vmul.f32 %v822, %v826
    %vm828 = vweird.f32 %v716
    %vm829 = vweird.f32 %v822
    %vm830 = vmor %vm828, %vm829
    %v831 = vsel %vm830, %v822, %v827
    %v832 = vrsqrt.pop %v717
    %v833 = vmul.f32 %v832, %v717
    %v834 = vmul.f32 %v833, %v832
    %v835 = vmul.f32 0.5, %v834
    %v836 = vsub.f32 1.5, %v835
    %v837 = vmul.f32 %v832, %v836
    %vm838 = vweird.f32 %v717
    %vm839 = vweird.f32 %v832
    %vm840 = vmor %vm838, %vm839
    %v841 = vsel %vm840, %v832, %v837
    %v842 = vrsqrt.pop %v718
    %v843 = vmul.f32 %v842, %v718
    %v844 = vmul.f32 %v843, %v842
    %v845 = vmul.f32 0.5, %v844
    %v846 = vsub.f32 1.5, %v845
    %v847 = vmul.f32 %v842, %v846
    %vm848 = vweird.f32 %v718
    %vm849 = vweird.f32 %v842
    %vm850 = vmor %vm848, %vm849
    %v851 = vsel %vm850, %v842, %v847
    %v852 = vrsqrt.pop %v719
    %v853 = vmul.f32 %v852, %v719
    %v854 = vmul.f32 %v853, %v852
    %v855 = vmul.f32 0.5, %v854
    %v856 = vsub.f32 1.5, %v855
    %v857 = vmul.f32 %v852, %v856
    %vm858 = vweird.f32 %v719
    %vm859 = vweird.f32 %v852
    %vm860 = vmor %vm858, %vm859
    %v861 = vsel %vm860, %v852, %v857
    %v862 = vrsqrt.pop %v720
    %v863 = vmul.f32 %v862, %v720
    %v864 = vmul.f32 %v863, %v862
    %v865 = vmul.f32 0.5, %v864
    %v866 = vsub.f32 1.5, %v865
    %v867 = vmul.f32 %v862, %v866
    %vm868 = vweird.f32 %v720
    %vm869 = vweird.f32 %v862
    %vm870 = vmor %vm868, %vm869
    %v871 = vsel %vm870, %v862, %v867
    %v872 = vrsqrt.pop %v721
    %v873 = vmul.f32 %v872, %v721
    %v874 = vmul.f32 %v873, %v872
    %v875 = vmul.f32 0.5, %v874
    %v876 = vsub.f32 1.5, %v875
    %v877 = vmul.f32 %v872, %v876
    %vm878 = vweird.f32 %v721
    %vm879 = vweird.f32 %v872
    %vm880 = vmor %vm878, %vm879
    %v881 = vsel %vm880, %v872, %v877
    %v883 = vperm.slane %v235, 0
    %v885 = vmul.f32 %v883, %v731
    %v886 = vmul.f32 %v883, %v741
    %v887 = vmul.f32 %v883, %v751
    %v888 = vmul.f32 %v883, %v761
    %v889 = vmul.f32 %v883, %v771
    %v890 = vmul.f32 %v883, %v781
    %v891 = vmul.f32 %v883, %v791
    %v892 = vmul.f32 %v883, %v801
    %v893 = vmul.f32 %v883, %v811
    %v894 = vmul.f32 %v883, %v821
    %v895 = vmul.f32 %v883, %v831
    %v896 = vmul.f32 %v883, %v841
    %v897 = vmul.f32 %v883, %v851
    %v898 = vmul.f32 %v883, %v861
    %v899 = vmul.f32 %v883, %v871
    %v900 = vmul.f32 %v883, %v881
    %v901 = vmul.f32 %v401, %v885
    %v902 = vmul.f32 %v404, %v886
    %v903 = vmul.f32 %v407, %v887
    %v904 = vmul.f32 %v410, %v888
    %v905 = vmul.f32 %v413, %v889
    %v906 = vmul.f32 %v416, %v890
    %v907 = vmul.f32 %v419, %v891
    %v908 = vmul.f32 %v422, %v892
    %v909 = vmul.f32 %v425, %v893
    %v910 = vmul.f32 %v428, %v894
    %v911 = vmul.f32 %v431, %v895
    %v912 = vmul.f32 %v434, %v896
    %v913 = vmul.f32 %v437, %v897
    %v914 = vmul.f32 %v440, %v898
    %v915 = vmul.f32 %v443, %v899
    %v916 = vmul.f32 %v446, %v900
    %v917 = vmax.f32 %v659, 1e-24
    %v918 = vmax.f32 %v662, 1e-24
    %v919 = vmax.f32 %v665, 1e-24
    %v920 = vmax.f32 %v668, 1e-24
    %v921 = vmax.f32 %v671, 1e-24
    %v922 = vmax.f32 %v674, 1e-24
    %v923 = vmax.f32 %v677, 1e-24
    %v924 = vmax.f32 %v680, 1e-24
    %v925 = vmax.f32 %v683, 1e-24
    %v926 = vmax.f32 %v686, 1e-24
    %v927 = vmax.f32 %v689, 1e-24
    %v928 = vmax.f32 %v692, 1e-24
    %v929 = vmax.f32 %v695, 1e-24
    %v930 = vmax.f32 %v698, 1e-24
    %v931 = vmax.f32 %v701, 1e-24
    %v932 = vmax.f32 %v704, 1e-24
    %v933 = vrsqrt.pop %v917
    %v934 = vmul.f32 %v933, %v917
    %v935 = vmul.f32 %v934, %v933
    %v936 = vmul.f32 0.5, %v935
    %v937 = vsub.f32 1.5, %v936
    %v938 = vmul.f32 %v933, %v937
    %vm939 = vweird.f32 %v917
    %vm940 = vweird.f32 %v933
    %vm941 = vmor %vm939, %vm940
    %v942 = vsel %vm941, %v933, %v938
    %v943 = vrsqrt.pop %v918
    %v944 = vmul.f32 %v943, %v918
    %v945 = vmul.f32 %v944, %v943
    %v946 = vmul.f32 0.5, %v945
    %v947 = vsub.f32 1.5, %v946
    %v948 = vmul.f32 %v943, %v947
    %vm949 = vweird.f32 %v918
    %vm950 = vweird.f32 %v943
    %vm951 = vmor %vm949, %vm950
    %v952 = vsel %vm951, %v943, %v948
    %v953 = vrsqrt.pop %v919
    %v954 = vmul.f32 %v953, %v919
    %v955 = vmul.f32 %v954, %v953
    %v956 = vmul.f32 0.5, %v955
    %v957 = vsub.f32 1.5, %v956
    %v958 = vmul.f32 %v953, %v957
    %vm959 = vweird.f32 %v919
    %vm960 = vweird.f32 %v953
    %vm961 = vmor %vm959, %vm960
    %v962 = vsel %vm961, %v953, %v958
    %v963 = vrsqrt.pop %v920
    %v964 = vmul.f32 %v963, %v920
    %v965 = vmul.f32 %v964, %v963
    %v966 = vmul.f32 0.5, %v965
    %v967 = vsub.f32 1.5, %v966
    %v968 = vmul.f32 %v963, %v967
    %vm969 = vweird.f32 %v920
    %vm970 = vweird.f32 %v963
    %vm971 = vmor %vm969, %vm970
    %v972 = vsel %vm971, %v963, %v968
    %v973 = vrsqrt.pop %v921
    %v974 = vmul.f32 %v973, %v921
    %v975 = vmul.f32 %v974, %v973
    %v976 = vmul.f32 0.5, %v975
    %v977 = vsub.f32 1.5, %v976
    %v978 = vmul.f32 %v973, %v977
    %vm979 = vweird.f32 %v921
    %vm980 = vweird.f32 %v973
    %vm981 = vmor %vm979, %vm980
    %v982 = vsel %vm981, %v973, %v978
    %v983 = vrsqrt.pop %v922
    %v984 = vmul.f32 %v983, %v922
    %v985 = vmul.f32 %v984, %v983
    %v986 = vmul.f32 0.5, %v985
    %v987 = vsub.f32 1.5, %v986
    %v988 = vmul.f32 %v983, %v987
    %vm989 = vweird.f32 %v922
    %vm990 = vweird.f32 %v983
    %vm991 = vmor %vm989, %vm990
    %v992 = vsel %vm991, %v983, %v988
    %v993 = vrsqrt.pop %v923
    %v994 = vmul.f32 %v993, %v923
    %v995 = vmul.f32 %v994, %v993
    %v996 = vmul.f32 0.5, %v995
    %v997 = vsub.f32 1.5, %v996
    %v998 = vmul.f32 %v993, %v997
    %vm999 = vweird.f32 %v923
    %vm1000 = vweird.f32 %v993
    %vm1001 = vmor %vm999, %vm1000
    %v1002 = vsel %vm1001, %v993, %v998
    %v1003 = vrsqrt.pop %v924
    %v1004 = vmul.f32 %v1003, %v924
    %v1005 = vmul.f32 %v1004, %v1003
    %v1006 = vmul.f32 0.5, %v1005
    %v1007 = vsub.f32 1.5, %v1006
    %v1008 = vmul.f32 %v1003, %v1007
    %vm1009 = vweird.f32 %v924
    %vm1010 = vweird.f32 %v1003
    %vm1011 = vmor %vm1009, %vm1010
    %v1012 = vsel %vm1011, %v1003, %v1008
    %v1013 = vrsqrt.pop %v925
    %v1014 = vmul.f32 %v1013, %v925
    %v1015 = vmul.f32 %v1014, %v1013
    %v1016 = vmul.f32 0.5, %v1015
    %v1017 = vsub.f32 1.5, %v1016
    %v1018 = vmul.f32 %v1013, %v1017
    %vm1019 = vweird.f32 %v925
    %vm1020 = vweird.f32 %v1013
    %vm1021 = vmor %vm1019, %vm1020
    %v1022 = vsel %vm1021, %v1013, %v1018
    %v1023 = vrsqrt.pop %v926
    %v1024 = vmul.f32 %v1023, %v926
    %v1025 = vmul.f32 %v1024, %v1023
    %v1026 = vmul.f32 0.5, %v1025
    %v1027 = vsub.f32 1.5, %v1026
    %v1028 = vmul.f32 %v1023, %v1027
    %vm1029 = vweird.f32 %v926
    %vm1030 = vweird.f32 %v1023
    %vm1031 = vmor %vm1029, %vm1030
    %v1032 = vsel %vm1031, %v1023, %v1028
    %v1033 = vrsqrt.pop %v927
    %v1034 = vmul.f32 %v1033, %v927
    %v1035 = vmul.f32 %v1034, %v1033
    %v1036 = vmul.f32 0.5, %v1035
    %v1037 = vsub.f32 1.5, %v1036
    %v1038 = vmul.f32 %v1033, %v1037
    %vm1039 = vweird.f32 %v927
    %vm1040 = vweird.f32 %v1033
    %vm1041 = vmor %vm1039, %vm1040
    %v1042 = vsel %vm1041, %v1033, %v1038
    %v1043 = vrsqrt.pop %v928
    %v1044 = vmul.f32 %v1043, %v928
    %v1045 = vmul.f32 %v1044, %v1043
    %v1046 = vmul.f32 0.5, %v1045
    %v1047 = vsub.f32 1.5, %v1046
    %v1048 = vmul.f32 %v1043, %v1047
    %vm1049 = vweird.f32 %v928
    %vm1050 = vweird.f32 %v1043
    %vm1051 = vmor %vm1049, %vm1050
    %v1052 = vsel %vm1051, %v1043, %v1048
    %v1053 = vrsqrt.pop %v929
    %v1054 = vmul.f32 %v1053, %v929
    %v1055 = vmul.f32 %v1054, %v1053
    %v1056 = vmul.f32 0.5, %v1055
    %v1057 = vsub.f32 1.5, %v1056
    %v1058 = vmul.f32 %v1053, %v1057
    %vm1059 = vweird.f32 %v929
    %vm1060 = vweird.f32 %v1053
    %vm1061 = vmor %vm1059, %vm1060
    %v1062 = vsel %vm1061, %v1053, %v1058
    %v1063 = vrsqrt.pop %v930
    %v1064 = vmul.f32 %v1063, %v930
    %v1065 = vmul.f32 %v1064, %v1063
    %v1066 = vmul.f32 0.5, %v1065
    %v1067 = vsub.f32 1.5, %v1066
    %v1068 = vmul.f32 %v1063, %v1067
    %vm1069 = vweird.f32 %v930
    %vm1070 = vweird.f32 %v1063
    %vm1071 = vmor %vm1069, %vm1070
    %v1072 = vsel %vm1071, %v1063, %v1068
    %v1073 = vrsqrt.pop %v931
    %v1074 = vmul.f32 %v1073, %v931
    %v1075 = vmul.f32 %v1074, %v1073
    %v1076 = vmul.f32 0.5, %v1075
    %v1077 = vsub.f32 1.5, %v1076
    %v1078 = vmul.f32 %v1073, %v1077
    %vm1079 = vweird.f32 %v931
    %vm1080 = vweird.f32 %v1073
    %vm1081 = vmor %vm1079, %vm1080
    %v1082 = vsel %vm1081, %v1073, %v1078
    %v1083 = vrsqrt.pop %v932
    %v1084 = vmul.f32 %v1083, %v932
    %v1085 = vmul.f32 %v1084, %v1083
    %v1086 = vmul.f32 0.5, %v1085
    %v1087 = vsub.f32 1.5, %v1086
    %v1088 = vmul.f32 %v1083, %v1087
    %vm1089 = vweird.f32 %v932
    %vm1090 = vweird.f32 %v1083
    %vm1091 = vmor %vm1089, %vm1090
    %v1092 = vsel %vm1091, %v1083, %v1088
    %1109 = vrot.lane.b32.xlu0 %v942, 32
    %v1110 = vpop.permute.xlu0 %1109
    %1111 = vrot.lane.b32.xlu0 %v952, 32
    %v1112 = vpop.permute.xlu0 %1111
    %1113 = vrot.lane.b32.xlu0 %v962, 32
    %v1114 = vpop.permute.xlu0 %1113
    %1115 = vrot.lane.b32.xlu0 %v972, 32
    %v1116 = vpop.permute.xlu0 %1115
    %1117 = vrot.lane.b32.xlu0 %v982, 32
    %v1118 = vpop.permute.xlu0 %1117
    %1119 = vrot.lane.b32.xlu0 %v992, 32
    %v1120 = vpop.permute.xlu0 %1119
    %1121 = vrot.lane.b32.xlu0 %v1002, 32
    %v1122 = vpop.permute.xlu0 %1121
    %1123 = vrot.lane.b32.xlu0 %v1012, 32
    %v1124 = vpop.permute.xlu0 %1123
    %1125 = vrot.lane.b32.xlu0 %v1022, 32
    %v1126 = vpop.permute.xlu0 %1125
    %1127 = vrot.lane.b32.xlu0 %v1032, 32
    %v1128 = vpop.permute.xlu0 %1127
    %1129 = vrot.lane.b32.xlu0 %v1042, 32
    %v1130 = vpop.permute.xlu0 %1129
    %1131 = vrot.lane.b32.xlu0 %v1052, 32
    %v1132 = vpop.permute.xlu0 %1131
    %1133 = vrot.lane.b32.xlu0 %v1062, 32
    %v1134 = vpop.permute.xlu0 %1133
    %1135 = vrot.lane.b32.xlu0 %v1072, 32
    %v1136 = vpop.permute.xlu0 %1135
    %1137 = vrot.lane.b32.xlu0 %v1082, 32
    %v1138 = vpop.permute.xlu0 %1137
    %1139 = vrot.lane.b32.xlu0 %v1092, 32
    %v1140 = vpop.permute.xlu0 %1139
    %v1157 = vmul.f32 %v401, %v1110
    %v1158 = vmul.f32 %v404, %v1112
    %v1159 = vmul.f32 %v407, %v1114
    %v1160 = vmul.f32 %v410, %v1116
    %v1161 = vmul.f32 %v413, %v1118
    %v1162 = vmul.f32 %v416, %v1120
    %v1163 = vmul.f32 %v419, %v1122
    %v1164 = vmul.f32 %v422, %v1124
    %v1165 = vmul.f32 %v425, %v1126
    %v1166 = vmul.f32 %v428, %v1128
    %v1167 = vmul.f32 %v431, %v1130
    %v1168 = vmul.f32 %v434, %v1132
    %v1169 = vmul.f32 %v437, %v1134
    %v1170 = vmul.f32 %v440, %v1136
    %v1171 = vmul.f32 %v443, %v1138
    %v1172 = vmul.f32 %v446, %v1140
    %v1173 = vmul.f32 %v901, %v166
    %v1174 = vmul.f32 %v902, %v167
    %v1175 = vmul.f32 %v903, %v168
    %v1176 = vmul.f32 %v904, %v169
    %v1177 = vmul.f32 %v905, %v170
    %v1178 = vmul.f32 %v906, %v171
    %v1179 = vmul.f32 %v907, %v172
    %v1180 = vmul.f32 %v908, %v173
    %v1181 = vmul.f32 %v909, %v174
    %v1182 = vmul.f32 %v910, %v175
    %v1183 = vmul.f32 %v911, %v176
    %v1184 = vmul.f32 %v912, %v177
    %v1185 = vmul.f32 %v913, %v178
    %v1186 = vmul.f32 %v914, %v179
    %v1187 = vmul.f32 %v915, %v180
    %v1188 = vmul.f32 %v916, %v181
    %v1189 = vmul.f32 %v901, %v182
    %v1190 = vmul.f32 %v902, %v183
    %v1191 = vmul.f32 %v903, %v184
    %v1192 = vmul.f32 %v904, %v185
    %v1193 = vmul.f32 %v905, %v186
    %v1194 = vmul.f32 %v906, %v187
    %v1195 = vmul.f32 %v907, %v188
    %v1196 = vmul.f32 %v908, %v189
    %v1197 = vmul.f32 %v909, %v190
    %v1198 = vmul.f32 %v910, %v191
    %v1199 = vmul.f32 %v911, %v192
    %v1200 = vmul.f32 %v912, %v193
    %v1201 = vmul.f32 %v913, %v194
    %v1202 = vmul.f32 %v914, %v195
    %v1203 = vmul.f32 %v915, %v196
    %v1204 = vmul.f32 %v916, %v197
    %v1205 = vmul.f32 %v901, %v198
    %v1206 = vmul.f32 %v902, %v199
    %v1207 = vmul.f32 %v903, %v200
    %v1208 = vmul.f32 %v904, %v201
    %v1209 = vmul.f32 %v905, %v202
    %v1210 = vmul.f32 %v906, %v203
    %v1211 = vmul.f32 %v907, %v204
    %v1212 = vmul.f32 %v908, %v205
    %v1213 = vmul.f32 %v909, %v206
    %v1214 = vmul.f32 %v910, %v207
    %v1215 = vmul.f32 %v911, %v208
    %v1216 = vmul.f32 %v912, %v209
    %v1217 = vmul.f32 %v913, %v210
    %v1218 = vmul.f32 %v914, %v211
    %v1219 = vmul.f32 %v915, %v212
    %v1220 = vmul.f32 %v916, %v213
    %v1221 = vmul.f32 %v901, %v214
    %v1222 = vmul.f32 %v902, %v215
    %v1223 = vmul.f32 %v903, %v216
    %v1224 = vmul.f32 %v904, %v217
    %v1225 = vmul.f32 %v905, %v218
    %v1226 = vmul.f32 %v906, %v219
    %v1227 = vmul.f32 %v907, %v220
    %v1228 = vmul.f32 %v908, %v221
    %v1229 = vmul.f32 %v909, %v222
    %v1230 = vmul.f32 %v910, %v223
    %v1231 = vmul.f32 %v911, %v224
    %v1232 = vmul.f32 %v912, %v225
    %v1233 = vmul.f32 %v913, %v226
    %v1234 = vmul.f32 %v914, %v227
    %v1235 = vmul.f32 %v915, %v228
    %v1236 = vmul.f32 %v916, %v229
    %1253 = vrot.lane.b32.xlu0 %v1157, 96
    %v1254 = vpop.permute.xlu0 %1253
    %1255 = vrot.lane.b32.xlu0 %v1158, 96
    %v1256 = vpop.permute.xlu0 %1255
    %1257 = vrot.lane.b32.xlu0 %v1159, 96
    %v1258 = vpop.permute.xlu0 %1257
    %1259 = vrot.lane.b32.xlu0 %v1160, 96
    %v1260 = vpop.permute.xlu0 %1259
    %1261 = vrot.lane.b32.xlu0 %v1161, 96
    %v1262 = vpop.permute.xlu0 %1261
    %1263 = vrot.lane.b32.xlu0 %v1162, 96
    %v1264 = vpop.permute.xlu0 %1263
    %1265 = vrot.lane.b32.xlu0 %v1163, 96
    %v1266 = vpop.permute.xlu0 %1265
    %1267 = vrot.lane.b32.xlu0 %v1164, 96
    %v1268 = vpop.permute.xlu0 %1267
    %1269 = vrot.lane.b32.xlu0 %v1165, 96
    %v1270 = vpop.permute.xlu0 %1269
    %1271 = vrot.lane.b32.xlu0 %v1166, 96
    %v1272 = vpop.permute.xlu0 %1271
    %1273 = vrot.lane.b32.xlu0 %v1167, 96
    %v1274 = vpop.permute.xlu0 %1273
    %1275 = vrot.lane.b32.xlu0 %v1168, 96
    %v1276 = vpop.permute.xlu0 %1275
    %1277 = vrot.lane.b32.xlu0 %v1169, 96
    %v1278 = vpop.permute.xlu0 %1277
    %1279 = vrot.lane.b32.xlu0 %v1170, 96
    %v1280 = vpop.permute.xlu0 %1279
    %1281 = vrot.lane.b32.xlu0 %v1171, 96
    %v1282 = vpop.permute.xlu0 %1281
    %1283 = vrot.lane.b32.xlu0 %v1172, 96
    %v1284 = vpop.permute.xlu0 %1283
    %v1286 = vsel %vm334, %v1173, 0
    %v1289 = vsel %vm334, %v1174, 0
    %v1292 = vsel %vm334, %v1175, 0
    %v1295 = vsel %vm334, %v1176, 0
    %v1298 = vsel %vm334, %v1177, 0
    %v1301 = vsel %vm334, %v1178, 0
    %v1304 = vsel %vm334, %v1179, 0
    %v1307 = vsel %vm334, %v1180, 0
    %v1310 = vsel %vm334, %v1181, 0
    %v1313 = vsel %vm334, %v1182, 0
    %v1316 = vsel %vm334, %v1183, 0
    %v1319 = vsel %vm334, %v1184, 0
    %v1322 = vsel %vm334, %v1185, 0
    %v1325 = vsel %vm334, %v1186, 0
    %v1328 = vsel %vm334, %v1187, 0
    %v1331 = vsel %vm334, %v1188, 0
    %v1334 = vsel %vm334, %v1189, 0
    %v1337 = vsel %vm334, %v1190, 0
    %v1340 = vsel %vm334, %v1191, 0
    %v1343 = vsel %vm334, %v1192, 0
    %v1346 = vsel %vm334, %v1193, 0
    %v1349 = vsel %vm334, %v1194, 0
    %v1352 = vsel %vm334, %v1195, 0
    %v1355 = vsel %vm334, %v1196, 0
    %v1358 = vsel %vm334, %v1197, 0
    %v1361 = vsel %vm334, %v1198, 0
    %v1364 = vsel %vm334, %v1199, 0
    %v1367 = vsel %vm334, %v1200, 0
    %v1370 = vsel %vm334, %v1201, 0
    %v1373 = vsel %vm334, %v1202, 0
    %v1376 = vsel %vm334, %v1203, 0
    %v1379 = vsel %vm334, %v1204, 0
    %v1382 = vsel %vm334, %v1205, 0
    %v1385 = vsel %vm334, %v1206, 0
    %v1388 = vsel %vm334, %v1207, 0
    %v1391 = vsel %vm334, %v1208, 0
    %v1394 = vsel %vm334, %v1209, 0
    %v1397 = vsel %vm334, %v1210, 0
    %v1400 = vsel %vm334, %v1211, 0
    %v1403 = vsel %vm334, %v1212, 0
    %v1406 = vsel %vm334, %v1213, 0
    %v1409 = vsel %vm334, %v1214, 0
    %v1412 = vsel %vm334, %v1215, 0
    %v1415 = vsel %vm334, %v1216, 0
    %v1418 = vsel %vm334, %v1217, 0
    %v1421 = vsel %vm334, %v1218, 0
    %v1424 = vsel %vm334, %v1219, 0
    %v1427 = vsel %vm334, %v1220, 0
    %v1430 = vsel %vm334, %v1221, 0
    %v1433 = vsel %vm334, %v1222, 0
    %v1436 = vsel %vm334, %v1223, 0
    %v1439 = vsel %vm334, %v1224, 0
    %v1442 = vsel %vm334, %v1225, 0
    %v1445 = vsel %vm334, %v1226, 0
    %v1448 = vsel %vm334, %v1227, 0
    %v1451 = vsel %vm334, %v1228, 0
    %v1454 = vsel %vm334, %v1229, 0
    %v1457 = vsel %vm334, %v1230, 0
    %v1460 = vsel %vm334, %v1231, 0
    %v1463 = vsel %vm334, %v1232, 0
    %v1466 = vsel %vm334, %v1233, 0
    %v1469 = vsel %vm334, %v1234, 0
    %v1472 = vsel %vm334, %v1235, 0
    %v1475 = vsel %vm334, %v1236, 0
    %v1477 = vsel %vm334, %v1254, 0
    %v1479 = vsel %vm334, %v1256, 0
    %v1481 = vsel %vm334, %v1258, 0
    %v1483 = vsel %vm334, %v1260, 0
    %v1485 = vsel %vm334, %v1262, 0
    %v1487 = vsel %vm334, %v1264, 0
    %v1489 = vsel %vm334, %v1266, 0
    %v1491 = vsel %vm334, %v1268, 0
    %v1493 = vsel %vm334, %v1270, 0
    %v1495 = vsel %vm334, %v1272, 0
    %v1497 = vsel %vm334, %v1274, 0
    %v1499 = vsel %vm334, %v1276, 0
    %v1501 = vsel %vm334, %v1278, 0
    %v1503 = vsel %vm334, %v1280, 0
    %v1505 = vsel %vm334, %v1282, 0
    %v1507 = vsel %vm334, %v1284, 0
    %1509 = vmatpush.xpose.msra.mxu0 %v1507
    %1510 = vmatpush.xpose.msra.mxu0 %v1505
    %1511 = vmatpush.xpose.msra.mxu0 %v1503
    %1512 = vmatpush.xpose.msra.mxu0 %v1501
    %1513 = vmatpush.xpose.msra.mxu0 %v1499
    %1514 = vmatpush.xpose.msra.mxu0 %v1497
    %1515 = vmatpush.xpose.msra.mxu0 %v1495
    %1516 = vmatpush.xpose.msra.mxu0 %v1493
    %1517 = vmatpush.xpose.msra.mxu0 %v1491
    %1518 = vmatpush.xpose.msra.mxu0 %v1489
    %1519 = vmatpush.xpose.msra.mxu0 %v1487
    %1520 = vmatpush.xpose.msra.mxu0 %v1485
    %1521 = vmatpush.xpose.msra.mxu0 %v1483
    %1522 = vmatpush.xpose.msra.mxu0 %v1481
    %1523 = vmatpush.xpose.msra.mxu0 %v1479
    %1524 = vmatpush.xpose.msra.mxu0 %v1477
    %1525 = vmatmul.f32.gmra.mxu0 %v1286
    %v1526 = vpop.f32.mrf.mxu0
    %v1527 = vadd.f32 %v236, %v1526
    %1528 = vmatmul.f32.gmra.mxu0 %v1289
    %v1529 = vpop.f32.mrf.mxu0
    %v1530 = vadd.f32 %v237, %v1529
    %1531 = vmatmul.f32.gmra.mxu0 %v1292
    %v1532 = vpop.f32.mrf.mxu0
    %v1533 = vadd.f32 %v238, %v1532
    %1534 = vmatmul.f32.gmra.mxu0 %v1295
    %v1535 = vpop.f32.mrf.mxu0
    %v1536 = vadd.f32 %v239, %v1535
    %1537 = vmatmul.f32.gmra.mxu0 %v1298
    %v1538 = vpop.f32.mrf.mxu0
    %v1539 = vadd.f32 %v240, %v1538
    %1540 = vmatmul.f32.gmra.mxu0 %v1301
    %v1541 = vpop.f32.mrf.mxu0
    %v1542 = vadd.f32 %v241, %v1541
    %1543 = vmatmul.f32.gmra.mxu0 %v1304
    %v1544 = vpop.f32.mrf.mxu0
    %v1545 = vadd.f32 %v242, %v1544
    %1546 = vmatmul.f32.gmra.mxu0 %v1307
    %v1547 = vpop.f32.mrf.mxu0
    %v1548 = vadd.f32 %v243, %v1547
    %1549 = vmatmul.f32.gmra.mxu0 %v1310
    %v1550 = vpop.f32.mrf.mxu0
    %v1551 = vadd.f32 %v244, %v1550
    %1552 = vmatmul.f32.gmra.mxu0 %v1313
    %v1553 = vpop.f32.mrf.mxu0
    %v1554 = vadd.f32 %v245, %v1553
    %1555 = vmatmul.f32.gmra.mxu0 %v1316
    %v1556 = vpop.f32.mrf.mxu0
    %v1557 = vadd.f32 %v246, %v1556
    %1558 = vmatmul.f32.gmra.mxu0 %v1319
    %v1559 = vpop.f32.mrf.mxu0
    %v1560 = vadd.f32 %v247, %v1559
    %1561 = vmatmul.f32.gmra.mxu0 %v1322
    %v1562 = vpop.f32.mrf.mxu0
    %v1563 = vadd.f32 %v248, %v1562
    %1564 = vmatmul.f32.gmra.mxu0 %v1325
    %v1565 = vpop.f32.mrf.mxu0
    %v1566 = vadd.f32 %v249, %v1565
    %1567 = vmatmul.f32.gmra.mxu0 %v1328
    %v1568 = vpop.f32.mrf.mxu0
    %v1569 = vadd.f32 %v250, %v1568
    %1570 = vmatmul.f32.gmra.mxu0 %v1331
    %v1571 = vpop.f32.mrf.mxu0
    %v1572 = vadd.f32 %v251, %v1571
    %1573 = vmatmul.f32.gmra.mxu0 %v1334
    %v1574 = vpop.f32.mrf.mxu0
    %v1575 = vadd.f32 %v252, %v1574
    %1576 = vmatmul.f32.gmra.mxu0 %v1337
    %v1577 = vpop.f32.mrf.mxu0
    %v1578 = vadd.f32 %v253, %v1577
    %1579 = vmatmul.f32.gmra.mxu0 %v1340
    %v1580 = vpop.f32.mrf.mxu0
    %v1581 = vadd.f32 %v254, %v1580
    %1582 = vmatmul.f32.gmra.mxu0 %v1343
    %v1583 = vpop.f32.mrf.mxu0
    %v1584 = vadd.f32 %v255, %v1583
    %1585 = vmatmul.f32.gmra.mxu0 %v1346
    %v1586 = vpop.f32.mrf.mxu0
    %v1587 = vadd.f32 %v256, %v1586
    %1588 = vmatmul.f32.gmra.mxu0 %v1349
    %v1589 = vpop.f32.mrf.mxu0
    %v1590 = vadd.f32 %v257, %v1589
    %1591 = vmatmul.f32.gmra.mxu0 %v1352
    %v1592 = vpop.f32.mrf.mxu0
    %v1593 = vadd.f32 %v258, %v1592
    %1594 = vmatmul.f32.gmra.mxu0 %v1355
    %v1595 = vpop.f32.mrf.mxu0
    %v1596 = vadd.f32 %v259, %v1595
    %1597 = vmatmul.f32.gmra.mxu0 %v1358
    %v1598 = vpop.f32.mrf.mxu0
    %v1599 = vadd.f32 %v260, %v1598
    %1600 = vmatmul.f32.gmra.mxu0 %v1361
    %v1601 = vpop.f32.mrf.mxu0
    %v1602 = vadd.f32 %v261, %v1601
    %1603 = vmatmul.f32.gmra.mxu0 %v1364
    %v1604 = vpop.f32.mrf.mxu0
    %v1605 = vadd.f32 %v262, %v1604
    %1606 = vmatmul.f32.gmra.mxu0 %v1367
    %v1607 = vpop.f32.mrf.mxu0
    %v1608 = vadd.f32 %v263, %v1607
    %1609 = vmatmul.f32.gmra.mxu0 %v1370
    %v1610 = vpop.f32.mrf.mxu0
    %v1611 = vadd.f32 %v264, %v1610
    %1612 = vmatmul.f32.gmra.mxu0 %v1373
    %v1613 = vpop.f32.mrf.mxu0
    %v1614 = vadd.f32 %v265, %v1613
    %1615 = vmatmul.f32.gmra.mxu0 %v1376
    %v1616 = vpop.f32.mrf.mxu0
    %v1617 = vadd.f32 %v266, %v1616
    %1618 = vmatmul.f32.gmra.mxu0 %v1379
    %v1619 = vpop.f32.mrf.mxu0
    %v1620 = vadd.f32 %v267, %v1619
    %1621 = vmatmul.f32.gmra.mxu0 %v1382
    %v1622 = vpop.f32.mrf.mxu0
    %v1623 = vadd.f32 %v268, %v1622
    %1624 = vmatmul.f32.gmra.mxu0 %v1385
    %v1625 = vpop.f32.mrf.mxu0
    %v1626 = vadd.f32 %v269, %v1625
    %1627 = vmatmul.f32.gmra.mxu0 %v1388
    %v1628 = vpop.f32.mrf.mxu0
    %v1629 = vadd.f32 %v270, %v1628
    %1630 = vmatmul.f32.gmra.mxu0 %v1391
    %v1631 = vpop.f32.mrf.mxu0
    %v1632 = vadd.f32 %v271, %v1631
    %1633 = vmatmul.f32.gmra.mxu0 %v1394
    %v1634 = vpop.f32.mrf.mxu0
    %v1635 = vadd.f32 %v272, %v1634
    %1636 = vmatmul.f32.gmra.mxu0 %v1397
    %v1637 = vpop.f32.mrf.mxu0
    %v1638 = vadd.f32 %v273, %v1637
    %1639 = vmatmul.f32.gmra.mxu0 %v1400
    %v1640 = vpop.f32.mrf.mxu0
    %v1641 = vadd.f32 %v274, %v1640
    %1642 = vmatmul.f32.gmra.mxu0 %v1403
    %v1643 = vpop.f32.mrf.mxu0
    %v1644 = vadd.f32 %v275, %v1643
    %1645 = vmatmul.f32.gmra.mxu0 %v1406
    %v1646 = vpop.f32.mrf.mxu0
    %v1647 = vadd.f32 %v276, %v1646
    %1648 = vmatmul.f32.gmra.mxu0 %v1409
    %v1649 = vpop.f32.mrf.mxu0
    %v1650 = vadd.f32 %v277, %v1649
    %1651 = vmatmul.f32.gmra.mxu0 %v1412
    %v1652 = vpop.f32.mrf.mxu0
    %v1653 = vadd.f32 %v278, %v1652
    %1654 = vmatmul.f32.gmra.mxu0 %v1415
    %v1655 = vpop.f32.mrf.mxu0
    %v1656 = vadd.f32 %v279, %v1655
    %1657 = vmatmul.f32.gmra.mxu0 %v1418
    %v1658 = vpop.f32.mrf.mxu0
    %v1659 = vadd.f32 %v280, %v1658
    %1660 = vmatmul.f32.gmra.mxu0 %v1421
    %v1661 = vpop.f32.mrf.mxu0
    %v1662 = vadd.f32 %v281, %v1661
    %1663 = vmatmul.f32.gmra.mxu0 %v1424
    %v1664 = vpop.f32.mrf.mxu0
    %v1665 = vadd.f32 %v282, %v1664
    %1666 = vmatmul.f32.gmra.mxu0 %v1427
    %v1667 = vpop.f32.mrf.mxu0
    %v1668 = vadd.f32 %v283, %v1667
    %1669 = vmatmul.f32.gmra.mxu0 %v1430
    %v1670 = vpop.f32.mrf.mxu0
    %v1671 = vadd.f32 %v284, %v1670
    %1672 = vmatmul.f32.gmra.mxu0 %v1433
    %v1673 = vpop.f32.mrf.mxu0
    %v1674 = vadd.f32 %v285, %v1673
    %1675 = vmatmul.f32.gmra.mxu0 %v1436
    %v1676 = vpop.f32.mrf.mxu0
    %v1677 = vadd.f32 %v286, %v1676
    %1678 = vmatmul.f32.gmra.mxu0 %v1439
    %v1679 = vpop.f32.mrf.mxu0
    %v1680 = vadd.f32 %v287, %v1679
    %1681 = vmatmul.f32.gmra.mxu0 %v1442
    %v1682 = vpop.f32.mrf.mxu0
    %v1683 = vadd.f32 %v288, %v1682
    %1684 = vmatmul.f32.gmra.mxu0 %v1445
    %v1685 = vpop.f32.mrf.mxu0
    %v1686 = vadd.f32 %v289, %v1685
    %1687 = vmatmul.f32.gmra.mxu0 %v1448
    %v1688 = vpop.f32.mrf.mxu0
    %v1689 = vadd.f32 %v290, %v1688
    %1690 = vmatmul.f32.gmra.mxu0 %v1451
    %v1691 = vpop.f32.mrf.mxu0
    %v1692 = vadd.f32 %v291, %v1691
    %1693 = vmatmul.f32.gmra.mxu0 %v1454
    %v1694 = vpop.f32.mrf.mxu0
    %v1695 = vadd.f32 %v292, %v1694
    %1696 = vmatmul.f32.gmra.mxu0 %v1457
    %v1697 = vpop.f32.mrf.mxu0
    %v1698 = vadd.f32 %v293, %v1697
    %1699 = vmatmul.f32.gmra.mxu0 %v1460
    %v1700 = vpop.f32.mrf.mxu0
    %v1701 = vadd.f32 %v294, %v1700
    %1702 = vmatmul.f32.gmra.mxu0 %v1463
    %v1703 = vpop.f32.mrf.mxu0
    %v1704 = vadd.f32 %v295, %v1703
    %1705 = vmatmul.f32.gmra.mxu0 %v1466
    %v1706 = vpop.f32.mrf.mxu0
    %v1707 = vadd.f32 %v296, %v1706
    %1708 = vmatmul.f32.gmra.mxu0 %v1469
    %v1709 = vpop.f32.mrf.mxu0
    %v1710 = vadd.f32 %v297, %v1709
    %1711 = vmatmul.f32.gmra.mxu0 %v1472
    %v1712 = vpop.f32.mrf.mxu0
    %v1713 = vadd.f32 %v298, %v1712
    %1714 = vmatmul.f32.gmra.mxu0 %v1475
    %v1715 = vpop.f32.mrf.mxu0
    %v1716 = vadd.f32 %v299, %v1715
    %1717 = vdwg.mxu0
    %1718 = vmax.xlane.f32.xlu0 %v1527
    %v1719 = vpop.xlane.xlu0 %1718
    %1720 = vmax.xlane.f32.xlu0 %v1530
    %v1721 = vpop.xlane.xlu0 %1720
    %1722 = vmax.xlane.f32.xlu0 %v1533
    %v1723 = vpop.xlane.xlu0 %1722
    %1724 = vmax.xlane.f32.xlu0 %v1536
    %v1725 = vpop.xlane.xlu0 %1724
    %1726 = vmax.xlane.f32.xlu0 %v1539
    %v1727 = vpop.xlane.xlu0 %1726
    %1728 = vmax.xlane.f32.xlu0 %v1542
    %v1729 = vpop.xlane.xlu0 %1728
    %1730 = vmax.xlane.f32.xlu0 %v1545
    %v1731 = vpop.xlane.xlu0 %1730
    %1732 = vmax.xlane.f32.xlu0 %v1548
    %v1733 = vpop.xlane.xlu0 %1732
    %1734 = vmax.xlane.f32.xlu0 %v1551
    %v1735 = vpop.xlane.xlu0 %1734
    %1736 = vmax.xlane.f32.xlu0 %v1554
    %v1737 = vpop.xlane.xlu0 %1736
    %1738 = vmax.xlane.f32.xlu0 %v1557
    %v1739 = vpop.xlane.xlu0 %1738
    %1740 = vmax.xlane.f32.xlu0 %v1560
    %v1741 = vpop.xlane.xlu0 %1740
    %1742 = vmax.xlane.f32.xlu0 %v1563
    %v1743 = vpop.xlane.xlu0 %1742
    %1744 = vmax.xlane.f32.xlu0 %v1566
    %v1745 = vpop.xlane.xlu0 %1744
    %1746 = vmax.xlane.f32.xlu0 %v1569
    %v1747 = vpop.xlane.xlu0 %1746
    %1748 = vmax.xlane.f32.xlu0 %v1572
    %v1749 = vpop.xlane.xlu0 %1748
    %1750 = vmax.xlane.f32.xlu0 %v1575
    %v1751 = vpop.xlane.xlu0 %1750
    %1752 = vmax.xlane.f32.xlu0 %v1578
    %v1753 = vpop.xlane.xlu0 %1752
    %1754 = vmax.xlane.f32.xlu0 %v1581
    %v1755 = vpop.xlane.xlu0 %1754
    %1756 = vmax.xlane.f32.xlu0 %v1584
    %v1757 = vpop.xlane.xlu0 %1756
    %1758 = vmax.xlane.f32.xlu0 %v1587
    %v1759 = vpop.xlane.xlu0 %1758
    %1760 = vmax.xlane.f32.xlu0 %v1590
    %v1761 = vpop.xlane.xlu0 %1760
    %1762 = vmax.xlane.f32.xlu0 %v1593
    %v1763 = vpop.xlane.xlu0 %1762
    %1764 = vmax.xlane.f32.xlu0 %v1596
    %v1765 = vpop.xlane.xlu0 %1764
    %1766 = vmax.xlane.f32.xlu0 %v1599
    %v1767 = vpop.xlane.xlu0 %1766
    %1768 = vmax.xlane.f32.xlu0 %v1602
    %v1769 = vpop.xlane.xlu0 %1768
    %1770 = vmax.xlane.f32.xlu0 %v1605
    %v1771 = vpop.xlane.xlu0 %1770
    %1772 = vmax.xlane.f32.xlu0 %v1608
    %v1773 = vpop.xlane.xlu0 %1772
    %1774 = vmax.xlane.f32.xlu0 %v1611
    %v1775 = vpop.xlane.xlu0 %1774
    %1776 = vmax.xlane.f32.xlu0 %v1614
    %v1777 = vpop.xlane.xlu0 %1776
    %1778 = vmax.xlane.f32.xlu0 %v1617
    %v1779 = vpop.xlane.xlu0 %1778
    %1780 = vmax.xlane.f32.xlu0 %v1620
    %v1781 = vpop.xlane.xlu0 %1780
    %1782 = vmax.xlane.f32.xlu0 %v1623
    %v1783 = vpop.xlane.xlu0 %1782
    %1784 = vmax.xlane.f32.xlu0 %v1626
    %v1785 = vpop.xlane.xlu0 %1784
    %1786 = vmax.xlane.f32.xlu0 %v1629
    %v1787 = vpop.xlane.xlu0 %1786
    %1788 = vmax.xlane.f32.xlu0 %v1632
    %v1789 = vpop.xlane.xlu0 %1788
    %1790 = vmax.xlane.f32.xlu0 %v1635
    %v1791 = vpop.xlane.xlu0 %1790
    %1792 = vmax.xlane.f32.xlu0 %v1638
    %v1793 = vpop.xlane.xlu0 %1792
    %1794 = vmax.xlane.f32.xlu0 %v1641
    %v1795 = vpop.xlane.xlu0 %1794
    %1796 = vmax.xlane.f32.xlu0 %v1644
    %v1797 = vpop.xlane.xlu0 %1796
    %1798 = vmax.xlane.f32.xlu0 %v1647
    %v1799 = vpop.xlane.xlu0 %1798
    %1800 = vmax.xlane.f32.xlu0 %v1650
    %v1801 = vpop.xlane.xlu0 %1800
    %1802 = vmax.xlane.f32.xlu0 %v1653
    %v1803 = vpop.xlane.xlu0 %1802
    %1804 = vmax.xlane.f32.xlu0 %v1656
    %v1805 = vpop.xlane.xlu0 %1804
    %1806 = vmax.xlane.f32.xlu0 %v1659
    %v1807 = vpop.xlane.xlu0 %1806
    %1808 = vmax.xlane.f32.xlu0 %v1662
    %v1809 = vpop.xlane.xlu0 %1808
    %1810 = vmax.xlane.f32.xlu0 %v1665
    %v1811 = vpop.xlane.xlu0 %1810
    %1812 = vmax.xlane.f32.xlu0 %v1668
    %v1813 = vpop.xlane.xlu0 %1812
    %1814 = vmax.xlane.f32.xlu0 %v1671
    %v1815 = vpop.xlane.xlu0 %1814
    %1816 = vmax.xlane.f32.xlu0 %v1674
    %v1817 = vpop.xlane.xlu0 %1816
    %1818 = vmax.xlane.f32.xlu0 %v1677
    %v1819 = vpop.xlane.xlu0 %1818
    %1820 = vmax.xlane.f32.xlu0 %v1680
    %v1821 = vpop.xlane.xlu0 %1820
    %1822 = vmax.xlane.f32.xlu0 %v1683
    %v1823 = vpop.xlane.xlu0 %1822
    %1824 = vmax.xlane.f32.xlu0 %v1686
    %v1825 = vpop.xlane.xlu0 %1824
    %1826 = vmax.xlane.f32.xlu0 %v1689
    %v1827 = vpop.xlane.xlu0 %1826
    %1828 = vmax.xlane.f32.xlu0 %v1692
    %v1829 = vpop.xlane.xlu0 %1828
    %1830 = vmax.xlane.f32.xlu0 %v1695
    %v1831 = vpop.xlane.xlu0 %1830
    %1832 = vmax.xlane.f32.xlu0 %v1698
    %v1833 = vpop.xlane.xlu0 %1832
    %1834 = vmax.xlane.f32.xlu0 %v1701
    %v1835 = vpop.xlane.xlu0 %1834
    %1836 = vmax.xlane.f32.xlu0 %v1704
    %v1837 = vpop.xlane.xlu0 %1836
    %1838 = vmax.xlane.f32.xlu0 %v1707
    %v1839 = vpop.xlane.xlu0 %1838
    %1840 = vmax.xlane.f32.xlu0 %v1710
    %v1841 = vpop.xlane.xlu0 %1840
    %1842 = vmax.xlane.f32.xlu0 %v1713
    %v1843 = vpop.xlane.xlu0 %1842
    %1844 = vmax.xlane.f32.xlu0 %v1716
    %v1845 = vpop.xlane.xlu0 %1844
    %v1846 = vsub.f32 %v1527, %v1719
    %v1847 = vsub.f32 %v1530, %v1721
    %v1848 = vsub.f32 %v1533, %v1723
    %v1849 = vsub.f32 %v1536, %v1725
    %v1850 = vsub.f32 %v1539, %v1727
    %v1851 = vsub.f32 %v1542, %v1729
    %v1852 = vsub.f32 %v1545, %v1731
    %v1853 = vsub.f32 %v1548, %v1733
    %v1854 = vsub.f32 %v1551, %v1735
    %v1855 = vsub.f32 %v1554, %v1737
    %v1856 = vsub.f32 %v1557, %v1739
    %v1857 = vsub.f32 %v1560, %v1741
    %v1858 = vsub.f32 %v1563, %v1743
    %v1859 = vsub.f32 %v1566, %v1745
    %v1860 = vsub.f32 %v1569, %v1747
    %v1861 = vsub.f32 %v1572, %v1749
    %v1862 = vsub.f32 %v1575, %v1751
    %v1863 = vsub.f32 %v1578, %v1753
    %v1864 = vsub.f32 %v1581, %v1755
    %v1865 = vsub.f32 %v1584, %v1757
    %v1866 = vsub.f32 %v1587, %v1759
    %v1867 = vsub.f32 %v1590, %v1761
    %v1868 = vsub.f32 %v1593, %v1763
    %v1869 = vsub.f32 %v1596, %v1765
    %v1870 = vsub.f32 %v1599, %v1767
    %v1871 = vsub.f32 %v1602, %v1769
    %v1872 = vsub.f32 %v1605, %v1771
    %v1873 = vsub.f32 %v1608, %v1773
    %v1874 = vsub.f32 %v1611, %v1775
    %v1875 = vsub.f32 %v1614, %v1777
    %v1876 = vsub.f32 %v1617, %v1779
    %v1877 = vsub.f32 %v1620, %v1781
    %v1878 = vsub.f32 %v1623, %v1783
    %v1879 = vsub.f32 %v1626, %v1785
    %v1880 = vsub.f32 %v1629, %v1787
    %v1881 = vsub.f32 %v1632, %v1789
    %v1882 = vsub.f32 %v1635, %v1791
    %v1883 = vsub.f32 %v1638, %v1793
    %v1884 = vsub.f32 %v1641, %v1795
    %v1885 = vsub.f32 %v1644, %v1797
    %v1886 = vsub.f32 %v1647, %v1799
    %v1887 = vsub.f32 %v1650, %v1801
    %v1888 = vsub.f32 %v1653, %v1803
    %v1889 = vsub.f32 %v1656, %v1805
    %v1890 = vsub.f32 %v1659, %v1807
    %v1891 = vsub.f32 %v1662, %v1809
    %v1892 = vsub.f32 %v1665, %v1811
    %v1893 = vsub.f32 %v1668, %v1813
    %v1894 = vsub.f32 %v1671, %v1815
    %v1895 = vsub.f32 %v1674, %v1817
    %v1896 = vsub.f32 %v1677, %v1819
    %v1897 = vsub.f32 %v1680, %v1821
    %v1898 = vsub.f32 %v1683, %v1823
    %v1899 = vsub.f32 %v1686, %v1825
    %v1900 = vsub.f32 %v1689, %v1827
    %v1901 = vsub.f32 %v1692, %v1829
    %v1902 = vsub.f32 %v1695, %v1831
    %v1903 = vsub.f32 %v1698, %v1833
    %v1904 = vsub.f32 %v1701, %v1835
    %v1905 = vsub.f32 %v1704, %v1837
    %v1906 = vsub.f32 %v1707, %v1839
    %v1907 = vsub.f32 %v1710, %v1841
    %v1908 = vsub.f32 %v1713, %v1843
    %v1909 = vsub.f32 %v1716, %v1845
    %v1910 = vmul.f32 %v1846, 1.442695
    %v1911 = vpow.pop %v1910
    %v1912 = vmul.f32 %v1847, 1.442695
    %v1913 = vpow.pop %v1912
    %v1914 = vmul.f32 %v1848, 1.442695
    %v1915 = vpow.pop %v1914
    %v1916 = vmul.f32 %v1849, 1.442695
    %v1917 = vpow.pop %v1916
    %v1918 = vmul.f32 %v1850, 1.442695
    %v1919 = vpow.pop %v1918
    %v1920 = vmul.f32 %v1851, 1.442695
    %v1921 = vpow.pop %v1920
    %v1922 = vmul.f32 %v1852, 1.442695
    %v1923 = vpow.pop %v1922
    %v1924 = vmul.f32 %v1853, 1.442695
    %v1925 = vpow.pop %v1924
    %v1926 = vmul.f32 %v1854, 1.442695
    %v1927 = vpow.pop %v1926
    %v1928 = vmul.f32 %v1855, 1.442695
    %v1929 = vpow.pop %v1928
    %v1930 = vmul.f32 %v1856, 1.442695
    %v1931 = vpow.pop %v1930
    %v1932 = vmul.f32 %v1857, 1.442695
    %v1933 = vpow.pop %v1932
    %v1934 = vmul.f32 %v1858, 1.442695
    %v1935 = vpow.pop %v1934
    %v1936 = vmul.f32 %v1859, 1.442695
    %v1937 = vpow.pop %v1936
    %v1938 = vmul.f32 %v1860, 1.442695
    %v1939 = vpow.pop %v1938
    %v1940 = vmul.f32 %v1861, 1.442695
    %v1941 = vpow.pop %v1940
    %v1942 = vmul.f32 %v1862, 1.442695
    %v1943 = vpow.pop %v1942
    %v1944 = vmul.f32 %v1863, 1.442695
    %v1945 = vpow.pop %v1944
    %v1946 = vmul.f32 %v1864, 1.442695
    %v1947 = vpow.pop %v1946
    %v1948 = vmul.f32 %v1865, 1.442695
    %v1949 = vpow.pop %v1948
    %v1950 = vmul.f32 %v1866, 1.442695
    %v1951 = vpow.pop %v1950
    %v1952 = vmul.f32 %v1867, 1.442695
    %v1953 = vpow.pop %v1952
    %v1954 = vmul.f32 %v1868, 1.442695
    %v1955 = vpow.pop %v1954
    %v1956 = vmul.f32 %v1869, 1.442695
    %v1957 = vpow.pop %v1956
    %v1958 = vmul.f32 %v1870, 1.442695
    %v1959 = vpow.pop %v1958
    %v1960 = vmul.f32 %v1871, 1.442695
    %v1961 = vpow.pop %v1960
    %v1962 = vmul.f32 %v1872, 1.442695
    %v1963 = vpow.pop %v1962
    %v1964 = vmul.f32 %v1873, 1.442695
    %v1965 = vpow.pop %v1964
    %v1966 = vmul.f32 %v1874, 1.442695
    %v1967 = vpow.pop %v1966
    %v1968 = vmul.f32 %v1875, 1.442695
    %v1969 = vpow.pop %v1968
    %v1970 = vmul.f32 %v1876, 1.442695
    %v1971 = vpow.pop %v1970
    %v1972 = vmul.f32 %v1877, 1.442695
    %v1973 = vpow.pop %v1972
    %v1974 = vmul.f32 %v1878, 1.442695
    %v1975 = vpow.pop %v1974
    %v1976 = vmul.f32 %v1879, 1.442695
    %v1977 = vpow.pop %v1976
    %v1978 = vmul.f32 %v1880, 1.442695
    %v1979 = vpow.pop %v1978
    %v1980 = vmul.f32 %v1881, 1.442695
    %v1981 = vpow.pop %v1980
    %v1982 = vmul.f32 %v1882, 1.442695
    %v1983 = vpow.pop %v1982
    %v1984 = vmul.f32 %v1883, 1.442695
    %v1985 = vpow.pop %v1984
    %v1986 = vmul.f32 %v1884, 1.442695
    %v1987 = vpow.pop %v1986
    %v1988 = vmul.f32 %v1885, 1.442695
    %v1989 = vpow.pop %v1988
    %v1990 = vmul.f32 %v1886, 1.442695
    %v1991 = vpow.pop %v1990
    %v1992 = vmul.f32 %v1887, 1.442695
    %v1993 = vpow.pop %v1992
    %v1994 = vmul.f32 %v1888, 1.442695
    %v1995 = vpow.pop %v1994
    %v1996 = vmul.f32 %v1889, 1.442695
    %v1997 = vpow.pop %v1996
    %v1998 = vmul.f32 %v1890, 1.442695
    %v1999 = vpow.pop %v1998
    %v2000 = vmul.f32 %v1891, 1.442695
    %v2001 = vpow.pop %v2000
    %v2002 = vmul.f32 %v1892, 1.442695
    %v2003 = vpow.pop %v2002
    %v2004 = vmul.f32 %v1893, 1.442695
    %v2005 = vpow.pop %v2004
    %v2006 = vmul.f32 %v1894, 1.442695
    %v2007 = vpow.pop %v2006
    %v2008 = vmul.f32 %v1895, 1.442695
    %v2009 = vpow.pop %v2008
    %v2010 = vmul.f32 %v1896, 1.442695
    %v2011 = vpow.pop %v2010
    %v2012 = vmul.f32 %v1897, 1.442695
    %v2013 = vpow.pop %v2012
    %v2014 = vmul.f32 %v1898, 1.442695
    %v2015 = vpow.pop %v2014
    %v2016 = vmul.f32 %v1899, 1.442695
    %v2017 = vpow.pop %v2016
    %v2018 = vmul.f32 %v1900, 1.442695
    %v2019 = vpow.pop %v2018
    %v2020 = vmul.f32 %v1901, 1.442695
    %v2021 = vpow.pop %v2020
    %v2022 = vmul.f32 %v1902, 1.442695
    %v2023 = vpow.pop %v2022
    %v2024 = vmul.f32 %v1903, 1.442695
    %v2025 = vpow.pop %v2024
    %v2026 = vmul.f32 %v1904, 1.442695
    %v2027 = vpow.pop %v2026
    %v2028 = vmul.f32 %v1905, 1.442695
    %v2029 = vpow.pop %v2028
    %v2030 = vmul.f32 %v1906, 1.442695
    %v2031 = vpow.pop %v2030
    %v2032 = vmul.f32 %v1907, 1.442695
    %v2033 = vpow.pop %v2032
    %v2034 = vmul.f32 %v1908, 1.442695
    %v2035 = vpow.pop %v2034
    %v2036 = vmul.f32 %v1909, 1.442695
    %v2037 = vpow.pop %v2036
    %2038 = vadd.xlane.f32.xlu0 %v1911
    %v2039 = vpop.xlane.xlu0 %2038
    %2040 = vadd.xlane.f32.xlu0 %v1913
    %v2041 = vpop.xlane.xlu0 %2040
    %2042 = vadd.xlane.f32.xlu0 %v1915
    %v2043 = vpop.xlane.xlu0 %2042
    %2044 = vadd.xlane.f32.xlu0 %v1917
    %v2045 = vpop.xlane.xlu0 %2044
    %2046 = vadd.xlane.f32.xlu0 %v1919
    %v2047 = vpop.xlane.xlu0 %2046
    %2048 = vadd.xlane.f32.xlu0 %v1921
    %v2049 = vpop.xlane.xlu0 %2048
    %2050 = vadd.xlane.f32.xlu0 %v1923
    %v2051 = vpop.xlane.xlu0 %2050
    %2052 = vadd.xlane.f32.xlu0 %v1925
    %v2053 = vpop.xlane.xlu0 %2052
    %2054 = vadd.xlane.f32.xlu0 %v1927
    %v2055 = vpop.xlane.xlu0 %2054
    %2056 = vadd.xlane.f32.xlu0 %v1929
    %v2057 = vpop.xlane.xlu0 %2056
    %2058 = vadd.xlane.f32.xlu0 %v1931
    %v2059 = vpop.xlane.xlu0 %2058
    %2060 = vadd.xlane.f32.xlu0 %v1933
    %v2061 = vpop.xlane.xlu0 %2060
    %2062 = vadd.xlane.f32.xlu0 %v1935
    %v2063 = vpop.xlane.xlu0 %2062
    %2064 = vadd.xlane.f32.xlu0 %v1937
    %v2065 = vpop.xlane.xlu0 %2064
    %2066 = vadd.xlane.f32.xlu0 %v1939
    %v2067 = vpop.xlane.xlu0 %2066
    %2068 = vadd.xlane.f32.xlu0 %v1941
    %v2069 = vpop.xlane.xlu0 %2068
    %2070 = vadd.xlane.f32.xlu0 %v1943
    %v2071 = vpop.xlane.xlu0 %2070
    %2072 = vadd.xlane.f32.xlu0 %v1945
    %v2073 = vpop.xlane.xlu0 %2072
    %2074 = vadd.xlane.f32.xlu0 %v1947
    %v2075 = vpop.xlane.xlu0 %2074
    %2076 = vadd.xlane.f32.xlu0 %v1949
    %v2077 = vpop.xlane.xlu0 %2076
    %2078 = vadd.xlane.f32.xlu0 %v1951
    %v2079 = vpop.xlane.xlu0 %2078
    %2080 = vadd.xlane.f32.xlu0 %v1953
    %v2081 = vpop.xlane.xlu0 %2080
    %2082 = vadd.xlane.f32.xlu0 %v1955
    %v2083 = vpop.xlane.xlu0 %2082
    %2084 = vadd.xlane.f32.xlu0 %v1957
    %v2085 = vpop.xlane.xlu0 %2084
    %2086 = vadd.xlane.f32.xlu0 %v1959
    %v2087 = vpop.xlane.xlu0 %2086
    %2088 = vadd.xlane.f32.xlu0 %v1961
    %v2089 = vpop.xlane.xlu0 %2088
    %2090 = vadd.xlane.f32.xlu0 %v1963
    %v2091 = vpop.xlane.xlu0 %2090
    %2092 = vadd.xlane.f32.xlu0 %v1965
    %v2093 = vpop.xlane.xlu0 %2092
    %2094 = vadd.xlane.f32.xlu0 %v1967
    %v2095 = vpop.xlane.xlu0 %2094
    %2096 = vadd.xlane.f32.xlu0 %v1969
    %v2097 = vpop.xlane.xlu0 %2096
    %2098 = vadd.xlane.f32.xlu0 %v1971
    %v2099 = vpop.xlane.xlu0 %2098
    %2100 = vadd.xlane.f32.xlu0 %v1973
    %v2101 = vpop.xlane.xlu0 %2100
    %2102 = vadd.xlane.f32.xlu0 %v1975
    %v2103 = vpop.xlane.xlu0 %2102
    %2104 = vadd.xlane.f32.xlu0 %v1977
    %v2105 = vpop.xlane.xlu0 %2104
    %2106 = vadd.xlane.f32.xlu0 %v1979
    %v2107 = vpop.xlane.xlu0 %2106
    %2108 = vadd.xlane.f32.xlu0 %v1981
    %v2109 = vpop.xlane.xlu0 %2108
    %2110 = vadd.xlane.f32.xlu0 %v1983
    %v2111 = vpop.xlane.xlu0 %2110
    %2112 = vadd.xlane.f32.xlu0 %v1985
    %v2113 = vpop.xlane.xlu0 %2112
    %2114 = vadd.xlane.f32.xlu0 %v1987
    %v2115 = vpop.xlane.xlu0 %2114
    %2116 = vadd.xlane.f32.xlu0 %v1989
    %v2117 = vpop.xlane.xlu0 %2116
    %2118 = vadd.xlane.f32.xlu0 %v1991
    %v2119 = vpop.xlane.xlu0 %2118
    %2120 = vadd.xlane.f32.xlu0 %v1993
    %v2121 = vpop.xlane.xlu0 %2120
    %2122 = vadd.xlane.f32.xlu0 %v1995
    %v2123 = vpop.xlane.xlu0 %2122
    %2124 = vadd.xlane.f32.xlu0 %v1997
    %v2125 = vpop.xlane.xlu0 %2124
    %2126 = vadd.xlane.f32.xlu0 %v1999
    %v2127 = vpop.xlane.xlu0 %2126
    %2128 = vadd.xlane.f32.xlu0 %v2001
    %v2129 = vpop.xlane.xlu0 %2128
    %2130 = vadd.xlane.f32.xlu0 %v2003
    %v2131 = vpop.xlane.xlu0 %2130
    %2132 = vadd.xlane.f32.xlu0 %v2005
    %v2133 = vpop.xlane.xlu0 %2132
    %2134 = vadd.xlane.f32.xlu0 %v2007
    %v2135 = vpop.xlane.xlu0 %2134
    %2136 = vadd.xlane.f32.xlu0 %v2009
    %v2137 = vpop.xlane.xlu0 %2136
    %2138 = vadd.xlane.f32.xlu0 %v2011
    %v2139 = vpop.xlane.xlu0 %2138
    %2140 = vadd.xlane.f32.xlu0 %v2013
    %v2141 = vpop.xlane.xlu0 %2140
    %2142 = vadd.xlane.f32.xlu0 %v2015
    %v2143 = vpop.xlane.xlu0 %2142
    %2144 = vadd.xlane.f32.xlu0 %v2017
    %v2145 = vpop.xlane.xlu0 %2144
    %2146 = vadd.xlane.f32.xlu0 %v2019
    %v2147 = vpop.xlane.xlu0 %2146
    %2148 = vadd.xlane.f32.xlu0 %v2021
    %v2149 = vpop.xlane.xlu0 %2148
    %2150 = vadd.xlane.f32.xlu0 %v2023
    %v2151 = vpop.xlane.xlu0 %2150
    %2152 = vadd.xlane.f32.xlu0 %v2025
    %v2153 = vpop.xlane.xlu0 %2152
    %2154 = vadd.xlane.f32.xlu0 %v2027
    %v2155 = vpop.xlane.xlu0 %2154
    %2156 = vadd.xlane.f32.xlu0 %v2029
    %v2157 = vpop.xlane.xlu0 %2156
    %2158 = vadd.xlane.f32.xlu0 %v2031
    %v2159 = vpop.xlane.xlu0 %2158
    %2160 = vadd.xlane.f32.xlu0 %v2033
    %v2161 = vpop.xlane.xlu0 %2160
    %2162 = vadd.xlane.f32.xlu0 %v2035
    %v2163 = vpop.xlane.xlu0 %2162
    %2164 = vadd.xlane.f32.xlu0 %v2037
    %v2165 = vpop.xlane.xlu0 %2164
    %v2166 = vrcp.pop %v2039
    %v2167 = vmul.f32 %v2039, %v2166
    %v2168 = vsub.f32 1.0, %v2167
    %v2169 = vmul.f32 %v2166, %v2168
    %v2170 = vadd.f32 %v2166, %v2169
    %vm2171 = vweird.f32 %v2039
    %vm2172 = vweird.f32 %v2166
    %vm2173 = vmor %vm2171, %vm2172
    %v2174 = vsel %vm2173, %v2166, %v2170
    %v2175 = vand.u32 2147483647, %v2039
    %vm2176 = vcmp.eq.f32.partialorder %v2175, 8.507059e+37
    %v2177 = vand.u32 %v2039, 2147483648
    %v2178 = vor.u32 1.1754944e-38, %v2177
    %v2179 = vsel %vm2176, %v2178, %v2174
    %v2180 = vrcp.pop %v2041
    %v2181 = vmul.f32 %v2041, %v2180
    %v2182 = vsub.f32 1.0, %v2181
    %v2183 = vmul.f32 %v2180, %v2182
    %v2184 = vadd.f32 %v2180, %v2183
    %vm2185 = vweird.f32 %v2041
    %vm2186 = vweird.f32 %v2180
    %vm2187 = vmor %vm2185, %vm2186
    %v2188 = vsel %vm2187, %v2180, %v2184
    %v2189 = vand.u32 2147483647, %v2041
    %vm2190 = vcmp.eq.f32.partialorder %v2189, 8.507059e+37
    %v2191 = vand.u32 %v2041, 2147483648
    %v2192 = vor.u32 1.1754944e-38, %v2191
    %v2193 = vsel %vm2190, %v2192, %v2188
    %v2194 = vrcp.pop %v2043
    %v2195 = vmul.f32 %v2043, %v2194
    %v2196 = vsub.f32 1.0, %v2195
    %v2197 = vmul.f32 %v2194, %v2196
    %v2198 = vadd.f32 %v2194, %v2197
    %vm2199 = vweird.f32 %v2043
    %vm2200 = vweird.f32 %v2194
    %vm2201 = vmor %vm2199, %vm2200
    %v2202 = vsel %vm2201, %v2194, %v2198
    %v2203 = vand.u32 2147483647, %v2043
    %vm2204 = vcmp.eq.f32.partialorder %v2203, 8.507059e+37
    %v2205 = vand.u32 %v2043, 2147483648
    %v2206 = vor.u32 1.1754944e-38, %v2205
    %v2207 = vsel %vm2204, %v2206, %v2202
    %v2208 = vrcp.pop %v2045
    %v2209 = vmul.f32 %v2045, %v2208
    %v2210 = vsub.f32 1.0, %v2209
    %v2211 = vmul.f32 %v2208, %v2210
    %v2212 = vadd.f32 %v2208, %v2211
    %vm2213 = vweird.f32 %v2045
    %vm2214 = vweird.f32 %v2208
    %vm2215 = vmor %vm2213, %vm2214
    %v2216 = vsel %vm2215, %v2208, %v2212
    %v2217 = vand.u32 2147483647, %v2045
    %vm2218 = vcmp.eq.f32.partialorder %v2217, 8.507059e+37
    %v2219 = vand.u32 %v2045, 2147483648
    %v2220 = vor.u32 1.1754944e-38, %v2219
    %v2221 = vsel %vm2218, %v2220, %v2216
    %v2222 = vrcp.pop %v2047
    %v2223 = vmul.f32 %v2047, %v2222
    %v2224 = vsub.f32 1.0, %v2223
    %v2225 = vmul.f32 %v2222, %v2224
    %v2226 = vadd.f32 %v2222, %v2225
    %vm2227 = vweird.f32 %v2047
    %vm2228 = vweird.f32 %v2222
    %vm2229 = vmor %vm2227, %vm2228
    %v2230 = vsel %vm2229, %v2222, %v2226
    %v2231 = vand.u32 2147483647, %v2047
    %vm2232 = vcmp.eq.f32.partialorder %v2231, 8.507059e+37
    %v2233 = vand.u32 %v2047, 2147483648
    %v2234 = vor.u32 1.1754944e-38, %v2233
    %v2235 = vsel %vm2232, %v2234, %v2230
    %v2236 = vrcp.pop %v2049
    %v2237 = vmul.f32 %v2049, %v2236
    %v2238 = vsub.f32 1.0, %v2237
    %v2239 = vmul.f32 %v2236, %v2238
    %v2240 = vadd.f32 %v2236, %v2239
    %vm2241 = vweird.f32 %v2049
    %vm2242 = vweird.f32 %v2236
    %vm2243 = vmor %vm2241, %vm2242
    %v2244 = vsel %vm2243, %v2236, %v2240
    %v2245 = vand.u32 2147483647, %v2049
    %vm2246 = vcmp.eq.f32.partialorder %v2245, 8.507059e+37
    %v2247 = vand.u32 %v2049, 2147483648
    %v2248 = vor.u32 1.1754944e-38, %v2247
    %v2249 = vsel %vm2246, %v2248, %v2244
    %v2250 = vrcp.pop %v2051
    %v2251 = vmul.f32 %v2051, %v2250
    %v2252 = vsub.f32 1.0, %v2251
    %v2253 = vmul.f32 %v2250, %v2252
    %v2254 = vadd.f32 %v2250, %v2253
    %vm2255 = vweird.f32 %v2051
    %vm2256 = vweird.f32 %v2250
    %vm2257 = vmor %vm2255, %vm2256
    %v2258 = vsel %vm2257, %v2250, %v2254
    %v2259 = vand.u32 2147483647, %v2051
    %vm2260 = vcmp.eq.f32.partialorder %v2259, 8.507059e+37
    %v2261 = vand.u32 %v2051, 2147483648
    %v2262 = vor.u32 1.1754944e-38, %v2261
    %v2263 = vsel %vm2260, %v2262, %v2258
    %v2264 = vrcp.pop %v2053
    %v2265 = vmul.f32 %v2053, %v2264
    %v2266 = vsub.f32 1.0, %v2265
    %v2267 = vmul.f32 %v2264, %v2266
    %v2268 = vadd.f32 %v2264, %v2267
    %vm2269 = vweird.f32 %v2053
    %vm2270 = vweird.f32 %v2264
    %vm2271 = vmor %vm2269, %vm2270
    %v2272 = vsel %vm2271, %v2264, %v2268
    %v2273 = vand.u32 2147483647, %v2053
    %vm2274 = vcmp.eq.f32.partialorder %v2273, 8.507059e+37
    %v2275 = vand.u32 %v2053, 2147483648
    %v2276 = vor.u32 1.1754944e-38, %v2275
    %v2277 = vsel %vm2274, %v2276, %v2272
    %v2278 = vrcp.pop %v2055
    %v2279 = vmul.f32 %v2055, %v2278
    %v2280 = vsub.f32 1.0, %v2279
    %v2281 = vmul.f32 %v2278, %v2280
    %v2282 = vadd.f32 %v2278, %v2281
    %vm2283 = vweird.f32 %v2055
    %vm2284 = vweird.f32 %v2278
    %vm2285 = vmor %vm2283, %vm2284
    %v2286 = vsel %vm2285, %v2278, %v2282
    %v2287 = vand.u32 2147483647, %v2055
    %vm2288 = vcmp.eq.f32.partialorder %v2287, 8.507059e+37
    %v2289 = vand.u32 %v2055, 2147483648
    %v2290 = vor.u32 1.1754944e-38, %v2289
    %v2291 = vsel %vm2288, %v2290, %v2286
    %v2292 = vrcp.pop %v2057
    %v2293 = vmul.f32 %v2057, %v2292
    %v2294 = vsub.f32 1.0, %v2293
    %v2295 = vmul.f32 %v2292, %v2294
    %v2296 = vadd.f32 %v2292, %v2295
    %vm2297 = vweird.f32 %v2057
    %vm2298 = vweird.f32 %v2292
    %vm2299 = vmor %vm2297, %vm2298
    %v2300 = vsel %vm2299, %v2292, %v2296
    %v2301 = vand.u32 2147483647, %v2057
    %vm2302 = vcmp.eq.f32.partialorder %v2301, 8.507059e+37
    %v2303 = vand.u32 %v2057, 2147483648
    %v2304 = vor.u32 1.1754944e-38, %v2303
    %v2305 = vsel %vm2302, %v2304, %v2300
    %v2306 = vrcp.pop %v2059
    %v2307 = vmul.f32 %v2059, %v2306
    %v2308 = vsub.f32 1.0, %v2307
    %v2309 = vmul.f32 %v2306, %v2308
    %v2310 = vadd.f32 %v2306, %v2309
    %vm2311 = vweird.f32 %v2059
    %vm2312 = vweird.f32 %v2306
    %vm2313 = vmor %vm2311, %vm2312
    %v2314 = vsel %vm2313, %v2306, %v2310
    %v2315 = vand.u32 2147483647, %v2059
    %vm2316 = vcmp.eq.f32.partialorder %v2315, 8.507059e+37
    %v2317 = vand.u32 %v2059, 2147483648
    %v2318 = vor.u32 1.1754944e-38, %v2317
    %v2319 = vsel %vm2316, %v2318, %v2314
    %v2320 = vrcp.pop %v2061
    %v2321 = vmul.f32 %v2061, %v2320
    %v2322 = vsub.f32 1.0, %v2321
    %v2323 = vmul.f32 %v2320, %v2322
    %v2324 = vadd.f32 %v2320, %v2323
    %vm2325 = vweird.f32 %v2061
    %vm2326 = vweird.f32 %v2320
    %vm2327 = vmor %vm2325, %vm2326
    %v2328 = vsel %vm2327, %v2320, %v2324
    %v2329 = vand.u32 2147483647, %v2061
    %vm2330 = vcmp.eq.f32.partialorder %v2329, 8.507059e+37
    %v2331 = vand.u32 %v2061, 2147483648
    %v2332 = vor.u32 1.1754944e-38, %v2331
    %v2333 = vsel %vm2330, %v2332, %v2328
    %v2334 = vrcp.pop %v2063
    %v2335 = vmul.f32 %v2063, %v2334
    %v2336 = vsub.f32 1.0, %v2335
    %v2337 = vmul.f32 %v2334, %v2336
    %v2338 = vadd.f32 %v2334, %v2337
    %vm2339 = vweird.f32 %v2063
    %vm2340 = vweird.f32 %v2334
    %vm2341 = vmor %vm2339, %vm2340
    %v2342 = vsel %vm2341, %v2334, %v2338
    %v2343 = vand.u32 2147483647, %v2063
    %vm2344 = vcmp.eq.f32.partialorder %v2343, 8.507059e+37
    %v2345 = vand.u32 %v2063, 2147483648
    %v2346 = vor.u32 1.1754944e-38, %v2345
    %v2347 = vsel %vm2344, %v2346, %v2342
    %v2348 = vrcp.pop %v2065
    %v2349 = vmul.f32 %v2065, %v2348
    %v2350 = vsub.f32 1.0, %v2349
    %v2351 = vmul.f32 %v2348, %v2350
    %v2352 = vadd.f32 %v2348, %v2351
    %vm2353 = vweird.f32 %v2065
    %vm2354 = vweird.f32 %v2348
    %vm2355 = vmor %vm2353, %vm2354
    %v2356 = vsel %vm2355, %v2348, %v2352
    %v2357 = vand.u32 2147483647, %v2065
    %vm2358 = vcmp.eq.f32.partialorder %v2357, 8.507059e+37
    %v2359 = vand.u32 %v2065, 2147483648
    %v2360 = vor.u32 1.1754944e-38, %v2359
    %v2361 = vsel %vm2358, %v2360, %v2356
    %v2362 = vrcp.pop %v2067
    %v2363 = vmul.f32 %v2067, %v2362
    %v2364 = vsub.f32 1.0, %v2363
    %v2365 = vmul.f32 %v2362, %v2364
    %v2366 = vadd.f32 %v2362, %v2365
    %vm2367 = vweird.f32 %v2067
    %vm2368 = vweird.f32 %v2362
    %vm2369 = vmor %vm2367, %vm2368
    %v2370 = vsel %vm2369, %v2362, %v2366
    %v2371 = vand.u32 2147483647, %v2067
    %vm2372 = vcmp.eq.f32.partialorder %v2371, 8.507059e+37
    %v2373 = vand.u32 %v2067, 2147483648
    %v2374 = vor.u32 1.1754944e-38, %v2373
    %v2375 = vsel %vm2372, %v2374, %v2370
    %v2376 = vrcp.pop %v2069
    %v2377 = vmul.f32 %v2069, %v2376
    %v2378 = vsub.f32 1.0, %v2377
    %v2379 = vmul.f32 %v2376, %v2378
    %v2380 = vadd.f32 %v2376, %v2379
    %vm2381 = vweird.f32 %v2069
    %vm2382 = vweird.f32 %v2376
    %vm2383 = vmor %vm2381, %vm2382
    %v2384 = vsel %vm2383, %v2376, %v2380
    %v2385 = vand.u32 2147483647, %v2069
    %vm2386 = vcmp.eq.f32.partialorder %v2385, 8.507059e+37
    %v2387 = vand.u32 %v2069, 2147483648
    %v2388 = vor.u32 1.1754944e-38, %v2387
    %v2389 = vsel %vm2386, %v2388, %v2384
    %v2390 = vrcp.pop %v2071
    %v2391 = vmul.f32 %v2071, %v2390
    %v2392 = vsub.f32 1.0, %v2391
    %v2393 = vmul.f32 %v2390, %v2392
    %v2394 = vadd.f32 %v2390, %v2393
    %vm2395 = vweird.f32 %v2071
    %vm2396 = vweird.f32 %v2390
    %vm2397 = vmor %vm2395, %vm2396
    %v2398 = vsel %vm2397, %v2390, %v2394
    %v2399 = vand.u32 2147483647, %v2071
    %vm2400 = vcmp.eq.f32.partialorder %v2399, 8.507059e+37
    %v2401 = vand.u32 %v2071, 2147483648
    %v2402 = vor.u32 1.1754944e-38, %v2401
    %v2403 = vsel %vm2400, %v2402, %v2398
    %v2404 = vrcp.pop %v2073
    %v2405 = vmul.f32 %v2073, %v2404
    %v2406 = vsub.f32 1.0, %v2405
    %v2407 = vmul.f32 %v2404, %v2406
    %v2408 = vadd.f32 %v2404, %v2407
    %vm2409 = vweird.f32 %v2073
    %vm2410 = vweird.f32 %v2404
    %vm2411 = vmor %vm2409, %vm2410
    %v2412 = vsel %vm2411, %v2404, %v2408
    %v2413 = vand.u32 2147483647, %v2073
    %vm2414 = vcmp.eq.f32.partialorder %v2413, 8.507059e+37
    %v2415 = vand.u32 %v2073, 2147483648
    %v2416 = vor.u32 1.1754944e-38, %v2415
    %v2417 = vsel %vm2414, %v2416, %v2412
    %v2418 = vrcp.pop %v2075
    %v2419 = vmul.f32 %v2075, %v2418
    %v2420 = vsub.f32 1.0, %v2419
    %v2421 = vmul.f32 %v2418, %v2420
    %v2422 = vadd.f32 %v2418, %v2421
    %vm2423 = vweird.f32 %v2075
    %vm2424 = vweird.f32 %v2418
    %vm2425 = vmor %vm2423, %vm2424
    %v2426 = vsel %vm2425, %v2418, %v2422
    %v2427 = vand.u32 2147483647, %v2075
    %vm2428 = vcmp.eq.f32.partialorder %v2427, 8.507059e+37
    %v2429 = vand.u32 %v2075, 2147483648
    %v2430 = vor.u32 1.1754944e-38, %v2429
    %v2431 = vsel %vm2428, %v2430, %v2426
    %v2432 = vrcp.pop %v2077
    %v2433 = vmul.f32 %v2077, %v2432
    %v2434 = vsub.f32 1.0, %v2433
    %v2435 = vmul.f32 %v2432, %v2434
    %v2436 = vadd.f32 %v2432, %v2435
    %vm2437 = vweird.f32 %v2077
    %vm2438 = vweird.f32 %v2432
    %vm2439 = vmor %vm2437, %vm2438
    %v2440 = vsel %vm2439, %v2432, %v2436
    %v2441 = vand.u32 2147483647, %v2077
    %vm2442 = vcmp.eq.f32.partialorder %v2441, 8.507059e+37
    %v2443 = vand.u32 %v2077, 2147483648
    %v2444 = vor.u32 1.1754944e-38, %v2443
    %v2445 = vsel %vm2442, %v2444, %v2440
    %v2446 = vrcp.pop %v2079
    %v2447 = vmul.f32 %v2079, %v2446
    %v2448 = vsub.f32 1.0, %v2447
    %v2449 = vmul.f32 %v2446, %v2448
    %v2450 = vadd.f32 %v2446, %v2449
    %vm2451 = vweird.f32 %v2079
    %vm2452 = vweird.f32 %v2446
    %vm2453 = vmor %vm2451, %vm2452
    %v2454 = vsel %vm2453, %v2446, %v2450
    %v2455 = vand.u32 2147483647, %v2079
    %vm2456 = vcmp.eq.f32.partialorder %v2455, 8.507059e+37
    %v2457 = vand.u32 %v2079, 2147483648
    %v2458 = vor.u32 1.1754944e-38, %v2457
    %v2459 = vsel %vm2456, %v2458, %v2454
    %v2460 = vrcp.pop %v2081
    %v2461 = vmul.f32 %v2081, %v2460
    %v2462 = vsub.f32 1.0, %v2461
    %v2463 = vmul.f32 %v2460, %v2462
    %v2464 = vadd.f32 %v2460, %v2463
    %vm2465 = vweird.f32 %v2081
    %vm2466 = vweird.f32 %v2460
    %vm2467 = vmor %vm2465, %vm2466
    %v2468 = vsel %vm2467, %v2460, %v2464
    %v2469 = vand.u32 2147483647, %v2081
    %vm2470 = vcmp.eq.f32.partialorder %v2469, 8.507059e+37
    %v2471 = vand.u32 %v2081, 2147483648
    %v2472 = vor.u32 1.1754944e-38, %v2471
    %v2473 = vsel %vm2470, %v2472, %v2468
    %v2474 = vrcp.pop %v2083
    %v2475 = vmul.f32 %v2083, %v2474
    %v2476 = vsub.f32 1.0, %v2475
    %v2477 = vmul.f32 %v2474, %v2476
    %v2478 = vadd.f32 %v2474, %v2477
    %vm2479 = vweird.f32 %v2083
    %vm2480 = vweird.f32 %v2474
    %vm2481 = vmor %vm2479, %vm2480
    %v2482 = vsel %vm2481, %v2474, %v2478
    %v2483 = vand.u32 2147483647, %v2083
    %vm2484 = vcmp.eq.f32.partialorder %v2483, 8.507059e+37
    %v2485 = vand.u32 %v2083, 2147483648
    %v2486 = vor.u32 1.1754944e-38, %v2485
    %v2487 = vsel %vm2484, %v2486, %v2482
    %v2488 = vrcp.pop %v2085
    %v2489 = vmul.f32 %v2085, %v2488
    %v2490 = vsub.f32 1.0, %v2489
    %v2491 = vmul.f32 %v2488, %v2490
    %v2492 = vadd.f32 %v2488, %v2491
    %vm2493 = vweird.f32 %v2085
    %vm2494 = vweird.f32 %v2488
    %vm2495 = vmor %vm2493, %vm2494
    %v2496 = vsel %vm2495, %v2488, %v2492
    %v2497 = vand.u32 2147483647, %v2085
    %vm2498 = vcmp.eq.f32.partialorder %v2497, 8.507059e+37
    %v2499 = vand.u32 %v2085, 2147483648
    %v2500 = vor.u32 1.1754944e-38, %v2499
    %v2501 = vsel %vm2498, %v2500, %v2496
    %v2502 = vrcp.pop %v2087
    %v2503 = vmul.f32 %v2087, %v2502
    %v2504 = vsub.f32 1.0, %v2503
    %v2505 = vmul.f32 %v2502, %v2504
    %v2506 = vadd.f32 %v2502, %v2505
    %vm2507 = vweird.f32 %v2087
    %vm2508 = vweird.f32 %v2502
    %vm2509 = vmor %vm2507, %vm2508
    %v2510 = vsel %vm2509, %v2502, %v2506
    %v2511 = vand.u32 2147483647, %v2087
    %vm2512 = vcmp.eq.f32.partialorder %v2511, 8.507059e+37
    %v2513 = vand.u32 %v2087, 2147483648
    %v2514 = vor.u32 1.1754944e-38, %v2513
    %v2515 = vsel %vm2512, %v2514, %v2510
    %v2516 = vrcp.pop %v2089
    %v2517 = vmul.f32 %v2089, %v2516
    %v2518 = vsub.f32 1.0, %v2517
    %v2519 = vmul.f32 %v2516, %v2518
    %v2520 = vadd.f32 %v2516, %v2519
    %vm2521 = vweird.f32 %v2089
    %vm2522 = vweird.f32 %v2516
    %vm2523 = vmor %vm2521, %vm2522
    %v2524 = vsel %vm2523, %v2516, %v2520
    %v2525 = vand.u32 2147483647, %v2089
    %vm2526 = vcmp.eq.f32.partialorder %v2525, 8.507059e+37
    %v2527 = vand.u32 %v2089, 2147483648
    %v2528 = vor.u32 1.1754944e-38, %v2527
    %v2529 = vsel %vm2526, %v2528, %v2524
    %v2530 = vrcp.pop %v2091
    %v2531 = vmul.f32 %v2091, %v2530
    %v2532 = vsub.f32 1.0, %v2531
    %v2533 = vmul.f32 %v2530, %v2532
    %v2534 = vadd.f32 %v2530, %v2533
    %vm2535 = vweird.f32 %v2091
    %vm2536 = vweird.f32 %v2530
    %vm2537 = vmor %vm2535, %vm2536
    %v2538 = vsel %vm2537, %v2530, %v2534
    %v2539 = vand.u32 2147483647, %v2091
    %vm2540 = vcmp.eq.f32.partialorder %v2539, 8.507059e+37
    %v2541 = vand.u32 %v2091, 2147483648
    %v2542 = vor.u32 1.1754944e-38, %v2541
    %v2543 = vsel %vm2540, %v2542, %v2538
    %v2544 = vrcp.pop %v2093
    %v2545 = vmul.f32 %v2093, %v2544
    %v2546 = vsub.f32 1.0, %v2545
    %v2547 = vmul.f32 %v2544, %v2546
    %v2548 = vadd.f32 %v2544, %v2547
    %vm2549 = vweird.f32 %v2093
    %vm2550 = vweird.f32 %v2544
    %vm2551 = vmor %vm2549, %vm2550
    %v2552 = vsel %vm2551, %v2544, %v2548
    %v2553 = vand.u32 2147483647, %v2093
    %vm2554 = vcmp.eq.f32.partialorder %v2553, 8.507059e+37
    %v2555 = vand.u32 %v2093, 2147483648
    %v2556 = vor.u32 1.1754944e-38, %v2555
    %v2557 = vsel %vm2554, %v2556, %v2552
    %v2558 = vrcp.pop %v2095
    %v2559 = vmul.f32 %v2095, %v2558
    %v2560 = vsub.f32 1.0, %v2559
    %v2561 = vmul.f32 %v2558, %v2560
    %v2562 = vadd.f32 %v2558, %v2561
    %vm2563 = vweird.f32 %v2095
    %vm2564 = vweird.f32 %v2558
    %vm2565 = vmor %vm2563, %vm2564
    %v2566 = vsel %vm2565, %v2558, %v2562
    %v2567 = vand.u32 2147483647, %v2095
    %vm2568 = vcmp.eq.f32.partialorder %v2567, 8.507059e+37
    %v2569 = vand.u32 %v2095, 2147483648
    %v2570 = vor.u32 1.1754944e-38, %v2569
    %v2571 = vsel %vm2568, %v2570, %v2566
    %v2572 = vrcp.pop %v2097
    %v2573 = vmul.f32 %v2097, %v2572
    %v2574 = vsub.f32 1.0, %v2573
    %v2575 = vmul.f32 %v2572, %v2574
    %v2576 = vadd.f32 %v2572, %v2575
    %vm2577 = vweird.f32 %v2097
    %vm2578 = vweird.f32 %v2572
    %vm2579 = vmor %vm2577, %vm2578
    %v2580 = vsel %vm2579, %v2572, %v2576
    %v2581 = vand.u32 2147483647, %v2097
    %vm2582 = vcmp.eq.f32.partialorder %v2581, 8.507059e+37
    %v2583 = vand.u32 %v2097, 2147483648
    %v2584 = vor.u32 1.1754944e-38, %v2583
    %v2585 = vsel %vm2582, %v2584, %v2580
    %v2586 = vrcp.pop %v2099
    %v2587 = vmul.f32 %v2099, %v2586
    %v2588 = vsub.f32 1.0, %v2587
    %v2589 = vmul.f32 %v2586, %v2588
    %v2590 = vadd.f32 %v2586, %v2589
    %vm2591 = vweird.f32 %v2099
    %vm2592 = vweird.f32 %v2586
    %vm2593 = vmor %vm2591, %vm2592
    %v2594 = vsel %vm2593, %v2586, %v2590
    %v2595 = vand.u32 2147483647, %v2099
    %vm2596 = vcmp.eq.f32.partialorder %v2595, 8.507059e+37
    %v2597 = vand.u32 %v2099, 2147483648
    %v2598 = vor.u32 1.1754944e-38, %v2597
    %v2599 = vsel %vm2596, %v2598, %v2594
    %v2600 = vrcp.pop %v2101
    %v2601 = vmul.f32 %v2101, %v2600
    %v2602 = vsub.f32 1.0, %v2601
    %v2603 = vmul.f32 %v2600, %v2602
    %v2604 = vadd.f32 %v2600, %v2603
    %vm2605 = vweird.f32 %v2101
    %vm2606 = vweird.f32 %v2600
    %vm2607 = vmor %vm2605, %vm2606
    %v2608 = vsel %vm2607, %v2600, %v2604
    %v2609 = vand.u32 2147483647, %v2101
    %vm2610 = vcmp.eq.f32.partialorder %v2609, 8.507059e+37
    %v2611 = vand.u32 %v2101, 2147483648
    %v2612 = vor.u32 1.1754944e-38, %v2611
    %v2613 = vsel %vm2610, %v2612, %v2608
    %v2614 = vrcp.pop %v2103
    %v2615 = vmul.f32 %v2103, %v2614
    %v2616 = vsub.f32 1.0, %v2615
    %v2617 = vmul.f32 %v2614, %v2616
    %v2618 = vadd.f32 %v2614, %v2617
    %vm2619 = vweird.f32 %v2103
    %vm2620 = vweird.f32 %v2614
    %vm2621 = vmor %vm2619, %vm2620
    %v2622 = vsel %vm2621, %v2614, %v2618
    %v2623 = vand.u32 2147483647, %v2103
    %vm2624 = vcmp.eq.f32.partialorder %v2623, 8.507059e+37
    %v2625 = vand.u32 %v2103, 2147483648
    %v2626 = vor.u32 1.1754944e-38, %v2625
    %v2627 = vsel %vm2624, %v2626, %v2622
    %v2628 = vrcp.pop %v2105
    %v2629 = vmul.f32 %v2105, %v2628
    %v2630 = vsub.f32 1.0, %v2629
    %v2631 = vmul.f32 %v2628, %v2630
    %v2632 = vadd.f32 %v2628, %v2631
    %vm2633 = vweird.f32 %v2105
    %vm2634 = vweird.f32 %v2628
    %vm2635 = vmor %vm2633, %vm2634
    %v2636 = vsel %vm2635, %v2628, %v2632
    %v2637 = vand.u32 2147483647, %v2105
    %vm2638 = vcmp.eq.f32.partialorder %v2637, 8.507059e+37
    %v2639 = vand.u32 %v2105, 2147483648
    %v2640 = vor.u32 1.1754944e-38, %v2639
    %v2641 = vsel %vm2638, %v2640, %v2636
    %v2642 = vrcp.pop %v2107
    %v2643 = vmul.f32 %v2107, %v2642
    %v2644 = vsub.f32 1.0, %v2643
    %v2645 = vmul.f32 %v2642, %v2644
    %v2646 = vadd.f32 %v2642, %v2645
    %vm2647 = vweird.f32 %v2107
    %vm2648 = vweird.f32 %v2642
    %vm2649 = vmor %vm2647, %vm2648
    %v2650 = vsel %vm2649, %v2642, %v2646
    %v2651 = vand.u32 2147483647, %v2107
    %vm2652 = vcmp.eq.f32.partialorder %v2651, 8.507059e+37
    %v2653 = vand.u32 %v2107, 2147483648
    %v2654 = vor.u32 1.1754944e-38, %v2653
    %v2655 = vsel %vm2652, %v2654, %v2650
    %v2656 = vrcp.pop %v2109
    %v2657 = vmul.f32 %v2109, %v2656
    %v2658 = vsub.f32 1.0, %v2657
    %v2659 = vmul.f32 %v2656, %v2658
    %v2660 = vadd.f32 %v2656, %v2659
    %vm2661 = vweird.f32 %v2109
    %vm2662 = vweird.f32 %v2656
    %vm2663 = vmor %vm2661, %vm2662
    %v2664 = vsel %vm2663, %v2656, %v2660
    %v2665 = vand.u32 2147483647, %v2109
    %vm2666 = vcmp.eq.f32.partialorder %v2665, 8.507059e+37
    %v2667 = vand.u32 %v2109, 2147483648
    %v2668 = vor.u32 1.1754944e-38, %v2667
    %v2669 = vsel %vm2666, %v2668, %v2664
    %v2670 = vrcp.pop %v2111
    %v2671 = vmul.f32 %v2111, %v2670
    %v2672 = vsub.f32 1.0, %v2671
    %v2673 = vmul.f32 %v2670, %v2672
    %v2674 = vadd.f32 %v2670, %v2673
    %vm2675 = vweird.f32 %v2111
    %vm2676 = vweird.f32 %v2670
    %vm2677 = vmor %vm2675, %vm2676
    %v2678 = vsel %vm2677, %v2670, %v2674
    %v2679 = vand.u32 2147483647, %v2111
    %vm2680 = vcmp.eq.f32.partialorder %v2679, 8.507059e+37
    %v2681 = vand.u32 %v2111, 2147483648
    %v2682 = vor.u32 1.1754944e-38, %v2681
    %v2683 = vsel %vm2680, %v2682, %v2678
    %v2684 = vrcp.pop %v2113
    %v2685 = vmul.f32 %v2113, %v2684
    %v2686 = vsub.f32 1.0, %v2685
    %v2687 = vmul.f32 %v2684, %v2686
    %v2688 = vadd.f32 %v2684, %v2687
    %vm2689 = vweird.f32 %v2113
    %vm2690 = vweird.f32 %v2684
    %vm2691 = vmor %vm2689, %vm2690
    %v2692 = vsel %vm2691, %v2684, %v2688
    %v2693 = vand.u32 2147483647, %v2113
    %vm2694 = vcmp.eq.f32.partialorder %v2693, 8.507059e+37
    %v2695 = vand.u32 %v2113, 2147483648
    %v2696 = vor.u32 1.1754944e-38, %v2695
    %v2697 = vsel %vm2694, %v2696, %v2692
    %v2698 = vrcp.pop %v2115
    %v2699 = vmul.f32 %v2115, %v2698
    %v2700 = vsub.f32 1.0, %v2699
    %v2701 = vmul.f32 %v2698, %v2700
    %v2702 = vadd.f32 %v2698, %v2701
    %vm2703 = vweird.f32 %v2115
    %vm2704 = vweird.f32 %v2698
    %vm2705 = vmor %vm2703, %vm2704
    %v2706 = vsel %vm2705, %v2698, %v2702
    %v2707 = vand.u32 2147483647, %v2115
    %vm2708 = vcmp.eq.f32.partialorder %v2707, 8.507059e+37
    %v2709 = vand.u32 %v2115, 2147483648
    %v2710 = vor.u32 1.1754944e-38, %v2709
    %v2711 = vsel %vm2708, %v2710, %v2706
    %v2712 = vrcp.pop %v2117
    %v2713 = vmul.f32 %v2117, %v2712
    %v2714 = vsub.f32 1.0, %v2713
    %v2715 = vmul.f32 %v2712, %v2714
    %v2716 = vadd.f32 %v2712, %v2715
    %vm2717 = vweird.f32 %v2117
    %vm2718 = vweird.f32 %v2712
    %vm2719 = vmor %vm2717, %vm2718
    %v2720 = vsel %vm2719, %v2712, %v2716
    %v2721 = vand.u32 2147483647, %v2117
    %vm2722 = vcmp.eq.f32.partialorder %v2721, 8.507059e+37
    %v2723 = vand.u32 %v2117, 2147483648
    %v2724 = vor.u32 1.1754944e-38, %v2723
    %v2725 = vsel %vm2722, %v2724, %v2720
    %v2726 = vrcp.pop %v2119
    %v2727 = vmul.f32 %v2119, %v2726
    %v2728 = vsub.f32 1.0, %v2727
    %v2729 = vmul.f32 %v2726, %v2728
    %v2730 = vadd.f32 %v2726, %v2729
    %vm2731 = vweird.f32 %v2119
    %vm2732 = vweird.f32 %v2726
    %vm2733 = vmor %vm2731, %vm2732
    %v2734 = vsel %vm2733, %v2726, %v2730
    %v2735 = vand.u32 2147483647, %v2119
    %vm2736 = vcmp.eq.f32.partialorder %v2735, 8.507059e+37
    %v2737 = vand.u32 %v2119, 2147483648
    %v2738 = vor.u32 1.1754944e-38, %v2737
    %v2739 = vsel %vm2736, %v2738, %v2734
    %v2740 = vrcp.pop %v2121
    %v2741 = vmul.f32 %v2121, %v2740
    %v2742 = vsub.f32 1.0, %v2741
    %v2743 = vmul.f32 %v2740, %v2742
    %v2744 = vadd.f32 %v2740, %v2743
    %vm2745 = vweird.f32 %v2121
    %vm2746 = vweird.f32 %v2740
    %vm2747 = vmor %vm2745, %vm2746
    %v2748 = vsel %vm2747, %v2740, %v2744
    %v2749 = vand.u32 2147483647, %v2121
    %vm2750 = vcmp.eq.f32.partialorder %v2749, 8.507059e+37
    %v2751 = vand.u32 %v2121, 2147483648
    %v2752 = vor.u32 1.1754944e-38, %v2751
    %v2753 = vsel %vm2750, %v2752, %v2748
    %v2754 = vrcp.pop %v2123
    %v2755 = vmul.f32 %v2123, %v2754
    %v2756 = vsub.f32 1.0, %v2755
    %v2757 = vmul.f32 %v2754, %v2756
    %v2758 = vadd.f32 %v2754, %v2757
    %vm2759 = vweird.f32 %v2123
    %vm2760 = vweird.f32 %v2754
    %vm2761 = vmor %vm2759, %vm2760
    %v2762 = vsel %vm2761, %v2754, %v2758
    %v2763 = vand.u32 2147483647, %v2123
    %vm2764 = vcmp.eq.f32.partialorder %v2763, 8.507059e+37
    %v2765 = vand.u32 %v2123, 2147483648
    %v2766 = vor.u32 1.1754944e-38, %v2765
    %v2767 = vsel %vm2764, %v2766, %v2762
    %v2768 = vrcp.pop %v2125
    %v2769 = vmul.f32 %v2125, %v2768
    %v2770 = vsub.f32 1.0, %v2769
    %v2771 = vmul.f32 %v2768, %v2770
    %v2772 = vadd.f32 %v2768, %v2771
    %vm2773 = vweird.f32 %v2125
    %vm2774 = vweird.f32 %v2768
    %vm2775 = vmor %vm2773, %vm2774
    %v2776 = vsel %vm2775, %v2768, %v2772
    %v2777 = vand.u32 2147483647, %v2125
    %vm2778 = vcmp.eq.f32.partialorder %v2777, 8.507059e+37
    %v2779 = vand.u32 %v2125, 2147483648
    %v2780 = vor.u32 1.1754944e-38, %v2779
    %v2781 = vsel %vm2778, %v2780, %v2776
    %v2782 = vrcp.pop %v2127
    %v2783 = vmul.f32 %v2127, %v2782
    %v2784 = vsub.f32 1.0, %v2783
    %v2785 = vmul.f32 %v2782, %v2784
    %v2786 = vadd.f32 %v2782, %v2785
    %vm2787 = vweird.f32 %v2127
    %vm2788 = vweird.f32 %v2782
    %vm2789 = vmor %vm2787, %vm2788
    %v2790 = vsel %vm2789, %v2782, %v2786
    %v2791 = vand.u32 2147483647, %v2127
    %vm2792 = vcmp.eq.f32.partialorder %v2791, 8.507059e+37
    %v2793 = vand.u32 %v2127, 2147483648
    %v2794 = vor.u32 1.1754944e-38, %v2793
    %v2795 = vsel %vm2792, %v2794, %v2790
    %v2796 = vrcp.pop %v2129
    %v2797 = vmul.f32 %v2129, %v2796
    %v2798 = vsub.f32 1.0, %v2797
    %v2799 = vmul.f32 %v2796, %v2798
    %v2800 = vadd.f32 %v2796, %v2799
    %vm2801 = vweird.f32 %v2129
    %vm2802 = vweird.f32 %v2796
    %vm2803 = vmor %vm2801, %vm2802
    %v2804 = vsel %vm2803, %v2796, %v2800
    %v2805 = vand.u32 2147483647, %v2129
    %vm2806 = vcmp.eq.f32.partialorder %v2805, 8.507059e+37
    %v2807 = vand.u32 %v2129, 2147483648
    %v2808 = vor.u32 1.1754944e-38, %v2807
    %v2809 = vsel %vm2806, %v2808, %v2804
    %v2810 = vrcp.pop %v2131
    %v2811 = vmul.f32 %v2131, %v2810
    %v2812 = vsub.f32 1.0, %v2811
    %v2813 = vmul.f32 %v2810, %v2812
    %v2814 = vadd.f32 %v2810, %v2813
    %vm2815 = vweird.f32 %v2131
    %vm2816 = vweird.f32 %v2810
    %vm2817 = vmor %vm2815, %vm2816
    %v2818 = vsel %vm2817, %v2810, %v2814
    %v2819 = vand.u32 2147483647, %v2131
    %vm2820 = vcmp.eq.f32.partialorder %v2819, 8.507059e+37
    %v2821 = vand.u32 %v2131, 2147483648
    %v2822 = vor.u32 1.1754944e-38, %v2821
    %v2823 = vsel %vm2820, %v2822, %v2818
    %v2824 = vrcp.pop %v2133
    %v2825 = vmul.f32 %v2133, %v2824
    %v2826 = vsub.f32 1.0, %v2825
    %v2827 = vmul.f32 %v2824, %v2826
    %v2828 = vadd.f32 %v2824, %v2827
    %vm2829 = vweird.f32 %v2133
    %vm2830 = vweird.f32 %v2824
    %vm2831 = vmor %vm2829, %vm2830
    %v2832 = vsel %vm2831, %v2824, %v2828
    %v2833 = vand.u32 2147483647, %v2133
    %vm2834 = vcmp.eq.f32.partialorder %v2833, 8.507059e+37
    %v2835 = vand.u32 %v2133, 2147483648
    %v2836 = vor.u32 1.1754944e-38, %v2835
    %v2837 = vsel %vm2834, %v2836, %v2832
    %v2838 = vrcp.pop %v2135
    %v2839 = vmul.f32 %v2135, %v2838
    %v2840 = vsub.f32 1.0, %v2839
    %v2841 = vmul.f32 %v2838, %v2840
    %v2842 = vadd.f32 %v2838, %v2841
    %vm2843 = vweird.f32 %v2135
    %vm2844 = vweird.f32 %v2838
    %vm2845 = vmor %vm2843, %vm2844
    %v2846 = vsel %vm2845, %v2838, %v2842
    %v2847 = vand.u32 2147483647, %v2135
    %vm2848 = vcmp.eq.f32.partialorder %v2847, 8.507059e+37
    %v2849 = vand.u32 %v2135, 2147483648
    %v2850 = vor.u32 1.1754944e-38, %v2849
    %v2851 = vsel %vm2848, %v2850, %v2846
    %v2852 = vrcp.pop %v2137
    %v2853 = vmul.f32 %v2137, %v2852
    %v2854 = vsub.f32 1.0, %v2853
    %v2855 = vmul.f32 %v2852, %v2854
    %v2856 = vadd.f32 %v2852, %v2855
    %vm2857 = vweird.f32 %v2137
    %vm2858 = vweird.f32 %v2852
    %vm2859 = vmor %vm2857, %vm2858
    %v2860 = vsel %vm2859, %v2852, %v2856
    %v2861 = vand.u32 2147483647, %v2137
    %vm2862 = vcmp.eq.f32.partialorder %v2861, 8.507059e+37
    %v2863 = vand.u32 %v2137, 2147483648
    %v2864 = vor.u32 1.1754944e-38, %v2863
    %v2865 = vsel %vm2862, %v2864, %v2860
    %v2866 = vrcp.pop %v2139
    %v2867 = vmul.f32 %v2139, %v2866
    %v2868 = vsub.f32 1.0, %v2867
    %v2869 = vmul.f32 %v2866, %v2868
    %v2870 = vadd.f32 %v2866, %v2869
    %vm2871 = vweird.f32 %v2139
    %vm2872 = vweird.f32 %v2866
    %vm2873 = vmor %vm2871, %vm2872
    %v2874 = vsel %vm2873, %v2866, %v2870
    %v2875 = vand.u32 2147483647, %v2139
    %vm2876 = vcmp.eq.f32.partialorder %v2875, 8.507059e+37
    %v2877 = vand.u32 %v2139, 2147483648
    %v2878 = vor.u32 1.1754944e-38, %v2877
    %v2879 = vsel %vm2876, %v2878, %v2874
    %v2880 = vrcp.pop %v2141
    %v2881 = vmul.f32 %v2141, %v2880
    %v2882 = vsub.f32 1.0, %v2881
    %v2883 = vmul.f32 %v2880, %v2882
    %v2884 = vadd.f32 %v2880, %v2883
    %vm2885 = vweird.f32 %v2141
    %vm2886 = vweird.f32 %v2880
    %vm2887 = vmor %vm2885, %vm2886
    %v2888 = vsel %vm2887, %v2880, %v2884
    %v2889 = vand.u32 2147483647, %v2141
    %vm2890 = vcmp.eq.f32.partialorder %v2889, 8.507059e+37
    %v2891 = vand.u32 %v2141, 2147483648
    %v2892 = vor.u32 1.1754944e-38, %v2891
    %v2893 = vsel %vm2890, %v2892, %v2888
    %v2894 = vrcp.pop %v2143
    %v2895 = vmul.f32 %v2143, %v2894
    %v2896 = vsub.f32 1.0, %v2895
    %v2897 = vmul.f32 %v2894, %v2896
    %v2898 = vadd.f32 %v2894, %v2897
    %vm2899 = vweird.f32 %v2143
    %vm2900 = vweird.f32 %v2894
    %vm2901 = vmor %vm2899, %vm2900
    %v2902 = vsel %vm2901, %v2894, %v2898
    %v2903 = vand.u32 2147483647, %v2143
    %vm2904 = vcmp.eq.f32.partialorder %v2903, 8.507059e+37
    %v2905 = vand.u32 %v2143, 2147483648
    %v2906 = vor.u32 1.1754944e-38, %v2905
    %v2907 = vsel %vm2904, %v2906, %v2902
    %v2908 = vrcp.pop %v2145
    %v2909 = vmul.f32 %v2145, %v2908
    %v2910 = vsub.f32 1.0, %v2909
    %v2911 = vmul.f32 %v2908, %v2910
    %v2912 = vadd.f32 %v2908, %v2911
    %vm2913 = vweird.f32 %v2145
    %vm2914 = vweird.f32 %v2908
    %vm2915 = vmor %vm2913, %vm2914
    %v2916 = vsel %vm2915, %v2908, %v2912
    %v2917 = vand.u32 2147483647, %v2145
    %vm2918 = vcmp.eq.f32.partialorder %v2917, 8.507059e+37
    %v2919 = vand.u32 %v2145, 2147483648
    %v2920 = vor.u32 1.1754944e-38, %v2919
    %v2921 = vsel %vm2918, %v2920, %v2916
    %v2922 = vrcp.pop %v2147
    %v2923 = vmul.f32 %v2147, %v2922
    %v2924 = vsub.f32 1.0, %v2923
    %v2925 = vmul.f32 %v2922, %v2924
    %v2926 = vadd.f32 %v2922, %v2925
    %vm2927 = vweird.f32 %v2147
    %vm2928 = vweird.f32 %v2922
    %vm2929 = vmor %vm2927, %vm2928
    %v2930 = vsel %vm2929, %v2922, %v2926
    %v2931 = vand.u32 2147483647, %v2147
    %vm2932 = vcmp.eq.f32.partialorder %v2931, 8.507059e+37
    %v2933 = vand.u32 %v2147, 2147483648
    %v2934 = vor.u32 1.1754944e-38, %v2933
    %v2935 = vsel %vm2932, %v2934, %v2930
    %v2936 = vrcp.pop %v2149
    %v2937 = vmul.f32 %v2149, %v2936
    %v2938 = vsub.f32 1.0, %v2937
    %v2939 = vmul.f32 %v2936, %v2938
    %v2940 = vadd.f32 %v2936, %v2939
    %vm2941 = vweird.f32 %v2149
    %vm2942 = vweird.f32 %v2936
    %vm2943 = vmor %vm2941, %vm2942
    %v2944 = vsel %vm2943, %v2936, %v2940
    %v2945 = vand.u32 2147483647, %v2149
    %vm2946 = vcmp.eq.f32.partialorder %v2945, 8.507059e+37
    %v2947 = vand.u32 %v2149, 2147483648
    %v2948 = vor.u32 1.1754944e-38, %v2947
    %v2949 = vsel %vm2946, %v2948, %v2944
    %v2950 = vrcp.pop %v2151
    %v2951 = vmul.f32 %v2151, %v2950
    %v2952 = vsub.f32 1.0, %v2951
    %v2953 = vmul.f32 %v2950, %v2952
    %v2954 = vadd.f32 %v2950, %v2953
    %vm2955 = vweird.f32 %v2151
    %vm2956 = vweird.f32 %v2950
    %vm2957 = vmor %vm2955, %vm2956
    %v2958 = vsel %vm2957, %v2950, %v2954
    %v2959 = vand.u32 2147483647, %v2151
    %vm2960 = vcmp.eq.f32.partialorder %v2959, 8.507059e+37
    %v2961 = vand.u32 %v2151, 2147483648
    %v2962 = vor.u32 1.1754944e-38, %v2961
    %v2963 = vsel %vm2960, %v2962, %v2958
    %v2964 = vrcp.pop %v2153
    %v2965 = vmul.f32 %v2153, %v2964
    %v2966 = vsub.f32 1.0, %v2965
    %v2967 = vmul.f32 %v2964, %v2966
    %v2968 = vadd.f32 %v2964, %v2967
    %vm2969 = vweird.f32 %v2153
    %vm2970 = vweird.f32 %v2964
    %vm2971 = vmor %vm2969, %vm2970
    %v2972 = vsel %vm2971, %v2964, %v2968
    %v2973 = vand.u32 2147483647, %v2153
    %vm2974 = vcmp.eq.f32.partialorder %v2973, 8.507059e+37
    %v2975 = vand.u32 %v2153, 2147483648
    %v2976 = vor.u32 1.1754944e-38, %v2975
    %v2977 = vsel %vm2974, %v2976, %v2972
    %v2978 = vrcp.pop %v2155
    %v2979 = vmul.f32 %v2155, %v2978
    %v2980 = vsub.f32 1.0, %v2979
    %v2981 = vmul.f32 %v2978, %v2980
    %v2982 = vadd.f32 %v2978, %v2981
    %vm2983 = vweird.f32 %v2155
    %vm2984 = vweird.f32 %v2978
    %vm2985 = vmor %vm2983, %vm2984
    %v2986 = vsel %vm2985, %v2978, %v2982
    %v2987 = vand.u32 2147483647, %v2155
    %vm2988 = vcmp.eq.f32.partialorder %v2987, 8.507059e+37
    %v2989 = vand.u32 %v2155, 2147483648
    %v2990 = vor.u32 1.1754944e-38, %v2989
    %v2991 = vsel %vm2988, %v2990, %v2986
    %v2992 = vrcp.pop %v2157
    %v2993 = vmul.f32 %v2157, %v2992
    %v2994 = vsub.f32 1.0, %v2993
    %v2995 = vmul.f32 %v2992, %v2994
    %v2996 = vadd.f32 %v2992, %v2995
    %vm2997 = vweird.f32 %v2157
    %vm2998 = vweird.f32 %v2992
    %vm2999 = vmor %vm2997, %vm2998
    %v3000 = vsel %vm2999, %v2992, %v2996
    %v3001 = vand.u32 2147483647, %v2157
    %vm3002 = vcmp.eq.f32.partialorder %v3001, 8.507059e+37
    %v3003 = vand.u32 %v2157, 2147483648
    %v3004 = vor.u32 1.1754944e-38, %v3003
    %v3005 = vsel %vm3002, %v3004, %v3000
    %v3006 = vrcp.pop %v2159
    %v3007 = vmul.f32 %v2159, %v3006
    %v3008 = vsub.f32 1.0, %v3007
    %v3009 = vmul.f32 %v3006, %v3008
    %v3010 = vadd.f32 %v3006, %v3009
    %vm3011 = vweird.f32 %v2159
    %vm3012 = vweird.f32 %v3006
    %vm3013 = vmor %vm3011, %vm3012
    %v3014 = vsel %vm3013, %v3006, %v3010
    %v3015 = vand.u32 2147483647, %v2159
    %vm3016 = vcmp.eq.f32.partialorder %v3015, 8.507059e+37
    %v3017 = vand.u32 %v2159, 2147483648
    %v3018 = vor.u32 1.1754944e-38, %v3017
    %v3019 = vsel %vm3016, %v3018, %v3014
    %v3020 = vrcp.pop %v2161
    %v3021 = vmul.f32 %v2161, %v3020
    %v3022 = vsub.f32 1.0, %v3021
    %v3023 = vmul.f32 %v3020, %v3022
    %v3024 = vadd.f32 %v3020, %v3023
    %vm3025 = vweird.f32 %v2161
    %vm3026 = vweird.f32 %v3020
    %vm3027 = vmor %vm3025, %vm3026
    %v3028 = vsel %vm3027, %v3020, %v3024
    %v3029 = vand.u32 2147483647, %v2161
    %vm3030 = vcmp.eq.f32.partialorder %v3029, 8.507059e+37
    %v3031 = vand.u32 %v2161, 2147483648
    %v3032 = vor.u32 1.1754944e-38, %v3031
    %v3033 = vsel %vm3030, %v3032, %v3028
    %v3034 = vrcp.pop %v2163
    %v3035 = vmul.f32 %v2163, %v3034
    %v3036 = vsub.f32 1.0, %v3035
    %v3037 = vmul.f32 %v3034, %v3036
    %v3038 = vadd.f32 %v3034, %v3037
    %vm3039 = vweird.f32 %v2163
    %vm3040 = vweird.f32 %v3034
    %vm3041 = vmor %vm3039, %vm3040
    %v3042 = vsel %vm3041, %v3034, %v3038
    %v3043 = vand.u32 2147483647, %v2163
    %vm3044 = vcmp.eq.f32.partialorder %v3043, 8.507059e+37
    %v3045 = vand.u32 %v2163, 2147483648
    %v3046 = vor.u32 1.1754944e-38, %v3045
    %v3047 = vsel %vm3044, %v3046, %v3042
    %v3048 = vrcp.pop %v2165
    %v3049 = vmul.f32 %v2165, %v3048
    %v3050 = vsub.f32 1.0, %v3049
    %v3051 = vmul.f32 %v3048, %v3050
    %v3052 = vadd.f32 %v3048, %v3051
    %vm3053 = vweird.f32 %v2165
    %vm3054 = vweird.f32 %v3048
    %vm3055 = vmor %vm3053, %vm3054
    %v3056 = vsel %vm3055, %v3048, %v3052
    %v3057 = vand.u32 2147483647, %v2165
    %vm3058 = vcmp.eq.f32.partialorder %v3057, 8.507059e+37
    %v3059 = vand.u32 %v2165, 2147483648
    %v3060 = vor.u32 1.1754944e-38, %v3059
    %v3061 = vsel %vm3058, %v3060, %v3056
    %v3062 = vmul.f32 %v1911, %v2179
    %v3063 = vmul.f32 %v1913, %v2193
    %v3064 = vmul.f32 %v1915, %v2207
    %v3065 = vmul.f32 %v1917, %v2221
    %v3066 = vmul.f32 %v1919, %v2235
    %v3067 = vmul.f32 %v1921, %v2249
    %v3068 = vmul.f32 %v1923, %v2263
    %v3069 = vmul.f32 %v1925, %v2277
    %v3070 = vmul.f32 %v1927, %v2291
    %v3071 = vmul.f32 %v1929, %v2305
    %v3072 = vmul.f32 %v1931, %v2319
    %v3073 = vmul.f32 %v1933, %v2333
    %v3074 = vmul.f32 %v1935, %v2347
    %v3075 = vmul.f32 %v1937, %v2361
    %v3076 = vmul.f32 %v1939, %v2375
    %v3077 = vmul.f32 %v1941, %v2389
    %v3078 = vmul.f32 %v1943, %v2403
    %v3079 = vmul.f32 %v1945, %v2417
    %v3080 = vmul.f32 %v1947, %v2431
    %v3081 = vmul.f32 %v1949, %v2445
    %v3082 = vmul.f32 %v1951, %v2459
    %v3083 = vmul.f32 %v1953, %v2473
    %v3084 = vmul.f32 %v1955, %v2487
    %v3085 = vmul.f32 %v1957, %v2501
    %v3086 = vmul.f32 %v1959, %v2515
    %v3087 = vmul.f32 %v1961, %v2529
    %v3088 = vmul.f32 %v1963, %v2543
    %v3089 = vmul.f32 %v1965, %v2557
    %v3090 = vmul.f32 %v1967, %v2571
    %v3091 = vmul.f32 %v1969, %v2585
    %v3092 = vmul.f32 %v1971, %v2599
    %v3093 = vmul.f32 %v1973, %v2613
    %v3094 = vmul.f32 %v1975, %v2627
    %v3095 = vmul.f32 %v1977, %v2641
    %v3096 = vmul.f32 %v1979, %v2655
    %v3097 = vmul.f32 %v1981, %v2669
    %v3098 = vmul.f32 %v1983, %v2683
    %v3099 = vmul.f32 %v1985, %v2697
    %v3100 = vmul.f32 %v1987, %v2711
    %v3101 = vmul.f32 %v1989, %v2725
    %v3102 = vmul.f32 %v1991, %v2739
    %v3103 = vmul.f32 %v1993, %v2753
    %v3104 = vmul.f32 %v1995, %v2767
    %v3105 = vmul.f32 %v1997, %v2781
    %v3106 = vmul.f32 %v1999, %v2795
    %v3107 = vmul.f32 %v2001, %v2809
    %v3108 = vmul.f32 %v2003, %v2823
    %v3109 = vmul.f32 %v2005, %v2837
    %v3110 = vmul.f32 %v2007, %v2851
    %v3111 = vmul.f32 %v2009, %v2865
    %v3112 = vmul.f32 %v2011, %v2879
    %v3113 = vmul.f32 %v2013, %v2893
    %v3114 = vmul.f32 %v2015, %v2907
    %v3115 = vmul.f32 %v2017, %v2921
    %v3116 = vmul.f32 %v2019, %v2935
    %v3117 = vmul.f32 %v2021, %v2949
    %v3118 = vmul.f32 %v2023, %v2963
    %v3119 = vmul.f32 %v2025, %v2977
    %v3120 = vmul.f32 %v2027, %v2991
    %v3121 = vmul.f32 %v2029, %v3005
    %v3122 = vmul.f32 %v2031, %v3019
    %v3123 = vmul.f32 %v2033, %v3033
    %v3124 = vmul.f32 %v2035, %v3047
    %v3125 = vmul.f32 %v2037, %v3061
    %3142 = vrot.lane.b32.xlu0 %v401, 64
    %v3143 = vpop.permute.xlu0 %3142
    %3144 = vrot.lane.b32.xlu0 %v404, 64
    %v3145 = vpop.permute.xlu0 %3144
    %3146 = vrot.lane.b32.xlu0 %v407, 64
    %v3147 = vpop.permute.xlu0 %3146
    %3148 = vrot.lane.b32.xlu0 %v410, 64
    %v3149 = vpop.permute.xlu0 %3148
    %3150 = vrot.lane.b32.xlu0 %v413, 64
    %v3151 = vpop.permute.xlu0 %3150
    %3152 = vrot.lane.b32.xlu0 %v416, 64
    %v3153 = vpop.permute.xlu0 %3152
    %3154 = vrot.lane.b32.xlu0 %v419, 64
    %v3155 = vpop.permute.xlu0 %3154
    %3156 = vrot.lane.b32.xlu0 %v422, 64
    %v3157 = vpop.permute.xlu0 %3156
    %3158 = vrot.lane.b32.xlu0 %v425, 64
    %v3159 = vpop.permute.xlu0 %3158
    %3160 = vrot.lane.b32.xlu0 %v428, 64
    %v3161 = vpop.permute.xlu0 %3160
    %3162 = vrot.lane.b32.xlu0 %v431, 64
    %v3163 = vpop.permute.xlu0 %3162
    %3164 = vrot.lane.b32.xlu0 %v434, 64
    %v3165 = vpop.permute.xlu0 %3164
    %3166 = vrot.lane.b32.xlu0 %v437, 64
    %v3167 = vpop.permute.xlu0 %3166
    %3168 = vrot.lane.b32.xlu0 %v440, 64
    %v3169 = vpop.permute.xlu0 %3168
    %3170 = vrot.lane.b32.xlu0 %v443, 64
    %v3171 = vpop.permute.xlu0 %3170
    %3172 = vrot.lane.b32.xlu0 %v446, 64
    %v3173 = vpop.permute.xlu0 %3172
    %3190 = vmatpush.msra.mxu0 %v3173
    %3191 = vmatpush.msra.mxu0 %v3171
    %3192 = vmatpush.msra.mxu0 %v3169
    %3193 = vmatpush.msra.mxu0 %v3167
    %3194 = vmatpush.msra.mxu0 %v3165
    %3195 = vmatpush.msra.mxu0 %v3163
    %3196 = vmatpush.msra.mxu0 %v3161
    %3197 = vmatpush.msra.mxu0 %v3159
    %3198 = vmatpush.msra.mxu0 %v3157
    %3199 = vmatpush.msra.mxu0 %v3155
    %3200 = vmatpush.msra.mxu0 %v3153
    %3201 = vmatpush.msra.mxu0 %v3151
    %3202 = vmatpush.msra.mxu0 %v3149
    %3203 = vmatpush.msra.mxu0 %v3147
    %3204 = vmatpush.msra.mxu0 %v3145
    %3205 = vmatpush.msra.mxu0 %v3143
    %3206 = vmatmul.f32.gmra.mxu0 %v3062
    %v3207 = vpop.f32.mrf.mxu0
    %v3208 = vadd.f32 0.0, %v3207
    %3209 = vmatmul.f32.gmra.mxu0 %v3063
    %v3210 = vpop.f32.mrf.mxu0
    %v3211 = vadd.f32 0.0, %v3210
    %3212 = vmatmul.f32.gmra.mxu0 %v3064
    %v3213 = vpop.f32.mrf.mxu0
    %v3214 = vadd.f32 0.0, %v3213
    %3215 = vmatmul.f32.gmra.mxu0 %v3065
    %v3216 = vpop.f32.mrf.mxu0
    %v3217 = vadd.f32 0.0, %v3216
    %3218 = vmatmul.f32.gmra.mxu0 %v3066
    %v3219 = vpop.f32.mrf.mxu0
    %v3220 = vadd.f32 0.0, %v3219
    %3221 = vmatmul.f32.gmra.mxu0 %v3067
    %v3222 = vpop.f32.mrf.mxu0
    %v3223 = vadd.f32 0.0, %v3222
    %3224 = vmatmul.f32.gmra.mxu0 %v3068
    %v3225 = vpop.f32.mrf.mxu0
    %v3226 = vadd.f32 0.0, %v3225
    %3227 = vmatmul.f32.gmra.mxu0 %v3069
    %v3228 = vpop.f32.mrf.mxu0
    %v3229 = vadd.f32 0.0, %v3228
    %3230 = vmatmul.f32.gmra.mxu0 %v3070
    %v3231 = vpop.f32.mrf.mxu0
    %v3232 = vadd.f32 0.0, %v3231
    %3233 = vmatmul.f32.gmra.mxu0 %v3071
    %v3234 = vpop.f32.mrf.mxu0
    %v3235 = vadd.f32 0.0, %v3234
    %3236 = vmatmul.f32.gmra.mxu0 %v3072
    %v3237 = vpop.f32.mrf.mxu0
    %v3238 = vadd.f32 0.0, %v3237
    %3239 = vmatmul.f32.gmra.mxu0 %v3073
    %v3240 = vpop.f32.mrf.mxu0
    %v3241 = vadd.f32 0.0, %v3240
    %3242 = vmatmul.f32.gmra.mxu0 %v3074
    %v3243 = vpop.f32.mrf.mxu0
    %v3244 = vadd.f32 0.0, %v3243
    %3245 = vmatmul.f32.gmra.mxu0 %v3075
    %v3246 = vpop.f32.mrf.mxu0
    %v3247 = vadd.f32 0.0, %v3246
    %3248 = vmatmul.f32.gmra.mxu0 %v3076
    %v3249 = vpop.f32.mrf.mxu0
    %v3250 = vadd.f32 0.0, %v3249
    %3251 = vmatmul.f32.gmra.mxu0 %v3077
    %v3252 = vpop.f32.mrf.mxu0
    %v3253 = vadd.f32 0.0, %v3252
    %3254 = vmatmul.f32.gmra.mxu0 %v3078
    %v3255 = vpop.f32.mrf.mxu0
    %v3256 = vadd.f32 0.0, %v3255
    %3257 = vmatmul.f32.gmra.mxu0 %v3079
    %v3258 = vpop.f32.mrf.mxu0
    %v3259 = vadd.f32 0.0, %v3258
    %3260 = vmatmul.f32.gmra.mxu0 %v3080
    %v3261 = vpop.f32.mrf.mxu0
    %v3262 = vadd.f32 0.0, %v3261
    %3263 = vmatmul.f32.gmra.mxu0 %v3081
    %v3264 = vpop.f32.mrf.mxu0
    %v3265 = vadd.f32 0.0, %v3264
    %3266 = vmatmul.f32.gmra.mxu0 %v3082
    %v3267 = vpop.f32.mrf.mxu0
    %v3268 = vadd.f32 0.0, %v3267
    %3269 = vmatmul.f32.gmra.mxu0 %v3083
    %v3270 = vpop.f32.mrf.mxu0
    %v3271 = vadd.f32 0.0, %v3270
    %3272 = vmatmul.f32.gmra.mxu0 %v3084
    %v3273 = vpop.f32.mrf.mxu0
    %v3274 = vadd.f32 0.0, %v3273
    %3275 = vmatmul.f32.gmra.mxu0 %v3085
    %v3276 = vpop.f32.mrf.mxu0
    %v3277 = vadd.f32 0.0, %v3276
    %3278 = vmatmul.f32.gmra.mxu0 %v3086
    %v3279 = vpop.f32.mrf.mxu0
    %v3280 = vadd.f32 0.0, %v3279
    %3281 = vmatmul.f32.gmra.mxu0 %v3087
    %v3282 = vpop.f32.mrf.mxu0
    %v3283 = vadd.f32 0.0, %v3282
    %3284 = vmatmul.f32.gmra.mxu0 %v3088
    %v3285 = vpop.f32.mrf.mxu0
    %v3286 = vadd.f32 0.0, %v3285
    %3287 = vmatmul.f32.gmra.mxu0 %v3089
    %v3288 = vpop.f32.mrf.mxu0
    %v3289 = vadd.f32 0.0, %v3288
    %3290 = vmatmul.f32.gmra.mxu0 %v3090
    %v3291 = vpop.f32.mrf.mxu0
    %v3292 = vadd.f32 0.0, %v3291
    %3293 = vmatmul.f32.gmra.mxu0 %v3091
    %v3294 = vpop.f32.mrf.mxu0
    %v3295 = vadd.f32 0.0, %v3294
    %3296 = vmatmul.f32.gmra.mxu0 %v3092
    %v3297 = vpop.f32.mrf.mxu0
    %v3298 = vadd.f32 0.0, %v3297
    %3299 = vmatmul.f32.gmra.mxu0 %v3093
    %v3300 = vpop.f32.mrf.mxu0
    %v3301 = vadd.f32 0.0, %v3300
    %3302 = vmatmul.f32.gmra.mxu0 %v3094
    %v3303 = vpop.f32.mrf.mxu0
    %v3304 = vadd.f32 0.0, %v3303
    %3305 = vmatmul.f32.gmra.mxu0 %v3095
    %v3306 = vpop.f32.mrf.mxu0
    %v3307 = vadd.f32 0.0, %v3306
    %3308 = vmatmul.f32.gmra.mxu0 %v3096
    %v3309 = vpop.f32.mrf.mxu0
    %v3310 = vadd.f32 0.0, %v3309
    %3311 = vmatmul.f32.gmra.mxu0 %v3097
    %v3312 = vpop.f32.mrf.mxu0
    %v3313 = vadd.f32 0.0, %v3312
    %3314 = vmatmul.f32.gmra.mxu0 %v3098
    %v3315 = vpop.f32.mrf.mxu0
    %v3316 = vadd.f32 0.0, %v3315
    %3317 = vmatmul.f32.gmra.mxu0 %v3099
    %v3318 = vpop.f32.mrf.mxu0
    %v3319 = vadd.f32 0.0, %v3318
    %3320 = vmatmul.f32.gmra.mxu0 %v3100
    %v3321 = vpop.f32.mrf.mxu0
    %v3322 = vadd.f32 0.0, %v3321
    %3323 = vmatmul.f32.gmra.mxu0 %v3101
    %v3324 = vpop.f32.mrf.mxu0
    %v3325 = vadd.f32 0.0, %v3324
    %3326 = vmatmul.f32.gmra.mxu0 %v3102
    %v3327 = vpop.f32.mrf.mxu0
    %v3328 = vadd.f32 0.0, %v3327
    %3329 = vmatmul.f32.gmra.mxu0 %v3103
    %v3330 = vpop.f32.mrf.mxu0
    %v3331 = vadd.f32 0.0, %v3330
    %3332 = vmatmul.f32.gmra.mxu0 %v3104
    %v3333 = vpop.f32.mrf.mxu0
    %v3334 = vadd.f32 0.0, %v3333
    %3335 = vmatmul.f32.gmra.mxu0 %v3105
    %v3336 = vpop.f32.mrf.mxu0
    %v3337 = vadd.f32 0.0, %v3336
    %3338 = vmatmul.f32.gmra.mxu0 %v3106
    %v3339 = vpop.f32.mrf.mxu0
    %v3340 = vadd.f32 0.0, %v3339
    %3341 = vmatmul.f32.gmra.mxu0 %v3107
    %v3342 = vpop.f32.mrf.mxu0
    %v3343 = vadd.f32 0.0, %v3342
    %3344 = vmatmul.f32.gmra.mxu0 %v3108
    %v3345 = vpop.f32.mrf.mxu0
    %v3346 = vadd.f32 0.0, %v3345
    %3347 = vmatmul.f32.gmra.mxu0 %v3109
    %v3348 = vpop.f32.mrf.mxu0
    %v3349 = vadd.f32 0.0, %v3348
    %3350 = vmatmul.f32.gmra.mxu0 %v3110
    %v3351 = vpop.f32.mrf.mxu0
    %v3352 = vadd.f32 0.0, %v3351
    %3353 = vmatmul.f32.gmra.mxu0 %v3111
    %v3354 = vpop.f32.mrf.mxu0
    %v3355 = vadd.f32 0.0, %v3354
    %3356 = vmatmul.f32.gmra.mxu0 %v3112
    %v3357 = vpop.f32.mrf.mxu0
    %v3358 = vadd.f32 0.0, %v3357
    %3359 = vmatmul.f32.gmra.mxu0 %v3113
    %v3360 = vpop.f32.mrf.mxu0
    %v3361 = vadd.f32 0.0, %v3360
    %3362 = vmatmul.f32.gmra.mxu0 %v3114
    %v3363 = vpop.f32.mrf.mxu0
    %v3364 = vadd.f32 0.0, %v3363
    %3365 = vmatmul.f32.gmra.mxu0 %v3115
    %v3366 = vpop.f32.mrf.mxu0
    %v3367 = vadd.f32 0.0, %v3366
    %3368 = vmatmul.f32.gmra.mxu0 %v3116
    %v3369 = vpop.f32.mrf.mxu0
    %v3370 = vadd.f32 0.0, %v3369
    %3371 = vmatmul.f32.gmra.mxu0 %v3117
    %v3372 = vpop.f32.mrf.mxu0
    %v3373 = vadd.f32 0.0, %v3372
    %3374 = vmatmul.f32.gmra.mxu0 %v3118
    %v3375 = vpop.f32.mrf.mxu0
    %v3376 = vadd.f32 0.0, %v3375
    %3377 = vmatmul.f32.gmra.mxu0 %v3119
    %v3378 = vpop.f32.mrf.mxu0
    %v3379 = vadd.f32 0.0, %v3378
    %3380 = vmatmul.f32.gmra.mxu0 %v3120
    %v3381 = vpop.f32.mrf.mxu0
    %v3382 = vadd.f32 0.0, %v3381
    %3383 = vmatmul.f32.gmra.mxu0 %v3121
    %v3384 = vpop.f32.mrf.mxu0
    %v3385 = vadd.f32 0.0, %v3384
    %3386 = vmatmul.f32.gmra.mxu0 %v3122
    %v3387 = vpop.f32.mrf.mxu0
    %v3388 = vadd.f32 0.0, %v3387
    %3389 = vmatmul.f32.gmra.mxu0 %v3123
    %v3390 = vpop.f32.mrf.mxu0
    %v3391 = vadd.f32 0.0, %v3390
    %3392 = vmatmul.f32.gmra.mxu0 %v3124
    %v3393 = vpop.f32.mrf.mxu0
    %v3394 = vadd.f32 0.0, %v3393
    %3395 = vmatmul.f32.gmra.mxu0 %v3125
    %v3396 = vpop.f32.mrf.mxu0
    %v3397 = vadd.f32 0.0, %v3396
    %3398 = vdwg.mxu0
    %v3399 = vmul.f32 %v3208, %v166
    %v3400 = vmul.f32 %v3211, %v167
    %v3401 = vmul.f32 %v3214, %v168
    %v3402 = vmul.f32 %v3217, %v169
    %v3403 = vmul.f32 %v3220, %v170
    %v3404 = vmul.f32 %v3223, %v171
    %v3405 = vmul.f32 %v3226, %v172
    %v3406 = vmul.f32 %v3229, %v173
    %v3407 = vmul.f32 %v3232, %v174
    %v3408 = vmul.f32 %v3235, %v175
    %v3409 = vmul.f32 %v3238, %v176
    %v3410 = vmul.f32 %v3241, %v177
    %v3411 = vmul.f32 %v3244, %v178
    %v3412 = vmul.f32 %v3247, %v179
    %v3413 = vmul.f32 %v3250, %v180
    %v3414 = vmul.f32 %v3253, %v181
    %v3415 = vmul.f32 %v3256, %v182
    %v3416 = vmul.f32 %v3259, %v183
    %v3417 = vmul.f32 %v3262, %v184
    %v3418 = vmul.f32 %v3265, %v185
    %v3419 = vmul.f32 %v3268, %v186
    %v3420 = vmul.f32 %v3271, %v187
    %v3421 = vmul.f32 %v3274, %v188
    %v3422 = vmul.f32 %v3277, %v189
    %v3423 = vmul.f32 %v3280, %v190
    %v3424 = vmul.f32 %v3283, %v191
    %v3425 = vmul.f32 %v3286, %v192
    %v3426 = vmul.f32 %v3289, %v193
    %v3427 = vmul.f32 %v3292, %v194
    %v3428 = vmul.f32 %v3295, %v195
    %v3429 = vmul.f32 %v3298, %v196
    %v3430 = vmul.f32 %v3301, %v197
    %v3431 = vmul.f32 %v3304, %v198
    %v3432 = vmul.f32 %v3307, %v199
    %v3433 = vmul.f32 %v3310, %v200
    %v3434 = vmul.f32 %v3313, %v201
    %v3435 = vmul.f32 %v3316, %v202
    %v3436 = vmul.f32 %v3319, %v203
    %v3437 = vmul.f32 %v3322, %v204
    %v3438 = vmul.f32 %v3325, %v205
    %v3439 = vmul.f32 %v3328, %v206
    %v3440 = vmul.f32 %v3331, %v207
    %v3441 = vmul.f32 %v3334, %v208
    %v3442 = vmul.f32 %v3337, %v209
    %v3443 = vmul.f32 %v3340, %v210
    %v3444 = vmul.f32 %v3343, %v211
    %v3445 = vmul.f32 %v3346, %v212
    %v3446 = vmul.f32 %v3349, %v213
    %v3447 = vmul.f32 %v3352, %v214
    %v3448 = vmul.f32 %v3355, %v215
    %v3449 = vmul.f32 %v3358, %v216
    %v3450 = vmul.f32 %v3361, %v217
    %v3451 = vmul.f32 %v3364, %v218
    %v3452 = vmul.f32 %v3367, %v219
    %v3453 = vmul.f32 %v3370, %v220
    %v3454 = vmul.f32 %v3373, %v221
    %v3455 = vmul.f32 %v3376, %v222
    %v3456 = vmul.f32 %v3379, %v223
    %v3457 = vmul.f32 %v3382, %v224
    %v3458 = vmul.f32 %v3385, %v225
    %v3459 = vmul.f32 %v3388, %v226
    %v3460 = vmul.f32 %v3391, %v227
    %v3461 = vmul.f32 %v3394, %v228
    %v3462 = vmul.f32 %v3397, %v229
    %v3463 = vadd.f32 %v3399, %v3415
    %v3464 = vadd.f32 %v3400, %v3416
    %v3465 = vadd.f32 %v3401, %v3417
    %v3466 = vadd.f32 %v3402, %v3418
    %v3467 = vadd.f32 %v3403, %v3419
    %v3468 = vadd.f32 %v3404, %v3420
    %v3469 = vadd.f32 %v3405, %v3421
    %v3470 = vadd.f32 %v3406, %v3422
    %v3471 = vadd.f32 %v3407, %v3423
    %v3472 = vadd.f32 %v3408, %v3424
    %v3473 = vadd.f32 %v3409, %v3425
    %v3474 = vadd.f32 %v3410, %v3426
    %v3475 = vadd.f32 %v3411, %v3427
    %v3476 = vadd.f32 %v3412, %v3428
    %v3477 = vadd.f32 %v3413, %v3429
    %v3478 = vadd.f32 %v3414, %v3430
    %v3479 = vadd.f32 %v3463, %v3431
    %v3480 = vadd.f32 %v3464, %v3432
    %v3481 = vadd.f32 %v3465, %v3433
    %v3482 = vadd.f32 %v3466, %v3434
    %v3483 = vadd.f32 %v3467, %v3435
    %v3484 = vadd.f32 %v3468, %v3436
    %v3485 = vadd.f32 %v3469, %v3437
    %v3486 = vadd.f32 %v3470, %v3438
    %v3487 = vadd.f32 %v3471, %v3439
    %v3488 = vadd.f32 %v3472, %v3440
    %v3489 = vadd.f32 %v3473, %v3441
    %v3490 = vadd.f32 %v3474, %v3442
    %v3491 = vadd.f32 %v3475, %v3443
    %v3492 = vadd.f32 %v3476, %v3444
    %v3493 = vadd.f32 %v3477, %v3445
    %v3494 = vadd.f32 %v3478, %v3446
    %v3495 = vadd.f32 %v3479, %v3447
    %v3496 = vadd.f32 %v3480, %v3448
    %v3497 = vadd.f32 %v3481, %v3449
    %v3498 = vadd.f32 %v3482, %v3450
    %v3499 = vadd.f32 %v3483, %v3451
    %v3500 = vadd.f32 %v3484, %v3452
    %v3501 = vadd.f32 %v3485, %v3453
    %v3502 = vadd.f32 %v3486, %v3454
    %v3503 = vadd.f32 %v3487, %v3455
    %v3504 = vadd.f32 %v3488, %v3456
    %v3505 = vadd.f32 %v3489, %v3457
    %v3506 = vadd.f32 %v3490, %v3458
    %v3507 = vadd.f32 %v3491, %v3459
    %v3508 = vadd.f32 %v3492, %v3460
    %v3509 = vadd.f32 %v3493, %v3461
    %v3510 = vadd.f32 %v3494, %v3462
    %v3512 = vperm.slane %v304, 0
    %v3515 = vsel %vm334, %v3495, 0
    %v3518 = vsel %vm334, %v3496, 0
    %v3521 = vsel %vm334, %v3497, 0
    %v3524 = vsel %vm334, %v3498, 0
    %v3527 = vsel %vm334, %v3499, 0
    %v3530 = vsel %vm334, %v3500, 0
    %v3533 = vsel %vm334, %v3501, 0
    %v3536 = vsel %vm334, %v3502, 0
    %v3539 = vsel %vm334, %v3503, 0
    %v3542 = vsel %vm334, %v3504, 0
    %v3545 = vsel %vm334, %v3505, 0
    %v3548 = vsel %vm334, %v3506, 0
    %v3551 = vsel %vm334, %v3507, 0
    %v3554 = vsel %vm334, %v3508, 0
    %v3557 = vsel %vm334, %v3509, 0
    %v3560 = vsel %vm334, %v3510, 0
    %3562 = vmatpush.msra.mxu0 0.0
    %3563 = vmatpush.msra.mxu0 0.0
    %3564 = vmatpush.msra.mxu0 0.0
    %3565 = vmatpush.msra.mxu0 0.0
    %3566 = vmatpush.msra.mxu0 0.0
    %3567 = vmatpush.msra.mxu0 0.0
    %3568 = vmatpush.msra.mxu0 0.0
    %3569 = vmatpush.msra.mxu0 0.0
    %3570 = vmatpush.msra.mxu0 0.0
    %3571 = vmatpush.msra.mxu0 0.0
    %3572 = vmatpush.msra.mxu0 0.0
    %3573 = vmatpush.msra.mxu0 0.0
    %3574 = vmatpush.msra.mxu0 %v303
    %3575 = vmatpush.msra.mxu0 %v302
    %3576 = vmatpush.msra.mxu0 %v301
    %3577 = vmatpush.msra.mxu0 %v300
    %3578 = vmatmul.f32.gmra.mxu0 %v3515
    %v3579 = vpop.f32.mrf.mxu0
    %v3580 = vadd.f32 %v3512, %v3579
    %3581 = vmatmul.f32.gmra.mxu0 %v3518
    %v3582 = vpop.f32.mrf.mxu0
    %v3583 = vadd.f32 %v3512, %v3582
    %3584 = vmatmul.f32.gmra.mxu0 %v3521
    %v3585 = vpop.f32.mrf.mxu0
    %v3586 = vadd.f32 %v3512, %v3585
    %3587 = vmatmul.f32.gmra.mxu0 %v3524
    %v3588 = vpop.f32.mrf.mxu0
    %v3589 = vadd.f32 %v3512, %v3588
    %3590 = vmatmul.f32.gmra.mxu0 %v3527
    %v3591 = vpop.f32.mrf.mxu0
    %v3592 = vadd.f32 %v3512, %v3591
    %3593 = vmatmul.f32.gmra.mxu0 %v3530
    %v3594 = vpop.f32.mrf.mxu0
    %v3595 = vadd.f32 %v3512, %v3594
    %3596 = vmatmul.f32.gmra.mxu0 %v3533
    %v3597 = vpop.f32.mrf.mxu0
    %v3598 = vadd.f32 %v3512, %v3597
    %3599 = vmatmul.f32.gmra.mxu0 %v3536
    %v3600 = vpop.f32.mrf.mxu0
    %v3601 = vadd.f32 %v3512, %v3600
    %3602 = vmatmul.f32.gmra.mxu0 %v3539
    %v3603 = vpop.f32.mrf.mxu0
    %v3604 = vadd.f32 %v3512, %v3603
    %3605 = vmatmul.f32.gmra.mxu0 %v3542
    %v3606 = vpop.f32.mrf.mxu0
    %v3607 = vadd.f32 %v3512, %v3606
    %3608 = vmatmul.f32.gmra.mxu0 %v3545
    %v3609 = vpop.f32.mrf.mxu0
    %v3610 = vadd.f32 %v3512, %v3609
    %3611 = vmatmul.f32.gmra.mxu0 %v3548
    %v3612 = vpop.f32.mrf.mxu0
    %v3613 = vadd.f32 %v3512, %v3612
    %3614 = vmatmul.f32.gmra.mxu0 %v3551
    %v3615 = vpop.f32.mrf.mxu0
    %v3616 = vadd.f32 %v3512, %v3615
    %3617 = vmatmul.f32.gmra.mxu0 %v3554
    %v3618 = vpop.f32.mrf.mxu0
    %v3619 = vadd.f32 %v3512, %v3618
    %3620 = vmatmul.f32.gmra.mxu0 %v3557
    %v3621 = vpop.f32.mrf.mxu0
    %v3622 = vadd.f32 %v3512, %v3621
    %3623 = vmatmul.f32.gmra.mxu0 %v3560
    %v3624 = vpop.f32.mrf.mxu0
    %v3625 = vadd.f32 %v3512, %v3624
    %3626 = vdwg.mxu0
    %v3627 = vsel %vm334, %v3580, 0.0
    %3628 = vadd.xlane.f32.xlu0 %v3627
    %v3629 = vpop.xlane.xlu0 %3628
    %v3630 = vsel %vm334, %v3583, 0.0
    %3631 = vadd.xlane.f32.xlu0 %v3630
    %v3632 = vpop.xlane.xlu0 %3631
    %v3633 = vsel %vm334, %v3586, 0.0
    %3634 = vadd.xlane.f32.xlu0 %v3633
    %v3635 = vpop.xlane.xlu0 %3634
    %v3636 = vsel %vm334, %v3589, 0.0
    %3637 = vadd.xlane.f32.xlu0 %v3636
    %v3638 = vpop.xlane.xlu0 %3637
    %v3639 = vsel %vm334, %v3592, 0.0
    %3640 = vadd.xlane.f32.xlu0 %v3639
    %v3641 = vpop.xlane.xlu0 %3640
    %v3642 = vsel %vm334, %v3595, 0.0
    %3643 = vadd.xlane.f32.xlu0 %v3642
    %v3644 = vpop.xlane.xlu0 %3643
    %v3645 = vsel %vm334, %v3598, 0.0
    %3646 = vadd.xlane.f32.xlu0 %v3645
    %v3647 = vpop.xlane.xlu0 %3646
    %v3648 = vsel %vm334, %v3601, 0.0
    %3649 = vadd.xlane.f32.xlu0 %v3648
    %v3650 = vpop.xlane.xlu0 %3649
    %v3651 = vsel %vm334, %v3604, 0.0
    %3652 = vadd.xlane.f32.xlu0 %v3651
    %v3653 = vpop.xlane.xlu0 %3652
    %v3654 = vsel %vm334, %v3607, 0.0
    %3655 = vadd.xlane.f32.xlu0 %v3654
    %v3656 = vpop.xlane.xlu0 %3655
    %v3657 = vsel %vm334, %v3610, 0.0
    %3658 = vadd.xlane.f32.xlu0 %v3657
    %v3659 = vpop.xlane.xlu0 %3658
    %v3660 = vsel %vm334, %v3613, 0.0
    %3661 = vadd.xlane.f32.xlu0 %v3660
    %v3662 = vpop.xlane.xlu0 %3661
    %v3663 = vsel %vm334, %v3616, 0.0
    %3664 = vadd.xlane.f32.xlu0 %v3663
    %v3665 = vpop.xlane.xlu0 %3664
    %v3666 = vsel %vm334, %v3619, 0.0
    %3667 = vadd.xlane.f32.xlu0 %v3666
    %v3668 = vpop.xlane.xlu0 %3667
    %v3669 = vsel %vm334, %v3622, 0.0
    %3670 = vadd.xlane.f32.xlu0 %v3669
    %v3671 = vpop.xlane.xlu0 %3670
    %v3672 = vsel %vm334, %v3625, 0.0
    %3673 = vadd.xlane.f32.xlu0 %v3672
    %v3674 = vpop.xlane.xlu0 %3673
    %v3675 = vrcp.pop 32.0
    %v3676 = vmul.f32 32.0, %v3675
    %v3677 = vsub.f32 1.0, %v3676
    %v3678 = vmul.f32 %v3675, %v3677
    %v3679 = vadd.f32 %v3675, %v3678
    %vm3680 = vweird.f32 %v3675
    %v3681 = vsel %vm3680, %v3675, %v3679
    %v3682 = vmul.f32 %v3629, %v3681
    %v3683 = vmul.f32 %v3632, %v3681
    %v3684 = vmul.f32 %v3635, %v3681
    %v3685 = vmul.f32 %v3638, %v3681
    %v3686 = vmul.f32 %v3641, %v3681
    %v3687 = vmul.f32 %v3644, %v3681
    %v3688 = vmul.f32 %v3647, %v3681
    %v3689 = vmul.f32 %v3650, %v3681
    %v3690 = vmul.f32 %v3653, %v3681
    %v3691 = vmul.f32 %v3656, %v3681
    %v3692 = vmul.f32 %v3659, %v3681
    %v3693 = vmul.f32 %v3662, %v3681
    %v3694 = vmul.f32 %v3665, %v3681
    %v3695 = vmul.f32 %v3668, %v3681
    %v3696 = vmul.f32 %v3671, %v3681
    %v3697 = vmul.f32 %v3674, %v3681
    %v3698 = vsub.f32 %v3580, %v3682
    %v3699 = vsub.f32 %v3583, %v3683
    %v3700 = vsub.f32 %v3586, %v3684
    %v3701 = vsub.f32 %v3589, %v3685
    %v3702 = vsub.f32 %v3592, %v3686
    %v3703 = vsub.f32 %v3595, %v3687
    %v3704 = vsub.f32 %v3598, %v3688
    %v3705 = vsub.f32 %v3601, %v3689
    %v3706 = vsub.f32 %v3604, %v3690
    %v3707 = vsub.f32 %v3607, %v3691
    %v3708 = vsub.f32 %v3610, %v3692
    %v3709 = vsub.f32 %v3613, %v3693
    %v3710 = vsub.f32 %v3616, %v3694
    %v3711 = vsub.f32 %v3619, %v3695
    %v3712 = vsub.f32 %v3622, %v3696
    %v3713 = vsub.f32 %v3625, %v3697
    %v3714 = vmul.f32 %v3698, %v3698
    %v3715 = vmul.f32 %v3699, %v3699
    %v3716 = vmul.f32 %v3700, %v3700
    %v3717 = vmul.f32 %v3701, %v3701
    %v3718 = vmul.f32 %v3702, %v3702
    %v3719 = vmul.f32 %v3703, %v3703
    %v3720 = vmul.f32 %v3704, %v3704
    %v3721 = vmul.f32 %v3705, %v3705
    %v3722 = vmul.f32 %v3706, %v3706
    %v3723 = vmul.f32 %v3707, %v3707
    %v3724 = vmul.f32 %v3708, %v3708
    %v3725 = vmul.f32 %v3709, %v3709
    %v3726 = vmul.f32 %v3710, %v3710
    %v3727 = vmul.f32 %v3711, %v3711
    %v3728 = vmul.f32 %v3712, %v3712
    %v3729 = vmul.f32 %v3713, %v3713
    %v3730 = vsel %vm334, %v3714, 0.0
    %3731 = vadd.xlane.f32.xlu0 %v3730
    %v3732 = vpop.xlane.xlu0 %3731
    %v3733 = vsel %vm334, %v3715, 0.0
    %3734 = vadd.xlane.f32.xlu0 %v3733
    %v3735 = vpop.xlane.xlu0 %3734
    %v3736 = vsel %vm334, %v3716, 0.0
    %3737 = vadd.xlane.f32.xlu0 %v3736
    %v3738 = vpop.xlane.xlu0 %3737
    %v3739 = vsel %vm334, %v3717, 0.0
    %3740 = vadd.xlane.f32.xlu0 %v3739
    %v3741 = vpop.xlane.xlu0 %3740
    %v3742 = vsel %vm334, %v3718, 0.0
    %3743 = vadd.xlane.f32.xlu0 %v3742
    %v3744 = vpop.xlane.xlu0 %3743
    %v3745 = vsel %vm334, %v3719, 0.0
    %3746 = vadd.xlane.f32.xlu0 %v3745
    %v3747 = vpop.xlane.xlu0 %3746
    %v3748 = vsel %vm334, %v3720, 0.0
    %3749 = vadd.xlane.f32.xlu0 %v3748
    %v3750 = vpop.xlane.xlu0 %3749
    %v3751 = vsel %vm334, %v3721, 0.0
    %3752 = vadd.xlane.f32.xlu0 %v3751
    %v3753 = vpop.xlane.xlu0 %3752
    %v3754 = vsel %vm334, %v3722, 0.0
    %3755 = vadd.xlane.f32.xlu0 %v3754
    %v3756 = vpop.xlane.xlu0 %3755
    %v3757 = vsel %vm334, %v3723, 0.0
    %3758 = vadd.xlane.f32.xlu0 %v3757
    %v3759 = vpop.xlane.xlu0 %3758
    %v3760 = vsel %vm334, %v3724, 0.0
    %3761 = vadd.xlane.f32.xlu0 %v3760
    %v3762 = vpop.xlane.xlu0 %3761
    %v3763 = vsel %vm334, %v3725, 0.0
    %3764 = vadd.xlane.f32.xlu0 %v3763
    %v3765 = vpop.xlane.xlu0 %3764
    %v3766 = vsel %vm334, %v3726, 0.0
    %3767 = vadd.xlane.f32.xlu0 %v3766
    %v3768 = vpop.xlane.xlu0 %3767
    %v3769 = vsel %vm334, %v3727, 0.0
    %3770 = vadd.xlane.f32.xlu0 %v3769
    %v3771 = vpop.xlane.xlu0 %3770
    %v3772 = vsel %vm334, %v3728, 0.0
    %3773 = vadd.xlane.f32.xlu0 %v3772
    %v3774 = vpop.xlane.xlu0 %3773
    %v3775 = vsel %vm334, %v3729, 0.0
    %3776 = vadd.xlane.f32.xlu0 %v3775
    %v3777 = vpop.xlane.xlu0 %3776
    %v3778 = vmul.f32 %v3732, %v3681
    %v3779 = vmul.f32 %v3735, %v3681
    %v3780 = vmul.f32 %v3738, %v3681
    %v3781 = vmul.f32 %v3741, %v3681
    %v3782 = vmul.f32 %v3744, %v3681
    %v3783 = vmul.f32 %v3747, %v3681
    %v3784 = vmul.f32 %v3750, %v3681
    %v3785 = vmul.f32 %v3753, %v3681
    %v3786 = vmul.f32 %v3756, %v3681
    %v3787 = vmul.f32 %v3759, %v3681
    %v3788 = vmul.f32 %v3762, %v3681
    %v3789 = vmul.f32 %v3765, %v3681
    %v3790 = vmul.f32 %v3768, %v3681
    %v3791 = vmul.f32 %v3771, %v3681
    %v3792 = vmul.f32 %v3774, %v3681
    %v3793 = vmul.f32 %v3777, %v3681
    %v3794 = vadd.f32 %v3778, 1e-05
    %v3795 = vadd.f32 %v3779, 1e-05
    %v3796 = vadd.f32 %v3780, 1e-05
    %v3797 = vadd.f32 %v3781, 1e-05
    %v3798 = vadd.f32 %v3782, 1e-05
    %v3799 = vadd.f32 %v3783, 1e-05
    %v3800 = vadd.f32 %v3784, 1e-05
    %v3801 = vadd.f32 %v3785, 1e-05
    %v3802 = vadd.f32 %v3786, 1e-05
    %v3803 = vadd.f32 %v3787, 1e-05
    %v3804 = vadd.f32 %v3788, 1e-05
    %v3805 = vadd.f32 %v3789, 1e-05
    %v3806 = vadd.f32 %v3790, 1e-05
    %v3807 = vadd.f32 %v3791, 1e-05
    %v3808 = vadd.f32 %v3792, 1e-05
    %v3809 = vadd.f32 %v3793, 1e-05
    %v3810 = vrsqrt.pop %v3794
    %v3811 = vmul.f32 %v3810, %v3794
    %v3812 = vmul.f32 %v3811, %v3810
    %v3813 = vmul.f32 0.5, %v3812
    %v3814 = vsub.f32 1.5, %v3813
    %v3815 = vmul.f32 %v3810, %v3814
    %vm3816 = vweird.f32 %v3794
    %vm3817 = vweird.f32 %v3810
    %vm3818 = vmor %vm3816, %vm3817
    %v3819 = vsel %vm3818, %v3810, %v3815
    %v3820 = vrsqrt.pop %v3795
    %v3821 = vmul.f32 %v3820, %v3795
    %v3822 = vmul.f32 %v3821, %v3820
    %v3823 = vmul.f32 0.5, %v3822
    %v3824 = vsub.f32 1.5, %v3823
    %v3825 = vmul.f32 %v3820, %v3824
    %vm3826 = vweird.f32 %v3795
    %vm3827 = vweird.f32 %v3820
    %vm3828 = vmor %vm3826, %vm3827
    %v3829 = vsel %vm3828, %v3820, %v3825
    %v3830 = vrsqrt.pop %v3796
    %v3831 = vmul.f32 %v3830, %v3796
    %v3832 = vmul.f32 %v3831, %v3830
    %v3833 = vmul.f32 0.5, %v3832
    %v3834 = vsub.f32 1.5, %v3833
    %v3835 = vmul.f32 %v3830, %v3834
    %vm3836 = vweird.f32 %v3796
    %vm3837 = vweird.f32 %v3830
    %vm3838 = vmor %vm3836, %vm3837
    %v3839 = vsel %vm3838, %v3830, %v3835
    %v3840 = vrsqrt.pop %v3797
    %v3841 = vmul.f32 %v3840, %v3797
    %v3842 = vmul.f32 %v3841, %v3840
    %v3843 = vmul.f32 0.5, %v3842
    %v3844 = vsub.f32 1.5, %v3843
    %v3845 = vmul.f32 %v3840, %v3844
    %vm3846 = vweird.f32 %v3797
    %vm3847 = vweird.f32 %v3840
    %vm3848 = vmor %vm3846, %vm3847
    %v3849 = vsel %vm3848, %v3840, %v3845
    %v3850 = vrsqrt.pop %v3798
    %v3851 = vmul.f32 %v3850, %v3798
    %v3852 = vmul.f32 %v3851, %v3850
    %v3853 = vmul.f32 0.5, %v3852
    %v3854 = vsub.f32 1.5, %v3853
    %v3855 = vmul.f32 %v3850, %v3854
    %vm3856 = vweird.f32 %v3798
    %vm3857 = vweird.f32 %v3850
    %vm3858 = vmor %vm3856, %vm3857
    %v3859 = vsel %vm3858, %v3850, %v3855
    %v3860 = vrsqrt.pop %v3799
    %v3861 = vmul.f32 %v3860, %v3799
    %v3862 = vmul.f32 %v3861, %v3860
    %v3863 = vmul.f32 0.5, %v3862
    %v3864 = vsub.f32 1.5, %v3863
    %v3865 = vmul.f32 %v3860, %v3864
    %vm3866 = vweird.f32 %v3799
    %vm3867 = vweird.f32 %v3860
    %vm3868 = vmor %vm3866, %vm3867
    %v3869 = vsel %vm3868, %v3860, %v3865
    %v3870 = vrsqrt.pop %v3800
    %v3871 = vmul.f32 %v3870, %v3800
    %v3872 = vmul.f32 %v3871, %v3870
    %v3873 = vmul.f32 0.5, %v3872
    %v3874 = vsub.f32 1.5, %v3873
    %v3875 = vmul.f32 %v3870, %v3874
    %vm3876 = vweird.f32 %v3800
    %vm3877 = vweird.f32 %v3870
    %vm3878 = vmor %vm3876, %vm3877
    %v3879 = vsel %vm3878, %v3870, %v3875
    %v3880 = vrsqrt.pop %v3801
    %v3881 = vmul.f32 %v3880, %v3801
    %v3882 = vmul.f32 %v3881, %v3880
    %v3883 = vmul.f32 0.5, %v3882
    %v3884 = vsub.f32 1.5, %v3883
    %v3885 = vmul.f32 %v3880, %v3884
    %vm3886 = vweird.f32 %v3801
    %vm3887 = vweird.f32 %v3880
    %vm3888 = vmor %vm3886, %vm3887
    %v3889 = vsel %vm3888, %v3880, %v3885
    %v3890 = vrsqrt.pop %v3802
    %v3891 = vmul.f32 %v3890, %v3802
    %v3892 = vmul.f32 %v3891, %v3890
    %v3893 = vmul.f32 0.5, %v3892
    %v3894 = vsub.f32 1.5, %v3893
    %v3895 = vmul.f32 %v3890, %v3894
    %vm3896 = vweird.f32 %v3802
    %vm3897 = vweird.f32 %v3890
    %vm3898 = vmor %vm3896, %vm3897
    %v3899 = vsel %vm3898, %v3890, %v3895
    %v3900 = vrsqrt.pop %v3803
    %v3901 = vmul.f32 %v3900, %v3803
    %v3902 = vmul.f32 %v3901, %v3900
    %v3903 = vmul.f32 0.5, %v3902
    %v3904 = vsub.f32 1.5, %v3903
    %v3905 = vmul.f32 %v3900, %v3904
    %vm3906 = vweird.f32 %v3803
    %vm3907 = vweird.f32 %v3900
    %vm3908 = vmor %vm3906, %vm3907
    %v3909 = vsel %vm3908, %v3900, %v3905
    %v3910 = vrsqrt.pop %v3804
    %v3911 = vmul.f32 %v3910, %v3804
    %v3912 = vmul.f32 %v3911, %v3910
    %v3913 = vmul.f32 0.5, %v3912
    %v3914 = vsub.f32 1.5, %v3913
    %v3915 = vmul.f32 %v3910, %v3914
    %vm3916 = vweird.f32 %v3804
    %vm3917 = vweird.f32 %v3910
    %vm3918 = vmor %vm3916, %vm3917
    %v3919 = vsel %vm3918, %v3910, %v3915
    %v3920 = vrsqrt.pop %v3805
    %v3921 = vmul.f32 %v3920, %v3805
    %v3922 = vmul.f32 %v3921, %v3920
    %v3923 = vmul.f32 0.5, %v3922
    %v3924 = vsub.f32 1.5, %v3923
    %v3925 = vmul.f32 %v3920, %v3924
    %vm3926 = vweird.f32 %v3805
    %vm3927 = vweird.f32 %v3920
    %vm3928 = vmor %vm3926, %vm3927
    %v3929 = vsel %vm3928, %v3920, %v3925
    %v3930 = vrsqrt.pop %v3806
    %v3931 = vmul.f32 %v3930, %v3806
    %v3932 = vmul.f32 %v3931, %v3930
    %v3933 = vmul.f32 0.5, %v3932
    %v3934 = vsub.f32 1.5, %v3933
    %v3935 = vmul.f32 %v3930, %v3934
    %vm3936 = vweird.f32 %v3806
    %vm3937 = vweird.f32 %v3930
    %vm3938 = vmor %vm3936, %vm3937
    %v3939 = vsel %vm3938, %v3930, %v3935
    %v3940 = vrsqrt.pop %v3807
    %v3941 = vmul.f32 %v3940, %v3807
    %v3942 = vmul.f32 %v3941, %v3940
    %v3943 = vmul.f32 0.5, %v3942
    %v3944 = vsub.f32 1.5, %v3943
    %v3945 = vmul.f32 %v3940, %v3944
    %vm3946 = vweird.f32 %v3807
    %vm3947 = vweird.f32 %v3940
    %vm3948 = vmor %vm3946, %vm3947
    %v3949 = vsel %vm3948, %v3940, %v3945
    %v3950 = vrsqrt.pop %v3808
    %v3951 = vmul.f32 %v3950, %v3808
    %v3952 = vmul.f32 %v3951, %v3950
    %v3953 = vmul.f32 0.5, %v3952
    %v3954 = vsub.f32 1.5, %v3953
    %v3955 = vmul.f32 %v3950, %v3954
    %vm3956 = vweird.f32 %v3808
    %vm3957 = vweird.f32 %v3950
    %vm3958 = vmor %vm3956, %vm3957
    %v3959 = vsel %vm3958, %v3950, %v3955
    %v3960 = vrsqrt.pop %v3809
    %v3961 = vmul.f32 %v3960, %v3809
    %v3962 = vmul.f32 %v3961, %v3960
    %v3963 = vmul.f32 0.5, %v3962
    %v3964 = vsub.f32 1.5, %v3963
    %v3965 = vmul.f32 %v3960, %v3964
    %vm3966 = vweird.f32 %v3809
    %vm3967 = vweird.f32 %v3960
    %vm3968 = vmor %vm3966, %vm3967
    %v3969 = vsel %vm3968, %v3960, %v3965
    %v3970 = vmul.f32 %v3698, %v3819
    %v3971 = vmul.f32 %v3699, %v3829
    %v3972 = vmul.f32 %v3700, %v3839
    %v3973 = vmul.f32 %v3701, %v3849
    %v3974 = vmul.f32 %v3702, %v3859
    %v3975 = vmul.f32 %v3703, %v3869
    %v3976 = vmul.f32 %v3704, %v3879
    %v3977 = vmul.f32 %v3705, %v3889
    %v3978 = vmul.f32 %v3706, %v3899
    %v3979 = vmul.f32 %v3707, %v3909
    %v3980 = vmul.f32 %v3708, %v3919
    %v3981 = vmul.f32 %v3709, %v3929
    %v3982 = vmul.f32 %v3710, %v3939
    %v3983 = vmul.f32 %v3711, %v3949
    %v3984 = vmul.f32 %v3712, %v3959
    %v3985 = vmul.f32 %v3713, %v3969
    %v3987 = vperm.slane %v305, 0
    %v3989 = vmul.f32 %v3970, %v3987
    %v3990 = vmul.f32 %v3971, %v3987
    %v3991 = vmul.f32 %v3972, %v3987
    %v3992 = vmul.f32 %v3973, %v3987
    %v3993 = vmul.f32 %v3974, %v3987
    %v3994 = vmul.f32 %v3975, %v3987
    %v3995 = vmul.f32 %v3976, %v3987
    %v3996 = vmul.f32 %v3977, %v3987
    %v3997 = vmul.f32 %v3978, %v3987
    %v3998 = vmul.f32 %v3979, %v3987
    %v3999 = vmul.f32 %v3980, %v3987
    %v4000 = vmul.f32 %v3981, %v3987
    %v4001 = vmul.f32 %v3982, %v3987
    %v4002 = vmul.f32 %v3983, %v3987
    %v4003 = vmul.f32 %v3984, %v3987
    %v4004 = vmul.f32 %v3985, %v3987
    %v4005 = vadd.f32 %v146, %v3989
    %v4006 = vadd.f32 %v147, %v3990
    %v4007 = vadd.f32 %v148, %v3991
    %v4008 = vadd.f32 %v149, %v3992
    %v4009 = vadd.f32 %v150, %v3993
    %v4010 = vadd.f32 %v151, %v3994
    %v4011 = vadd.f32 %v152, %v3995
    %v4012 = vadd.f32 %v153, %v3996
    %v4013 = vadd.f32 %v154, %v3997
    %v4014 = vadd.f32 %v155, %v3998
    %v4015 = vadd.f32 %v156, %v3999
    %v4016 = vadd.f32 %v157, %v4000
    %v4017 = vadd.f32 %v158, %v4001
    %v4018 = vadd.f32 %v159, %v4002
    %v4019 = vadd.f32 %v160, %v4003
    %v4020 = vadd.f32 %v161, %v4004
    %v4022 = vperm.slane %v306, 0
    %v4024 = vadd.f32 %v4005, %v4022
    %v4025 = vadd.f32 %v4006, %v4022
    %v4026 = vadd.f32 %v4007, %v4022
    %v4027 = vadd.f32 %v4008, %v4022
    %v4028 = vadd.f32 %v4009, %v4022
    %v4029 = vadd.f32 %v4010, %v4022
    %v4030 = vadd.f32 %v4011, %v4022
    %v4031 = vadd.f32 %v4012, %v4022
    %v4032 = vadd.f32 %v4013, %v4022
    %v4033 = vadd.f32 %v4014, %v4022
    %v4034 = vadd.f32 %v4015, %v4022
    %v4035 = vadd.f32 %v4016, %v4022
    %v4036 = vadd.f32 %v4017, %v4022
    %v4037 = vadd.f32 %v4018, %v4022
    %v4038 = vadd.f32 %v4019, %v4022
    %v4039 = vadd.f32 %v4020, %v4022
    %v4041 = vperm.slane %v311, 0
    %v4044 = vsel %vm334, %v4024, 0
    %v4047 = vsel %vm334, %v4025, 0
    %v4050 = vsel %vm334, %v4026, 0
    %v4053 = vsel %vm334, %v4027, 0
    %v4056 = vsel %vm334, %v4028, 0
    %v4059 = vsel %vm334, %v4029, 0
    %v4062 = vsel %vm334, %v4030, 0
    %v4065 = vsel %vm334, %v4031, 0
    %v4068 = vsel %vm334, %v4032, 0
    %v4071 = vsel %vm334, %v4033, 0
    %v4074 = vsel %vm334, %v4034, 0
    %v4077 = vsel %vm334, %v4035, 0
    %v4080 = vsel %vm334, %v4036, 0
    %v4083 = vsel %vm334, %v4037, 0
    %v4086 = vsel %vm334, %v4038, 0
    %v4089 = vsel %vm334, %v4039, 0
    %4091 = vmatpush.msra.mxu0 0.0
    %4092 = vmatpush.msra.mxu0 0.0
    %4093 = vmatpush.msra.mxu0 0.0
    %4094 = vmatpush.msra.mxu0 0.0
    %4095 = vmatpush.msra.mxu0 0.0
    %4096 = vmatpush.msra.mxu0 0.0
    %4097 = vmatpush.msra.mxu0 0.0
    %4098 = vmatpush.msra.mxu0 0.0
    %4099 = vmatpush.msra.mxu0 0.0
    %4100 = vmatpush.msra.mxu0 0.0
    %4101 = vmatpush.msra.mxu0 0.0
    %4102 = vmatpush.msra.mxu0 0.0
    %4103 = vmatpush.msra.mxu0 %v310
    %4104 = vmatpush.msra.mxu0 %v309
    %4105 = vmatpush.msra.mxu0 %v308
    %4106 = vmatpush.msra.mxu0 %v307
    %4107 = vmatmul.f32.gmra.mxu0 %v4044
    %v4108 = vpop.f32.mrf.mxu0
    %v4109 = vadd.f32 %v4041, %v4108
    %4110 = vmatmul.f32.gmra.mxu0 %v4047
    %v4111 = vpop.f32.mrf.mxu0
    %v4112 = vadd.f32 %v4041, %v4111
    %4113 = vmatmul.f32.gmra.mxu0 %v4050
    %v4114 = vpop.f32.mrf.mxu0
    %v4115 = vadd.f32 %v4041, %v4114
    %4116 = vmatmul.f32.gmra.mxu0 %v4053
    %v4117 = vpop.f32.mrf.mxu0
    %v4118 = vadd.f32 %v4041, %v4117
    %4119 = vmatmul.f32.gmra.mxu0 %v4056
    %v4120 = vpop.f32.mrf.mxu0
    %v4121 = vadd.f32 %v4041, %v4120
    %4122 = vmatmul.f32.gmra.mxu0 %v4059
    %v4123 = vpop.f32.mrf.mxu0
    %v4124 = vadd.f32 %v4041, %v4123
    %4125 = vmatmul.f32.gmra.mxu0 %v4062
    %v4126 = vpop.f32.mrf.mxu0
    %v4127 = vadd.f32 %v4041, %v4126
    %4128 = vmatmul.f32.gmra.mxu0 %v4065
    %v4129 = vpop.f32.mrf.mxu0
    %v4130 = vadd.f32 %v4041, %v4129
    %4131 = vmatmul.f32.gmra.mxu0 %v4068
    %v4132 = vpop.f32.mrf.mxu0
    %v4133 = vadd.f32 %v4041, %v4132
    %4134 = vmatmul.f32.gmra.mxu0 %v4071
    %v4135 = vpop.f32.mrf.mxu0
    %v4136 = vadd.f32 %v4041, %v4135
    %4137 = vmatmul.f32.gmra.mxu0 %v4074
    %v4138 = vpop.f32.mrf.mxu0
    %v4139 = vadd.f32 %v4041, %v4138
    %4140 = vmatmul.f32.gmra.mxu0 %v4077
    %v4141 = vpop.f32.mrf.mxu0
    %v4142 = vadd.f32 %v4041, %v4141
    %4143 = vmatmul.f32.gmra.mxu0 %v4080
    %v4144 = vpop.f32.mrf.mxu0
    %v4145 = vadd.f32 %v4041, %v4144
    %4146 = vmatmul.f32.gmra.mxu0 %v4083
    %v4147 = vpop.f32.mrf.mxu0
    %v4148 = vadd.f32 %v4041, %v4147
    %4149 = vmatmul.f32.gmra.mxu0 %v4086
    %v4150 = vpop.f32.mrf.mxu0
    %v4151 = vadd.f32 %v4041, %v4150
    %4152 = vmatmul.f32.gmra.mxu0 %v4089
    %v4153 = vpop.f32.mrf.mxu0
    %v4154 = vadd.f32 %v4041, %v4153
    %4155 = vdwg.mxu0
    %v4156 = vmul.f32 %v4109, 0.5
    %v4157 = vmul.f32 %v4112, 0.5
    %v4158 = vmul.f32 %v4115, 0.5
    %v4159 = vmul.f32 %v4118, 0.5
    %v4160 = vmul.f32 %v4121, 0.5
    %v4161 = vmul.f32 %v4124, 0.5
    %v4162 = vmul.f32 %v4127, 0.5
    %v4163 = vmul.f32 %v4130, 0.5
    %v4164 = vmul.f32 %v4133, 0.5
    %v4165 = vmul.f32 %v4136, 0.5
    %v4166 = vmul.f32 %v4139, 0.5
    %v4167 = vmul.f32 %v4142, 0.5
    %v4168 = vmul.f32 %v4145, 0.5
    %v4169 = vmul.f32 %v4148, 0.5
    %v4170 = vmul.f32 %v4151, 0.5
    %v4171 = vmul.f32 %v4154, 0.5
    %v4172 = vmul.f32 %v4109, 0.70710677
    %v4173 = vmul.f32 %v4112, 0.70710677
    %v4174 = vmul.f32 %v4115, 0.70710677
    %v4175 = vmul.f32 %v4118, 0.70710677
    %v4176 = vmul.f32 %v4121, 0.70710677
    %v4177 = vmul.f32 %v4124, 0.70710677
    %v4178 = vmul.f32 %v4127, 0.70710677
    %v4179 = vmul.f32 %v4130, 0.70710677
    %v4180 = vmul.f32 %v4133, 0.70710677
    %v4181 = vmul.f32 %v4136, 0.70710677
    %v4182 = vmul.f32 %v4139, 0.70710677
    %v4183 = vmul.f32 %v4142, 0.70710677
    %v4184 = vmul.f32 %v4145, 0.70710677
    %v4185 = vmul.f32 %v4148, 0.70710677
    %v4186 = vmul.f32 %v4151, 0.70710677
    %v4187 = vmul.f32 %v4154, 0.70710677
    %v4188 = vand.u32 2147483647, %v4172
    %v4189 = vand.u32 2147483647, %v4173
    %v4190 = vand.u32 2147483647, %v4174
    %v4191 = vand.u32 2147483647, %v4175
    %v4192 = vand.u32 2147483647, %v4176
    %v4193 = vand.u32 2147483647, %v4177
    %v4194 = vand.u32 2147483647, %v4178
    %v4195 = vand.u32 2147483647, %v4179
    %v4196 = vand.u32 2147483647, %v4180
    %v4197 = vand.u32 2147483647, %v4181
    %v4198 = vand.u32 2147483647, %v4182
    %v4199 = vand.u32 2147483647, %v4183
    %v4200 = vand.u32 2147483647, %v4184
    %v4201 = vand.u32 2147483647, %v4185
    %v4202 = vand.u32 2147483647, %v4186
    %v4203 = vand.u32 2147483647, %v4187
    %v4204 = vmul.f32 %v4188, 0.3275911
    %v4205 = vmul.f32 %v4189, 0.3275911
    %v4206 = vmul.f32 %v4190, 0.3275911
    %v4207 = vmul.f32 %v4191, 0.3275911
    %v4208 = vmul.f32 %v4192, 0.3275911
    %v4209 = vmul.f32 %v4193, 0.3275911
    %v4210 = vmul.f32 %v4194, 0.3275911
    %v4211 = vmul.f32 %v4195, 0.3275911
    %v4212 = vmul.f32 %v4196, 0.3275911
    %v4213 = vmul.f32 %v4197, 0.3275911
    %v4214 = vmul.f32 %v4198, 0.3275911
    %v4215 = vmul.f32 %v4199, 0.3275911
    %v4216 = vmul.f32 %v4200, 0.3275911
    %v4217 = vmul.f32 %v4201, 0.3275911
    %v4218 = vmul.f32 %v4202, 0.3275911
    %v4219 = vmul.f32 %v4203, 0.3275911
    %v4220 = vadd.f32 %v4204, 1.0
    %v4221 = vadd.f32 %v4205, 1.0
    %v4222 = vadd.f32 %v4206, 1.0
    %v4223 = vadd.f32 %v4207, 1.0
    %v4224 = vadd.f32 %v4208, 1.0
    %v4225 = vadd.f32 %v4209, 1.0
    %v4226 = vadd.f32 %v4210, 1.0
    %v4227 = vadd.f32 %v4211, 1.0
    %v4228 = vadd.f32 %v4212, 1.0
    %v4229 = vadd.f32 %v4213, 1.0
    %v4230 = vadd.f32 %v4214, 1.0
    %v4231 = vadd.f32 %v4215, 1.0
    %v4232 = vadd.f32 %v4216, 1.0
    %v4233 = vadd.f32 %v4217, 1.0
    %v4234 = vadd.f32 %v4218, 1.0
    %v4235 = vadd.f32 %v4219, 1.0
    %v4236 = vrcp.pop %v4220
    %v4237 = vmul.f32 %v4220, %v4236
    %v4238 = vsub.f32 1.0, %v4237
    %v4239 = vmul.f32 %v4236, %v4238
    %v4240 = vadd.f32 %v4236, %v4239
    %vm4241 = vweird.f32 %v4220
    %vm4242 = vweird.f32 %v4236
    %vm4243 = vmor %vm4241, %vm4242
    %v4244 = vsel %vm4243, %v4236, %v4240
    %v4245 = vand.u32 2147483647, %v4220
    %vm4246 = vcmp.eq.f32.partialorder %v4245, 8.507059e+37
    %v4247 = vand.u32 %v4220, 2147483648
    %v4248 = vor.u32 1.1754944e-38, %v4247
    %v4249 = vsel %vm4246, %v4248, %v4244
    %v4250 = vmul.f32 1.0, %v4249
    %v4251 = vrcp.pop %v4221
    %v4252 = vmul.f32 %v4221, %v4251
    %v4253 = vsub.f32 1.0, %v4252
    %v4254 = vmul.f32 %v4251, %v4253
    %v4255 = vadd.f32 %v4251, %v4254
    %vm4256 = vweird.f32 %v4221
    %vm4257 = vweird.f32 %v4251
    %vm4258 = vmor %vm4256, %vm4257
    %v4259 = vsel %vm4258, %v4251, %v4255
    %v4260 = vand.u32 2147483647, %v4221
    %vm4261 = vcmp.eq.f32.partialorder %v4260, 8.507059e+37
    %v4262 = vand.u32 %v4221, 2147483648
    %v4263 = vor.u32 1.1754944e-38, %v4262
    %v4264 = vsel %vm4261, %v4263, %v4259
    %v4265 = vmul.f32 1.0, %v4264
    %v4266 = vrcp.pop %v4222
    %v4267 = vmul.f32 %v4222, %v4266
    %v4268 = vsub.f32 1.0, %v4267
    %v4269 = vmul.f32 %v4266, %v4268
    %v4270 = vadd.f32 %v4266, %v4269
    %vm4271 = vweird.f32 %v4222
    %vm4272 = vweird.f32 %v4266
    %vm4273 = vmor %vm4271, %vm4272
    %v4274 = vsel %vm4273, %v4266, %v4270
    %v4275 = vand.u32 2147483647, %v4222
    %vm4276 = vcmp.eq.f32.partialorder %v4275, 8.507059e+37
    %v4277 = vand.u32 %v4222, 2147483648
    %v4278 = vor.u32 1.1754944e-38, %v4277
    %v4279 = vsel %vm4276, %v4278, %v4274
    %v4280 = vmul.f32 1.0, %v4279
    %v4281 = vrcp.pop %v4223
    %v4282 = vmul.f32 %v4223, %v4281
    %v4283 = vsub.f32 1.0, %v4282
    %v4284 = vmul.f32 %v4281, %v4283
    %v4285 = vadd.f32 %v4281, %v4284
    %vm4286 = vweird.f32 %v4223
    %vm4287 = vweird.f32 %v4281
    %vm4288 = vmor %vm4286, %vm4287
    %v4289 = vsel %vm4288, %v4281, %v4285
    %v4290 = vand.u32 2147483647, %v4223
    %vm4291 = vcmp.eq.f32.partialorder %v4290, 8.507059e+37
    %v4292 = vand.u32 %v4223, 2147483648
    %v4293 = vor.u32 1.1754944e-38, %v4292
    %v4294 = vsel %vm4291, %v4293, %v4289
    %v4295 = vmul.f32 1.0, %v4294
    %v4296 = vrcp.pop %v4224
    %v4297 = vmul.f32 %v4224, %v4296
    %v4298 = vsub.f32 1.0, %v4297
    %v4299 = vmul.f32 %v4296, %v4298
    %v4300 = vadd.f32 %v4296, %v4299
    %vm4301 = vweird.f32 %v4224
    %vm4302 = vweird.f32 %v4296
    %vm4303 = vmor %vm4301, %vm4302
    %v4304 = vsel %vm4303, %v4296, %v4300
    %v4305 = vand.u32 2147483647, %v4224
    %vm4306 = vcmp.eq.f32.partialorder %v4305, 8.507059e+37
    %v4307 = vand.u32 %v4224, 2147483648
    %v4308 = vor.u32 1.1754944e-38, %v4307
    %v4309 = vsel %vm4306, %v4308, %v4304
    %v4310 = vmul.f32 1.0, %v4309
    %v4311 = vrcp.pop %v4225
    %v4312 = vmul.f32 %v4225, %v4311
    %v4313 = vsub.f32 1.0, %v4312
    %v4314 = vmul.f32 %v4311, %v4313
    %v4315 = vadd.f32 %v4311, %v4314
    %vm4316 = vweird.f32 %v4225
    %vm4317 = vweird.f32 %v4311
    %vm4318 = vmor %vm4316, %vm4317
    %v4319 = vsel %vm4318, %v4311, %v4315
    %v4320 = vand.u32 2147483647, %v4225
    %vm4321 = vcmp.eq.f32.partialorder %v4320, 8.507059e+37
    %v4322 = vand.u32 %v4225, 2147483648
    %v4323 = vor.u32 1.1754944e-38, %v4322
    %v4324 = vsel %vm4321, %v4323, %v4319
    %v4325 = vmul.f32 1.0, %v4324
    %v4326 = vrcp.pop %v4226
    %v4327 = vmul.f32 %v4226, %v4326
    %v4328 = vsub.f32 1.0, %v4327
    %v4329 = vmul.f32 %v4326, %v4328
    %v4330 = vadd.f32 %v4326, %v4329
    %vm4331 = vweird.f32 %v4226
    %vm4332 = vweird.f32 %v4326
    %vm4333 = vmor %vm4331, %vm4332
    %v4334 = vsel %vm4333, %v4326, %v4330
    %v4335 = vand.u32 2147483647, %v4226
    %vm4336 = vcmp.eq.f32.partialorder %v4335, 8.507059e+37
    %v4337 = vand.u32 %v4226, 2147483648
    %v4338 = vor.u32 1.1754944e-38, %v4337
    %v4339 = vsel %vm4336, %v4338, %v4334
    %v4340 = vmul.f32 1.0, %v4339
    %v4341 = vrcp.pop %v4227
    %v4342 = vmul.f32 %v4227, %v4341
    %v4343 = vsub.f32 1.0, %v4342
    %v4344 = vmul.f32 %v4341, %v4343
    %v4345 = vadd.f32 %v4341, %v4344
    %vm4346 = vweird.f32 %v4227
    %vm4347 = vweird.f32 %v4341
    %vm4348 = vmor %vm4346, %vm4347
    %v4349 = vsel %vm4348, %v4341, %v4345
    %v4350 = vand.u32 2147483647, %v4227
    %vm4351 = vcmp.eq.f32.partialorder %v4350, 8.507059e+37
    %v4352 = vand.u32 %v4227, 2147483648
    %v4353 = vor.u32 1.1754944e-38, %v4352
    %v4354 = vsel %vm4351, %v4353, %v4349
    %v4355 = vmul.f32 1.0, %v4354
    %v4356 = vrcp.pop %v4228
    %v4357 = vmul.f32 %v4228, %v4356
    %v4358 = vsub.f32 1.0, %v4357
    %v4359 = vmul.f32 %v4356, %v4358
    %v4360 = vadd.f32 %v4356, %v4359
    %vm4361 = vweird.f32 %v4228
    %vm4362 = vweird.f32 %v4356
    %vm4363 = vmor %vm4361, %vm4362
    %v4364 = vsel %vm4363, %v4356, %v4360
    %v4365 = vand.u32 2147483647, %v4228
    %vm4366 = vcmp.eq.f32.partialorder %v4365, 8.507059e+37
    %v4367 = vand.u32 %v4228, 2147483648
    %v4368 = vor.u32 1.1754944e-38, %v4367
    %v4369 = vsel %vm4366, %v4368, %v4364
    %v4370 = vmul.f32 1.0, %v4369
    %v4371 = vrcp.pop %v4229
    %v4372 = vmul.f32 %v4229, %v4371
    %v4373 = vsub.f32 1.0, %v4372
    %v4374 = vmul.f32 %v4371, %v4373
    %v4375 = vadd.f32 %v4371, %v4374
    %vm4376 = vweird.f32 %v4229
    %vm4377 = vweird.f32 %v4371
    %vm4378 = vmor %vm4376, %vm4377
    %v4379 = vsel %vm4378, %v4371, %v4375
    %v4380 = vand.u32 2147483647, %v4229
    %vm4381 = vcmp.eq.f32.partialorder %v4380, 8.507059e+37
    %v4382 = vand.u32 %v4229, 2147483648
    %v4383 = vor.u32 1.1754944e-38, %v4382
    %v4384 = vsel %vm4381, %v4383, %v4379
    %v4385 = vmul.f32 1.0, %v4384
    %v4386 = vrcp.pop %v4230
    %v4387 = vmul.f32 %v4230, %v4386
    %v4388 = vsub.f32 1.0, %v4387
    %v4389 = vmul.f32 %v4386, %v4388
    %v4390 = vadd.f32 %v4386, %v4389
    %vm4391 = vweird.f32 %v4230
    %vm4392 = vweird.f32 %v4386
    %vm4393 = vmor %vm4391, %vm4392
    %v4394 = vsel %vm4393, %v4386, %v4390
    %v4395 = vand.u32 2147483647, %v4230
    %vm4396 = vcmp.eq.f32.partialorder %v4395, 8.507059e+37
    %v4397 = vand.u32 %v4230, 2147483648
    %v4398 = vor.u32 1.1754944e-38, %v4397
    %v4399 = vsel %vm4396, %v4398, %v4394
    %v4400 = vmul.f32 1.0, %v4399
    %v4401 = vrcp.pop %v4231
    %v4402 = vmul.f32 %v4231, %v4401
    %v4403 = vsub.f32 1.0, %v4402
    %v4404 = vmul.f32 %v4401, %v4403
    %v4405 = vadd.f32 %v4401, %v4404
    %vm4406 = vweird.f32 %v4231
    %vm4407 = vweird.f32 %v4401
    %vm4408 = vmor %vm4406, %vm4407
    %v4409 = vsel %vm4408, %v4401, %v4405
    %v4410 = vand.u32 2147483647, %v4231
    %vm4411 = vcmp.eq.f32.partialorder %v4410, 8.507059e+37
    %v4412 = vand.u32 %v4231, 2147483648
    %v4413 = vor.u32 1.1754944e-38, %v4412
    %v4414 = vsel %vm4411, %v4413, %v4409
    %v4415 = vmul.f32 1.0, %v4414
    %v4416 = vrcp.pop %v4232
    %v4417 = vmul.f32 %v4232, %v4416
    %v4418 = vsub.f32 1.0, %v4417
    %v4419 = vmul.f32 %v4416, %v4418
    %v4420 = vadd.f32 %v4416, %v4419
    %vm4421 = vweird.f32 %v4232
    %vm4422 = vweird.f32 %v4416
    %vm4423 = vmor %vm4421, %vm4422
    %v4424 = vsel %vm4423, %v4416, %v4420
    %v4425 = vand.u32 2147483647, %v4232
    %vm4426 = vcmp.eq.f32.partialorder %v4425, 8.507059e+37
    %v4427 = vand.u32 %v4232, 2147483648
    %v4428 = vor.u32 1.1754944e-38, %v4427
    %v4429 = vsel %vm4426, %v4428, %v4424
    %v4430 = vmul.f32 1.0, %v4429
    %v4431 = vrcp.pop %v4233
    %v4432 = vmul.f32 %v4233, %v4431
    %v4433 = vsub.f32 1.0, %v4432
    %v4434 = vmul.f32 %v4431, %v4433
    %v4435 = vadd.f32 %v4431, %v4434
    %vm4436 = vweird.f32 %v4233
    %vm4437 = vweird.f32 %v4431
    %vm4438 = vmor %vm4436, %vm4437
    %v4439 = vsel %vm4438, %v4431, %v4435
    %v4440 = vand.u32 2147483647, %v4233
    %vm4441 = vcmp.eq.f32.partialorder %v4440, 8.507059e+37
    %v4442 = vand.u32 %v4233, 2147483648
    %v4443 = vor.u32 1.1754944e-38, %v4442
    %v4444 = vsel %vm4441, %v4443, %v4439
    %v4445 = vmul.f32 1.0, %v4444
    %v4446 = vrcp.pop %v4234
    %v4447 = vmul.f32 %v4234, %v4446
    %v4448 = vsub.f32 1.0, %v4447
    %v4449 = vmul.f32 %v4446, %v4448
    %v4450 = vadd.f32 %v4446, %v4449
    %vm4451 = vweird.f32 %v4234
    %vm4452 = vweird.f32 %v4446
    %vm4453 = vmor %vm4451, %vm4452
    %v4454 = vsel %vm4453, %v4446, %v4450
    %v4455 = vand.u32 2147483647, %v4234
    %vm4456 = vcmp.eq.f32.partialorder %v4455, 8.507059e+37
    %v4457 = vand.u32 %v4234, 2147483648
    %v4458 = vor.u32 1.1754944e-38, %v4457
    %v4459 = vsel %vm4456, %v4458, %v4454
    %v4460 = vmul.f32 1.0, %v4459
    %v4461 = vrcp.pop %v4235
    %v4462 = vmul.f32 %v4235, %v4461
    %v4463 = vsub.f32 1.0, %v4462
    %v4464 = vmul.f32 %v4461, %v4463
    %v4465 = vadd.f32 %v4461, %v4464
    %vm4466 = vweird.f32 %v4235
    %vm4467 = vweird.f32 %v4461
    %vm4468 = vmor %vm4466, %vm4467
    %v4469 = vsel %vm4468, %v4461, %v4465
    %v4470 = vand.u32 2147483647, %v4235
    %vm4471 = vcmp.eq.f32.partialorder %v4470, 8.507059e+37
    %v4472 = vand.u32 %v4235, 2147483648
    %v4473 = vor.u32 1.1754944e-38, %v4472
    %v4474 = vsel %vm4471, %v4473, %v4469
    %v4475 = vmul.f32 1.0, %v4474
    %v4476 = vmul.f32 %v4250, 1.0614054
    %v4477 = vmul.f32 %v4265, 1.0614054
    %v4478 = vmul.f32 %v4280, 1.0614054
    %v4479 = vmul.f32 %v4295, 1.0614054
    %v4480 = vmul.f32 %v4310, 1.0614054
    %v4481 = vmul.f32 %v4325, 1.0614054
    %v4482 = vmul.f32 %v4340, 1.0614054
    %v4483 = vmul.f32 %v4355, 1.0614054
    %v4484 = vmul.f32 %v4370, 1.0614054
    %v4485 = vmul.f32 %v4385, 1.0614054
    %v4486 = vmul.f32 %v4400, 1.0614054
    %v4487 = vmul.f32 %v4415, 1.0614054
    %v4488 = vmul.f32 %v4430, 1.0614054
    %v4489 = vmul.f32 %v4445, 1.0614054
    %v4490 = vmul.f32 %v4460, 1.0614054
    %v4491 = vmul.f32 %v4475, 1.0614054
    %v4492 = vadd.f32 %v4476, -1.4531521
    %v4493 = vadd.f32 %v4477, -1.4531521
    %v4494 = vadd.f32 %v4478, -1.4531521
    %v4495 = vadd.f32 %v4479, -1.4531521
    %v4496 = vadd.f32 %v4480, -1.4531521
    %v4497 = vadd.f32 %v4481, -1.4531521
    %v4498 = vadd.f32 %v4482, -1.4531521
    %v4499 = vadd.f32 %v4483, -1.4531521
    %v4500 = vadd.f32 %v4484, -1.4531521
    %v4501 = vadd.f32 %v4485, -1.4531521
    %v4502 = vadd.f32 %v4486, -1.4531521
    %v4503 = vadd.f32 %v4487, -1.4531521
    %v4504 = vadd.f32 %v4488, -1.4531521
    %v4505 = vadd.f32 %v4489, -1.4531521
    %v4506 = vadd.f32 %v4490, -1.4531521
    %v4507 = vadd.f32 %v4491, -1.4531521
    %v4508 = vmul.f32 %v4250, %v4492
    %v4509 = vmul.f32 %v4265, %v4493
    %v4510 = vmul.f32 %v4280, %v4494
    %v4511 = vmul.f32 %v4295, %v4495
    %v4512 = vmul.f32 %v4310, %v4496
    %v4513 = vmul.f32 %v4325, %v4497
    %v4514 = vmul.f32 %v4340, %v4498
    %v4515 = vmul.f32 %v4355, %v4499
    %v4516 = vmul.f32 %v4370, %v4500
    %v4517 = vmul.f32 %v4385, %v4501
    %v4518 = vmul.f32 %v4400, %v4502
    %v4519 = vmul.f32 %v4415, %v4503
    %v4520 = vmul.f32 %v4430, %v4504
    %v4521 = vmul.f32 %v4445, %v4505
    %v4522 = vmul.f32 %v4460, %v4506
    %v4523 = vmul.f32 %v4475, %v4507
    %v4524 = vadd.f32 %v4508, 1.4214138
    %v4525 = vadd.f32 %v4509, 1.4214138
    %v4526 = vadd.f32 %v4510, 1.4214138
    %v4527 = vadd.f32 %v4511, 1.4214138
    %v4528 = vadd.f32 %v4512, 1.4214138
    %v4529 = vadd.f32 %v4513, 1.4214138
    %v4530 = vadd.f32 %v4514, 1.4214138
    %v4531 = vadd.f32 %v4515, 1.4214138
    %v4532 = vadd.f32 %v4516, 1.4214138
    %v4533 = vadd.f32 %v4517, 1.4214138
    %v4534 = vadd.f32 %v4518, 1.4214138
    %v4535 = vadd.f32 %v4519, 1.4214138
    %v4536 = vadd.f32 %v4520, 1.4214138
    %v4537 = vadd.f32 %v4521, 1.4214138
    %v4538 = vadd.f32 %v4522, 1.4214138
    %v4539 = vadd.f32 %v4523, 1.4214138
    %v4540 = vmul.f32 %v4250, %v4524
    %v4541 = vmul.f32 %v4265, %v4525
    %v4542 = vmul.f32 %v4280, %v4526
    %v4543 = vmul.f32 %v4295, %v4527
    %v4544 = vmul.f32 %v4310, %v4528
    %v4545 = vmul.f32 %v4325, %v4529
    %v4546 = vmul.f32 %v4340, %v4530
    %v4547 = vmul.f32 %v4355, %v4531
    %v4548 = vmul.f32 %v4370, %v4532
    %v4549 = vmul.f32 %v4385, %v4533
    %v4550 = vmul.f32 %v4400, %v4534
    %v4551 = vmul.f32 %v4415, %v4535
    %v4552 = vmul.f32 %v4430, %v4536
    %v4553 = vmul.f32 %v4445, %v4537
    %v4554 = vmul.f32 %v4460, %v4538
    %v4555 = vmul.f32 %v4475, %v4539
    %v4556 = vadd.f32 %v4540, -0.28449672
    %v4557 = vadd.f32 %v4541, -0.28449672
    %v4558 = vadd.f32 %v4542, -0.28449672
    %v4559 = vadd.f32 %v4543, -0.28449672
    %v4560 = vadd.f32 %v4544, -0.28449672
    %v4561 = vadd.f32 %v4545, -0.28449672
    %v4562 = vadd.f32 %v4546, -0.28449672
    %v4563 = vadd.f32 %v4547, -0.28449672
    %v4564 = vadd.f32 %v4548, -0.28449672
    %v4565 = vadd.f32 %v4549, -0.28449672
    %v4566 = vadd.f32 %v4550, -0.28449672
    %v4567 = vadd.f32 %v4551, -0.28449672
    %v4568 = vadd.f32 %v4552, -0.28449672
    %v4569 = vadd.f32 %v4553, -0.28449672
    %v4570 = vadd.f32 %v4554, -0.28449672
    %v4571 = vadd.f32 %v4555, -0.28449672
    %v4572 = vmul.f32 %v4250, %v4556
    %v4573 = vmul.f32 %v4265, %v4557
    %v4574 = vmul.f32 %v4280, %v4558
    %v4575 = vmul.f32 %v4295, %v4559
    %v4576 = vmul.f32 %v4310, %v4560
    %v4577 = vmul.f32 %v4325, %v4561
    %v4578 = vmul.f32 %v4340, %v4562
    %v4579 = vmul.f32 %v4355, %v4563
    %v4580 = vmul.f32 %v4370, %v4564
    %v4581 = vmul.f32 %v4385, %v4565
    %v4582 = vmul.f32 %v4400, %v4566
    %v4583 = vmul.f32 %v4415, %v4567
    %v4584 = vmul.f32 %v4430, %v4568
    %v4585 = vmul.f32 %v4445, %v4569
    %v4586 = vmul.f32 %v4460, %v4570
    %v4587 = vmul.f32 %v4475, %v4571
    %v4588 = vadd.f32 %v4572, 0.2548296
    %v4589 = vadd.f32 %v4573, 0.2548296
    %v4590 = vadd.f32 %v4574, 0.2548296
    %v4591 = vadd.f32 %v4575, 0.2548296
    %v4592 = vadd.f32 %v4576, 0.2548296
    %v4593 = vadd.f32 %v4577, 0.2548296
    %v4594 = vadd.f32 %v4578, 0.2548296
    %v4595 = vadd.f32 %v4579, 0.2548296
    %v4596 = vadd.f32 %v4580, 0.2548296
    %v4597 = vadd.f32 %v4581, 0.2548296
    %v4598 = vadd.f32 %v4582, 0.2548296
    %v4599 = vadd.f32 %v4583, 0.2548296
    %v4600 = vadd.f32 %v4584, 0.2548296
    %v4601 = vadd.f32 %v4585, 0.2548296
    %v4602 = vadd.f32 %v4586, 0.2548296
    %v4603 = vadd.f32 %v4587, 0.2548296
    %v4604 = vmul.f32 %v4250, %v4588
    %v4605 = vmul.f32 %v4265, %v4589
    %v4606 = vmul.f32 %v4280, %v4590
    %v4607 = vmul.f32 %v4295, %v4591
    %v4608 = vmul.f32 %v4310, %v4592
    %v4609 = vmul.f32 %v4325, %v4593
    %v4610 = vmul.f32 %v4340, %v4594
    %v4611 = vmul.f32 %v4355, %v4595
    %v4612 = vmul.f32 %v4370, %v4596
    %v4613 = vmul.f32 %v4385, %v4597
    %v4614 = vmul.f32 %v4400, %v4598
    %v4615 = vmul.f32 %v4415, %v4599
    %v4616 = vmul.f32 %v4430, %v4600
    %v4617 = vmul.f32 %v4445, %v4601
    %v4618 = vmul.f32 %v4460, %v4602
    %v4619 = vmul.f32 %v4475, %v4603
    %v4620 = vsub.f32 0.0, %v4188
    %v4621 = vsub.f32 0.0, %v4189
    %v4622 = vsub.f32 0.0, %v4190
    %v4623 = vsub.f32 0.0, %v4191
    %v4624 = vsub.f32 0.0, %v4192
    %v4625 = vsub.f32 0.0, %v4193
    %v4626 = vsub.f32 0.0, %v4194
    %v4627 = vsub.f32 0.0, %v4195
    %v4628 = vsub.f32 0.0, %v4196
    %v4629 = vsub.f32 0.0, %v4197
    %v4630 = vsub.f32 0.0, %v4198
    %v4631 = vsub.f32 0.0, %v4199
    %v4632 = vsub.f32 0.0, %v4200
    %v4633 = vsub.f32 0.0, %v4201
    %v4634 = vsub.f32 0.0, %v4202
    %v4635 = vsub.f32 0.0, %v4203
    %v4636 = vmul.f32 %v4620, %v4188
    %v4637 = vmul.f32 %v4621, %v4189
    %v4638 = vmul.f32 %v4622, %v4190
    %v4639 = vmul.f32 %v4623, %v4191
    %v4640 = vmul.f32 %v4624, %v4192
    %v4641 = vmul.f32 %v4625, %v4193
    %v4642 = vmul.f32 %v4626, %v4194
    %v4643 = vmul.f32 %v4627, %v4195
    %v4644 = vmul.f32 %v4628, %v4196
    %v4645 = vmul.f32 %v4629, %v4197
    %v4646 = vmul.f32 %v4630, %v4198
    %v4647 = vmul.f32 %v4631, %v4199
    %v4648 = vmul.f32 %v4632, %v4200
    %v4649 = vmul.f32 %v4633, %v4201
    %v4650 = vmul.f32 %v4634, %v4202
    %v4651 = vmul.f32 %v4635, %v4203
    %v4652 = vmul.f32 %v4636, 1.442695
    %v4653 = vpow.pop %v4652
    %v4654 = vmul.f32 %v4637, 1.442695
    %v4655 = vpow.pop %v4654
    %v4656 = vmul.f32 %v4638, 1.442695
    %v4657 = vpow.pop %v4656
    %v4658 = vmul.f32 %v4639, 1.442695
    %v4659 = vpow.pop %v4658
    %v4660 = vmul.f32 %v4640, 1.442695
    %v4661 = vpow.pop %v4660
    %v4662 = vmul.f32 %v4641, 1.442695
    %v4663 = vpow.pop %v4662
    %v4664 = vmul.f32 %v4642, 1.442695
    %v4665 = vpow.pop %v4664
    %v4666 = vmul.f32 %v4643, 1.442695
    %v4667 = vpow.pop %v4666
    %v4668 = vmul.f32 %v4644, 1.442695
    %v4669 = vpow.pop %v4668
    %v4670 = vmul.f32 %v4645, 1.442695
    %v4671 = vpow.pop %v4670
    %v4672 = vmul.f32 %v4646, 1.442695
    %v4673 = vpow.pop %v4672
    %v4674 = vmul.f32 %v4647, 1.442695
    %v4675 = vpow.pop %v4674
    %v4676 = vmul.f32 %v4648, 1.442695
    %v4677 = vpow.pop %v4676
    %v4678 = vmul.f32 %v4649, 1.442695
    %v4679 = vpow.pop %v4678
    %v4680 = vmul.f32 %v4650, 1.442695
    %v4681 = vpow.pop %v4680
    %v4682 = vmul.f32 %v4651, 1.442695
    %v4683 = vpow.pop %v4682
    %v4684 = vmul.f32 %v4604, %v4653
    %v4685 = vmul.f32 %v4605, %v4655
    %v4686 = vmul.f32 %v4606, %v4657
    %v4687 = vmul.f32 %v4607, %v4659
    %v4688 = vmul.f32 %v4608, %v4661
    %v4689 = vmul.f32 %v4609, %v4663
    %v4690 = vmul.f32 %v4610, %v4665
    %v4691 = vmul.f32 %v4611, %v4667
    %v4692 = vmul.f32 %v4612, %v4669
    %v4693 = vmul.f32 %v4613, %v4671
    %v4694 = vmul.f32 %v4614, %v4673
    %v4695 = vmul.f32 %v4615, %v4675
    %v4696 = vmul.f32 %v4616, %v4677
    %v4697 = vmul.f32 %v4617, %v4679
    %v4698 = vmul.f32 %v4618, %v4681
    %v4699 = vmul.f32 %v4619, %v4683
    %v4700 = vsub.f32 1.0, %v4684
    %v4701 = vsub.f32 1.0, %v4685
    %v4702 = vsub.f32 1.0, %v4686
    %v4703 = vsub.f32 1.0, %v4687
    %v4704 = vsub.f32 1.0, %v4688
    %v4705 = vsub.f32 1.0, %v4689
    %v4706 = vsub.f32 1.0, %v4690
    %v4707 = vsub.f32 1.0, %v4691
    %v4708 = vsub.f32 1.0, %v4692
    %v4709 = vsub.f32 1.0, %v4693
    %v4710 = vsub.f32 1.0, %v4694
    %v4711 = vsub.f32 1.0, %v4695
    %v4712 = vsub.f32 1.0, %v4696
    %v4713 = vsub.f32 1.0, %v4697
    %v4714 = vsub.f32 1.0, %v4698
    %v4715 = vsub.f32 1.0, %v4699
    %vm4716 = vcmp.lt.f32.partialorder %v4172, 0.0
    %vm4717 = vcmp.lt.f32.partialorder %v4173, 0.0
    %vm4718 = vcmp.lt.f32.partialorder %v4174, 0.0
    %vm4719 = vcmp.lt.f32.partialorder %v4175, 0.0
    %vm4720 = vcmp.lt.f32.partialorder %v4176, 0.0
    %vm4721 = vcmp.lt.f32.partialorder %v4177, 0.0
    %vm4722 = vcmp.lt.f32.partialorder %v4178, 0.0
    %vm4723 = vcmp.lt.f32.partialorder %v4179, 0.0
    %vm4724 = vcmp.lt.f32.partialorder %v4180, 0.0
    %vm4725 = vcmp.lt.f32.partialorder %v4181, 0.0
    %vm4726 = vcmp.lt.f32.partialorder %v4182, 0.0
    %vm4727 = vcmp.lt.f32.partialorder %v4183, 0.0
    %vm4728 = vcmp.lt.f32.partialorder %v4184, 0.0
    %vm4729 = vcmp.lt.f32.partialorder %v4185, 0.0
    %vm4730 = vcmp.lt.f32.partialorder %v4186, 0.0
    %vm4731 = vcmp.lt.f32.partialorder %v4187, 0.0
    %v4732 = vsub.f32 0.0, %v4700
    %v4733 = vsub.f32 0.0, %v4701
    %v4734 = vsub.f32 0.0, %v4702
    %v4735 = vsub.f32 0.0, %v4703
    %v4736 = vsub.f32 0.0, %v4704
    %v4737 = vsub.f32 0.0, %v4705
    %v4738 = vsub.f32 0.0, %v4706
    %v4739 = vsub.f32 0.0, %v4707
    %v4740 = vsub.f32 0.0, %v4708
    %v4741 = vsub.f32 0.0, %v4709
    %v4742 = vsub.f32 0.0, %v4710
    %v4743 = vsub.f32 0.0, %v4711
    %v4744 = vsub.f32 0.0, %v4712
    %v4745 = vsub.f32 0.0, %v4713
    %v4746 = vsub.f32 0.0, %v4714
    %v4747 = vsub.f32 0.0, %v4715
    %v4748 = vsel %vm4716, %v4732, %v4700
    %v4749 = vsel %vm4717, %v4733, %v4701
    %v4750 = vsel %vm4718, %v4734, %v4702
    %v4751 = vsel %vm4719, %v4735, %v4703
    %v4752 = vsel %vm4720, %v4736, %v4704
    %v4753 = vsel %vm4721, %v4737, %v4705
    %v4754 = vsel %vm4722, %v4738, %v4706
    %v4755 = vsel %vm4723, %v4739, %v4707
    %v4756 = vsel %vm4724, %v4740, %v4708
    %v4757 = vsel %vm4725, %v4741, %v4709
    %v4758 = vsel %vm4726, %v4742, %v4710
    %v4759 = vsel %vm4727, %v4743, %v4711
    %v4760 = vsel %vm4728, %v4744, %v4712
    %v4761 = vsel %vm4729, %v4745, %v4713
    %v4762 = vsel %vm4730, %v4746, %v4714
    %v4763 = vsel %vm4731, %v4747, %v4715
    %v4764 = vadd.f32 %v4748, 1.0
    %v4765 = vadd.f32 %v4749, 1.0
    %v4766 = vadd.f32 %v4750, 1.0
    %v4767 = vadd.f32 %v4751, 1.0
    %v4768 = vadd.f32 %v4752, 1.0
    %v4769 = vadd.f32 %v4753, 1.0
    %v4770 = vadd.f32 %v4754, 1.0
    %v4771 = vadd.f32 %v4755, 1.0
    %v4772 = vadd.f32 %v4756, 1.0
    %v4773 = vadd.f32 %v4757, 1.0
    %v4774 = vadd.f32 %v4758, 1.0
    %v4775 = vadd.f32 %v4759, 1.0
    %v4776 = vadd.f32 %v4760, 1.0
    %v4777 = vadd.f32 %v4761, 1.0
    %v4778 = vadd.f32 %v4762, 1.0
    %v4779 = vadd.f32 %v4763, 1.0
    %v4780 = vmul.f32 %v4156, %v4764
    %v4781 = vmul.f32 %v4157, %v4765
    %v4782 = vmul.f32 %v4158, %v4766
    %v4783 = vmul.f32 %v4159, %v4767
    %v4784 = vmul.f32 %v4160, %v4768
    %v4785 = vmul.f32 %v4161, %v4769
    %v4786 = vmul.f32 %v4162, %v4770
    %v4787 = vmul.f32 %v4163, %v4771
    %v4788 = vmul.f32 %v4164, %v4772
    %v4789 = vmul.f32 %v4165, %v4773
    %v4790 = vmul.f32 %v4166, %v4774
    %v4791 = vmul.f32 %v4167, %v4775
    %v4792 = vmul.f32 %v4168, %v4776
    %v4793 = vmul.f32 %v4169, %v4777
    %v4794 = vmul.f32 %v4170, %v4778
    %v4795 = vmul.f32 %v4171, %v4779
    %v4797 = vperm.slane %v328, 0
    %4799 = vmatpush.msra.mxu0 %v327
    %4800 = vmatpush.msra.mxu0 %v326
    %4801 = vmatpush.msra.mxu0 %v325
    %4802 = vmatpush.msra.mxu0 %v324
    %4803 = vmatpush.msra.mxu0 %v323
    %4804 = vmatpush.msra.mxu0 %v322
    %4805 = vmatpush.msra.mxu0 %v321
    %4806 = vmatpush.msra.mxu0 %v320
    %4807 = vmatpush.msra.mxu0 %v319
    %4808 = vmatpush.msra.mxu0 %v318
    %4809 = vmatpush.msra.mxu0 %v317
    %4810 = vmatpush.msra.mxu0 %v316
    %4811 = vmatpush.msra.mxu0 %v315
    %4812 = vmatpush.msra.mxu0 %v314
    %4813 = vmatpush.msra.mxu0 %v313
    %4814 = vmatpush.msra.mxu0 %v312
    %4815 = vmatmul.f32.gmra.mxu0 %v4780
    %v4816 = vpop.f32.mrf.mxu0
    %v4817 = vadd.f32 %v4797, %v4816
    %4818 = vmatmul.f32.gmra.mxu0 %v4781
    %v4819 = vpop.f32.mrf.mxu0
    %v4820 = vadd.f32 %v4797, %v4819
    %4821 = vmatmul.f32.gmra.mxu0 %v4782
    %v4822 = vpop.f32.mrf.mxu0
    %v4823 = vadd.f32 %v4797, %v4822
    %4824 = vmatmul.f32.gmra.mxu0 %v4783
    %v4825 = vpop.f32.mrf.mxu0
    %v4826 = vadd.f32 %v4797, %v4825
    %4827 = vmatmul.f32.gmra.mxu0 %v4784
    %v4828 = vpop.f32.mrf.mxu0
    %v4829 = vadd.f32 %v4797, %v4828
    %4830 = vmatmul.f32.gmra.mxu0 %v4785
    %v4831 = vpop.f32.mrf.mxu0
    %v4832 = vadd.f32 %v4797, %v4831
    %4833 = vmatmul.f32.gmra.mxu0 %v4786
    %v4834 = vpop.f32.mrf.mxu0
    %v4835 = vadd.f32 %v4797, %v4834
    %4836 = vmatmul.f32.gmra.mxu0 %v4787
    %v4837 = vpop.f32.mrf.mxu0
    %v4838 = vadd.f32 %v4797, %v4837
    %4839 = vmatmul.f32.gmra.mxu0 %v4788
    %v4840 = vpop.f32.mrf.mxu0
    %v4841 = vadd.f32 %v4797, %v4840
    %4842 = vmatmul.f32.gmra.mxu0 %v4789
    %v4843 = vpop.f32.mrf.mxu0
    %v4844 = vadd.f32 %v4797, %v4843
    %4845 = vmatmul.f32.gmra.mxu0 %v4790
    %v4846 = vpop.f32.mrf.mxu0
    %v4847 = vadd.f32 %v4797, %v4846
    %4848 = vmatmul.f32.gmra.mxu0 %v4791
    %v4849 = vpop.f32.mrf.mxu0
    %v4850 = vadd.f32 %v4797, %v4849
    %4851 = vmatmul.f32.gmra.mxu0 %v4792
    %v4852 = vpop.f32.mrf.mxu0
    %v4853 = vadd.f32 %v4797, %v4852
    %4854 = vmatmul.f32.gmra.mxu0 %v4793
    %v4855 = vpop.f32.mrf.mxu0
    %v4856 = vadd.f32 %v4797, %v4855
    %4857 = vmatmul.f32.gmra.mxu0 %v4794
    %v4858 = vpop.f32.mrf.mxu0
    %v4859 = vadd.f32 %v4797, %v4858
    %4860 = vmatmul.f32.gmra.mxu0 %v4795
    %v4861 = vpop.f32.mrf.mxu0
    %v4862 = vadd.f32 %v4797, %v4861
    %4863 = vdwg.mxu0
    %v4864 = vsel %vm334, %v4817, 0.0
    %4865 = vadd.xlane.f32.xlu0 %v4864
    %v4866 = vpop.xlane.xlu0 %4865
    %v4867 = vsel %vm334, %v4820, 0.0
    %4868 = vadd.xlane.f32.xlu0 %v4867
    %v4869 = vpop.xlane.xlu0 %4868
    %v4870 = vsel %vm334, %v4823, 0.0
    %4871 = vadd.xlane.f32.xlu0 %v4870
    %v4872 = vpop.xlane.xlu0 %4871
    %v4873 = vsel %vm334, %v4826, 0.0
    %4874 = vadd.xlane.f32.xlu0 %v4873
    %v4875 = vpop.xlane.xlu0 %4874
    %v4876 = vsel %vm334, %v4829, 0.0
    %4877 = vadd.xlane.f32.xlu0 %v4876
    %v4878 = vpop.xlane.xlu0 %4877
    %v4879 = vsel %vm334, %v4832, 0.0
    %4880 = vadd.xlane.f32.xlu0 %v4879
    %v4881 = vpop.xlane.xlu0 %4880
    %v4882 = vsel %vm334, %v4835, 0.0
    %4883 = vadd.xlane.f32.xlu0 %v4882
    %v4884 = vpop.xlane.xlu0 %4883
    %v4885 = vsel %vm334, %v4838, 0.0
    %4886 = vadd.xlane.f32.xlu0 %v4885
    %v4887 = vpop.xlane.xlu0 %4886
    %v4888 = vsel %vm334, %v4841, 0.0
    %4889 = vadd.xlane.f32.xlu0 %v4888
    %v4890 = vpop.xlane.xlu0 %4889
    %v4891 = vsel %vm334, %v4844, 0.0
    %4892 = vadd.xlane.f32.xlu0 %v4891
    %v4893 = vpop.xlane.xlu0 %4892
    %v4894 = vsel %vm334, %v4847, 0.0
    %4895 = vadd.xlane.f32.xlu0 %v4894
    %v4896 = vpop.xlane.xlu0 %4895
    %v4897 = vsel %vm334, %v4850, 0.0
    %4898 = vadd.xlane.f32.xlu0 %v4897
    %v4899 = vpop.xlane.xlu0 %4898
    %v4900 = vsel %vm334, %v4853, 0.0
    %4901 = vadd.xlane.f32.xlu0 %v4900
    %v4902 = vpop.xlane.xlu0 %4901
    %v4903 = vsel %vm334, %v4856, 0.0
    %4904 = vadd.xlane.f32.xlu0 %v4903
    %v4905 = vpop.xlane.xlu0 %4904
    %v4906 = vsel %vm334, %v4859, 0.0
    %4907 = vadd.xlane.f32.xlu0 %v4906
    %v4908 = vpop.xlane.xlu0 %4907
    %v4909 = vsel %vm334, %v4862, 0.0
    %4910 = vadd.xlane.f32.xlu0 %v4909
    %v4911 = vpop.xlane.xlu0 %4910
    %v4912 = vmul.f32 %v4866, %v3681
    %v4913 = vmul.f32 %v4869, %v3681
    %v4914 = vmul.f32 %v4872, %v3681
    %v4915 = vmul.f32 %v4875, %v3681
    %v4916 = vmul.f32 %v4878, %v3681
    %v4917 = vmul.f32 %v4881, %v3681
    %v4918 = vmul.f32 %v4884, %v3681
    %v4919 = vmul.f32 %v4887, %v3681
    %v4920 = vmul.f32 %v4890, %v3681
    %v4921 = vmul.f32 %v4893, %v3681
    %v4922 = vmul.f32 %v4896, %v3681
    %v4923 = vmul.f32 %v4899, %v3681
    %v4924 = vmul.f32 %v4902, %v3681
    %v4925 = vmul.f32 %v4905, %v3681
    %v4926 = vmul.f32 %v4908, %v3681
    %v4927 = vmul.f32 %v4911, %v3681
    %v4928 = vsub.f32 %v4817, %v4912
    %v4929 = vsub.f32 %v4820, %v4913
    %v4930 = vsub.f32 %v4823, %v4914
    %v4931 = vsub.f32 %v4826, %v4915
    %v4932 = vsub.f32 %v4829, %v4916
    %v4933 = vsub.f32 %v4832, %v4917
    %v4934 = vsub.f32 %v4835, %v4918
    %v4935 = vsub.f32 %v4838, %v4919
    %v4936 = vsub.f32 %v4841, %v4920
    %v4937 = vsub.f32 %v4844, %v4921
    %v4938 = vsub.f32 %v4847, %v4922
    %v4939 = vsub.f32 %v4850, %v4923
    %v4940 = vsub.f32 %v4853, %v4924
    %v4941 = vsub.f32 %v4856, %v4925
    %v4942 = vsub.f32 %v4859, %v4926
    %v4943 = vsub.f32 %v4862, %v4927
    %v4944 = vmul.f32 %v4928, %v4928
    %v4945 = vmul.f32 %v4929, %v4929
    %v4946 = vmul.f32 %v4930, %v4930
    %v4947 = vmul.f32 %v4931, %v4931
    %v4948 = vmul.f32 %v4932, %v4932
    %v4949 = vmul.f32 %v4933, %v4933
    %v4950 = vmul.f32 %v4934, %v4934
    %v4951 = vmul.f32 %v4935, %v4935
    %v4952 = vmul.f32 %v4936, %v4936
    %v4953 = vmul.f32 %v4937, %v4937
    %v4954 = vmul.f32 %v4938, %v4938
    %v4955 = vmul.f32 %v4939, %v4939
    %v4956 = vmul.f32 %v4940, %v4940
    %v4957 = vmul.f32 %v4941, %v4941
    %v4958 = vmul.f32 %v4942, %v4942
    %v4959 = vmul.f32 %v4943, %v4943
    %v4960 = vsel %vm334, %v4944, 0.0
    %4961 = vadd.xlane.f32.xlu0 %v4960
    %v4962 = vpop.xlane.xlu0 %4961
    %v4963 = vsel %vm334, %v4945, 0.0
    %4964 = vadd.xlane.f32.xlu0 %v4963
    %v4965 = vpop.xlane.xlu0 %4964
    %v4966 = vsel %vm334, %v4946, 0.0
    %4967 = vadd.xlane.f32.xlu0 %v4966
    %v4968 = vpop.xlane.xlu0 %4967
    %v4969 = vsel %vm334, %v4947, 0.0
    %4970 = vadd.xlane.f32.xlu0 %v4969
    %v4971 = vpop.xlane.xlu0 %4970
    %v4972 = vsel %vm334, %v4948, 0.0
    %4973 = vadd.xlane.f32.xlu0 %v4972
    %v4974 = vpop.xlane.xlu0 %4973
    %v4975 = vsel %vm334, %v4949, 0.0
    %4976 = vadd.xlane.f32.xlu0 %v4975
    %v4977 = vpop.xlane.xlu0 %4976
    %v4978 = vsel %vm334, %v4950, 0.0
    %4979 = vadd.xlane.f32.xlu0 %v4978
    %v4980 = vpop.xlane.xlu0 %4979
    %v4981 = vsel %vm334, %v4951, 0.0
    %4982 = vadd.xlane.f32.xlu0 %v4981
    %v4983 = vpop.xlane.xlu0 %4982
    %v4984 = vsel %vm334, %v4952, 0.0
    %4985 = vadd.xlane.f32.xlu0 %v4984
    %v4986 = vpop.xlane.xlu0 %4985
    %v4987 = vsel %vm334, %v4953, 0.0
    %4988 = vadd.xlane.f32.xlu0 %v4987
    %v4989 = vpop.xlane.xlu0 %4988
    %v4990 = vsel %vm334, %v4954, 0.0
    %4991 = vadd.xlane.f32.xlu0 %v4990
    %v4992 = vpop.xlane.xlu0 %4991
    %v4993 = vsel %vm334, %v4955, 0.0
    %4994 = vadd.xlane.f32.xlu0 %v4993
    %v4995 = vpop.xlane.xlu0 %4994
    %v4996 = vsel %vm334, %v4956, 0.0
    %4997 = vadd.xlane.f32.xlu0 %v4996
    %v4998 = vpop.xlane.xlu0 %4997
    %v4999 = vsel %vm334, %v4957, 0.0
    %5000 = vadd.xlane.f32.xlu0 %v4999
    %v5001 = vpop.xlane.xlu0 %5000
    %v5002 = vsel %vm334, %v4958, 0.0
    %5003 = vadd.xlane.f32.xlu0 %v5002
    %v5004 = vpop.xlane.xlu0 %5003
    %v5005 = vsel %vm334, %v4959, 0.0
    %5006 = vadd.xlane.f32.xlu0 %v5005
    %v5007 = vpop.xlane.xlu0 %5006
    %v5008 = vmul.f32 %v4962, %v3681
    %v5009 = vmul.f32 %v4965, %v3681
    %v5010 = vmul.f32 %v4968, %v3681
    %v5011 = vmul.f32 %v4971, %v3681
    %v5012 = vmul.f32 %v4974, %v3681
    %v5013 = vmul.f32 %v4977, %v3681
    %v5014 = vmul.f32 %v4980, %v3681
    %v5015 = vmul.f32 %v4983, %v3681
    %v5016 = vmul.f32 %v4986, %v3681
    %v5017 = vmul.f32 %v4989, %v3681
    %v5018 = vmul.f32 %v4992, %v3681
    %v5019 = vmul.f32 %v4995, %v3681
    %v5020 = vmul.f32 %v4998, %v3681
    %v5021 = vmul.f32 %v5001, %v3681
    %v5022 = vmul.f32 %v5004, %v3681
    %v5023 = vmul.f32 %v5007, %v3681
    %v5024 = vadd.f32 %v5008, 1e-05
    %v5025 = vadd.f32 %v5009, 1e-05
    %v5026 = vadd.f32 %v5010, 1e-05
    %v5027 = vadd.f32 %v5011, 1e-05
    %v5028 = vadd.f32 %v5012, 1e-05
    %v5029 = vadd.f32 %v5013, 1e-05
    %v5030 = vadd.f32 %v5014, 1e-05
    %v5031 = vadd.f32 %v5015, 1e-05
    %v5032 = vadd.f32 %v5016, 1e-05
    %v5033 = vadd.f32 %v5017, 1e-05
    %v5034 = vadd.f32 %v5018, 1e-05
    %v5035 = vadd.f32 %v5019, 1e-05
    %v5036 = vadd.f32 %v5020, 1e-05
    %v5037 = vadd.f32 %v5021, 1e-05
    %v5038 = vadd.f32 %v5022, 1e-05
    %v5039 = vadd.f32 %v5023, 1e-05
    %v5040 = vrsqrt.pop %v5024
    %v5041 = vmul.f32 %v5040, %v5024
    %v5042 = vmul.f32 %v5041, %v5040
    %v5043 = vmul.f32 0.5, %v5042
    %v5044 = vsub.f32 1.5, %v5043
    %v5045 = vmul.f32 %v5040, %v5044
    %vm5046 = vweird.f32 %v5024
    %vm5047 = vweird.f32 %v5040
    %vm5048 = vmor %vm5046, %vm5047
    %v5049 = vsel %vm5048, %v5040, %v5045
    %v5050 = vrsqrt.pop %v5025
    %v5051 = vmul.f32 %v5050, %v5025
    %v5052 = vmul.f32 %v5051, %v5050
    %v5053 = vmul.f32 0.5, %v5052
    %v5054 = vsub.f32 1.5, %v5053
    %v5055 = vmul.f32 %v5050, %v5054
    %vm5056 = vweird.f32 %v5025
    %vm5057 = vweird.f32 %v5050
    %vm5058 = vmor %vm5056, %vm5057
    %v5059 = vsel %vm5058, %v5050, %v5055
    %v5060 = vrsqrt.pop %v5026
    %v5061 = vmul.f32 %v5060, %v5026
    %v5062 = vmul.f32 %v5061, %v5060
    %v5063 = vmul.f32 0.5, %v5062
    %v5064 = vsub.f32 1.5, %v5063
    %v5065 = vmul.f32 %v5060, %v5064
    %vm5066 = vweird.f32 %v5026
    %vm5067 = vweird.f32 %v5060
    %vm5068 = vmor %vm5066, %vm5067
    %v5069 = vsel %vm5068, %v5060, %v5065
    %v5070 = vrsqrt.pop %v5027
    %v5071 = vmul.f32 %v5070, %v5027
    %v5072 = vmul.f32 %v5071, %v5070
    %v5073 = vmul.f32 0.5, %v5072
    %v5074 = vsub.f32 1.5, %v5073
    %v5075 = vmul.f32 %v5070, %v5074
    %vm5076 = vweird.f32 %v5027
    %vm5077 = vweird.f32 %v5070
    %vm5078 = vmor %vm5076, %vm5077
    %v5079 = vsel %vm5078, %v5070, %v5075
    %v5080 = vrsqrt.pop %v5028
    %v5081 = vmul.f32 %v5080, %v5028
    %v5082 = vmul.f32 %v5081, %v5080
    %v5083 = vmul.f32 0.5, %v5082
    %v5084 = vsub.f32 1.5, %v5083
    %v5085 = vmul.f32 %v5080, %v5084
    %vm5086 = vweird.f32 %v5028
    %vm5087 = vweird.f32 %v5080
    %vm5088 = vmor %vm5086, %vm5087
    %v5089 = vsel %vm5088, %v5080, %v5085
    %v5090 = vrsqrt.pop %v5029
    %v5091 = vmul.f32 %v5090, %v5029
    %v5092 = vmul.f32 %v5091, %v5090
    %v5093 = vmul.f32 0.5, %v5092
    %v5094 = vsub.f32 1.5, %v5093
    %v5095 = vmul.f32 %v5090, %v5094
    %vm5096 = vweird.f32 %v5029
    %vm5097 = vweird.f32 %v5090
    %vm5098 = vmor %vm5096, %vm5097
    %v5099 = vsel %vm5098, %v5090, %v5095
    %v5100 = vrsqrt.pop %v5030
    %v5101 = vmul.f32 %v5100, %v5030
    %v5102 = vmul.f32 %v5101, %v5100
    %v5103 = vmul.f32 0.5, %v5102
    %v5104 = vsub.f32 1.5, %v5103
    %v5105 = vmul.f32 %v5100, %v5104
    %vm5106 = vweird.f32 %v5030
    %vm5107 = vweird.f32 %v5100
    %vm5108 = vmor %vm5106, %vm5107
    %v5109 = vsel %vm5108, %v5100, %v5105
    %v5110 = vrsqrt.pop %v5031
    %v5111 = vmul.f32 %v5110, %v5031
    %v5112 = vmul.f32 %v5111, %v5110
    %v5113 = vmul.f32 0.5, %v5112
    %v5114 = vsub.f32 1.5, %v5113
    %v5115 = vmul.f32 %v5110, %v5114
    %vm5116 = vweird.f32 %v5031
    %vm5117 = vweird.f32 %v5110
    %vm5118 = vmor %vm5116, %vm5117
    %v5119 = vsel %vm5118, %v5110, %v5115
    %v5120 = vrsqrt.pop %v5032
    %v5121 = vmul.f32 %v5120, %v5032
    %v5122 = vmul.f32 %v5121, %v5120
    %v5123 = vmul.f32 0.5, %v5122
    %v5124 = vsub.f32 1.5, %v5123
    %v5125 = vmul.f32 %v5120, %v5124
    %vm5126 = vweird.f32 %v5032
    %vm5127 = vweird.f32 %v5120
    %vm5128 = vmor %vm5126, %vm5127
    %v5129 = vsel %vm5128, %v5120, %v5125
    %v5130 = vrsqrt.pop %v5033
    %v5131 = vmul.f32 %v5130, %v5033
    %v5132 = vmul.f32 %v5131, %v5130
    %v5133 = vmul.f32 0.5, %v5132
    %v5134 = vsub.f32 1.5, %v5133
    %v5135 = vmul.f32 %v5130, %v5134
    %vm5136 = vweird.f32 %v5033
    %vm5137 = vweird.f32 %v5130
    %vm5138 = vmor %vm5136, %vm5137
    %v5139 = vsel %vm5138, %v5130, %v5135
    %v5140 = vrsqrt.pop %v5034
    %v5141 = vmul.f32 %v5140, %v5034
    %v5142 = vmul.f32 %v5141, %v5140
    %v5143 = vmul.f32 0.5, %v5142
    %v5144 = vsub.f32 1.5, %v5143
    %v5145 = vmul.f32 %v5140, %v5144
    %vm5146 = vweird.f32 %v5034
    %vm5147 = vweird.f32 %v5140
    %vm5148 = vmor %vm5146, %vm5147
    %v5149 = vsel %vm5148, %v5140, %v5145
    %v5150 = vrsqrt.pop %v5035
    %v5151 = vmul.f32 %v5150, %v5035
    %v5152 = vmul.f32 %v5151, %v5150
    %v5153 = vmul.f32 0.5, %v5152
    %v5154 = vsub.f32 1.5, %v5153
    %v5155 = vmul.f32 %v5150, %v5154
    %vm5156 = vweird.f32 %v5035
    %vm5157 = vweird.f32 %v5150
    %vm5158 = vmor %vm5156, %vm5157
    %v5159 = vsel %vm5158, %v5150, %v5155
    %v5160 = vrsqrt.pop %v5036
    %v5161 = vmul.f32 %v5160, %v5036
    %v5162 = vmul.f32 %v5161, %v5160
    %v5163 = vmul.f32 0.5, %v5162
    %v5164 = vsub.f32 1.5, %v5163
    %v5165 = vmul.f32 %v5160, %v5164
    %vm5166 = vweird.f32 %v5036
    %vm5167 = vweird.f32 %v5160
    %vm5168 = vmor %vm5166, %vm5167
    %v5169 = vsel %vm5168, %v5160, %v5165
    %v5170 = vrsqrt.pop %v5037
    %v5171 = vmul.f32 %v5170, %v5037
    %v5172 = vmul.f32 %v5171, %v5170
    %v5173 = vmul.f32 0.5, %v5172
    %v5174 = vsub.f32 1.5, %v5173
    %v5175 = vmul.f32 %v5170, %v5174
    %vm5176 = vweird.f32 %v5037
    %vm5177 = vweird.f32 %v5170
    %vm5178 = vmor %vm5176, %vm5177
    %v5179 = vsel %vm5178, %v5170, %v5175
    %v5180 = vrsqrt.pop %v5038
    %v5181 = vmul.f32 %v5180, %v5038
    %v5182 = vmul.f32 %v5181, %v5180
    %v5183 = vmul.f32 0.5, %v5182
    %v5184 = vsub.f32 1.5, %v5183
    %v5185 = vmul.f32 %v5180, %v5184
    %vm5186 = vweird.f32 %v5038
    %vm5187 = vweird.f32 %v5180
    %vm5188 = vmor %vm5186, %vm5187
    %v5189 = vsel %vm5188, %v5180, %v5185
    %v5190 = vrsqrt.pop %v5039
    %v5191 = vmul.f32 %v5190, %v5039
    %v5192 = vmul.f32 %v5191, %v5190
    %v5193 = vmul.f32 0.5, %v5192
    %v5194 = vsub.f32 1.5, %v5193
    %v5195 = vmul.f32 %v5190, %v5194
    %vm5196 = vweird.f32 %v5039
    %vm5197 = vweird.f32 %v5190
    %vm5198 = vmor %vm5196, %vm5197
    %v5199 = vsel %vm5198, %v5190, %v5195
    %v5200 = vmul.f32 %v4928, %v5049
    %v5201 = vmul.f32 %v4929, %v5059
    %v5202 = vmul.f32 %v4930, %v5069
    %v5203 = vmul.f32 %v4931, %v5079
    %v5204 = vmul.f32 %v4932, %v5089
    %v5205 = vmul.f32 %v4933, %v5099
    %v5206 = vmul.f32 %v4934, %v5109
    %v5207 = vmul.f32 %v4935, %v5119
    %v5208 = vmul.f32 %v4936, %v5129
    %v5209 = vmul.f32 %v4937, %v5139
    %v5210 = vmul.f32 %v4938, %v5149
    %v5211 = vmul.f32 %v4939, %v5159
    %v5212 = vmul.f32 %v4940, %v5169
    %v5213 = vmul.f32 %v4941, %v5179
    %v5214 = vmul.f32 %v4942, %v5189
    %v5215 = vmul.f32 %v4943, %v5199
    %v5217 = vperm.slane %v329, 0
    %v5219 = vmul.f32 %v5200, %v5217
    %v5220 = vmul.f32 %v5201, %v5217
    %v5221 = vmul.f32 %v5202, %v5217
    %v5222 = vmul.f32 %v5203, %v5217
    %v5223 = vmul.f32 %v5204, %v5217
    %v5224 = vmul.f32 %v5205, %v5217
    %v5225 = vmul.f32 %v5206, %v5217
    %v5226 = vmul.f32 %v5207, %v5217
    %v5227 = vmul.f32 %v5208, %v5217
    %v5228 = vmul.f32 %v5209, %v5217
    %v5229 = vmul.f32 %v5210, %v5217
    %v5230 = vmul.f32 %v5211, %v5217
    %v5231 = vmul.f32 %v5212, %v5217
    %v5232 = vmul.f32 %v5213, %v5217
    %v5233 = vmul.f32 %v5214, %v5217
    %v5234 = vmul.f32 %v5215, %v5217
    %v5235 = vadd.f32 %v4024, %v5219
    %v5236 = vadd.f32 %v4025, %v5220
    %v5237 = vadd.f32 %v4026, %v5221
    %v5238 = vadd.f32 %v4027, %v5222
    %v5239 = vadd.f32 %v4028, %v5223
    %v5240 = vadd.f32 %v4029, %v5224
    %v5241 = vadd.f32 %v4030, %v5225
    %v5242 = vadd.f32 %v4031, %v5226
    %v5243 = vadd.f32 %v4032, %v5227
    %v5244 = vadd.f32 %v4033, %v5228
    %v5245 = vadd.f32 %v4034, %v5229
    %v5246 = vadd.f32 %v4035, %v5230
    %v5247 = vadd.f32 %v4036, %v5231
    %v5248 = vadd.f32 %v4037, %v5232
    %v5249 = vadd.f32 %v4038, %v5233
    %v5250 = vadd.f32 %v4039, %v5234
    %v5252 = vperm.slane %v330, 0
    %v5254 = vadd.f32 %v5235, %v5252
    %v5255 = vadd.f32 %v5236, %v5252
    %v5256 = vadd.f32 %v5237, %v5252
    %v5257 = vadd.f32 %v5238, %v5252
    %v5258 = vadd.f32 %v5239, %v5252
    %v5259 = vadd.f32 %v5240, %v5252
    %v5260 = vadd.f32 %v5241, %v5252
    %v5261 = vadd.f32 %v5242, %v5252
    %v5262 = vadd.f32 %v5243, %v5252
    %v5263 = vadd.f32 %v5244, %v5252
    %v5264 = vadd.f32 %v5245, %v5252
    %v5265 = vadd.f32 %v5246, %v5252
    %v5266 = vadd.f32 %v5247, %v5252
    %v5267 = vadd.f32 %v5248, %v5252
    %v5268 = vadd.f32 %v5249, %v5252
    %v5269 = vadd.f32 %v5250, %v5252
    %v5270 = vld [vmem:[%s35] sm:$0xff]
    %v5271 = vld [vmem:[%s35 + $0x8] sm:$0xff]
    %v5272 = vld [vmem:[%s35 + $0x10] sm:$0xff]
    %v5273 = vld [vmem:[%s35 + $0x18] sm:$0xff]
    %v5274 = vld [vmem:[%s37] sm:$0x1]
    %v5275 = vld [vmem:[%s39] sm:$0x1]
    %v5276 = vld [vmem:[#allocation2] sm:$0xff]
    %v5277 = vld [vmem:[#allocation2 + $0x8] sm:$0xff]
    %v5278 = vld [vmem:[#allocation2 + $0x10] sm:$0xff]
    %v5279 = vld [vmem:[#allocation2 + $0x18] sm:$0xff]
    %v5280 = vld [vmem:[#allocation2 + $0x20] sm:$0xff]
    %v5281 = vld [vmem:[#allocation2 + $0x28] sm:$0xff]
    %v5282 = vld [vmem:[#allocation2 + $0x30] sm:$0xff]
    %v5283 = vld [vmem:[#allocation2 + $0x38] sm:$0xff]
    %v5284 = vld [vmem:[#allocation2 + $0x40] sm:$0xff]
    %v5285 = vld [vmem:[#allocation2 + $0x48] sm:$0xff]
    %v5286 = vld [vmem:[#allocation2 + $0x50] sm:$0xff]
    %v5287 = vld [vmem:[#allocation2 + $0x58] sm:$0xff]
    %v5288 = vld [vmem:[#allocation2 + $0x60] sm:$0xff]
    %v5289 = vld [vmem:[#allocation2 + $0x68] sm:$0xff]
    %v5290 = vld [vmem:[#allocation2 + $0x70] sm:$0xff]
    %v5291 = vld [vmem:[#allocation2 + $0x78] sm:$0xff]
    %v5292 = vld [vmem:[#allocation2 + $0x80] sm:$0xff]
    %v5293 = vld [vmem:[#allocation2 + $0x88] sm:$0xff]
    %v5294 = vld [vmem:[#allocation2 + $0x90] sm:$0xff]
    %v5295 = vld [vmem:[#allocation2 + $0x98] sm:$0xff]
    %v5296 = vld [vmem:[#allocation2 + $0xa0] sm:$0xff]
    %v5297 = vld [vmem:[#allocation2 + $0xa8] sm:$0xff]
    %v5298 = vld [vmem:[#allocation2 + $0xb0] sm:$0xff]
    %v5299 = vld [vmem:[#allocation2 + $0xb8] sm:$0xff]
    %v5300 = vld [vmem:[#allocation2 + $0xc0] sm:$0xff]
    %v5301 = vld [vmem:[#allocation2 + $0xc8] sm:$0xff]
    %v5302 = vld [vmem:[#allocation2 + $0xd0] sm:$0xff]
    %v5303 = vld [vmem:[#allocation2 + $0xd8] sm:$0xff]
    %v5304 = vld [vmem:[#allocation2 + $0xe0] sm:$0xff]
    %v5305 = vld [vmem:[#allocation2 + $0xe8] sm:$0xff]
    %v5306 = vld [vmem:[#allocation2 + $0xf0] sm:$0xff]
    %v5307 = vld [vmem:[#allocation2 + $0xf8] sm:$0xff]
    %v5308 = vld [vmem:[#allocation2 + $0x100] sm:$0xff]
    %v5309 = vld [vmem:[#allocation2 + $0x108] sm:$0xff]
    %v5310 = vld [vmem:[#allocation2 + $0x110] sm:$0xff]
    %v5311 = vld [vmem:[#allocation2 + $0x118] sm:$0xff]
    %v5312 = vld [vmem:[#allocation2 + $0x120] sm:$0xff]
    %v5313 = vld [vmem:[#allocation2 + $0x128] sm:$0xff]
    %v5314 = vld [vmem:[#allocation2 + $0x130] sm:$0xff]
    %v5315 = vld [vmem:[#allocation2 + $0x138] sm:$0xff]
    %v5316 = vld [vmem:[#allocation2 + $0x140] sm:$0xff]
    %v5317 = vld [vmem:[#allocation2 + $0x148] sm:$0xff]
    %v5318 = vld [vmem:[#allocation2 + $0x150] sm:$0xff]
    %v5319 = vld [vmem:[#allocation2 + $0x158] sm:$0xff]
    %v5320 = vld [vmem:[#allocation2 + $0x160] sm:$0xff]
    %v5321 = vld [vmem:[#allocation2 + $0x168] sm:$0xff]
    %v5322 = vld [vmem:[#allocation2 + $0x170] sm:$0xff]
    %v5323 = vld [vmem:[#allocation2 + $0x178] sm:$0xff]
    %v5324 = vld [vmem:[#allocation2 + $0x180] sm:$0xff]
    %v5325 = vld [vmem:[#allocation2 + $0x188] sm:$0xff]
    %v5326 = vld [vmem:[#allocation2 + $0x190] sm:$0xff]
    %v5327 = vld [vmem:[#allocation2 + $0x198] sm:$0xff]
    %v5328 = vld [vmem:[#allocation2 + $0x1a0] sm:$0xff]
    %v5329 = vld [vmem:[#allocation2 + $0x1a8] sm:$0xff]
    %v5330 = vld [vmem:[#allocation2 + $0x1b0] sm:$0xff]
    %v5331 = vld [vmem:[#allocation2 + $0x1b8] sm:$0xff]
    %v5332 = vld [vmem:[#allocation2 + $0x1c0] sm:$0xff]
    %v5333 = vld [vmem:[#allocation2 + $0x1c8] sm:$0xff]
    %v5334 = vld [vmem:[#allocation2 + $0x1d0] sm:$0xff]
    %v5335 = vld [vmem:[#allocation2 + $0x1d8] sm:$0xff]
    %v5336 = vld [vmem:[#allocation2 + $0x1e0] sm:$0xff]
    %v5337 = vld [vmem:[#allocation2 + $0x1e8] sm:$0xff]
    %v5338 = vld [vmem:[#allocation2 + $0x1f0] sm:$0xff]
    %v5339 = vld [vmem:[#allocation2 + $0x1f8] sm:$0xff]
    %v5340 = vld [vmem:[%s43] sm:$0xff]
    %v5341 = vld [vmem:[%s43 + $0x8] sm:$0xff]
    %v5342 = vld [vmem:[%s43 + $0x10] sm:$0xff]
    %v5343 = vld [vmem:[%s43 + $0x18] sm:$0xff]
    %v5344 = vld [vmem:[%s45] sm:$0x1]
    %v5345 = vld [vmem:[%s47] sm:$0x1]
    %v5346 = vld [vmem:[%s49] sm:$0x1]
    %v5347 = vld [vmem:[%s51] sm:$0xff]
    %v5348 = vld [vmem:[%s51 + $0x8] sm:$0xff]
    %v5349 = vld [vmem:[%s51 + $0x10] sm:$0xff]
    %v5350 = vld [vmem:[%s51 + $0x18] sm:$0xff]
    %v5351 = vld [vmem:[%s53] sm:$0x1]
    %v5352 = vld [vmem:[%s55] sm:$0xff]
    %v5353 = vld [vmem:[%s55 + $0x8] sm:$0xff]
    %v5354 = vld [vmem:[%s55 + $0x10] sm:$0xff]
    %v5355 = vld [vmem:[%s55 + $0x18] sm:$0xff]
    %v5356 = vld [vmem:[%s55 + $0x20] sm:$0xff]
    %v5357 = vld [vmem:[%s55 + $0x28] sm:$0xff]
    %v5358 = vld [vmem:[%s55 + $0x30] sm:$0xff]
    %v5359 = vld [vmem:[%s55 + $0x38] sm:$0xff]
    %v5360 = vld [vmem:[%s55 + $0x40] sm:$0xff]
    %v5361 = vld [vmem:[%s55 + $0x48] sm:$0xff]
    %v5362 = vld [vmem:[%s55 + $0x50] sm:$0xff]
    %v5363 = vld [vmem:[%s55 + $0x58] sm:$0xff]
    %v5364 = vld [vmem:[%s55 + $0x60] sm:$0xff]
    %v5365 = vld [vmem:[%s55 + $0x68] sm:$0xff]
    %v5366 = vld [vmem:[%s55 + $0x70] sm:$0xff]
    %v5367 = vld [vmem:[%s55 + $0x78] sm:$0xff]
    %v5368 = vld [vmem:[%s57] sm:$0x1]
    %v5369 = vld [vmem:[%s59] sm:$0x1]
    %v5370 = vld [vmem:[%s61] sm:$0x1]
    %v5372 = vperm.slane %v5274, 0
    %v5375 = vsel %vm334, %v5254, 0
    %v5378 = vsel %vm334, %v5255, 0
    %v5381 = vsel %vm334, %v5256, 0
    %v5384 = vsel %vm334, %v5257, 0
    %v5387 = vsel %vm334, %v5258, 0
    %v5390 = vsel %vm334, %v5259, 0
    %v5393 = vsel %vm334, %v5260, 0
    %v5396 = vsel %vm334, %v5261, 0
    %v5399 = vsel %vm334, %v5262, 0
    %v5402 = vsel %vm334, %v5263, 0
    %v5405 = vsel %vm334, %v5264, 0
    %v5408 = vsel %vm334, %v5265, 0
    %v5411 = vsel %vm334, %v5266, 0
    %v5414 = vsel %vm334, %v5267, 0
    %v5417 = vsel %vm334, %v5268, 0
    %v5420 = vsel %vm334, %v5269, 0
    %5422 = vmatpush.msra.mxu0 0.0
    %5423 = vmatpush.msra.mxu0 0.0
    %5424 = vmatpush.msra.mxu0 0.0
    %5425 = vmatpush.msra.mxu0 0.0
    %5426 = vmatpush.msra.mxu0 0.0
    %5427 = vmatpush.msra.mxu0 0.0
    %5428 = vmatpush.msra.mxu0 0.0
    %5429 = vmatpush.msra.mxu0 0.0
    %5430 = vmatpush.msra.mxu0 0.0
    %5431 = vmatpush.msra.mxu0 0.0
    %5432 = vmatpush.msra.mxu0 0.0
    %5433 = vmatpush.msra.mxu0 0.0
    %5434 = vmatpush.msra.mxu0 %v5273
    %5435 = vmatpush.msra.mxu0 %v5272
    %5436 = vmatpush.msra.mxu0 %v5271
    %5437 = vmatpush.msra.mxu0 %v5270
    %5438 = vmatmul.f32.gmra.mxu0 %v5375
    %v5439 = vpop.f32.mrf.mxu0
    %v5440 = vadd.f32 %v5372, %v5439
    %5441 = vmatmul.f32.gmra.mxu0 %v5378
    %v5442 = vpop.f32.mrf.mxu0
    %v5443 = vadd.f32 %v5372, %v5442
    %5444 = vmatmul.f32.gmra.mxu0 %v5381
    %v5445 = vpop.f32.mrf.mxu0
    %v5446 = vadd.f32 %v5372, %v5445
    %5447 = vmatmul.f32.gmra.mxu0 %v5384
    %v5448 = vpop.f32.mrf.mxu0
    %v5449 = vadd.f32 %v5372, %v5448
    %5450 = vmatmul.f32.gmra.mxu0 %v5387
    %v5451 = vpop.f32.mrf.mxu0
    %v5452 = vadd.f32 %v5372, %v5451
    %5453 = vmatmul.f32.gmra.mxu0 %v5390
    %v5454 = vpop.f32.mrf.mxu0
    %v5455 = vadd.f32 %v5372, %v5454
    %5456 = vmatmul.f32.gmra.mxu0 %v5393
    %v5457 = vpop.f32.mrf.mxu0
    %v5458 = vadd.f32 %v5372, %v5457
    %5459 = vmatmul.f32.gmra.mxu0 %v5396
    %v5460 = vpop.f32.mrf.mxu0
    %v5461 = vadd.f32 %v5372, %v5460
    %5462 = vmatmul.f32.gmra.mxu0 %v5399
    %v5463 = vpop.f32.mrf.mxu0
    %v5464 = vadd.f32 %v5372, %v5463
    %5465 = vmatmul.f32.gmra.mxu0 %v5402
    %v5466 = vpop.f32.mrf.mxu0
    %v5467 = vadd.f32 %v5372, %v5466
    %5468 = vmatmul.f32.gmra.mxu0 %v5405
    %v5469 = vpop.f32.mrf.mxu0
    %v5470 = vadd.f32 %v5372, %v5469
    %5471 = vmatmul.f32.gmra.mxu0 %v5408
    %v5472 = vpop.f32.mrf.mxu0
    %v5473 = vadd.f32 %v5372, %v5472
    %5474 = vmatmul.f32.gmra.mxu0 %v5411
    %v5475 = vpop.f32.mrf.mxu0
    %v5476 = vadd.f32 %v5372, %v5475
    %5477 = vmatmul.f32.gmra.mxu0 %v5414
    %v5478 = vpop.f32.mrf.mxu0
    %v5479 = vadd.f32 %v5372, %v5478
    %5480 = vmatmul.f32.gmra.mxu0 %v5417
    %v5481 = vpop.f32.mrf.mxu0
    %v5482 = vadd.f32 %v5372, %v5481
    %5483 = vmatmul.f32.gmra.mxu0 %v5420
    %v5484 = vpop.f32.mrf.mxu0
    %v5485 = vadd.f32 %v5372, %v5484
    %5486 = vdwg.mxu0
    %v5487 = vmul.f32 %v5440, %v5440
    %v5488 = vmul.f32 %v5443, %v5443
    %v5489 = vmul.f32 %v5446, %v5446
    %v5490 = vmul.f32 %v5449, %v5449
    %v5491 = vmul.f32 %v5452, %v5452
    %v5492 = vmul.f32 %v5455, %v5455
    %v5493 = vmul.f32 %v5458, %v5458
    %v5494 = vmul.f32 %v5461, %v5461
    %v5495 = vmul.f32 %v5464, %v5464
    %v5496 = vmul.f32 %v5467, %v5467
    %v5497 = vmul.f32 %v5470, %v5470
    %v5498 = vmul.f32 %v5473, %v5473
    %v5499 = vmul.f32 %v5476, %v5476
    %v5500 = vmul.f32 %v5479, %v5479
    %v5501 = vmul.f32 %v5482, %v5482
    %v5502 = vmul.f32 %v5485, %v5485
    %v5504 = vsel %vm334, %v5487, 0
    %v5507 = vsel %vm334, %v5488, 0
    %v5510 = vsel %vm334, %v5489, 0
    %v5513 = vsel %vm334, %v5490, 0
    %v5516 = vsel %vm334, %v5491, 0
    %v5519 = vsel %vm334, %v5492, 0
    %v5522 = vsel %vm334, %v5493, 0
    %v5525 = vsel %vm334, %v5494, 0
    %v5528 = vsel %vm334, %v5495, 0
    %v5531 = vsel %vm334, %v5496, 0
    %v5534 = vsel %vm334, %v5497, 0
    %v5537 = vsel %vm334, %v5498, 0
    %v5540 = vsel %vm334, %v5499, 0
    %v5543 = vsel %vm334, %v5500, 0
    %v5546 = vsel %vm334, %v5501, 0
    %v5549 = vsel %vm334, %v5502, 0
    %5551 = vmatpush.msra.mxu0 0.0
    %5552 = vmatpush.msra.mxu0 0.0
    %5553 = vmatpush.msra.mxu0 0.0
    %5554 = vmatpush.msra.mxu0 0.0
    %5555 = vmatpush.msra.mxu0 0.0
    %5556 = vmatpush.msra.mxu0 0.0
    %5557 = vmatpush.msra.mxu0 0.0
    %5558 = vmatpush.msra.mxu0 0.0
    %5559 = vmatpush.msra.mxu0 0.0
    %5560 = vmatpush.msra.mxu0 0.0
    %5561 = vmatpush.msra.mxu0 0.0
    %5562 = vmatpush.msra.mxu0 0.0
    %5563 = vmatpush.msra.mxu0 %v165
    %5564 = vmatpush.msra.mxu0 %v164
    %5565 = vmatpush.msra.mxu0 %v163
    %5566 = vmatpush.msra.mxu0 %v162
    %5567 = vmatmul.f32.gmra.mxu0 %v5504
    %v5568 = vpop.f32.mrf.mxu0
    %v5569 = vadd.f32 0.0, %v5568
    %5570 = vmatmul.f32.gmra.mxu0 %v5507
    %v5571 = vpop.f32.mrf.mxu0
    %v5572 = vadd.f32 0.0, %v5571
    %5573 = vmatmul.f32.gmra.mxu0 %v5510
    %v5574 = vpop.f32.mrf.mxu0
    %v5575 = vadd.f32 0.0, %v5574
    %5576 = vmatmul.f32.gmra.mxu0 %v5513
    %v5577 = vpop.f32.mrf.mxu0
    %v5578 = vadd.f32 0.0, %v5577
    %5579 = vmatmul.f32.gmra.mxu0 %v5516
    %v5580 = vpop.f32.mrf.mxu0
    %v5581 = vadd.f32 0.0, %v5580
    %5582 = vmatmul.f32.gmra.mxu0 %v5519
    %v5583 = vpop.f32.mrf.mxu0
    %v5584 = vadd.f32 0.0, %v5583
    %5585 = vmatmul.f32.gmra.mxu0 %v5522
    %v5586 = vpop.f32.mrf.mxu0
    %v5587 = vadd.f32 0.0, %v5586
    %5588 = vmatmul.f32.gmra.mxu0 %v5525
    %v5589 = vpop.f32.mrf.mxu0
    %v5590 = vadd.f32 0.0, %v5589
    %5591 = vmatmul.f32.gmra.mxu0 %v5528
    %v5592 = vpop.f32.mrf.mxu0
    %v5593 = vadd.f32 0.0, %v5592
    %5594 = vmatmul.f32.gmra.mxu0 %v5531
    %v5595 = vpop.f32.mrf.mxu0
    %v5596 = vadd.f32 0.0, %v5595
    %5597 = vmatmul.f32.gmra.mxu0 %v5534
    %v5598 = vpop.f32.mrf.mxu0
    %v5599 = vadd.f32 0.0, %v5598
    %5600 = vmatmul.f32.gmra.mxu0 %v5537
    %v5601 = vpop.f32.mrf.mxu0
    %v5602 = vadd.f32 0.0, %v5601
    %5603 = vmatmul.f32.gmra.mxu0 %v5540
    %v5604 = vpop.f32.mrf.mxu0
    %v5605 = vadd.f32 0.0, %v5604
    %5606 = vmatmul.f32.gmra.mxu0 %v5543
    %v5607 = vpop.f32.mrf.mxu0
    %v5608 = vadd.f32 0.0, %v5607
    %5609 = vmatmul.f32.gmra.mxu0 %v5546
    %v5610 = vpop.f32.mrf.mxu0
    %v5611 = vadd.f32 0.0, %v5610
    %5612 = vmatmul.f32.gmra.mxu0 %v5549
    %v5613 = vpop.f32.mrf.mxu0
    %v5614 = vadd.f32 0.0, %v5613
    %5615 = vdwg.mxu0
    %5616 = vrot.lane.b32.xlu0 %v5487, 96
    %v5617 = vpop.permute.xlu0 %5616
    %5618 = vrot.lane.b32.xlu0 %v5488, 96
    %v5619 = vpop.permute.xlu0 %5618
    %5620 = vrot.lane.b32.xlu0 %v5489, 96
    %v5621 = vpop.permute.xlu0 %5620
    %5622 = vrot.lane.b32.xlu0 %v5490, 96
    %v5623 = vpop.permute.xlu0 %5622
    %5624 = vrot.lane.b32.xlu0 %v5491, 96
    %v5625 = vpop.permute.xlu0 %5624
    %5626 = vrot.lane.b32.xlu0 %v5492, 96
    %v5627 = vpop.permute.xlu0 %5626
    %5628 = vrot.lane.b32.xlu0 %v5493, 96
    %v5629 = vpop.permute.xlu0 %5628
    %5630 = vrot.lane.b32.xlu0 %v5494, 96
    %v5631 = vpop.permute.xlu0 %5630
    %5632 = vrot.lane.b32.xlu0 %v5495, 96
    %v5633 = vpop.permute.xlu0 %5632
    %5634 = vrot.lane.b32.xlu0 %v5496, 96
    %v5635 = vpop.permute.xlu0 %5634
    %5636 = vrot.lane.b32.xlu0 %v5497, 96
    %v5637 = vpop.permute.xlu0 %5636
    %5638 = vrot.lane.b32.xlu0 %v5498, 96
    %v5639 = vpop.permute.xlu0 %5638
    %5640 = vrot.lane.b32.xlu0 %v5499, 96
    %v5641 = vpop.permute.xlu0 %5640
    %5642 = vrot.lane.b32.xlu0 %v5500, 96
    %v5643 = vpop.permute.xlu0 %5642
    %5644 = vrot.lane.b32.xlu0 %v5501, 96
    %v5645 = vpop.permute.xlu0 %5644
    %5646 = vrot.lane.b32.xlu0 %v5502, 96
    %v5647 = vpop.permute.xlu0 %5646
    %v5648 = vsel %vm334, %v5617, 0
    %v5650 = vsel %vm334, %v5619, 0
    %v5652 = vsel %vm334, %v5621, 0
    %v5654 = vsel %vm334, %v5623, 0
    %v5656 = vsel %vm334, %v5625, 0
    %v5658 = vsel %vm334, %v5627, 0
    %v5660 = vsel %vm334, %v5629, 0
    %v5662 = vsel %vm334, %v5631, 0
    %v5664 = vsel %vm334, %v5633, 0
    %v5666 = vsel %vm334, %v5635, 0
    %v5668 = vsel %vm334, %v5637, 0
    %v5670 = vsel %vm334, %v5639, 0
    %v5672 = vsel %vm334, %v5641, 0
    %v5674 = vsel %vm334, %v5643, 0
    %v5676 = vsel %vm334, %v5645, 0
    %v5678 = vsel %vm334, %v5647, 0
    %5680 = vmatpush.msra.mxu0 0.0
    %5681 = vmatpush.msra.mxu0 0.0
    %5682 = vmatpush.msra.mxu0 0.0
    %5683 = vmatpush.msra.mxu0 0.0
    %5684 = vmatpush.msra.mxu0 0.0
    %5685 = vmatpush.msra.mxu0 0.0
    %5686 = vmatpush.msra.mxu0 0.0
    %5687 = vmatpush.msra.mxu0 0.0
    %5688 = vmatpush.msra.mxu0 0.0
    %5689 = vmatpush.msra.mxu0 0.0
    %5690 = vmatpush.msra.mxu0 0.0
    %5691 = vmatpush.msra.mxu0 0.0
    %5692 = vmatpush.msra.mxu0 %v165
    %5693 = vmatpush.msra.mxu0 %v164
    %5694 = vmatpush.msra.mxu0 %v163
    %5695 = vmatpush.msra.mxu0 %v162
    %5696 = vmatmul.f32.gmra.mxu0 %v5648
    %v5697 = vpop.f32.mrf.mxu0
    %v5698 = vadd.f32 0.0, %v5697
    %5699 = vmatmul.f32.gmra.mxu0 %v5650
    %v5700 = vpop.f32.mrf.mxu0
    %v5701 = vadd.f32 0.0, %v5700
    %5702 = vmatmul.f32.gmra.mxu0 %v5652
    %v5703 = vpop.f32.mrf.mxu0
    %v5704 = vadd.f32 0.0, %v5703
    %5705 = vmatmul.f32.gmra.mxu0 %v5654
    %v5706 = vpop.f32.mrf.mxu0
    %v5707 = vadd.f32 0.0, %v5706
    %5708 = vmatmul.f32.gmra.mxu0 %v5656
    %v5709 = vpop.f32.mrf.mxu0
    %v5710 = vadd.f32 0.0, %v5709
    %5711 = vmatmul.f32.gmra.mxu0 %v5658
    %v5712 = vpop.f32.mrf.mxu0
    %v5713 = vadd.f32 0.0, %v5712
    %5714 = vmatmul.f32.gmra.mxu0 %v5660
    %v5715 = vpop.f32.mrf.mxu0
    %v5716 = vadd.f32 0.0, %v5715
    %5717 = vmatmul.f32.gmra.mxu0 %v5662
    %v5718 = vpop.f32.mrf.mxu0
    %v5719 = vadd.f32 0.0, %v5718
    %5720 = vmatmul.f32.gmra.mxu0 %v5664
    %v5721 = vpop.f32.mrf.mxu0
    %v5722 = vadd.f32 0.0, %v5721
    %5723 = vmatmul.f32.gmra.mxu0 %v5666
    %v5724 = vpop.f32.mrf.mxu0
    %v5725 = vadd.f32 0.0, %v5724
    %5726 = vmatmul.f32.gmra.mxu0 %v5668
    %v5727 = vpop.f32.mrf.mxu0
    %v5728 = vadd.f32 0.0, %v5727
    %5729 = vmatmul.f32.gmra.mxu0 %v5670
    %v5730 = vpop.f32.mrf.mxu0
    %v5731 = vadd.f32 0.0, %v5730
    %5732 = vmatmul.f32.gmra.mxu0 %v5672
    %v5733 = vpop.f32.mrf.mxu0
    %v5734 = vadd.f32 0.0, %v5733
    %5735 = vmatmul.f32.gmra.mxu0 %v5674
    %v5736 = vpop.f32.mrf.mxu0
    %v5737 = vadd.f32 0.0, %v5736
    %5738 = vmatmul.f32.gmra.mxu0 %v5676
    %v5739 = vpop.f32.mrf.mxu0
    %v5740 = vadd.f32 0.0, %v5739
    %5741 = vmatmul.f32.gmra.mxu0 %v5678
    %v5742 = vpop.f32.mrf.mxu0
    %v5743 = vadd.f32 0.0, %v5742
    %5744 = vdwg.mxu0
    %v5745 = vmax.f32 %v5569, 1e-24
    %v5746 = vmax.f32 %v5572, 1e-24
    %v5747 = vmax.f32 %v5575, 1e-24
    %v5748 = vmax.f32 %v5578, 1e-24
    %v5749 = vmax.f32 %v5581, 1e-24
    %v5750 = vmax.f32 %v5584, 1e-24
    %v5751 = vmax.f32 %v5587, 1e-24
    %v5752 = vmax.f32 %v5590, 1e-24
    %v5753 = vmax.f32 %v5593, 1e-24
    %v5754 = vmax.f32 %v5596, 1e-24
    %v5755 = vmax.f32 %v5599, 1e-24
    %v5756 = vmax.f32 %v5602, 1e-24
    %v5757 = vmax.f32 %v5605, 1e-24
    %v5758 = vmax.f32 %v5608, 1e-24
    %v5759 = vmax.f32 %v5611, 1e-24
    %v5760 = vmax.f32 %v5614, 1e-24
    %v5761 = vrsqrt.pop %v5745
    %v5762 = vmul.f32 %v5761, %v5745
    %v5763 = vmul.f32 %v5762, %v5761
    %v5764 = vmul.f32 0.5, %v5763
    %v5765 = vsub.f32 1.5, %v5764
    %v5766 = vmul.f32 %v5761, %v5765
    %vm5767 = vweird.f32 %v5745
    %vm5768 = vweird.f32 %v5761
    %vm5769 = vmor %vm5767, %vm5768
    %v5770 = vsel %vm5769, %v5761, %v5766
    %v5771 = vrsqrt.pop %v5746
    %v5772 = vmul.f32 %v5771, %v5746
    %v5773 = vmul.f32 %v5772, %v5771
    %v5774 = vmul.f32 0.5, %v5773
    %v5775 = vsub.f32 1.5, %v5774
    %v5776 = vmul.f32 %v5771, %v5775
    %vm5777 = vweird.f32 %v5746
    %vm5778 = vweird.f32 %v5771
    %vm5779 = vmor %vm5777, %vm5778
    %v5780 = vsel %vm5779, %v5771, %v5776
    %v5781 = vrsqrt.pop %v5747
    %v5782 = vmul.f32 %v5781, %v5747
    %v5783 = vmul.f32 %v5782, %v5781
    %v5784 = vmul.f32 0.5, %v5783
    %v5785 = vsub.f32 1.5, %v5784
    %v5786 = vmul.f32 %v5781, %v5785
    %vm5787 = vweird.f32 %v5747
    %vm5788 = vweird.f32 %v5781
    %vm5789 = vmor %vm5787, %vm5788
    %v5790 = vsel %vm5789, %v5781, %v5786
    %v5791 = vrsqrt.pop %v5748
    %v5792 = vmul.f32 %v5791, %v5748
    %v5793 = vmul.f32 %v5792, %v5791
    %v5794 = vmul.f32 0.5, %v5793
    %v5795 = vsub.f32 1.5, %v5794
    %v5796 = vmul.f32 %v5791, %v5795
    %vm5797 = vweird.f32 %v5748
    %vm5798 = vweird.f32 %v5791
    %vm5799 = vmor %vm5797, %vm5798
    %v5800 = vsel %vm5799, %v5791, %v5796
    %v5801 = vrsqrt.pop %v5749
    %v5802 = vmul.f32 %v5801, %v5749
    %v5803 = vmul.f32 %v5802, %v5801
    %v5804 = vmul.f32 0.5, %v5803
    %v5805 = vsub.f32 1.5, %v5804
    %v5806 = vmul.f32 %v5801, %v5805
    %vm5807 = vweird.f32 %v5749
    %vm5808 = vweird.f32 %v5801
    %vm5809 = vmor %vm5807, %vm5808
    %v5810 = vsel %vm5809, %v5801, %v5806
    %v5811 = vrsqrt.pop %v5750
    %v5812 = vmul.f32 %v5811, %v5750
    %v5813 = vmul.f32 %v5812, %v5811
    %v5814 = vmul.f32 0.5, %v5813
    %v5815 = vsub.f32 1.5, %v5814
    %v5816 = vmul.f32 %v5811, %v5815
    %vm5817 = vweird.f32 %v5750
    %vm5818 = vweird.f32 %v5811
    %vm5819 = vmor %vm5817, %vm5818
    %v5820 = vsel %vm5819, %v5811, %v5816
    %v5821 = vrsqrt.pop %v5751
    %v5822 = vmul.f32 %v5821, %v5751
    %v5823 = vmul.f32 %v5822, %v5821
    %v5824 = vmul.f32 0.5, %v5823
    %v5825 = vsub.f32 1.5, %v5824
    %v5826 = vmul.f32 %v5821, %v5825
    %vm5827 = vweird.f32 %v5751
    %vm5828 = vweird.f32 %v5821
    %vm5829 = vmor %vm5827, %vm5828
    %v5830 = vsel %vm5829, %v5821, %v5826
    %v5831 = vrsqrt.pop %v5752
    %v5832 = vmul.f32 %v5831, %v5752
    %v5833 = vmul.f32 %v5832, %v5831
    %v5834 = vmul.f32 0.5, %v5833
    %v5835 = vsub.f32 1.5, %v5834
    %v5836 = vmul.f32 %v5831, %v5835
    %vm5837 = vweird.f32 %v5752
    %vm5838 = vweird.f32 %v5831
    %vm5839 = vmor %vm5837, %vm5838
    %v5840 = vsel %vm5839, %v5831, %v5836
    %v5841 = vrsqrt.pop %v5753
    %v5842 = vmul.f32 %v5841, %v5753
    %v5843 = vmul.f32 %v5842, %v5841
    %v5844 = vmul.f32 0.5, %v5843
    %v5845 = vsub.f32 1.5, %v5844
    %v5846 = vmul.f32 %v5841, %v5845
    %vm5847 = vweird.f32 %v5753
    %vm5848 = vweird.f32 %v5841
    %vm5849 = vmor %vm5847, %vm5848
    %v5850 = vsel %vm5849, %v5841, %v5846
    %v5851 = vrsqrt.pop %v5754
    %v5852 = vmul.f32 %v5851, %v5754
    %v5853 = vmul.f32 %v5852, %v5851
    %v5854 = vmul.f32 0.5, %v5853
    %v5855 = vsub.f32 1.5, %v5854
    %v5856 = vmul.f32 %v5851, %v5855
    %vm5857 = vweird.f32 %v5754
    %vm5858 = vweird.f32 %v5851
    %vm5859 = vmor %vm5857, %vm5858
    %v5860 = vsel %vm5859, %v5851, %v5856
    %v5861 = vrsqrt.pop %v5755
    %v5862 = vmul.f32 %v5861, %v5755
    %v5863 = vmul.f32 %v5862, %v5861
    %v5864 = vmul.f32 0.5, %v5863
    %v5865 = vsub.f32 1.5, %v5864
    %v5866 = vmul.f32 %v5861, %v5865
    %vm5867 = vweird.f32 %v5755
    %vm5868 = vweird.f32 %v5861
    %vm5869 = vmor %vm5867, %vm5868
    %v5870 = vsel %vm5869, %v5861, %v5866
    %v5871 = vrsqrt.pop %v5756
    %v5872 = vmul.f32 %v5871, %v5756
    %v5873 = vmul.f32 %v5872, %v5871
    %v5874 = vmul.f32 0.5, %v5873
    %v5875 = vsub.f32 1.5, %v5874
    %v5876 = vmul.f32 %v5871, %v5875
    %vm5877 = vweird.f32 %v5756
    %vm5878 = vweird.f32 %v5871
    %vm5879 = vmor %vm5877, %vm5878
    %v5880 = vsel %vm5879, %v5871, %v5876
    %v5881 = vrsqrt.pop %v5757
    %v5882 = vmul.f32 %v5881, %v5757
    %v5883 = vmul.f32 %v5882, %v5881
    %v5884 = vmul.f32 0.5, %v5883
    %v5885 = vsub.f32 1.5, %v5884
    %v5886 = vmul.f32 %v5881, %v5885
    %vm5887 = vweird.f32 %v5757
    %vm5888 = vweird.f32 %v5881
    %vm5889 = vmor %vm5887, %vm5888
    %v5890 = vsel %vm5889, %v5881, %v5886
    %v5891 = vrsqrt.pop %v5758
    %v5892 = vmul.f32 %v5891, %v5758
    %v5893 = vmul.f32 %v5892, %v5891
    %v5894 = vmul.f32 0.5, %v5893
    %v5895 = vsub.f32 1.5, %v5894
    %v5896 = vmul.f32 %v5891, %v5895
    %vm5897 = vweird.f32 %v5758
    %vm5898 = vweird.f32 %v5891
    %vm5899 = vmor %vm5897, %vm5898
    %v5900 = vsel %vm5899, %v5891, %v5896
    %v5901 = vrsqrt.pop %v5759
    %v5902 = vmul.f32 %v5901, %v5759
    %v5903 = vmul.f32 %v5902, %v5901
    %v5904 = vmul.f32 0.5, %v5903
    %v5905 = vsub.f32 1.5, %v5904
    %v5906 = vmul.f32 %v5901, %v5905
    %vm5907 = vweird.f32 %v5759
    %vm5908 = vweird.f32 %v5901
    %vm5909 = vmor %vm5907, %vm5908
    %v5910 = vsel %vm5909, %v5901, %v5906
    %v5911 = vrsqrt.pop %v5760
    %v5912 = vmul.f32 %v5911, %v5760
    %v5913 = vmul.f32 %v5912, %v5911
    %v5914 = vmul.f32 0.5, %v5913
    %v5915 = vsub.f32 1.5, %v5914
    %v5916 = vmul.f32 %v5911, %v5915
    %vm5917 = vweird.f32 %v5760
    %vm5918 = vweird.f32 %v5911
    %vm5919 = vmor %vm5917, %vm5918
    %v5920 = vsel %vm5919, %v5911, %v5916
    %v5922 = vperm.slane %v5275, 0
    %v5924 = vmul.f32 %v5922, %v5770
    %v5925 = vmul.f32 %v5922, %v5780
    %v5926 = vmul.f32 %v5922, %v5790
    %v5927 = vmul.f32 %v5922, %v5800
    %v5928 = vmul.f32 %v5922, %v5810
    %v5929 = vmul.f32 %v5922, %v5820
    %v5930 = vmul.f32 %v5922, %v5830
    %v5931 = vmul.f32 %v5922, %v5840
    %v5932 = vmul.f32 %v5922, %v5850
    %v5933 = vmul.f32 %v5922, %v5860
    %v5934 = vmul.f32 %v5922, %v5870
    %v5935 = vmul.f32 %v5922, %v5880
    %v5936 = vmul.f32 %v5922, %v5890
    %v5937 = vmul.f32 %v5922, %v5900
    %v5938 = vmul.f32 %v5922, %v5910
    %v5939 = vmul.f32 %v5922, %v5920
    %v5940 = vmul.f32 %v5440, %v5924
    %v5941 = vmul.f32 %v5443, %v5925
    %v5942 = vmul.f32 %v5446, %v5926
    %v5943 = vmul.f32 %v5449, %v5927
    %v5944 = vmul.f32 %v5452, %v5928
    %v5945 = vmul.f32 %v5455, %v5929
    %v5946 = vmul.f32 %v5458, %v5930
    %v5947 = vmul.f32 %v5461, %v5931
    %v5948 = vmul.f32 %v5464, %v5932
    %v5949 = vmul.f32 %v5467, %v5933
    %v5950 = vmul.f32 %v5470, %v5934
    %v5951 = vmul.f32 %v5473, %v5935
    %v5952 = vmul.f32 %v5476, %v5936
    %v5953 = vmul.f32 %v5479, %v5937
    %v5954 = vmul.f32 %v5482, %v5938
    %v5955 = vmul.f32 %v5485, %v5939
    %v5956 = vmax.f32 %v5698, 1e-24
    %v5957 = vmax.f32 %v5701, 1e-24
    %v5958 = vmax.f32 %v5704, 1e-24
    %v5959 = vmax.f32 %v5707, 1e-24
    %v5960 = vmax.f32 %v5710, 1e-24
    %v5961 = vmax.f32 %v5713, 1e-24
    %v5962 = vmax.f32 %v5716, 1e-24
    %v5963 = vmax.f32 %v5719, 1e-24
    %v5964 = vmax.f32 %v5722, 1e-24
    %v5965 = vmax.f32 %v5725, 1e-24
    %v5966 = vmax.f32 %v5728, 1e-24
    %v5967 = vmax.f32 %v5731, 1e-24
    %v5968 = vmax.f32 %v5734, 1e-24
    %v5969 = vmax.f32 %v5737, 1e-24
    %v5970 = vmax.f32 %v5740, 1e-24
    %v5971 = vmax.f32 %v5743, 1e-24
    %v5972 = vrsqrt.pop %v5956
    %v5973 = vmul.f32 %v5972, %v5956
    %v5974 = vmul.f32 %v5973, %v5972
    %v5975 = vmul.f32 0.5, %v5974
    %v5976 = vsub.f32 1.5, %v5975
    %v5977 = vmul.f32 %v5972, %v5976
    %vm5978 = vweird.f32 %v5956
    %vm5979 = vweird.f32 %v5972
    %vm5980 = vmor %vm5978, %vm5979
    %v5981 = vsel %vm5980, %v5972, %v5977
    %v5982 = vrsqrt.pop %v5957
    %v5983 = vmul.f32 %v5982, %v5957
    %v5984 = vmul.f32 %v5983, %v5982
    %v5985 = vmul.f32 0.5, %v5984
    %v5986 = vsub.f32 1.5, %v5985
    %v5987 = vmul.f32 %v5982, %v5986
    %vm5988 = vweird.f32 %v5957
    %vm5989 = vweird.f32 %v5982
    %vm5990 = vmor %vm5988, %vm5989
    %v5991 = vsel %vm5990, %v5982, %v5987
    %v5992 = vrsqrt.pop %v5958
    %v5993 = vmul.f32 %v5992, %v5958
    %v5994 = vmul.f32 %v5993, %v5992
    %v5995 = vmul.f32 0.5, %v5994
    %v5996 = vsub.f32 1.5, %v5995
    %v5997 = vmul.f32 %v5992, %v5996
    %vm5998 = vweird.f32 %v5958
    %vm5999 = vweird.f32 %v5992
    %vm6000 = vmor %vm5998, %vm5999
    %v6001 = vsel %vm6000, %v5992, %v5997
    %v6002 = vrsqrt.pop %v5959
    %v6003 = vmul.f32 %v6002, %v5959
    %v6004 = vmul.f32 %v6003, %v6002
    %v6005 = vmul.f32 0.5, %v6004
    %v6006 = vsub.f32 1.5, %v6005
    %v6007 = vmul.f32 %v6002, %v6006
    %vm6008 = vweird.f32 %v5959
    %vm6009 = vweird.f32 %v6002
    %vm6010 = vmor %vm6008, %vm6009
    %v6011 = vsel %vm6010, %v6002, %v6007
    %v6012 = vrsqrt.pop %v5960
    %v6013 = vmul.f32 %v6012, %v5960
    %v6014 = vmul.f32 %v6013, %v6012
    %v6015 = vmul.f32 0.5, %v6014
    %v6016 = vsub.f32 1.5, %v6015
    %v6017 = vmul.f32 %v6012, %v6016
    %vm6018 = vweird.f32 %v5960
    %vm6019 = vweird.f32 %v6012
    %vm6020 = vmor %vm6018, %vm6019
    %v6021 = vsel %vm6020, %v6012, %v6017
    %v6022 = vrsqrt.pop %v5961
    %v6023 = vmul.f32 %v6022, %v5961
    %v6024 = vmul.f32 %v6023, %v6022
    %v6025 = vmul.f32 0.5, %v6024
    %v6026 = vsub.f32 1.5, %v6025
    %v6027 = vmul.f32 %v6022, %v6026
    %vm6028 = vweird.f32 %v5961
    %vm6029 = vweird.f32 %v6022
    %vm6030 = vmor %vm6028, %vm6029
    %v6031 = vsel %vm6030, %v6022, %v6027
    %v6032 = vrsqrt.pop %v5962
    %v6033 = vmul.f32 %v6032, %v5962
    %v6034 = vmul.f32 %v6033, %v6032
    %v6035 = vmul.f32 0.5, %v6034
    %v6036 = vsub.f32 1.5, %v6035
    %v6037 = vmul.f32 %v6032, %v6036
    %vm6038 = vweird.f32 %v5962
    %vm6039 = vweird.f32 %v6032
    %vm6040 = vmor %vm6038, %vm6039
    %v6041 = vsel %vm6040, %v6032, %v6037
    %v6042 = vrsqrt.pop %v5963
    %v6043 = vmul.f32 %v6042, %v5963
    %v6044 = vmul.f32 %v6043, %v6042
    %v6045 = vmul.f32 0.5, %v6044
    %v6046 = vsub.f32 1.5, %v6045
    %v6047 = vmul.f32 %v6042, %v6046
    %vm6048 = vweird.f32 %v5963
    %vm6049 = vweird.f32 %v6042
    %vm6050 = vmor %vm6048, %vm6049
    %v6051 = vsel %vm6050, %v6042, %v6047
    %v6052 = vrsqrt.pop %v5964
    %v6053 = vmul.f32 %v6052, %v5964
    %v6054 = vmul.f32 %v6053, %v6052
    %v6055 = vmul.f32 0.5, %v6054
    %v6056 = vsub.f32 1.5, %v6055
    %v6057 = vmul.f32 %v6052, %v6056
    %vm6058 = vweird.f32 %v5964
    %vm6059 = vweird.f32 %v6052
    %vm6060 = vmor %vm6058, %vm6059
    %v6061 = vsel %vm6060, %v6052, %v6057
    %v6062 = vrsqrt.pop %v5965
    %v6063 = vmul.f32 %v6062, %v5965
    %v6064 = vmul.f32 %v6063, %v6062
    %v6065 = vmul.f32 0.5, %v6064
    %v6066 = vsub.f32 1.5, %v6065
    %v6067 = vmul.f32 %v6062, %v6066
    %vm6068 = vweird.f32 %v5965
    %vm6069 = vweird.f32 %v6062
    %vm6070 = vmor %vm6068, %vm6069
    %v6071 = vsel %vm6070, %v6062, %v6067
    %v6072 = vrsqrt.pop %v5966
    %v6073 = vmul.f32 %v6072, %v5966
    %v6074 = vmul.f32 %v6073, %v6072
    %v6075 = vmul.f32 0.5, %v6074
    %v6076 = vsub.f32 1.5, %v6075
    %v6077 = vmul.f32 %v6072, %v6076
    %vm6078 = vweird.f32 %v5966
    %vm6079 = vweird.f32 %v6072
    %vm6080 = vmor %vm6078, %vm6079
    %v6081 = vsel %vm6080, %v6072, %v6077
    %v6082 = vrsqrt.pop %v5967
    %v6083 = vmul.f32 %v6082, %v5967
    %v6084 = vmul.f32 %v6083, %v6082
    %v6085 = vmul.f32 0.5, %v6084
    %v6086 = vsub.f32 1.5, %v6085
    %v6087 = vmul.f32 %v6082, %v6086
    %vm6088 = vweird.f32 %v5967
    %vm6089 = vweird.f32 %v6082
    %vm6090 = vmor %vm6088, %vm6089
    %v6091 = vsel %vm6090, %v6082, %v6087
    %v6092 = vrsqrt.pop %v5968
    %v6093 = vmul.f32 %v6092, %v5968
    %v6094 = vmul.f32 %v6093, %v6092
    %v6095 = vmul.f32 0.5, %v6094
    %v6096 = vsub.f32 1.5, %v6095
    %v6097 = vmul.f32 %v6092, %v6096
    %vm6098 = vweird.f32 %v5968
    %vm6099 = vweird.f32 %v6092
    %vm6100 = vmor %vm6098, %vm6099
    %v6101 = vsel %vm6100, %v6092, %v6097
    %v6102 = vrsqrt.pop %v5969
    %v6103 = vmul.f32 %v6102, %v5969
    %v6104 = vmul.f32 %v6103, %v6102
    %v6105 = vmul.f32 0.5, %v6104
    %v6106 = vsub.f32 1.5, %v6105
    %v6107 = vmul.f32 %v6102, %v6106
    %vm6108 = vweird.f32 %v5969
    %vm6109 = vweird.f32 %v6102
    %vm6110 = vmor %vm6108, %vm6109
    %v6111 = vsel %vm6110, %v6102, %v6107
    %v6112 = vrsqrt.pop %v5970
    %v6113 = vmul.f32 %v6112, %v5970
    %v6114 = vmul.f32 %v6113, %v6112
    %v6115 = vmul.f32 0.5, %v6114
    %v6116 = vsub.f32 1.5, %v6115
    %v6117 = vmul.f32 %v6112, %v6116
    %vm6118 = vweird.f32 %v5970
    %vm6119 = vweird.f32 %v6112
    %vm6120 = vmor %vm6118, %vm6119
    %v6121 = vsel %vm6120, %v6112, %v6117
    %v6122 = vrsqrt.pop %v5971
    %v6123 = vmul.f32 %v6122, %v5971
    %v6124 = vmul.f32 %v6123, %v6122
    %v6125 = vmul.f32 0.5, %v6124
    %v6126 = vsub.f32 1.5, %v6125
    %v6127 = vmul.f32 %v6122, %v6126
    %vm6128 = vweird.f32 %v5971
    %vm6129 = vweird.f32 %v6122
    %vm6130 = vmor %vm6128, %vm6129
    %v6131 = vsel %vm6130, %v6122, %v6127
    %6148 = vrot.lane.b32.xlu0 %v5981, 32
    %v6149 = vpop.permute.xlu0 %6148
    %6150 = vrot.lane.b32.xlu0 %v5991, 32
    %v6151 = vpop.permute.xlu0 %6150
    %6152 = vrot.lane.b32.xlu0 %v6001, 32
    %v6153 = vpop.permute.xlu0 %6152
    %6154 = vrot.lane.b32.xlu0 %v6011, 32
    %v6155 = vpop.permute.xlu0 %6154
    %6156 = vrot.lane.b32.xlu0 %v6021, 32
    %v6157 = vpop.permute.xlu0 %6156
    %6158 = vrot.lane.b32.xlu0 %v6031, 32
    %v6159 = vpop.permute.xlu0 %6158
    %6160 = vrot.lane.b32.xlu0 %v6041, 32
    %v6161 = vpop.permute.xlu0 %6160
    %6162 = vrot.lane.b32.xlu0 %v6051, 32
    %v6163 = vpop.permute.xlu0 %6162
    %6164 = vrot.lane.b32.xlu0 %v6061, 32
    %v6165 = vpop.permute.xlu0 %6164
    %6166 = vrot.lane.b32.xlu0 %v6071, 32
    %v6167 = vpop.permute.xlu0 %6166
    %6168 = vrot.lane.b32.xlu0 %v6081, 32
    %v6169 = vpop.permute.xlu0 %6168
    %6170 = vrot.lane.b32.xlu0 %v6091, 32
    %v6171 = vpop.permute.xlu0 %6170
    %6172 = vrot.lane.b32.xlu0 %v6101, 32
    %v6173 = vpop.permute.xlu0 %6172
    %6174 = vrot.lane.b32.xlu0 %v6111, 32
    %v6175 = vpop.permute.xlu0 %6174
    %6176 = vrot.lane.b32.xlu0 %v6121, 32
    %v6177 = vpop.permute.xlu0 %6176
    %6178 = vrot.lane.b32.xlu0 %v6131, 32
    %v6179 = vpop.permute.xlu0 %6178
    %v6196 = vmul.f32 %v5440, %v6149
    %v6197 = vmul.f32 %v5443, %v6151
    %v6198 = vmul.f32 %v5446, %v6153
    %v6199 = vmul.f32 %v5449, %v6155
    %v6200 = vmul.f32 %v5452, %v6157
    %v6201 = vmul.f32 %v5455, %v6159
    %v6202 = vmul.f32 %v5458, %v6161
    %v6203 = vmul.f32 %v5461, %v6163
    %v6204 = vmul.f32 %v5464, %v6165
    %v6205 = vmul.f32 %v5467, %v6167
    %v6206 = vmul.f32 %v5470, %v6169
    %v6207 = vmul.f32 %v5473, %v6171
    %v6208 = vmul.f32 %v5476, %v6173
    %v6209 = vmul.f32 %v5479, %v6175
    %v6210 = vmul.f32 %v5482, %v6177
    %v6211 = vmul.f32 %v5485, %v6179
    %v6212 = vmul.f32 %v5940, %v166
    %v6213 = vmul.f32 %v5941, %v167
    %v6214 = vmul.f32 %v5942, %v168
    %v6215 = vmul.f32 %v5943, %v169
    %v6216 = vmul.f32 %v5944, %v170
    %v6217 = vmul.f32 %v5945, %v171
    %v6218 = vmul.f32 %v5946, %v172
    %v6219 = vmul.f32 %v5947, %v173
    %v6220 = vmul.f32 %v5948, %v174
    %v6221 = vmul.f32 %v5949, %v175
    %v6222 = vmul.f32 %v5950, %v176
    %v6223 = vmul.f32 %v5951, %v177
    %v6224 = vmul.f32 %v5952, %v178
    %v6225 = vmul.f32 %v5953, %v179
    %v6226 = vmul.f32 %v5954, %v180
    %v6227 = vmul.f32 %v5955, %v181
    %v6228 = vmul.f32 %v5940, %v182
    %v6229 = vmul.f32 %v5941, %v183
    %v6230 = vmul.f32 %v5942, %v184
    %v6231 = vmul.f32 %v5943, %v185
    %v6232 = vmul.f32 %v5944, %v186
    %v6233 = vmul.f32 %v5945, %v187
    %v6234 = vmul.f32 %v5946, %v188
    %v6235 = vmul.f32 %v5947, %v189
    %v6236 = vmul.f32 %v5948, %v190
    %v6237 = vmul.f32 %v5949, %v191
    %v6238 = vmul.f32 %v5950, %v192
    %v6239 = vmul.f32 %v5951, %v193
    %v6240 = vmul.f32 %v5952, %v194
    %v6241 = vmul.f32 %v5953, %v195
    %v6242 = vmul.f32 %v5954, %v196
    %v6243 = vmul.f32 %v5955, %v197
    %v6244 = vmul.f32 %v5940, %v198
    %v6245 = vmul.f32 %v5941, %v199
    %v6246 = vmul.f32 %v5942, %v200
    %v6247 = vmul.f32 %v5943, %v201
    %v6248 = vmul.f32 %v5944, %v202
    %v6249 = vmul.f32 %v5945, %v203
    %v6250 = vmul.f32 %v5946, %v204
    %v6251 = vmul.f32 %v5947, %v205
    %v6252 = vmul.f32 %v5948, %v206
    %v6253 = vmul.f32 %v5949, %v207
    %v6254 = vmul.f32 %v5950, %v208
    %v6255 = vmul.f32 %v5951, %v209
    %v6256 = vmul.f32 %v5952, %v210
    %v6257 = vmul.f32 %v5953, %v211
    %v6258 = vmul.f32 %v5954, %v212
    %v6259 = vmul.f32 %v5955, %v213
    %v6260 = vmul.f32 %v5940, %v214
    %v6261 = vmul.f32 %v5941, %v215
    %v6262 = vmul.f32 %v5942, %v216
    %v6263 = vmul.f32 %v5943, %v217
    %v6264 = vmul.f32 %v5944, %v218
    %v6265 = vmul.f32 %v5945, %v219
    %v6266 = vmul.f32 %v5946, %v220
    %v6267 = vmul.f32 %v5947, %v221
    %v6268 = vmul.f32 %v5948, %v222
    %v6269 = vmul.f32 %v5949, %v223
    %v6270 = vmul.f32 %v5950, %v224
    %v6271 = vmul.f32 %v5951, %v225
    %v6272 = vmul.f32 %v5952, %v226
    %v6273 = vmul.f32 %v5953, %v227
    %v6274 = vmul.f32 %v5954, %v228
    %v6275 = vmul.f32 %v5955, %v229
    %6292 = vrot.lane.b32.xlu0 %v6196, 96
    %v6293 = vpop.permute.xlu0 %6292
    %6294 = vrot.lane.b32.xlu0 %v6197, 96
    %v6295 = vpop.permute.xlu0 %6294
    %6296 = vrot.lane.b32.xlu0 %v6198, 96
    %v6297 = vpop.permute.xlu0 %6296
    %6298 = vrot.lane.b32.xlu0 %v6199, 96
    %v6299 = vpop.permute.xlu0 %6298
    %6300 = vrot.lane.b32.xlu0 %v6200, 96
    %v6301 = vpop.permute.xlu0 %6300
    %6302 = vrot.lane.b32.xlu0 %v6201, 96
    %v6303 = vpop.permute.xlu0 %6302
    %6304 = vrot.lane.b32.xlu0 %v6202, 96
    %v6305 = vpop.permute.xlu0 %6304
    %6306 = vrot.lane.b32.xlu0 %v6203, 96
    %v6307 = vpop.permute.xlu0 %6306
    %6308 = vrot.lane.b32.xlu0 %v6204, 96
    %v6309 = vpop.permute.xlu0 %6308
    %6310 = vrot.lane.b32.xlu0 %v6205, 96
    %v6311 = vpop.permute.xlu0 %6310
    %6312 = vrot.lane.b32.xlu0 %v6206, 96
    %v6313 = vpop.permute.xlu0 %6312
    %6314 = vrot.lane.b32.xlu0 %v6207, 96
    %v6315 = vpop.permute.xlu0 %6314
    %6316 = vrot.lane.b32.xlu0 %v6208, 96
    %v6317 = vpop.permute.xlu0 %6316
    %6318 = vrot.lane.b32.xlu0 %v6209, 96
    %v6319 = vpop.permute.xlu0 %6318
    %6320 = vrot.lane.b32.xlu0 %v6210, 96
    %v6321 = vpop.permute.xlu0 %6320
    %6322 = vrot.lane.b32.xlu0 %v6211, 96
    %v6323 = vpop.permute.xlu0 %6322
    %v6325 = vsel %vm334, %v6212, 0
    %v6328 = vsel %vm334, %v6213, 0
    %v6331 = vsel %vm334, %v6214, 0
    %v6334 = vsel %vm334, %v6215, 0
    %v6337 = vsel %vm334, %v6216, 0
    %v6340 = vsel %vm334, %v6217, 0
    %v6343 = vsel %vm334, %v6218, 0
    %v6346 = vsel %vm334, %v6219, 0
    %v6349 = vsel %vm334, %v6220, 0
    %v6352 = vsel %vm334, %v6221, 0
    %v6355 = vsel %vm334, %v6222, 0
    %v6358 = vsel %vm334, %v6223, 0
    %v6361 = vsel %vm334, %v6224, 0
    %v6364 = vsel %vm334, %v6225, 0
    %v6367 = vsel %vm334, %v6226, 0
    %v6370 = vsel %vm334, %v6227, 0
    %v6373 = vsel %vm334, %v6228, 0
    %v6376 = vsel %vm334, %v6229, 0
    %v6379 = vsel %vm334, %v6230, 0
    %v6382 = vsel %vm334, %v6231, 0
    %v6385 = vsel %vm334, %v6232, 0
    %v6388 = vsel %vm334, %v6233, 0
    %v6391 = vsel %vm334, %v6234, 0
    %v6394 = vsel %vm334, %v6235, 0
    %v6397 = vsel %vm334, %v6236, 0
    %v6400 = vsel %vm334, %v6237, 0
    %v6403 = vsel %vm334, %v6238, 0
    %v6406 = vsel %vm334, %v6239, 0
    %v6409 = vsel %vm334, %v6240, 0
    %v6412 = vsel %vm334, %v6241, 0
    %v6415 = vsel %vm334, %v6242, 0
    %v6418 = vsel %vm334, %v6243, 0
    %v6421 = vsel %vm334, %v6244, 0
    %v6424 = vsel %vm334, %v6245, 0
    %v6427 = vsel %vm334, %v6246, 0
    %v6430 = vsel %vm334, %v6247, 0
    %v6433 = vsel %vm334, %v6248, 0
    %v6436 = vsel %vm334, %v6249, 0
    %v6439 = vsel %vm334, %v6250, 0
    %v6442 = vsel %vm334, %v6251, 0
    %v6445 = vsel %vm334, %v6252, 0
    %v6448 = vsel %vm334, %v6253, 0
    %v6451 = vsel %vm334, %v6254, 0
    %v6454 = vsel %vm334, %v6255, 0
    %v6457 = vsel %vm334, %v6256, 0
    %v6460 = vsel %vm334, %v6257, 0
    %v6463 = vsel %vm334, %v6258, 0
    %v6466 = vsel %vm334, %v6259, 0
    %v6469 = vsel %vm334, %v6260, 0
    %v6472 = vsel %vm334, %v6261, 0
    %v6475 = vsel %vm334, %v6262, 0
    %v6478 = vsel %vm334, %v6263, 0
    %v6481 = vsel %vm334, %v6264, 0
    %v6484 = vsel %vm334, %v6265, 0
    %v6487 = vsel %vm334, %v6266, 0
    %v6490 = vsel %vm334, %v6267, 0
    %v6493 = vsel %vm334, %v6268, 0
    %v6496 = vsel %vm334, %v6269, 0
    %v6499 = vsel %vm334, %v6270, 0
    %v6502 = vsel %vm334, %v6271, 0
    %v6505 = vsel %vm334, %v6272, 0
    %v6508 = vsel %vm334, %v6273, 0
    %v6511 = vsel %vm334, %v6274, 0
    %v6514 = vsel %vm334, %v6275, 0
    %v6516 = vsel %vm334, %v6293, 0
    %v6518 = vsel %vm334, %v6295, 0
    %v6520 = vsel %vm334, %v6297, 0
    %v6522 = vsel %vm334, %v6299, 0
    %v6524 = vsel %vm334, %v6301, 0
    %v6526 = vsel %vm334, %v6303, 0
    %v6528 = vsel %vm334, %v6305, 0
    %v6530 = vsel %vm334, %v6307, 0
    %v6532 = vsel %vm334, %v6309, 0
    %v6534 = vsel %vm334, %v6311, 0
    %v6536 = vsel %vm334, %v6313, 0
    %v6538 = vsel %vm334, %v6315, 0
    %v6540 = vsel %vm334, %v6317, 0
    %v6542 = vsel %vm334, %v6319, 0
    %v6544 = vsel %vm334, %v6321, 0
    %v6546 = vsel %vm334, %v6323, 0
    %6548 = vmatpush.xpose.msra.mxu0 %v6546
    %6549 = vmatpush.xpose.msra.mxu0 %v6544
    %6550 = vmatpush.xpose.msra.mxu0 %v6542
    %6551 = vmatpush.xpose.msra.mxu0 %v6540
    %6552 = vmatpush.xpose.msra.mxu0 %v6538
    %6553 = vmatpush.xpose.msra.mxu0 %v6536
    %6554 = vmatpush.xpose.msra.mxu0 %v6534
    %6555 = vmatpush.xpose.msra.mxu0 %v6532
    %6556 = vmatpush.xpose.msra.mxu0 %v6530
    %6557 = vmatpush.xpose.msra.mxu0 %v6528
    %6558 = vmatpush.xpose.msra.mxu0 %v6526
    %6559 = vmatpush.xpose.msra.mxu0 %v6524
    %6560 = vmatpush.xpose.msra.mxu0 %v6522
    %6561 = vmatpush.xpose.msra.mxu0 %v6520
    %6562 = vmatpush.xpose.msra.mxu0 %v6518
    %6563 = vmatpush.xpose.msra.mxu0 %v6516
    %6564 = vmatmul.f32.gmra.mxu0 %v6325
    %v6565 = vpop.f32.mrf.mxu0
    %v6566 = vadd.f32 %v5276, %v6565
    %6567 = vmatmul.f32.gmra.mxu0 %v6328
    %v6568 = vpop.f32.mrf.mxu0
    %v6569 = vadd.f32 %v5277, %v6568
    %6570 = vmatmul.f32.gmra.mxu0 %v6331
    %v6571 = vpop.f32.mrf.mxu0
    %v6572 = vadd.f32 %v5278, %v6571
    %6573 = vmatmul.f32.gmra.mxu0 %v6334
    %v6574 = vpop.f32.mrf.mxu0
    %v6575 = vadd.f32 %v5279, %v6574
    %6576 = vmatmul.f32.gmra.mxu0 %v6337
    %v6577 = vpop.f32.mrf.mxu0
    %v6578 = vadd.f32 %v5280, %v6577
    %6579 = vmatmul.f32.gmra.mxu0 %v6340
    %v6580 = vpop.f32.mrf.mxu0
    %v6581 = vadd.f32 %v5281, %v6580
    %6582 = vmatmul.f32.gmra.mxu0 %v6343
    %v6583 = vpop.f32.mrf.mxu0
    %v6584 = vadd.f32 %v5282, %v6583
    %6585 = vmatmul.f32.gmra.mxu0 %v6346
    %v6586 = vpop.f32.mrf.mxu0
    %v6587 = vadd.f32 %v5283, %v6586
    %6588 = vmatmul.f32.gmra.mxu0 %v6349
    %v6589 = vpop.f32.mrf.mxu0
    %v6590 = vadd.f32 %v5284, %v6589
    %6591 = vmatmul.f32.gmra.mxu0 %v6352
    %v6592 = vpop.f32.mrf.mxu0
    %v6593 = vadd.f32 %v5285, %v6592
    %6594 = vmatmul.f32.gmra.mxu0 %v6355
    %v6595 = vpop.f32.mrf.mxu0
    %v6596 = vadd.f32 %v5286, %v6595
    %6597 = vmatmul.f32.gmra.mxu0 %v6358
    %v6598 = vpop.f32.mrf.mxu0
    %v6599 = vadd.f32 %v5287, %v6598
    %6600 = vmatmul.f32.gmra.mxu0 %v6361
    %v6601 = vpop.f32.mrf.mxu0
    %v6602 = vadd.f32 %v5288, %v6601
    %6603 = vmatmul.f32.gmra.mxu0 %v6364
    %v6604 = vpop.f32.mrf.mxu0
    %v6605 = vadd.f32 %v5289, %v6604
    %6606 = vmatmul.f32.gmra.mxu0 %v6367
    %v6607 = vpop.f32.mrf.mxu0
    %v6608 = vadd.f32 %v5290, %v6607
    %6609 = vmatmul.f32.gmra.mxu0 %v6370
    %v6610 = vpop.f32.mrf.mxu0
    %v6611 = vadd.f32 %v5291, %v6610
    %6612 = vmatmul.f32.gmra.mxu0 %v6373
    %v6613 = vpop.f32.mrf.mxu0
    %v6614 = vadd.f32 %v5292, %v6613
    %6615 = vmatmul.f32.gmra.mxu0 %v6376
    %v6616 = vpop.f32.mrf.mxu0
    %v6617 = vadd.f32 %v5293, %v6616
    %6618 = vmatmul.f32.gmra.mxu0 %v6379
    %v6619 = vpop.f32.mrf.mxu0
    %v6620 = vadd.f32 %v5294, %v6619
    %6621 = vmatmul.f32.gmra.mxu0 %v6382
    %v6622 = vpop.f32.mrf.mxu0
    %v6623 = vadd.f32 %v5295, %v6622
    %6624 = vmatmul.f32.gmra.mxu0 %v6385
    %v6625 = vpop.f32.mrf.mxu0
    %v6626 = vadd.f32 %v5296, %v6625
    %6627 = vmatmul.f32.gmra.mxu0 %v6388
    %v6628 = vpop.f32.mrf.mxu0
    %v6629 = vadd.f32 %v5297, %v6628
    %6630 = vmatmul.f32.gmra.mxu0 %v6391
    %v6631 = vpop.f32.mrf.mxu0
    %v6632 = vadd.f32 %v5298, %v6631
    %6633 = vmatmul.f32.gmra.mxu0 %v6394
    %v6634 = vpop.f32.mrf.mxu0
    %v6635 = vadd.f32 %v5299, %v6634
    %6636 = vmatmul.f32.gmra.mxu0 %v6397
    %v6637 = vpop.f32.mrf.mxu0
    %v6638 = vadd.f32 %v5300, %v6637
    %6639 = vmatmul.f32.gmra.mxu0 %v6400
    %v6640 = vpop.f32.mrf.mxu0
    %v6641 = vadd.f32 %v5301, %v6640
    %6642 = vmatmul.f32.gmra.mxu0 %v6403
    %v6643 = vpop.f32.mrf.mxu0
    %v6644 = vadd.f32 %v5302, %v6643
    %6645 = vmatmul.f32.gmra.mxu0 %v6406
    %v6646 = vpop.f32.mrf.mxu0
    %v6647 = vadd.f32 %v5303, %v6646
    %6648 = vmatmul.f32.gmra.mxu0 %v6409
    %v6649 = vpop.f32.mrf.mxu0
    %v6650 = vadd.f32 %v5304, %v6649
    %6651 = vmatmul.f32.gmra.mxu0 %v6412
    %v6652 = vpop.f32.mrf.mxu0
    %v6653 = vadd.f32 %v5305, %v6652
    %6654 = vmatmul.f32.gmra.mxu0 %v6415
    %v6655 = vpop.f32.mrf.mxu0
    %v6656 = vadd.f32 %v5306, %v6655
    %6657 = vmatmul.f32.gmra.mxu0 %v6418
    %v6658 = vpop.f32.mrf.mxu0
    %v6659 = vadd.f32 %v5307, %v6658
    %6660 = vmatmul.f32.gmra.mxu0 %v6421
    %v6661 = vpop.f32.mrf.mxu0
    %v6662 = vadd.f32 %v5308, %v6661
    %6663 = vmatmul.f32.gmra.mxu0 %v6424
    %v6664 = vpop.f32.mrf.mxu0
    %v6665 = vadd.f32 %v5309, %v6664
    %6666 = vmatmul.f32.gmra.mxu0 %v6427
    %v6667 = vpop.f32.mrf.mxu0
    %v6668 = vadd.f32 %v5310, %v6667
    %6669 = vmatmul.f32.gmra.mxu0 %v6430
    %v6670 = vpop.f32.mrf.mxu0
    %v6671 = vadd.f32 %v5311, %v6670
    %6672 = vmatmul.f32.gmra.mxu0 %v6433
    %v6673 = vpop.f32.mrf.mxu0
    %v6674 = vadd.f32 %v5312, %v6673
    %6675 = vmatmul.f32.gmra.mxu0 %v6436
    %v6676 = vpop.f32.mrf.mxu0
    %v6677 = vadd.f32 %v5313, %v6676
    %6678 = vmatmul.f32.gmra.mxu0 %v6439
    %v6679 = vpop.f32.mrf.mxu0
    %v6680 = vadd.f32 %v5314, %v6679
    %6681 = vmatmul.f32.gmra.mxu0 %v6442
    %v6682 = vpop.f32.mrf.mxu0
    %v6683 = vadd.f32 %v5315, %v6682
    %6684 = vmatmul.f32.gmra.mxu0 %v6445
    %v6685 = vpop.f32.mrf.mxu0
    %v6686 = vadd.f32 %v5316, %v6685
    %6687 = vmatmul.f32.gmra.mxu0 %v6448
    %v6688 = vpop.f32.mrf.mxu0
    %v6689 = vadd.f32 %v5317, %v6688
    %6690 = vmatmul.f32.gmra.mxu0 %v6451
    %v6691 = vpop.f32.mrf.mxu0
    %v6692 = vadd.f32 %v5318, %v6691
    %6693 = vmatmul.f32.gmra.mxu0 %v6454
    %v6694 = vpop.f32.mrf.mxu0
    %v6695 = vadd.f32 %v5319, %v6694
    %6696 = vmatmul.f32.gmra.mxu0 %v6457
    %v6697 = vpop.f32.mrf.mxu0
    %v6698 = vadd.f32 %v5320, %v6697
    %6699 = vmatmul.f32.gmra.mxu0 %v6460
    %v6700 = vpop.f32.mrf.mxu0
    %v6701 = vadd.f32 %v5321, %v6700
    %6702 = vmatmul.f32.gmra.mxu0 %v6463
    %v6703 = vpop.f32.mrf.mxu0
    %v6704 = vadd.f32 %v5322, %v6703
    %6705 = vmatmul.f32.gmra.mxu0 %v6466
    %v6706 = vpop.f32.mrf.mxu0
    %v6707 = vadd.f32 %v5323, %v6706
    %6708 = vmatmul.f32.gmra.mxu0 %v6469
    %v6709 = vpop.f32.mrf.mxu0
    %v6710 = vadd.f32 %v5324, %v6709
    %6711 = vmatmul.f32.gmra.mxu0 %v6472
    %v6712 = vpop.f32.mrf.mxu0
    %v6713 = vadd.f32 %v5325, %v6712
    %6714 = vmatmul.f32.gmra.mxu0 %v6475
    %v6715 = vpop.f32.mrf.mxu0
    %v6716 = vadd.f32 %v5326, %v6715
    %6717 = vmatmul.f32.gmra.mxu0 %v6478
    %v6718 = vpop.f32.mrf.mxu0
    %v6719 = vadd.f32 %v5327, %v6718
    %6720 = vmatmul.f32.gmra.mxu0 %v6481
    %v6721 = vpop.f32.mrf.mxu0
    %v6722 = vadd.f32 %v5328, %v6721
    %6723 = vmatmul.f32.gmra.mxu0 %v6484
    %v6724 = vpop.f32.mrf.mxu0
    %v6725 = vadd.f32 %v5329, %v6724
    %6726 = vmatmul.f32.gmra.mxu0 %v6487
    %v6727 = vpop.f32.mrf.mxu0
    %v6728 = vadd.f32 %v5330, %v6727
    %6729 = vmatmul.f32.gmra.mxu0 %v6490
    %v6730 = vpop.f32.mrf.mxu0
    %v6731 = vadd.f32 %v5331, %v6730
    %6732 = vmatmul.f32.gmra.mxu0 %v6493
    %v6733 = vpop.f32.mrf.mxu0
    %v6734 = vadd.f32 %v5332, %v6733
    %6735 = vmatmul.f32.gmra.mxu0 %v6496
    %v6736 = vpop.f32.mrf.mxu0
    %v6737 = vadd.f32 %v5333, %v6736
    %6738 = vmatmul.f32.gmra.mxu0 %v6499
    %v6739 = vpop.f32.mrf.mxu0
    %v6740 = vadd.f32 %v5334, %v6739
    %6741 = vmatmul.f32.gmra.mxu0 %v6502
    %v6742 = vpop.f32.mrf.mxu0
    %v6743 = vadd.f32 %v5335, %v6742
    %6744 = vmatmul.f32.gmra.mxu0 %v6505
    %v6745 = vpop.f32.mrf.mxu0
    %v6746 = vadd.f32 %v5336, %v6745
    %6747 = vmatmul.f32.gmra.mxu0 %v6508
    %v6748 = vpop.f32.mrf.mxu0
    %v6749 = vadd.f32 %v5337, %v6748
    %6750 = vmatmul.f32.gmra.mxu0 %v6511
    %v6751 = vpop.f32.mrf.mxu0
    %v6752 = vadd.f32 %v5338, %v6751
    %6753 = vmatmul.f32.gmra.mxu0 %v6514
    %v6754 = vpop.f32.mrf.mxu0
    %v6755 = vadd.f32 %v5339, %v6754
    %6756 = vdwg.mxu0
    %6757 = vmax.xlane.f32.xlu0 %v6566
    %v6758 = vpop.xlane.xlu0 %6757
    %6759 = vmax.xlane.f32.xlu0 %v6569
    %v6760 = vpop.xlane.xlu0 %6759
    %6761 = vmax.xlane.f32.xlu0 %v6572
    %v6762 = vpop.xlane.xlu0 %6761
    %6763 = vmax.xlane.f32.xlu0 %v6575
    %v6764 = vpop.xlane.xlu0 %6763
    %6765 = vmax.xlane.f32.xlu0 %v6578
    %v6766 = vpop.xlane.xlu0 %6765
    %6767 = vmax.xlane.f32.xlu0 %v6581
    %v6768 = vpop.xlane.xlu0 %6767
    %6769 = vmax.xlane.f32.xlu0 %v6584
    %v6770 = vpop.xlane.xlu0 %6769
    %6771 = vmax.xlane.f32.xlu0 %v6587
    %v6772 = vpop.xlane.xlu0 %6771
    %6773 = vmax.xlane.f32.xlu0 %v6590
    %v6774 = vpop.xlane.xlu0 %6773
    %6775 = vmax.xlane.f32.xlu0 %v6593
    %v6776 = vpop.xlane.xlu0 %6775
    %6777 = vmax.xlane.f32.xlu0 %v6596
    %v6778 = vpop.xlane.xlu0 %6777
    %6779 = vmax.xlane.f32.xlu0 %v6599
    %v6780 = vpop.xlane.xlu0 %6779
    %6781 = vmax.xlane.f32.xlu0 %v6602
    %v6782 = vpop.xlane.xlu0 %6781
    %6783 = vmax.xlane.f32.xlu0 %v6605
    %v6784 = vpop.xlane.xlu0 %6783
    %6785 = vmax.xlane.f32.xlu0 %v6608
    %v6786 = vpop.xlane.xlu0 %6785
    %6787 = vmax.xlane.f32.xlu0 %v6611
    %v6788 = vpop.xlane.xlu0 %6787
    %6789 = vmax.xlane.f32.xlu0 %v6614
    %v6790 = vpop.xlane.xlu0 %6789
    %6791 = vmax.xlane.f32.xlu0 %v6617
    %v6792 = vpop.xlane.xlu0 %6791
    %6793 = vmax.xlane.f32.xlu0 %v6620
    %v6794 = vpop.xlane.xlu0 %6793
    %6795 = vmax.xlane.f32.xlu0 %v6623
    %v6796 = vpop.xlane.xlu0 %6795
    %6797 = vmax.xlane.f32.xlu0 %v6626
    %v6798 = vpop.xlane.xlu0 %6797
    %6799 = vmax.xlane.f32.xlu0 %v6629
    %v6800 = vpop.xlane.xlu0 %6799
    %6801 = vmax.xlane.f32.xlu0 %v6632
    %v6802 = vpop.xlane.xlu0 %6801
    %6803 = vmax.xlane.f32.xlu0 %v6635
    %v6804 = vpop.xlane.xlu0 %6803
    %6805 = vmax.xlane.f32.xlu0 %v6638
    %v6806 = vpop.xlane.xlu0 %6805
    %6807 = vmax.xlane.f32.xlu0 %v6641
    %v6808 = vpop.xlane.xlu0 %6807
    %6809 = vmax.xlane.f32.xlu0 %v6644
    %v6810 = vpop.xlane.xlu0 %6809
    %6811 = vmax.xlane.f32.xlu0 %v6647
    %v6812 = vpop.xlane.xlu0 %6811
    %6813 = vmax.xlane.f32.xlu0 %v6650
    %v6814 = vpop.xlane.xlu0 %6813
    %6815 = vmax.xlane.f32.xlu0 %v6653
    %v6816 = vpop.xlane.xlu0 %6815
    %6817 = vmax.xlane.f32.xlu0 %v6656
    %v6818 = vpop.xlane.xlu0 %6817
    %6819 = vmax.xlane.f32.xlu0 %v6659
    %v6820 = vpop.xlane.xlu0 %6819
    %6821 = vmax.xlane.f32.xlu0 %v6662
    %v6822 = vpop.xlane.xlu0 %6821
    %6823 = vmax.xlane.f32.xlu0 %v6665
    %v6824 = vpop.xlane.xlu0 %6823
    %6825 = vmax.xlane.f32.xlu0 %v6668
    %v6826 = vpop.xlane.xlu0 %6825
    %6827 = vmax.xlane.f32.xlu0 %v6671
    %v6828 = vpop.xlane.xlu0 %6827
    %6829 = vmax.xlane.f32.xlu0 %v6674
    %v6830 = vpop.xlane.xlu0 %6829
    %6831 = vmax.xlane.f32.xlu0 %v6677
    %v6832 = vpop.xlane.xlu0 %6831
    %6833 = vmax.xlane.f32.xlu0 %v6680
    %v6834 = vpop.xlane.xlu0 %6833
    %6835 = vmax.xlane.f32.xlu0 %v6683
    %v6836 = vpop.xlane.xlu0 %6835
    %6837 = vmax.xlane.f32.xlu0 %v6686
    %v6838 = vpop.xlane.xlu0 %6837
    %6839 = vmax.xlane.f32.xlu0 %v6689
    %v6840 = vpop.xlane.xlu0 %6839
    %6841 = vmax.xlane.f32.xlu0 %v6692
    %v6842 = vpop.xlane.xlu0 %6841
    %6843 = vmax.xlane.f32.xlu0 %v6695
    %v6844 = vpop.xlane.xlu0 %6843
    %6845 = vmax.xlane.f32.xlu0 %v6698
    %v6846 = vpop.xlane.xlu0 %6845
    %6847 = vmax.xlane.f32.xlu0 %v6701
    %v6848 = vpop.xlane.xlu0 %6847
    %6849 = vmax.xlane.f32.xlu0 %v6704
    %v6850 = vpop.xlane.xlu0 %6849
    %6851 = vmax.xlane.f32.xlu0 %v6707
    %v6852 = vpop.xlane.xlu0 %6851
    %6853 = vmax.xlane.f32.xlu0 %v6710
    %v6854 = vpop.xlane.xlu0 %6853
    %6855 = vmax.xlane.f32.xlu0 %v6713
    %v6856 = vpop.xlane.xlu0 %6855
    %6857 = vmax.xlane.f32.xlu0 %v6716
    %v6858 = vpop.xlane.xlu0 %6857
    %6859 = vmax.xlane.f32.xlu0 %v6719
    %v6860 = vpop.xlane.xlu0 %6859
    %6861 = vmax.xlane.f32.xlu0 %v6722
    %v6862 = vpop.xlane.xlu0 %6861
    %6863 = vmax.xlane.f32.xlu0 %v6725
    %v6864 = vpop.xlane.xlu0 %6863
    %6865 = vmax.xlane.f32.xlu0 %v6728
    %v6866 = vpop.xlane.xlu0 %6865
    %6867 = vmax.xlane.f32.xlu0 %v6731
    %v6868 = vpop.xlane.xlu0 %6867
    %6869 = vmax.xlane.f32.xlu0 %v6734
    %v6870 = vpop.xlane.xlu0 %6869
    %6871 = vmax.xlane.f32.xlu0 %v6737
    %v6872 = vpop.xlane.xlu0 %6871
    %6873 = vmax.xlane.f32.xlu0 %v6740
    %v6874 = vpop.xlane.xlu0 %6873
    %6875 = vmax.xlane.f32.xlu0 %v6743
    %v6876 = vpop.xlane.xlu0 %6875
    %6877 = vmax.xlane.f32.xlu0 %v6746
    %v6878 = vpop.xlane.xlu0 %6877
    %6879 = vmax.xlane.f32.xlu0 %v6749
    %v6880 = vpop.xlane.xlu0 %6879
    %6881 = vmax.xlane.f32.xlu0 %v6752
    %v6882 = vpop.xlane.xlu0 %6881
    %6883 = vmax.xlane.f32.xlu0 %v6755
    %v6884 = vpop.xlane.xlu0 %6883
    %v6885 = vsub.f32 %v6566, %v6758
    %v6886 = vsub.f32 %v6569, %v6760
    %v6887 = vsub.f32 %v6572, %v6762
    %v6888 = vsub.f32 %v6575, %v6764
    %v6889 = vsub.f32 %v6578, %v6766
    %v6890 = vsub.f32 %v6581, %v6768
    %v6891 = vsub.f32 %v6584, %v6770
    %v6892 = vsub.f32 %v6587, %v6772
    %v6893 = vsub.f32 %v6590, %v6774
    %v6894 = vsub.f32 %v6593, %v6776
    %v6895 = vsub.f32 %v6596, %v6778
    %v6896 = vsub.f32 %v6599, %v6780
    %v6897 = vsub.f32 %v6602, %v6782
    %v6898 = vsub.f32 %v6605, %v6784
    %v6899 = vsub.f32 %v6608, %v6786
    %v6900 = vsub.f32 %v6611, %v6788
    %v6901 = vsub.f32 %v6614, %v6790
    %v6902 = vsub.f32 %v6617, %v6792
    %v6903 = vsub.f32 %v6620, %v6794
    %v6904 = vsub.f32 %v6623, %v6796
    %v6905 = vsub.f32 %v6626, %v6798
    %v6906 = vsub.f32 %v6629, %v6800
    %v6907 = vsub.f32 %v6632, %v6802
    %v6908 = vsub.f32 %v6635, %v6804
    %v6909 = vsub.f32 %v6638, %v6806
    %v6910 = vsub.f32 %v6641, %v6808
    %v6911 = vsub.f32 %v6644, %v6810
    %v6912 = vsub.f32 %v6647, %v6812
    %v6913 = vsub.f32 %v6650, %v6814
    %v6914 = vsub.f32 %v6653, %v6816
    %v6915 = vsub.f32 %v6656, %v6818
    %v6916 = vsub.f32 %v6659, %v6820
    %v6917 = vsub.f32 %v6662, %v6822
    %v6918 = vsub.f32 %v6665, %v6824
    %v6919 = vsub.f32 %v6668, %v6826
    %v6920 = vsub.f32 %v6671, %v6828
    %v6921 = vsub.f32 %v6674, %v6830
    %v6922 = vsub.f32 %v6677, %v6832
    %v6923 = vsub.f32 %v6680, %v6834
    %v6924 = vsub.f32 %v6683, %v6836
    %v6925 = vsub.f32 %v6686, %v6838
    %v6926 = vsub.f32 %v6689, %v6840
    %v6927 = vsub.f32 %v6692, %v6842
    %v6928 = vsub.f32 %v6695, %v6844
    %v6929 = vsub.f32 %v6698, %v6846
    %v6930 = vsub.f32 %v6701, %v6848
    %v6931 = vsub.f32 %v6704, %v6850
    %v6932 = vsub.f32 %v6707, %v6852
    %v6933 = vsub.f32 %v6710, %v6854
    %v6934 = vsub.f32 %v6713, %v6856
    %v6935 = vsub.f32 %v6716, %v6858
    %v6936 = vsub.f32 %v6719, %v6860
    %v6937 = vsub.f32 %v6722, %v6862
    %v6938 = vsub.f32 %v6725, %v6864
    %v6939 = vsub.f32 %v6728, %v6866
    %v6940 = vsub.f32 %v6731, %v6868
    %v6941 = vsub.f32 %v6734, %v6870
    %v6942 = vsub.f32 %v6737, %v6872
    %v6943 = vsub.f32 %v6740, %v6874
    %v6944 = vsub.f32 %v6743, %v6876
    %v6945 = vsub.f32 %v6746, %v6878
    %v6946 = vsub.f32 %v6749, %v6880
    %v6947 = vsub.f32 %v6752, %v6882
    %v6948 = vsub.f32 %v6755, %v6884
    %v6949 = vmul.f32 %v6885, 1.442695
    %v6950 = vpow.pop %v6949
    %v6951 = vmul.f32 %v6886, 1.442695
    %v6952 = vpow.pop %v6951
    %v6953 = vmul.f32 %v6887, 1.442695
    %v6954 = vpow.pop %v6953
    %v6955 = vmul.f32 %v6888, 1.442695
    %v6956 = vpow.pop %v6955
    %v6957 = vmul.f32 %v6889, 1.442695
    %v6958 = vpow.pop %v6957
    %v6959 = vmul.f32 %v6890, 1.442695
    %v6960 = vpow.pop %v6959
    %v6961 = vmul.f32 %v6891, 1.442695
    %v6962 = vpow.pop %v6961
    %v6963 = vmul.f32 %v6892, 1.442695
    %v6964 = vpow.pop %v6963
    %v6965 = vmul.f32 %v6893, 1.442695
    %v6966 = vpow.pop %v6965
    %v6967 = vmul.f32 %v6894, 1.442695
    %v6968 = vpow.pop %v6967
    %v6969 = vmul.f32 %v6895, 1.442695
    %v6970 = vpow.pop %v6969
    %v6971 = vmul.f32 %v6896, 1.442695
    %v6972 = vpow.pop %v6971
    %v6973 = vmul.f32 %v6897, 1.442695
    %v6974 = vpow.pop %v6973
    %v6975 = vmul.f32 %v6898, 1.442695
    %v6976 = vpow.pop %v6975
    %v6977 = vmul.f32 %v6899, 1.442695
    %v6978 = vpow.pop %v6977
    %v6979 = vmul.f32 %v6900, 1.442695
    %v6980 = vpow.pop %v6979
    %v6981 = vmul.f32 %v6901, 1.442695
    %v6982 = vpow.pop %v6981
    %v6983 = vmul.f32 %v6902, 1.442695
    %v6984 = vpow.pop %v6983
    %v6985 = vmul.f32 %v6903, 1.442695
    %v6986 = vpow.pop %v6985
    %v6987 = vmul.f32 %v6904, 1.442695
    %v6988 = vpow.pop %v6987
    %v6989 = vmul.f32 %v6905, 1.442695
    %v6990 = vpow.pop %v6989
    %v6991 = vmul.f32 %v6906, 1.442695
    %v6992 = vpow.pop %v6991
    %v6993 = vmul.f32 %v6907, 1.442695
    %v6994 = vpow.pop %v6993
    %v6995 = vmul.f32 %v6908, 1.442695
    %v6996 = vpow.pop %v6995
    %v6997 = vmul.f32 %v6909, 1.442695
    %v6998 = vpow.pop %v6997
    %v6999 = vmul.f32 %v6910, 1.442695
    %v7000 = vpow.pop %v6999
    %v7001 = vmul.f32 %v6911, 1.442695
    %v7002 = vpow.pop %v7001
    %v7003 = vmul.f32 %v6912, 1.442695
    %v7004 = vpow.pop %v7003
    %v7005 = vmul.f32 %v6913, 1.442695
    %v7006 = vpow.pop %v7005
    %v7007 = vmul.f32 %v6914, 1.442695
    %v7008 = vpow.pop %v7007
    %v7009 = vmul.f32 %v6915, 1.442695
    %v7010 = vpow.pop %v7009
    %v7011 = vmul.f32 %v6916, 1.442695
    %v7012 = vpow.pop %v7011
    %v7013 = vmul.f32 %v6917, 1.442695
    %v7014 = vpow.pop %v7013
    %v7015 = vmul.f32 %v6918, 1.442695
    %v7016 = vpow.pop %v7015
    %v7017 = vmul.f32 %v6919, 1.442695
    %v7018 = vpow.pop %v7017
    %v7019 = vmul.f32 %v6920, 1.442695
    %v7020 = vpow.pop %v7019
    %v7021 = vmul.f32 %v6921, 1.442695
    %v7022 = vpow.pop %v7021
    %v7023 = vmul.f32 %v6922, 1.442695
    %v7024 = vpow.pop %v7023
    %v7025 = vmul.f32 %v6923, 1.442695
    %v7026 = vpow.pop %v7025
    %v7027 = vmul.f32 %v6924, 1.442695
    %v7028 = vpow.pop %v7027
    %v7029 = vmul.f32 %v6925, 1.442695
    %v7030 = vpow.pop %v7029
    %v7031 = vmul.f32 %v6926, 1.442695
    %v7032 = vpow.pop %v7031
    %v7033 = vmul.f32 %v6927, 1.442695
    %v7034 = vpow.pop %v7033
    %v7035 = vmul.f32 %v6928, 1.442695
    %v7036 = vpow.pop %v7035
    %v7037 = vmul.f32 %v6929, 1.442695
    %v7038 = vpow.pop %v7037
    %v7039 = vmul.f32 %v6930, 1.442695
    %v7040 = vpow.pop %v7039
    %v7041 = vmul.f32 %v6931, 1.442695
    %v7042 = vpow.pop %v7041
    %v7043 = vmul.f32 %v6932, 1.442695
    %v7044 = vpow.pop %v7043
    %v7045 = vmul.f32 %v6933, 1.442695
    %v7046 = vpow.pop %v7045
    %v7047 = vmul.f32 %v6934, 1.442695
    %v7048 = vpow.pop %v7047
    %v7049 = vmul.f32 %v6935, 1.442695
    %v7050 = vpow.pop %v7049
    %v7051 = vmul.f32 %v6936, 1.442695
    %v7052 = vpow.pop %v7051
    %v7053 = vmul.f32 %v6937, 1.442695
    %v7054 = vpow.pop %v7053
    %v7055 = vmul.f32 %v6938, 1.442695
    %v7056 = vpow.pop %v7055
    %v7057 = vmul.f32 %v6939, 1.442695
    %v7058 = vpow.pop %v7057
    %v7059 = vmul.f32 %v6940, 1.442695
    %v7060 = vpow.pop %v7059
    %v7061 = vmul.f32 %v6941, 1.442695
    %v7062 = vpow.pop %v7061
    %v7063 = vmul.f32 %v6942, 1.442695
    %v7064 = vpow.pop %v7063
    %v7065 = vmul.f32 %v6943, 1.442695
    %v7066 = vpow.pop %v7065
    %v7067 = vmul.f32 %v6944, 1.442695
    %v7068 = vpow.pop %v7067
    %v7069 = vmul.f32 %v6945, 1.442695
    %v7070 = vpow.pop %v7069
    %v7071 = vmul.f32 %v6946, 1.442695
    %v7072 = vpow.pop %v7071
    %v7073 = vmul.f32 %v6947, 1.442695
    %v7074 = vpow.pop %v7073
    %v7075 = vmul.f32 %v6948, 1.442695
    %v7076 = vpow.pop %v7075
    %7077 = vadd.xlane.f32.xlu0 %v6950
    %v7078 = vpop.xlane.xlu0 %7077
    %7079 = vadd.xlane.f32.xlu0 %v6952
    %v7080 = vpop.xlane.xlu0 %7079
    %7081 = vadd.xlane.f32.xlu0 %v6954
    %v7082 = vpop.xlane.xlu0 %7081
    %7083 = vadd.xlane.f32.xlu0 %v6956
    %v7084 = vpop.xlane.xlu0 %7083
    %7085 = vadd.xlane.f32.xlu0 %v6958
    %v7086 = vpop.xlane.xlu0 %7085
    %7087 = vadd.xlane.f32.xlu0 %v6960
    %v7088 = vpop.xlane.xlu0 %7087
    %7089 = vadd.xlane.f32.xlu0 %v6962
    %v7090 = vpop.xlane.xlu0 %7089
    %7091 = vadd.xlane.f32.xlu0 %v6964
    %v7092 = vpop.xlane.xlu0 %7091
    %7093 = vadd.xlane.f32.xlu0 %v6966
    %v7094 = vpop.xlane.xlu0 %7093
    %7095 = vadd.xlane.f32.xlu0 %v6968
    %v7096 = vpop.xlane.xlu0 %7095
    %7097 = vadd.xlane.f32.xlu0 %v6970
    %v7098 = vpop.xlane.xlu0 %7097
    %7099 = vadd.xlane.f32.xlu0 %v6972
    %v7100 = vpop.xlane.xlu0 %7099
    %7101 = vadd.xlane.f32.xlu0 %v6974
    %v7102 = vpop.xlane.xlu0 %7101
    %7103 = vadd.xlane.f32.xlu0 %v6976
    %v7104 = vpop.xlane.xlu0 %7103
    %7105 = vadd.xlane.f32.xlu0 %v6978
    %v7106 = vpop.xlane.xlu0 %7105
    %7107 = vadd.xlane.f32.xlu0 %v6980
    %v7108 = vpop.xlane.xlu0 %7107
    %7109 = vadd.xlane.f32.xlu0 %v6982
    %v7110 = vpop.xlane.xlu0 %7109
    %7111 = vadd.xlane.f32.xlu0 %v6984
    %v7112 = vpop.xlane.xlu0 %7111
    %7113 = vadd.xlane.f32.xlu0 %v6986
    %v7114 = vpop.xlane.xlu0 %7113
    %7115 = vadd.xlane.f32.xlu0 %v6988
    %v7116 = vpop.xlane.xlu0 %7115
    %7117 = vadd.xlane.f32.xlu0 %v6990
    %v7118 = vpop.xlane.xlu0 %7117
    %7119 = vadd.xlane.f32.xlu0 %v6992
    %v7120 = vpop.xlane.xlu0 %7119
    %7121 = vadd.xlane.f32.xlu0 %v6994
    %v7122 = vpop.xlane.xlu0 %7121
    %7123 = vadd.xlane.f32.xlu0 %v6996
    %v7124 = vpop.xlane.xlu0 %7123
    %7125 = vadd.xlane.f32.xlu0 %v6998
    %v7126 = vpop.xlane.xlu0 %7125
    %7127 = vadd.xlane.f32.xlu0 %v7000
    %v7128 = vpop.xlane.xlu0 %7127
    %7129 = vadd.xlane.f32.xlu0 %v7002
    %v7130 = vpop.xlane.xlu0 %7129
    %7131 = vadd.xlane.f32.xlu0 %v7004
    %v7132 = vpop.xlane.xlu0 %7131
    %7133 = vadd.xlane.f32.xlu0 %v7006
    %v7134 = vpop.xlane.xlu0 %7133
    %7135 = vadd.xlane.f32.xlu0 %v7008
    %v7136 = vpop.xlane.xlu0 %7135
    %7137 = vadd.xlane.f32.xlu0 %v7010
    %v7138 = vpop.xlane.xlu0 %7137
    %7139 = vadd.xlane.f32.xlu0 %v7012
    %v7140 = vpop.xlane.xlu0 %7139
    %7141 = vadd.xlane.f32.xlu0 %v7014
    %v7142 = vpop.xlane.xlu0 %7141
    %7143 = vadd.xlane.f32.xlu0 %v7016
    %v7144 = vpop.xlane.xlu0 %7143
    %7145 = vadd.xlane.f32.xlu0 %v7018
    %v7146 = vpop.xlane.xlu0 %7145
    %7147 = vadd.xlane.f32.xlu0 %v7020
    %v7148 = vpop.xlane.xlu0 %7147
    %7149 = vadd.xlane.f32.xlu0 %v7022
    %v7150 = vpop.xlane.xlu0 %7149
    %7151 = vadd.xlane.f32.xlu0 %v7024
    %v7152 = vpop.xlane.xlu0 %7151
    %7153 = vadd.xlane.f32.xlu0 %v7026
    %v7154 = vpop.xlane.xlu0 %7153
    %7155 = vadd.xlane.f32.xlu0 %v7028
    %v7156 = vpop.xlane.xlu0 %7155
    %7157 = vadd.xlane.f32.xlu0 %v7030
    %v7158 = vpop.xlane.xlu0 %7157
    %7159 = vadd.xlane.f32.xlu0 %v7032
    %v7160 = vpop.xlane.xlu0 %7159
    %7161 = vadd.xlane.f32.xlu0 %v7034
    %v7162 = vpop.xlane.xlu0 %7161
    %7163 = vadd.xlane.f32.xlu0 %v7036
    %v7164 = vpop.xlane.xlu0 %7163
    %7165 = vadd.xlane.f32.xlu0 %v7038
    %v7166 = vpop.xlane.xlu0 %7165
    %7167 = vadd.xlane.f32.xlu0 %v7040
    %v7168 = vpop.xlane.xlu0 %7167
    %7169 = vadd.xlane.f32.xlu0 %v7042
    %v7170 = vpop.xlane.xlu0 %7169
    %7171 = vadd.xlane.f32.xlu0 %v7044
    %v7172 = vpop.xlane.xlu0 %7171
    %7173 = vadd.xlane.f32.xlu0 %v7046
    %v7174 = vpop.xlane.xlu0 %7173
    %7175 = vadd.xlane.f32.xlu0 %v7048
    %v7176 = vpop.xlane.xlu0 %7175
    %7177 = vadd.xlane.f32.xlu0 %v7050
    %v7178 = vpop.xlane.xlu0 %7177
    %7179 = vadd.xlane.f32.xlu0 %v7052
    %v7180 = vpop.xlane.xlu0 %7179
    %7181 = vadd.xlane.f32.xlu0 %v7054
    %v7182 = vpop.xlane.xlu0 %7181
    %7183 = vadd.xlane.f32.xlu0 %v7056
    %v7184 = vpop.xlane.xlu0 %7183
    %7185 = vadd.xlane.f32.xlu0 %v7058
    %v7186 = vpop.xlane.xlu0 %7185
    %7187 = vadd.xlane.f32.xlu0 %v7060
    %v7188 = vpop.xlane.xlu0 %7187
    %7189 = vadd.xlane.f32.xlu0 %v7062
    %v7190 = vpop.xlane.xlu0 %7189
    %7191 = vadd.xlane.f32.xlu0 %v7064
    %v7192 = vpop.xlane.xlu0 %7191
    %7193 = vadd.xlane.f32.xlu0 %v7066
    %v7194 = vpop.xlane.xlu0 %7193
    %7195 = vadd.xlane.f32.xlu0 %v7068
    %v7196 = vpop.xlane.xlu0 %7195
    %7197 = vadd.xlane.f32.xlu0 %v7070
    %v7198 = vpop.xlane.xlu0 %7197
    %7199 = vadd.xlane.f32.xlu0 %v7072
    %v7200 = vpop.xlane.xlu0 %7199
    %7201 = vadd.xlane.f32.xlu0 %v7074
    %v7202 = vpop.xlane.xlu0 %7201
    %7203 = vadd.xlane.f32.xlu0 %v7076
    %v7204 = vpop.xlane.xlu0 %7203
    %v7205 = vrcp.pop %v7078
    %v7206 = vmul.f32 %v7078, %v7205
    %v7207 = vsub.f32 1.0, %v7206
    %v7208 = vmul.f32 %v7205, %v7207
    %v7209 = vadd.f32 %v7205, %v7208
    %vm7210 = vweird.f32 %v7078
    %vm7211 = vweird.f32 %v7205
    %vm7212 = vmor %vm7210, %vm7211
    %v7213 = vsel %vm7212, %v7205, %v7209
    %v7214 = vand.u32 2147483647, %v7078
    %vm7215 = vcmp.eq.f32.partialorder %v7214, 8.507059e+37
    %v7216 = vand.u32 %v7078, 2147483648
    %v7217 = vor.u32 1.1754944e-38, %v7216
    %v7218 = vsel %vm7215, %v7217, %v7213
    %v7219 = vrcp.pop %v7080
    %v7220 = vmul.f32 %v7080, %v7219
    %v7221 = vsub.f32 1.0, %v7220
    %v7222 = vmul.f32 %v7219, %v7221
    %v7223 = vadd.f32 %v7219, %v7222
    %vm7224 = vweird.f32 %v7080
    %vm7225 = vweird.f32 %v7219
    %vm7226 = vmor %vm7224, %vm7225
    %v7227 = vsel %vm7226, %v7219, %v7223
    %v7228 = vand.u32 2147483647, %v7080
    %vm7229 = vcmp.eq.f32.partialorder %v7228, 8.507059e+37
    %v7230 = vand.u32 %v7080, 2147483648
    %v7231 = vor.u32 1.1754944e-38, %v7230
    %v7232 = vsel %vm7229, %v7231, %v7227
    %v7233 = vrcp.pop %v7082
    %v7234 = vmul.f32 %v7082, %v7233
    %v7235 = vsub.f32 1.0, %v7234
    %v7236 = vmul.f32 %v7233, %v7235
    %v7237 = vadd.f32 %v7233, %v7236
    %vm7238 = vweird.f32 %v7082
    %vm7239 = vweird.f32 %v7233
    %vm7240 = vmor %vm7238, %vm7239
    %v7241 = vsel %vm7240, %v7233, %v7237
    %v7242 = vand.u32 2147483647, %v7082
    %vm7243 = vcmp.eq.f32.partialorder %v7242, 8.507059e+37
    %v7244 = vand.u32 %v7082, 2147483648
    %v7245 = vor.u32 1.1754944e-38, %v7244
    %v7246 = vsel %vm7243, %v7245, %v7241
    %v7247 = vrcp.pop %v7084
    %v7248 = vmul.f32 %v7084, %v7247
    %v7249 = vsub.f32 1.0, %v7248
    %v7250 = vmul.f32 %v7247, %v7249
    %v7251 = vadd.f32 %v7247, %v7250
    %vm7252 = vweird.f32 %v7084
    %vm7253 = vweird.f32 %v7247
    %vm7254 = vmor %vm7252, %vm7253
    %v7255 = vsel %vm7254, %v7247, %v7251
    %v7256 = vand.u32 2147483647, %v7084
    %vm7257 = vcmp.eq.f32.partialorder %v7256, 8.507059e+37
    %v7258 = vand.u32 %v7084, 2147483648
    %v7259 = vor.u32 1.1754944e-38, %v7258
    %v7260 = vsel %vm7257, %v7259, %v7255
    %v7261 = vrcp.pop %v7086
    %v7262 = vmul.f32 %v7086, %v7261
    %v7263 = vsub.f32 1.0, %v7262
    %v7264 = vmul.f32 %v7261, %v7263
    %v7265 = vadd.f32 %v7261, %v7264
    %vm7266 = vweird.f32 %v7086
    %vm7267 = vweird.f32 %v7261
    %vm7268 = vmor %vm7266, %vm7267
    %v7269 = vsel %vm7268, %v7261, %v7265
    %v7270 = vand.u32 2147483647, %v7086
    %vm7271 = vcmp.eq.f32.partialorder %v7270, 8.507059e+37
    %v7272 = vand.u32 %v7086, 2147483648
    %v7273 = vor.u32 1.1754944e-38, %v7272
    %v7274 = vsel %vm7271, %v7273, %v7269
    %v7275 = vrcp.pop %v7088
    %v7276 = vmul.f32 %v7088, %v7275
    %v7277 = vsub.f32 1.0, %v7276
    %v7278 = vmul.f32 %v7275, %v7277
    %v7279 = vadd.f32 %v7275, %v7278
    %vm7280 = vweird.f32 %v7088
    %vm7281 = vweird.f32 %v7275
    %vm7282 = vmor %vm7280, %vm7281
    %v7283 = vsel %vm7282, %v7275, %v7279
    %v7284 = vand.u32 2147483647, %v7088
    %vm7285 = vcmp.eq.f32.partialorder %v7284, 8.507059e+37
    %v7286 = vand.u32 %v7088, 2147483648
    %v7287 = vor.u32 1.1754944e-38, %v7286
    %v7288 = vsel %vm7285, %v7287, %v7283
    %v7289 = vrcp.pop %v7090
    %v7290 = vmul.f32 %v7090, %v7289
    %v7291 = vsub.f32 1.0, %v7290
    %v7292 = vmul.f32 %v7289, %v7291
    %v7293 = vadd.f32 %v7289, %v7292
    %vm7294 = vweird.f32 %v7090
    %vm7295 = vweird.f32 %v7289
    %vm7296 = vmor %vm7294, %vm7295
    %v7297 = vsel %vm7296, %v7289, %v7293
    %v7298 = vand.u32 2147483647, %v7090
    %vm7299 = vcmp.eq.f32.partialorder %v7298, 8.507059e+37
    %v7300 = vand.u32 %v7090, 2147483648
    %v7301 = vor.u32 1.1754944e-38, %v7300
    %v7302 = vsel %vm7299, %v7301, %v7297
    %v7303 = vrcp.pop %v7092
    %v7304 = vmul.f32 %v7092, %v7303
    %v7305 = vsub.f32 1.0, %v7304
    %v7306 = vmul.f32 %v7303, %v7305
    %v7307 = vadd.f32 %v7303, %v7306
    %vm7308 = vweird.f32 %v7092
    %vm7309 = vweird.f32 %v7303
    %vm7310 = vmor %vm7308, %vm7309
    %v7311 = vsel %vm7310, %v7303, %v7307
    %v7312 = vand.u32 2147483647, %v7092
    %vm7313 = vcmp.eq.f32.partialorder %v7312, 8.507059e+37
    %v7314 = vand.u32 %v7092, 2147483648
    %v7315 = vor.u32 1.1754944e-38, %v7314
    %v7316 = vsel %vm7313, %v7315, %v7311
    %v7317 = vrcp.pop %v7094
    %v7318 = vmul.f32 %v7094, %v7317
    %v7319 = vsub.f32 1.0, %v7318
    %v7320 = vmul.f32 %v7317, %v7319
    %v7321 = vadd.f32 %v7317, %v7320
    %vm7322 = vweird.f32 %v7094
    %vm7323 = vweird.f32 %v7317
    %vm7324 = vmor %vm7322, %vm7323
    %v7325 = vsel %vm7324, %v7317, %v7321
    %v7326 = vand.u32 2147483647, %v7094
    %vm7327 = vcmp.eq.f32.partialorder %v7326, 8.507059e+37
    %v7328 = vand.u32 %v7094, 2147483648
    %v7329 = vor.u32 1.1754944e-38, %v7328
    %v7330 = vsel %vm7327, %v7329, %v7325
    %v7331 = vrcp.pop %v7096
    %v7332 = vmul.f32 %v7096, %v7331
    %v7333 = vsub.f32 1.0, %v7332
    %v7334 = vmul.f32 %v7331, %v7333
    %v7335 = vadd.f32 %v7331, %v7334
    %vm7336 = vweird.f32 %v7096
    %vm7337 = vweird.f32 %v7331
    %vm7338 = vmor %vm7336, %vm7337
    %v7339 = vsel %vm7338, %v7331, %v7335
    %v7340 = vand.u32 2147483647, %v7096
    %vm7341 = vcmp.eq.f32.partialorder %v7340, 8.507059e+37
    %v7342 = vand.u32 %v7096, 2147483648
    %v7343 = vor.u32 1.1754944e-38, %v7342
    %v7344 = vsel %vm7341, %v7343, %v7339
    %v7345 = vrcp.pop %v7098
    %v7346 = vmul.f32 %v7098, %v7345
    %v7347 = vsub.f32 1.0, %v7346
    %v7348 = vmul.f32 %v7345, %v7347
    %v7349 = vadd.f32 %v7345, %v7348
    %vm7350 = vweird.f32 %v7098
    %vm7351 = vweird.f32 %v7345
    %vm7352 = vmor %vm7350, %vm7351
    %v7353 = vsel %vm7352, %v7345, %v7349
    %v7354 = vand.u32 2147483647, %v7098
    %vm7355 = vcmp.eq.f32.partialorder %v7354, 8.507059e+37
    %v7356 = vand.u32 %v7098, 2147483648
    %v7357 = vor.u32 1.1754944e-38, %v7356
    %v7358 = vsel %vm7355, %v7357, %v7353
    %v7359 = vrcp.pop %v7100
    %v7360 = vmul.f32 %v7100, %v7359
    %v7361 = vsub.f32 1.0, %v7360
    %v7362 = vmul.f32 %v7359, %v7361
    %v7363 = vadd.f32 %v7359, %v7362
    %vm7364 = vweird.f32 %v7100
    %vm7365 = vweird.f32 %v7359
    %vm7366 = vmor %vm7364, %vm7365
    %v7367 = vsel %vm7366, %v7359, %v7363
    %v7368 = vand.u32 2147483647, %v7100
    %vm7369 = vcmp.eq.f32.partialorder %v7368, 8.507059e+37
    %v7370 = vand.u32 %v7100, 2147483648
    %v7371 = vor.u32 1.1754944e-38, %v7370
    %v7372 = vsel %vm7369, %v7371, %v7367
    %v7373 = vrcp.pop %v7102
    %v7374 = vmul.f32 %v7102, %v7373
    %v7375 = vsub.f32 1.0, %v7374
    %v7376 = vmul.f32 %v7373, %v7375
    %v7377 = vadd.f32 %v7373, %v7376
    %vm7378 = vweird.f32 %v7102
    %vm7379 = vweird.f32 %v7373
    %vm7380 = vmor %vm7378, %vm7379
    %v7381 = vsel %vm7380, %v7373, %v7377
    %v7382 = vand.u32 2147483647, %v7102
    %vm7383 = vcmp.eq.f32.partialorder %v7382, 8.507059e+37
    %v7384 = vand.u32 %v7102, 2147483648
    %v7385 = vor.u32 1.1754944e-38, %v7384
    %v7386 = vsel %vm7383, %v7385, %v7381
    %v7387 = vrcp.pop %v7104
    %v7388 = vmul.f32 %v7104, %v7387
    %v7389 = vsub.f32 1.0, %v7388
    %v7390 = vmul.f32 %v7387, %v7389
    %v7391 = vadd.f32 %v7387, %v7390
    %vm7392 = vweird.f32 %v7104
    %vm7393 = vweird.f32 %v7387
    %vm7394 = vmor %vm7392, %vm7393
    %v7395 = vsel %vm7394, %v7387, %v7391
    %v7396 = vand.u32 2147483647, %v7104
    %vm7397 = vcmp.eq.f32.partialorder %v7396, 8.507059e+37
    %v7398 = vand.u32 %v7104, 2147483648
    %v7399 = vor.u32 1.1754944e-38, %v7398
    %v7400 = vsel %vm7397, %v7399, %v7395
    %v7401 = vrcp.pop %v7106
    %v7402 = vmul.f32 %v7106, %v7401
    %v7403 = vsub.f32 1.0, %v7402
    %v7404 = vmul.f32 %v7401, %v7403
    %v7405 = vadd.f32 %v7401, %v7404
    %vm7406 = vweird.f32 %v7106
    %vm7407 = vweird.f32 %v7401
    %vm7408 = vmor %vm7406, %vm7407
    %v7409 = vsel %vm7408, %v7401, %v7405
    %v7410 = vand.u32 2147483647, %v7106
    %vm7411 = vcmp.eq.f32.partialorder %v7410, 8.507059e+37
    %v7412 = vand.u32 %v7106, 2147483648
    %v7413 = vor.u32 1.1754944e-38, %v7412
    %v7414 = vsel %vm7411, %v7413, %v7409
    %v7415 = vrcp.pop %v7108
    %v7416 = vmul.f32 %v7108, %v7415
    %v7417 = vsub.f32 1.0, %v7416
    %v7418 = vmul.f32 %v7415, %v7417
    %v7419 = vadd.f32 %v7415, %v7418
    %vm7420 = vweird.f32 %v7108
    %vm7421 = vweird.f32 %v7415
    %vm7422 = vmor %vm7420, %vm7421
    %v7423 = vsel %vm7422, %v7415, %v7419
    %v7424 = vand.u32 2147483647, %v7108
    %vm7425 = vcmp.eq.f32.partialorder %v7424, 8.507059e+37
    %v7426 = vand.u32 %v7108, 2147483648
    %v7427 = vor.u32 1.1754944e-38, %v7426
    %v7428 = vsel %vm7425, %v7427, %v7423
    %v7429 = vrcp.pop %v7110
    %v7430 = vmul.f32 %v7110, %v7429
    %v7431 = vsub.f32 1.0, %v7430
    %v7432 = vmul.f32 %v7429, %v7431
    %v7433 = vadd.f32 %v7429, %v7432
    %vm7434 = vweird.f32 %v7110
    %vm7435 = vweird.f32 %v7429
    %vm7436 = vmor %vm7434, %vm7435
    %v7437 = vsel %vm7436, %v7429, %v7433
    %v7438 = vand.u32 2147483647, %v7110
    %vm7439 = vcmp.eq.f32.partialorder %v7438, 8.507059e+37
    %v7440 = vand.u32 %v7110, 2147483648
    %v7441 = vor.u32 1.1754944e-38, %v7440
    %v7442 = vsel %vm7439, %v7441, %v7437
    %v7443 = vrcp.pop %v7112
    %v7444 = vmul.f32 %v7112, %v7443
    %v7445 = vsub.f32 1.0, %v7444
    %v7446 = vmul.f32 %v7443, %v7445
    %v7447 = vadd.f32 %v7443, %v7446
    %vm7448 = vweird.f32 %v7112
    %vm7449 = vweird.f32 %v7443
    %vm7450 = vmor %vm7448, %vm7449
    %v7451 = vsel %vm7450, %v7443, %v7447
    %v7452 = vand.u32 2147483647, %v7112
    %vm7453 = vcmp.eq.f32.partialorder %v7452, 8.507059e+37
    %v7454 = vand.u32 %v7112, 2147483648
    %v7455 = vor.u32 1.1754944e-38, %v7454
    %v7456 = vsel %vm7453, %v7455, %v7451
    %v7457 = vrcp.pop %v7114
    %v7458 = vmul.f32 %v7114, %v7457
    %v7459 = vsub.f32 1.0, %v7458
    %v7460 = vmul.f32 %v7457, %v7459
    %v7461 = vadd.f32 %v7457, %v7460
    %vm7462 = vweird.f32 %v7114
    %vm7463 = vweird.f32 %v7457
    %vm7464 = vmor %vm7462, %vm7463
    %v7465 = vsel %vm7464, %v7457, %v7461
    %v7466 = vand.u32 2147483647, %v7114
    %vm7467 = vcmp.eq.f32.partialorder %v7466, 8.507059e+37
    %v7468 = vand.u32 %v7114, 2147483648
    %v7469 = vor.u32 1.1754944e-38, %v7468
    %v7470 = vsel %vm7467, %v7469, %v7465
    %v7471 = vrcp.pop %v7116
    %v7472 = vmul.f32 %v7116, %v7471
    %v7473 = vsub.f32 1.0, %v7472
    %v7474 = vmul.f32 %v7471, %v7473
    %v7475 = vadd.f32 %v7471, %v7474
    %vm7476 = vweird.f32 %v7116
    %vm7477 = vweird.f32 %v7471
    %vm7478 = vmor %vm7476, %vm7477
    %v7479 = vsel %vm7478, %v7471, %v7475
    %v7480 = vand.u32 2147483647, %v7116
    %vm7481 = vcmp.eq.f32.partialorder %v7480, 8.507059e+37
    %v7482 = vand.u32 %v7116, 2147483648
    %v7483 = vor.u32 1.1754944e-38, %v7482
    %v7484 = vsel %vm7481, %v7483, %v7479
    %v7485 = vrcp.pop %v7118
    %v7486 = vmul.f32 %v7118, %v7485
    %v7487 = vsub.f32 1.0, %v7486
    %v7488 = vmul.f32 %v7485, %v7487
    %v7489 = vadd.f32 %v7485, %v7488
    %vm7490 = vweird.f32 %v7118
    %vm7491 = vweird.f32 %v7485
    %vm7492 = vmor %vm7490, %vm7491
    %v7493 = vsel %vm7492, %v7485, %v7489
    %v7494 = vand.u32 2147483647, %v7118
    %vm7495 = vcmp.eq.f32.partialorder %v7494, 8.507059e+37
    %v7496 = vand.u32 %v7118, 2147483648
    %v7497 = vor.u32 1.1754944e-38, %v7496
    %v7498 = vsel %vm7495, %v7497, %v7493
    %v7499 = vrcp.pop %v7120
    %v7500 = vmul.f32 %v7120, %v7499
    %v7501 = vsub.f32 1.0, %v7500
    %v7502 = vmul.f32 %v7499, %v7501
    %v7503 = vadd.f32 %v7499, %v7502
    %vm7504 = vweird.f32 %v7120
    %vm7505 = vweird.f32 %v7499
    %vm7506 = vmor %vm7504, %vm7505
    %v7507 = vsel %vm7506, %v7499, %v7503
    %v7508 = vand.u32 2147483647, %v7120
    %vm7509 = vcmp.eq.f32.partialorder %v7508, 8.507059e+37
    %v7510 = vand.u32 %v7120, 2147483648
    %v7511 = vor.u32 1.1754944e-38, %v7510
    %v7512 = vsel %vm7509, %v7511, %v7507
    %v7513 = vrcp.pop %v7122
    %v7514 = vmul.f32 %v7122, %v7513
    %v7515 = vsub.f32 1.0, %v7514
    %v7516 = vmul.f32 %v7513, %v7515
    %v7517 = vadd.f32 %v7513, %v7516
    %vm7518 = vweird.f32 %v7122
    %vm7519 = vweird.f32 %v7513
    %vm7520 = vmor %vm7518, %vm7519
    %v7521 = vsel %vm7520, %v7513, %v7517
    %v7522 = vand.u32 2147483647, %v7122
    %vm7523 = vcmp.eq.f32.partialorder %v7522, 8.507059e+37
    %v7524 = vand.u32 %v7122, 2147483648
    %v7525 = vor.u32 1.1754944e-38, %v7524
    %v7526 = vsel %vm7523, %v7525, %v7521
    %v7527 = vrcp.pop %v7124
    %v7528 = vmul.f32 %v7124, %v7527
    %v7529 = vsub.f32 1.0, %v7528
    %v7530 = vmul.f32 %v7527, %v7529
    %v7531 = vadd.f32 %v7527, %v7530
    %vm7532 = vweird.f32 %v7124
    %vm7533 = vweird.f32 %v7527
    %vm7534 = vmor %vm7532, %vm7533
    %v7535 = vsel %vm7534, %v7527, %v7531
    %v7536 = vand.u32 2147483647, %v7124
    %vm7537 = vcmp.eq.f32.partialorder %v7536, 8.507059e+37
    %v7538 = vand.u32 %v7124, 2147483648
    %v7539 = vor.u32 1.1754944e-38, %v7538
    %v7540 = vsel %vm7537, %v7539, %v7535
    %v7541 = vrcp.pop %v7126
    %v7542 = vmul.f32 %v7126, %v7541
    %v7543 = vsub.f32 1.0, %v7542
    %v7544 = vmul.f32 %v7541, %v7543
    %v7545 = vadd.f32 %v7541, %v7544
    %vm7546 = vweird.f32 %v7126
    %vm7547 = vweird.f32 %v7541
    %vm7548 = vmor %vm7546, %vm7547
    %v7549 = vsel %vm7548, %v7541, %v7545
    %v7550 = vand.u32 2147483647, %v7126
    %vm7551 = vcmp.eq.f32.partialorder %v7550, 8.507059e+37
    %v7552 = vand.u32 %v7126, 2147483648
    %v7553 = vor.u32 1.1754944e-38, %v7552
    %v7554 = vsel %vm7551, %v7553, %v7549
    %v7555 = vrcp.pop %v7128
    %v7556 = vmul.f32 %v7128, %v7555
    %v7557 = vsub.f32 1.0, %v7556
    %v7558 = vmul.f32 %v7555, %v7557
    %v7559 = vadd.f32 %v7555, %v7558
    %vm7560 = vweird.f32 %v7128
    %vm7561 = vweird.f32 %v7555
    %vm7562 = vmor %vm7560, %vm7561
    %v7563 = vsel %vm7562, %v7555, %v7559
    %v7564 = vand.u32 2147483647, %v7128
    %vm7565 = vcmp.eq.f32.partialorder %v7564, 8.507059e+37
    %v7566 = vand.u32 %v7128, 2147483648
    %v7567 = vor.u32 1.1754944e-38, %v7566
    %v7568 = vsel %vm7565, %v7567, %v7563
    %v7569 = vrcp.pop %v7130
    %v7570 = vmul.f32 %v7130, %v7569
    %v7571 = vsub.f32 1.0, %v7570
    %v7572 = vmul.f32 %v7569, %v7571
    %v7573 = vadd.f32 %v7569, %v7572
    %vm7574 = vweird.f32 %v7130
    %vm7575 = vweird.f32 %v7569
    %vm7576 = vmor %vm7574, %vm7575
    %v7577 = vsel %vm7576, %v7569, %v7573
    %v7578 = vand.u32 2147483647, %v7130
    %vm7579 = vcmp.eq.f32.partialorder %v7578, 8.507059e+37
    %v7580 = vand.u32 %v7130, 2147483648
    %v7581 = vor.u32 1.1754944e-38, %v7580
    %v7582 = vsel %vm7579, %v7581, %v7577
    %v7583 = vrcp.pop %v7132
    %v7584 = vmul.f32 %v7132, %v7583
    %v7585 = vsub.f32 1.0, %v7584
    %v7586 = vmul.f32 %v7583, %v7585
    %v7587 = vadd.f32 %v7583, %v7586
    %vm7588 = vweird.f32 %v7132
    %vm7589 = vweird.f32 %v7583
    %vm7590 = vmor %vm7588, %vm7589
    %v7591 = vsel %vm7590, %v7583, %v7587
    %v7592 = vand.u32 2147483647, %v7132
    %vm7593 = vcmp.eq.f32.partialorder %v7592, 8.507059e+37
    %v7594 = vand.u32 %v7132, 2147483648
    %v7595 = vor.u32 1.1754944e-38, %v7594
    %v7596 = vsel %vm7593, %v7595, %v7591
    %v7597 = vrcp.pop %v7134
    %v7598 = vmul.f32 %v7134, %v7597
    %v7599 = vsub.f32 1.0, %v7598
    %v7600 = vmul.f32 %v7597, %v7599
    %v7601 = vadd.f32 %v7597, %v7600
    %vm7602 = vweird.f32 %v7134
    %vm7603 = vweird.f32 %v7597
    %vm7604 = vmor %vm7602, %vm7603
    %v7605 = vsel %vm7604, %v7597, %v7601
    %v7606 = vand.u32 2147483647, %v7134
    %vm7607 = vcmp.eq.f32.partialorder %v7606, 8.507059e+37
    %v7608 = vand.u32 %v7134, 2147483648
    %v7609 = vor.u32 1.1754944e-38, %v7608
    %v7610 = vsel %vm7607, %v7609, %v7605
    %v7611 = vrcp.pop %v7136
    %v7612 = vmul.f32 %v7136, %v7611
    %v7613 = vsub.f32 1.0, %v7612
    %v7614 = vmul.f32 %v7611, %v7613
    %v7615 = vadd.f32 %v7611, %v7614
    %vm7616 = vweird.f32 %v7136
    %vm7617 = vweird.f32 %v7611
    %vm7618 = vmor %vm7616, %vm7617
    %v7619 = vsel %vm7618, %v7611, %v7615
    %v7620 = vand.u32 2147483647, %v7136
    %vm7621 = vcmp.eq.f32.partialorder %v7620, 8.507059e+37
    %v7622 = vand.u32 %v7136, 2147483648
    %v7623 = vor.u32 1.1754944e-38, %v7622
    %v7624 = vsel %vm7621, %v7623, %v7619
    %v7625 = vrcp.pop %v7138
    %v7626 = vmul.f32 %v7138, %v7625
    %v7627 = vsub.f32 1.0, %v7626
    %v7628 = vmul.f32 %v7625, %v7627
    %v7629 = vadd.f32 %v7625, %v7628
    %vm7630 = vweird.f32 %v7138
    %vm7631 = vweird.f32 %v7625
    %vm7632 = vmor %vm7630, %vm7631
    %v7633 = vsel %vm7632, %v7625, %v7629
    %v7634 = vand.u32 2147483647, %v7138
    %vm7635 = vcmp.eq.f32.partialorder %v7634, 8.507059e+37
    %v7636 = vand.u32 %v7138, 2147483648
    %v7637 = vor.u32 1.1754944e-38, %v7636
    %v7638 = vsel %vm7635, %v7637, %v7633
    %v7639 = vrcp.pop %v7140
    %v7640 = vmul.f32 %v7140, %v7639
    %v7641 = vsub.f32 1.0, %v7640
    %v7642 = vmul.f32 %v7639, %v7641
    %v7643 = vadd.f32 %v7639, %v7642
    %vm7644 = vweird.f32 %v7140
    %vm7645 = vweird.f32 %v7639
    %vm7646 = vmor %vm7644, %vm7645
    %v7647 = vsel %vm7646, %v7639, %v7643
    %v7648 = vand.u32 2147483647, %v7140
    %vm7649 = vcmp.eq.f32.partialorder %v7648, 8.507059e+37
    %v7650 = vand.u32 %v7140, 2147483648
    %v7651 = vor.u32 1.1754944e-38, %v7650
    %v7652 = vsel %vm7649, %v7651, %v7647
    %v7653 = vrcp.pop %v7142
    %v7654 = vmul.f32 %v7142, %v7653
    %v7655 = vsub.f32 1.0, %v7654
    %v7656 = vmul.f32 %v7653, %v7655
    %v7657 = vadd.f32 %v7653, %v7656
    %vm7658 = vweird.f32 %v7142
    %vm7659 = vweird.f32 %v7653
    %vm7660 = vmor %vm7658, %vm7659
    %v7661 = vsel %vm7660, %v7653, %v7657
    %v7662 = vand.u32 2147483647, %v7142
    %vm7663 = vcmp.eq.f32.partialorder %v7662, 8.507059e+37
    %v7664 = vand.u32 %v7142, 2147483648
    %v7665 = vor.u32 1.1754944e-38, %v7664
    %v7666 = vsel %vm7663, %v7665, %v7661
    %v7667 = vrcp.pop %v7144
    %v7668 = vmul.f32 %v7144, %v7667
    %v7669 = vsub.f32 1.0, %v7668
    %v7670 = vmul.f32 %v7667, %v7669
    %v7671 = vadd.f32 %v7667, %v7670
    %vm7672 = vweird.f32 %v7144
    %vm7673 = vweird.f32 %v7667
    %vm7674 = vmor %vm7672, %vm7673
    %v7675 = vsel %vm7674, %v7667, %v7671
    %v7676 = vand.u32 2147483647, %v7144
    %vm7677 = vcmp.eq.f32.partialorder %v7676, 8.507059e+37
    %v7678 = vand.u32 %v7144, 2147483648
    %v7679 = vor.u32 1.1754944e-38, %v7678
    %v7680 = vsel %vm7677, %v7679, %v7675
    %v7681 = vrcp.pop %v7146
    %v7682 = vmul.f32 %v7146, %v7681
    %v7683 = vsub.f32 1.0, %v7682
    %v7684 = vmul.f32 %v7681, %v7683
    %v7685 = vadd.f32 %v7681, %v7684
    %vm7686 = vweird.f32 %v7146
    %vm7687 = vweird.f32 %v7681
    %vm7688 = vmor %vm7686, %vm7687
    %v7689 = vsel %vm7688, %v7681, %v7685
    %v7690 = vand.u32 2147483647, %v7146
    %vm7691 = vcmp.eq.f32.partialorder %v7690, 8.507059e+37
    %v7692 = vand.u32 %v7146, 2147483648
    %v7693 = vor.u32 1.1754944e-38, %v7692
    %v7694 = vsel %vm7691, %v7693, %v7689
    %v7695 = vrcp.pop %v7148
    %v7696 = vmul.f32 %v7148, %v7695
    %v7697 = vsub.f32 1.0, %v7696
    %v7698 = vmul.f32 %v7695, %v7697
    %v7699 = vadd.f32 %v7695, %v7698
    %vm7700 = vweird.f32 %v7148
    %vm7701 = vweird.f32 %v7695
    %vm7702 = vmor %vm7700, %vm7701
    %v7703 = vsel %vm7702, %v7695, %v7699
    %v7704 = vand.u32 2147483647, %v7148
    %vm7705 = vcmp.eq.f32.partialorder %v7704, 8.507059e+37
    %v7706 = vand.u32 %v7148, 2147483648
    %v7707 = vor.u32 1.1754944e-38, %v7706
    %v7708 = vsel %vm7705, %v7707, %v7703
    %v7709 = vrcp.pop %v7150
    %v7710 = vmul.f32 %v7150, %v7709
    %v7711 = vsub.f32 1.0, %v7710
    %v7712 = vmul.f32 %v7709, %v7711
    %v7713 = vadd.f32 %v7709, %v7712
    %vm7714 = vweird.f32 %v7150
    %vm7715 = vweird.f32 %v7709
    %vm7716 = vmor %vm7714, %vm7715
    %v7717 = vsel %vm7716, %v7709, %v7713
    %v7718 = vand.u32 2147483647, %v7150
    %vm7719 = vcmp.eq.f32.partialorder %v7718, 8.507059e+37
    %v7720 = vand.u32 %v7150, 2147483648
    %v7721 = vor.u32 1.1754944e-38, %v7720
    %v7722 = vsel %vm7719, %v7721, %v7717
    %v7723 = vrcp.pop %v7152
    %v7724 = vmul.f32 %v7152, %v7723
    %v7725 = vsub.f32 1.0, %v7724
    %v7726 = vmul.f32 %v7723, %v7725
    %v7727 = vadd.f32 %v7723, %v7726
    %vm7728 = vweird.f32 %v7152
    %vm7729 = vweird.f32 %v7723
    %vm7730 = vmor %vm7728, %vm7729
    %v7731 = vsel %vm7730, %v7723, %v7727
    %v7732 = vand.u32 2147483647, %v7152
    %vm7733 = vcmp.eq.f32.partialorder %v7732, 8.507059e+37
    %v7734 = vand.u32 %v7152, 2147483648
    %v7735 = vor.u32 1.1754944e-38, %v7734
    %v7736 = vsel %vm7733, %v7735, %v7731
    %v7737 = vrcp.pop %v7154
    %v7738 = vmul.f32 %v7154, %v7737
    %v7739 = vsub.f32 1.0, %v7738
    %v7740 = vmul.f32 %v7737, %v7739
    %v7741 = vadd.f32 %v7737, %v7740
    %vm7742 = vweird.f32 %v7154
    %vm7743 = vweird.f32 %v7737
    %vm7744 = vmor %vm7742, %vm7743
    %v7745 = vsel %vm7744, %v7737, %v7741
    %v7746 = vand.u32 2147483647, %v7154
    %vm7747 = vcmp.eq.f32.partialorder %v7746, 8.507059e+37
    %v7748 = vand.u32 %v7154, 2147483648
    %v7749 = vor.u32 1.1754944e-38, %v7748
    %v7750 = vsel %vm7747, %v7749, %v7745
    %v7751 = vrcp.pop %v7156
    %v7752 = vmul.f32 %v7156, %v7751
    %v7753 = vsub.f32 1.0, %v7752
    %v7754 = vmul.f32 %v7751, %v7753
    %v7755 = vadd.f32 %v7751, %v7754
    %vm7756 = vweird.f32 %v7156
    %vm7757 = vweird.f32 %v7751
    %vm7758 = vmor %vm7756, %vm7757
    %v7759 = vsel %vm7758, %v7751, %v7755
    %v7760 = vand.u32 2147483647, %v7156
    %vm7761 = vcmp.eq.f32.partialorder %v7760, 8.507059e+37
    %v7762 = vand.u32 %v7156, 2147483648
    %v7763 = vor.u32 1.1754944e-38, %v7762
    %v7764 = vsel %vm7761, %v7763, %v7759
    %v7765 = vrcp.pop %v7158
    %v7766 = vmul.f32 %v7158, %v7765
    %v7767 = vsub.f32 1.0, %v7766
    %v7768 = vmul.f32 %v7765, %v7767
    %v7769 = vadd.f32 %v7765, %v7768
    %vm7770 = vweird.f32 %v7158
    %vm7771 = vweird.f32 %v7765
    %vm7772 = vmor %vm7770, %vm7771
    %v7773 = vsel %vm7772, %v7765, %v7769
    %v7774 = vand.u32 2147483647, %v7158
    %vm7775 = vcmp.eq.f32.partialorder %v7774, 8.507059e+37
    %v7776 = vand.u32 %v7158, 2147483648
    %v7777 = vor.u32 1.1754944e-38, %v7776
    %v7778 = vsel %vm7775, %v7777, %v7773
    %v7779 = vrcp.pop %v7160
    %v7780 = vmul.f32 %v7160, %v7779
    %v7781 = vsub.f32 1.0, %v7780
    %v7782 = vmul.f32 %v7779, %v7781
    %v7783 = vadd.f32 %v7779, %v7782
    %vm7784 = vweird.f32 %v7160
    %vm7785 = vweird.f32 %v7779
    %vm7786 = vmor %vm7784, %vm7785
    %v7787 = vsel %vm7786, %v7779, %v7783
    %v7788 = vand.u32 2147483647, %v7160
    %vm7789 = vcmp.eq.f32.partialorder %v7788, 8.507059e+37
    %v7790 = vand.u32 %v7160, 2147483648
    %v7791 = vor.u32 1.1754944e-38, %v7790
    %v7792 = vsel %vm7789, %v7791, %v7787
    %v7793 = vrcp.pop %v7162
    %v7794 = vmul.f32 %v7162, %v7793
    %v7795 = vsub.f32 1.0, %v7794
    %v7796 = vmul.f32 %v7793, %v7795
    %v7797 = vadd.f32 %v7793, %v7796
    %vm7798 = vweird.f32 %v7162
    %vm7799 = vweird.f32 %v7793
    %vm7800 = vmor %vm7798, %vm7799
    %v7801 = vsel %vm7800, %v7793, %v7797
    %v7802 = vand.u32 2147483647, %v7162
    %vm7803 = vcmp.eq.f32.partialorder %v7802, 8.507059e+37
    %v7804 = vand.u32 %v7162, 2147483648
    %v7805 = vor.u32 1.1754944e-38, %v7804
    %v7806 = vsel %vm7803, %v7805, %v7801
    %v7807 = vrcp.pop %v7164
    %v7808 = vmul.f32 %v7164, %v7807
    %v7809 = vsub.f32 1.0, %v7808
    %v7810 = vmul.f32 %v7807, %v7809
    %v7811 = vadd.f32 %v7807, %v7810
    %vm7812 = vweird.f32 %v7164
    %vm7813 = vweird.f32 %v7807
    %vm7814 = vmor %vm7812, %vm7813
    %v7815 = vsel %vm7814, %v7807, %v7811
    %v7816 = vand.u32 2147483647, %v7164
    %vm7817 = vcmp.eq.f32.partialorder %v7816, 8.507059e+37
    %v7818 = vand.u32 %v7164, 2147483648
    %v7819 = vor.u32 1.1754944e-38, %v7818
    %v7820 = vsel %vm7817, %v7819, %v7815
    %v7821 = vrcp.pop %v7166
    %v7822 = vmul.f32 %v7166, %v7821
    %v7823 = vsub.f32 1.0, %v7822
    %v7824 = vmul.f32 %v7821, %v7823
    %v7825 = vadd.f32 %v7821, %v7824
    %vm7826 = vweird.f32 %v7166
    %vm7827 = vweird.f32 %v7821
    %vm7828 = vmor %vm7826, %vm7827
    %v7829 = vsel %vm7828, %v7821, %v7825
    %v7830 = vand.u32 2147483647, %v7166
    %vm7831 = vcmp.eq.f32.partialorder %v7830, 8.507059e+37
    %v7832 = vand.u32 %v7166, 2147483648
    %v7833 = vor.u32 1.1754944e-38, %v7832
    %v7834 = vsel %vm7831, %v7833, %v7829
    %v7835 = vrcp.pop %v7168
    %v7836 = vmul.f32 %v7168, %v7835
    %v7837 = vsub.f32 1.0, %v7836
    %v7838 = vmul.f32 %v7835, %v7837
    %v7839 = vadd.f32 %v7835, %v7838
    %vm7840 = vweird.f32 %v7168
    %vm7841 = vweird.f32 %v7835
    %vm7842 = vmor %vm7840, %vm7841
    %v7843 = vsel %vm7842, %v7835, %v7839
    %v7844 = vand.u32 2147483647, %v7168
    %vm7845 = vcmp.eq.f32.partialorder %v7844, 8.507059e+37
    %v7846 = vand.u32 %v7168, 2147483648
    %v7847 = vor.u32 1.1754944e-38, %v7846
    %v7848 = vsel %vm7845, %v7847, %v7843
    %v7849 = vrcp.pop %v7170
    %v7850 = vmul.f32 %v7170, %v7849
    %v7851 = vsub.f32 1.0, %v7850
    %v7852 = vmul.f32 %v7849, %v7851
    %v7853 = vadd.f32 %v7849, %v7852
    %vm7854 = vweird.f32 %v7170
    %vm7855 = vweird.f32 %v7849
    %vm7856 = vmor %vm7854, %vm7855
    %v7857 = vsel %vm7856, %v7849, %v7853
    %v7858 = vand.u32 2147483647, %v7170
    %vm7859 = vcmp.eq.f32.partialorder %v7858, 8.507059e+37
    %v7860 = vand.u32 %v7170, 2147483648
    %v7861 = vor.u32 1.1754944e-38, %v7860
    %v7862 = vsel %vm7859, %v7861, %v7857
    %v7863 = vrcp.pop %v7172
    %v7864 = vmul.f32 %v7172, %v7863
    %v7865 = vsub.f32 1.0, %v7864
    %v7866 = vmul.f32 %v7863, %v7865
    %v7867 = vadd.f32 %v7863, %v7866
    %vm7868 = vweird.f32 %v7172
    %vm7869 = vweird.f32 %v7863
    %vm7870 = vmor %vm7868, %vm7869
    %v7871 = vsel %vm7870, %v7863, %v7867
    %v7872 = vand.u32 2147483647, %v7172
    %vm7873 = vcmp.eq.f32.partialorder %v7872, 8.507059e+37
    %v7874 = vand.u32 %v7172, 2147483648
    %v7875 = vor.u32 1.1754944e-38, %v7874
    %v7876 = vsel %vm7873, %v7875, %v7871
    %v7877 = vrcp.pop %v7174
    %v7878 = vmul.f32 %v7174, %v7877
    %v7879 = vsub.f32 1.0, %v7878
    %v7880 = vmul.f32 %v7877, %v7879
    %v7881 = vadd.f32 %v7877, %v7880
    %vm7882 = vweird.f32 %v7174
    %vm7883 = vweird.f32 %v7877
    %vm7884 = vmor %vm7882, %vm7883
    %v7885 = vsel %vm7884, %v7877, %v7881
    %v7886 = vand.u32 2147483647, %v7174
    %vm7887 = vcmp.eq.f32.partialorder %v7886, 8.507059e+37
    %v7888 = vand.u32 %v7174, 2147483648
    %v7889 = vor.u32 1.1754944e-38, %v7888
    %v7890 = vsel %vm7887, %v7889, %v7885
    %v7891 = vrcp.pop %v7176
    %v7892 = vmul.f32 %v7176, %v7891
    %v7893 = vsub.f32 1.0, %v7892
    %v7894 = vmul.f32 %v7891, %v7893
    %v7895 = vadd.f32 %v7891, %v7894
    %vm7896 = vweird.f32 %v7176
    %vm7897 = vweird.f32 %v7891
    %vm7898 = vmor %vm7896, %vm7897
    %v7899 = vsel %vm7898, %v7891, %v7895
    %v7900 = vand.u32 2147483647, %v7176
    %vm7901 = vcmp.eq.f32.partialorder %v7900, 8.507059e+37
    %v7902 = vand.u32 %v7176, 2147483648
    %v7903 = vor.u32 1.1754944e-38, %v7902
    %v7904 = vsel %vm7901, %v7903, %v7899
    %v7905 = vrcp.pop %v7178
    %v7906 = vmul.f32 %v7178, %v7905
    %v7907 = vsub.f32 1.0, %v7906
    %v7908 = vmul.f32 %v7905, %v7907
    %v7909 = vadd.f32 %v7905, %v7908
    %vm7910 = vweird.f32 %v7178
    %vm7911 = vweird.f32 %v7905
    %vm7912 = vmor %vm7910, %vm7911
    %v7913 = vsel %vm7912, %v7905, %v7909
    %v7914 = vand.u32 2147483647, %v7178
    %vm7915 = vcmp.eq.f32.partialorder %v7914, 8.507059e+37
    %v7916 = vand.u32 %v7178, 2147483648
    %v7917 = vor.u32 1.1754944e-38, %v7916
    %v7918 = vsel %vm7915, %v7917, %v7913
    %v7919 = vrcp.pop %v7180
    %v7920 = vmul.f32 %v7180, %v7919
    %v7921 = vsub.f32 1.0, %v7920
    %v7922 = vmul.f32 %v7919, %v7921
    %v7923 = vadd.f32 %v7919, %v7922
    %vm7924 = vweird.f32 %v7180
    %vm7925 = vweird.f32 %v7919
    %vm7926 = vmor %vm7924, %vm7925
    %v7927 = vsel %vm7926, %v7919, %v7923
    %v7928 = vand.u32 2147483647, %v7180
    %vm7929 = vcmp.eq.f32.partialorder %v7928, 8.507059e+37
    %v7930 = vand.u32 %v7180, 2147483648
    %v7931 = vor.u32 1.1754944e-38, %v7930
    %v7932 = vsel %vm7929, %v7931, %v7927
    %v7933 = vrcp.pop %v7182
    %v7934 = vmul.f32 %v7182, %v7933
    %v7935 = vsub.f32 1.0, %v7934
    %v7936 = vmul.f32 %v7933, %v7935
    %v7937 = vadd.f32 %v7933, %v7936
    %vm7938 = vweird.f32 %v7182
    %vm7939 = vweird.f32 %v7933
    %vm7940 = vmor %vm7938, %vm7939
    %v7941 = vsel %vm7940, %v7933, %v7937
    %v7942 = vand.u32 2147483647, %v7182
    %vm7943 = vcmp.eq.f32.partialorder %v7942, 8.507059e+37
    %v7944 = vand.u32 %v7182, 2147483648
    %v7945 = vor.u32 1.1754944e-38, %v7944
    %v7946 = vsel %vm7943, %v7945, %v7941
    %v7947 = vrcp.pop %v7184
    %v7948 = vmul.f32 %v7184, %v7947
    %v7949 = vsub.f32 1.0, %v7948
    %v7950 = vmul.f32 %v7947, %v7949
    %v7951 = vadd.f32 %v7947, %v7950
    %vm7952 = vweird.f32 %v7184
    %vm7953 = vweird.f32 %v7947
    %vm7954 = vmor %vm7952, %vm7953
    %v7955 = vsel %vm7954, %v7947, %v7951
    %v7956 = vand.u32 2147483647, %v7184
    %vm7957 = vcmp.eq.f32.partialorder %v7956, 8.507059e+37
    %v7958 = vand.u32 %v7184, 2147483648
    %v7959 = vor.u32 1.1754944e-38, %v7958
    %v7960 = vsel %vm7957, %v7959, %v7955
    %v7961 = vrcp.pop %v7186
    %v7962 = vmul.f32 %v7186, %v7961
    %v7963 = vsub.f32 1.0, %v7962
    %v7964 = vmul.f32 %v7961, %v7963
    %v7965 = vadd.f32 %v7961, %v7964
    %vm7966 = vweird.f32 %v7186
    %vm7967 = vweird.f32 %v7961
    %vm7968 = vmor %vm7966, %vm7967
    %v7969 = vsel %vm7968, %v7961, %v7965
    %v7970 = vand.u32 2147483647, %v7186
    %vm7971 = vcmp.eq.f32.partialorder %v7970, 8.507059e+37
    %v7972 = vand.u32 %v7186, 2147483648
    %v7973 = vor.u32 1.1754944e-38, %v7972
    %v7974 = vsel %vm7971, %v7973, %v7969
    %v7975 = vrcp.pop %v7188
    %v7976 = vmul.f32 %v7188, %v7975
    %v7977 = vsub.f32 1.0, %v7976
    %v7978 = vmul.f32 %v7975, %v7977
    %v7979 = vadd.f32 %v7975, %v7978
    %vm7980 = vweird.f32 %v7188
    %vm7981 = vweird.f32 %v7975
    %vm7982 = vmor %vm7980, %vm7981
    %v7983 = vsel %vm7982, %v7975, %v7979
    %v7984 = vand.u32 2147483647, %v7188
    %vm7985 = vcmp.eq.f32.partialorder %v7984, 8.507059e+37
    %v7986 = vand.u32 %v7188, 2147483648
    %v7987 = vor.u32 1.1754944e-38, %v7986
    %v7988 = vsel %vm7985, %v7987, %v7983
    %v7989 = vrcp.pop %v7190
    %v7990 = vmul.f32 %v7190, %v7989
    %v7991 = vsub.f32 1.0, %v7990
    %v7992 = vmul.f32 %v7989, %v7991
    %v7993 = vadd.f32 %v7989, %v7992
    %vm7994 = vweird.f32 %v7190
    %vm7995 = vweird.f32 %v7989
    %vm7996 = vmor %vm7994, %vm7995
    %v7997 = vsel %vm7996, %v7989, %v7993
    %v7998 = vand.u32 2147483647, %v7190
    %vm7999 = vcmp.eq.f32.partialorder %v7998, 8.507059e+37
    %v8000 = vand.u32 %v7190, 2147483648
    %v8001 = vor.u32 1.1754944e-38, %v8000
    %v8002 = vsel %vm7999, %v8001, %v7997
    %v8003 = vrcp.pop %v7192
    %v8004 = vmul.f32 %v7192, %v8003
    %v8005 = vsub.f32 1.0, %v8004
    %v8006 = vmul.f32 %v8003, %v8005
    %v8007 = vadd.f32 %v8003, %v8006
    %vm8008 = vweird.f32 %v7192
    %vm8009 = vweird.f32 %v8003
    %vm8010 = vmor %vm8008, %vm8009
    %v8011 = vsel %vm8010, %v8003, %v8007
    %v8012 = vand.u32 2147483647, %v7192
    %vm8013 = vcmp.eq.f32.partialorder %v8012, 8.507059e+37
    %v8014 = vand.u32 %v7192, 2147483648
    %v8015 = vor.u32 1.1754944e-38, %v8014
    %v8016 = vsel %vm8013, %v8015, %v8011
    %v8017 = vrcp.pop %v7194
    %v8018 = vmul.f32 %v7194, %v8017
    %v8019 = vsub.f32 1.0, %v8018
    %v8020 = vmul.f32 %v8017, %v8019
    %v8021 = vadd.f32 %v8017, %v8020
    %vm8022 = vweird.f32 %v7194
    %vm8023 = vweird.f32 %v8017
    %vm8024 = vmor %vm8022, %vm8023
    %v8025 = vsel %vm8024, %v8017, %v8021
    %v8026 = vand.u32 2147483647, %v7194
    %vm8027 = vcmp.eq.f32.partialorder %v8026, 8.507059e+37
    %v8028 = vand.u32 %v7194, 2147483648
    %v8029 = vor.u32 1.1754944e-38, %v8028
    %v8030 = vsel %vm8027, %v8029, %v8025
    %v8031 = vrcp.pop %v7196
    %v8032 = vmul.f32 %v7196, %v8031
    %v8033 = vsub.f32 1.0, %v8032
    %v8034 = vmul.f32 %v8031, %v8033
    %v8035 = vadd.f32 %v8031, %v8034
    %vm8036 = vweird.f32 %v7196
    %vm8037 = vweird.f32 %v8031
    %vm8038 = vmor %vm8036, %vm8037
    %v8039 = vsel %vm8038, %v8031, %v8035
    %v8040 = vand.u32 2147483647, %v7196
    %vm8041 = vcmp.eq.f32.partialorder %v8040, 8.507059e+37
    %v8042 = vand.u32 %v7196, 2147483648
    %v8043 = vor.u32 1.1754944e-38, %v8042
    %v8044 = vsel %vm8041, %v8043, %v8039
    %v8045 = vrcp.pop %v7198
    %v8046 = vmul.f32 %v7198, %v8045
    %v8047 = vsub.f32 1.0, %v8046
    %v8048 = vmul.f32 %v8045, %v8047
    %v8049 = vadd.f32 %v8045, %v8048
    %vm8050 = vweird.f32 %v7198
    %vm8051 = vweird.f32 %v8045
    %vm8052 = vmor %vm8050, %vm8051
    %v8053 = vsel %vm8052, %v8045, %v8049
    %v8054 = vand.u32 2147483647, %v7198
    %vm8055 = vcmp.eq.f32.partialorder %v8054, 8.507059e+37
    %v8056 = vand.u32 %v7198, 2147483648
    %v8057 = vor.u32 1.1754944e-38, %v8056
    %v8058 = vsel %vm8055, %v8057, %v8053
    %v8059 = vrcp.pop %v7200
    %v8060 = vmul.f32 %v7200, %v8059
    %v8061 = vsub.f32 1.0, %v8060
    %v8062 = vmul.f32 %v8059, %v8061
    %v8063 = vadd.f32 %v8059, %v8062
    %vm8064 = vweird.f32 %v7200
    %vm8065 = vweird.f32 %v8059
    %vm8066 = vmor %vm8064, %vm8065
    %v8067 = vsel %vm8066, %v8059, %v8063
    %v8068 = vand.u32 2147483647, %v7200
    %vm8069 = vcmp.eq.f32.partialorder %v8068, 8.507059e+37
    %v8070 = vand.u32 %v7200, 2147483648
    %v8071 = vor.u32 1.1754944e-38, %v8070
    %v8072 = vsel %vm8069, %v8071, %v8067
    %v8073 = vrcp.pop %v7202
    %v8074 = vmul.f32 %v7202, %v8073
    %v8075 = vsub.f32 1.0, %v8074
    %v8076 = vmul.f32 %v8073, %v8075
    %v8077 = vadd.f32 %v8073, %v8076
    %vm8078 = vweird.f32 %v7202
    %vm8079 = vweird.f32 %v8073
    %vm8080 = vmor %vm8078, %vm8079
    %v8081 = vsel %vm8080, %v8073, %v8077
    %v8082 = vand.u32 2147483647, %v7202
    %vm8083 = vcmp.eq.f32.partialorder %v8082, 8.507059e+37
    %v8084 = vand.u32 %v7202, 2147483648
    %v8085 = vor.u32 1.1754944e-38, %v8084
    %v8086 = vsel %vm8083, %v8085, %v8081
    %v8087 = vrcp.pop %v7204
    %v8088 = vmul.f32 %v7204, %v8087
    %v8089 = vsub.f32 1.0, %v8088
    %v8090 = vmul.f32 %v8087, %v8089
    %v8091 = vadd.f32 %v8087, %v8090
    %vm8092 = vweird.f32 %v7204
    %vm8093 = vweird.f32 %v8087
    %vm8094 = vmor %vm8092, %vm8093
    %v8095 = vsel %vm8094, %v8087, %v8091
    %v8096 = vand.u32 2147483647, %v7204
    %vm8097 = vcmp.eq.f32.partialorder %v8096, 8.507059e+37
    %v8098 = vand.u32 %v7204, 2147483648
    %v8099 = vor.u32 1.1754944e-38, %v8098
    %v8100 = vsel %vm8097, %v8099, %v8095
    %v8101 = vmul.f32 %v6950, %v7218
    %v8102 = vmul.f32 %v6952, %v7232
    %v8103 = vmul.f32 %v6954, %v7246
    %v8104 = vmul.f32 %v6956, %v7260
    %v8105 = vmul.f32 %v6958, %v7274
    %v8106 = vmul.f32 %v6960, %v7288
    %v8107 = vmul.f32 %v6962, %v7302
    %v8108 = vmul.f32 %v6964, %v7316
    %v8109 = vmul.f32 %v6966, %v7330
    %v8110 = vmul.f32 %v6968, %v7344
    %v8111 = vmul.f32 %v6970, %v7358
    %v8112 = vmul.f32 %v6972, %v7372
    %v8113 = vmul.f32 %v6974, %v7386
    %v8114 = vmul.f32 %v6976, %v7400
    %v8115 = vmul.f32 %v6978, %v7414
    %v8116 = vmul.f32 %v6980, %v7428
    %v8117 = vmul.f32 %v6982, %v7442
    %v8118 = vmul.f32 %v6984, %v7456
    %v8119 = vmul.f32 %v6986, %v7470
    %v8120 = vmul.f32 %v6988, %v7484
    %v8121 = vmul.f32 %v6990, %v7498
    %v8122 = vmul.f32 %v6992, %v7512
    %v8123 = vmul.f32 %v6994, %v7526
    %v8124 = vmul.f32 %v6996, %v7540
    %v8125 = vmul.f32 %v6998, %v7554
    %v8126 = vmul.f32 %v7000, %v7568
    %v8127 = vmul.f32 %v7002, %v7582
    %v8128 = vmul.f32 %v7004, %v7596
    %v8129 = vmul.f32 %v7006, %v7610
    %v8130 = vmul.f32 %v7008, %v7624
    %v8131 = vmul.f32 %v7010, %v7638
    %v8132 = vmul.f32 %v7012, %v7652
    %v8133 = vmul.f32 %v7014, %v7666
    %v8134 = vmul.f32 %v7016, %v7680
    %v8135 = vmul.f32 %v7018, %v7694
    %v8136 = vmul.f32 %v7020, %v7708
    %v8137 = vmul.f32 %v7022, %v7722
    %v8138 = vmul.f32 %v7024, %v7736
    %v8139 = vmul.f32 %v7026, %v7750
    %v8140 = vmul.f32 %v7028, %v7764
    %v8141 = vmul.f32 %v7030, %v7778
    %v8142 = vmul.f32 %v7032, %v7792
    %v8143 = vmul.f32 %v7034, %v7806
    %v8144 = vmul.f32 %v7036, %v7820
    %v8145 = vmul.f32 %v7038, %v7834
    %v8146 = vmul.f32 %v7040, %v7848
    %v8147 = vmul.f32 %v7042, %v7862
    %v8148 = vmul.f32 %v7044, %v7876
    %v8149 = vmul.f32 %v7046, %v7890
    %v8150 = vmul.f32 %v7048, %v7904
    %v8151 = vmul.f32 %v7050, %v7918
    %v8152 = vmul.f32 %v7052, %v7932
    %v8153 = vmul.f32 %v7054, %v7946
    %v8154 = vmul.f32 %v7056, %v7960
    %v8155 = vmul.f32 %v7058, %v7974
    %v8156 = vmul.f32 %v7060, %v7988
    %v8157 = vmul.f32 %v7062, %v8002
    %v8158 = vmul.f32 %v7064, %v8016
    %v8159 = vmul.f32 %v7066, %v8030
    %v8160 = vmul.f32 %v7068, %v8044
    %v8161 = vmul.f32 %v7070, %v8058
    %v8162 = vmul.f32 %v7072, %v8072
    %v8163 = vmul.f32 %v7074, %v8086
    %v8164 = vmul.f32 %v7076, %v8100
    %8181 = vrot.lane.b32.xlu0 %v5440, 64
    %v8182 = vpop.permute.xlu0 %8181
    %8183 = vrot.lane.b32.xlu0 %v5443, 64
    %v8184 = vpop.permute.xlu0 %8183
    %8185 = vrot.lane.b32.xlu0 %v5446, 64
    %v8186 = vpop.permute.xlu0 %8185
    %8187 = vrot.lane.b32.xlu0 %v5449, 64
    %v8188 = vpop.permute.xlu0 %8187
    %8189 = vrot.lane.b32.xlu0 %v5452, 64
    %v8190 = vpop.permute.xlu0 %8189
    %8191 = vrot.lane.b32.xlu0 %v5455, 64
    %v8192 = vpop.permute.xlu0 %8191
    %8193 = vrot.lane.b32.xlu0 %v5458, 64
    %v8194 = vpop.permute.xlu0 %8193
    %8195 = vrot.lane.b32.xlu0 %v5461, 64
    %v8196 = vpop.permute.xlu0 %8195
    %8197 = vrot.lane.b32.xlu0 %v5464, 64
    %v8198 = vpop.permute.xlu0 %8197
    %8199 = vrot.lane.b32.xlu0 %v5467, 64
    %v8200 = vpop.permute.xlu0 %8199
    %8201 = vrot.lane.b32.xlu0 %v5470, 64
    %v8202 = vpop.permute.xlu0 %8201
    %8203 = vrot.lane.b32.xlu0 %v5473, 64
    %v8204 = vpop.permute.xlu0 %8203
    %8205 = vrot.lane.b32.xlu0 %v5476, 64
    %v8206 = vpop.permute.xlu0 %8205
    %8207 = vrot.lane.b32.xlu0 %v5479, 64
    %v8208 = vpop.permute.xlu0 %8207
    %8209 = vrot.lane.b32.xlu0 %v5482, 64
    %v8210 = vpop.permute.xlu0 %8209
    %8211 = vrot.lane.b32.xlu0 %v5485, 64
    %v8212 = vpop.permute.xlu0 %8211
    %8229 = vmatpush.msra.mxu0 %v8212
    %8230 = vmatpush.msra.mxu0 %v8210
    %8231 = vmatpush.msra.mxu0 %v8208
    %8232 = vmatpush.msra.mxu0 %v8206
    %8233 = vmatpush.msra.mxu0 %v8204
    %8234 = vmatpush.msra.mxu0 %v8202
    %8235 = vmatpush.msra.mxu0 %v8200
    %8236 = vmatpush.msra.mxu0 %v8198
    %8237 = vmatpush.msra.mxu0 %v8196
    %8238 = vmatpush.msra.mxu0 %v8194
    %8239 = vmatpush.msra.mxu0 %v8192
    %8240 = vmatpush.msra.mxu0 %v8190
    %8241 = vmatpush.msra.mxu0 %v8188
    %8242 = vmatpush.msra.mxu0 %v8186
    %8243 = vmatpush.msra.mxu0 %v8184
    %8244 = vmatpush.msra.mxu0 %v8182
    %8245 = vmatmul.f32.gmra.mxu0 %v8101
    %v8246 = vpop.f32.mrf.mxu0
    %v8247 = vadd.f32 0.0, %v8246
    %8248 = vmatmul.f32.gmra.mxu0 %v8102
    %v8249 = vpop.f32.mrf.mxu0
    %v8250 = vadd.f32 0.0, %v8249
    %8251 = vmatmul.f32.gmra.mxu0 %v8103
    %v8252 = vpop.f32.mrf.mxu0
    %v8253 = vadd.f32 0.0, %v8252
    %8254 = vmatmul.f32.gmra.mxu0 %v8104
    %v8255 = vpop.f32.mrf.mxu0
    %v8256 = vadd.f32 0.0, %v8255
    %8257 = vmatmul.f32.gmra.mxu0 %v8105
    %v8258 = vpop.f32.mrf.mxu0
    %v8259 = vadd.f32 0.0, %v8258
    %8260 = vmatmul.f32.gmra.mxu0 %v8106
    %v8261 = vpop.f32.mrf.mxu0
    %v8262 = vadd.f32 0.0, %v8261
    %8263 = vmatmul.f32.gmra.mxu0 %v8107
    %v8264 = vpop.f32.mrf.mxu0
    %v8265 = vadd.f32 0.0, %v8264
    %8266 = vmatmul.f32.gmra.mxu0 %v8108
    %v8267 = vpop.f32.mrf.mxu0
    %v8268 = vadd.f32 0.0, %v8267
    %8269 = vmatmul.f32.gmra.mxu0 %v8109
    %v8270 = vpop.f32.mrf.mxu0
    %v8271 = vadd.f32 0.0, %v8270
    %8272 = vmatmul.f32.gmra.mxu0 %v8110
    %v8273 = vpop.f32.mrf.mxu0
    %v8274 = vadd.f32 0.0, %v8273
    %8275 = vmatmul.f32.gmra.mxu0 %v8111
    %v8276 = vpop.f32.mrf.mxu0
    %v8277 = vadd.f32 0.0, %v8276
    %8278 = vmatmul.f32.gmra.mxu0 %v8112
    %v8279 = vpop.f32.mrf.mxu0
    %v8280 = vadd.f32 0.0, %v8279
    %8281 = vmatmul.f32.gmra.mxu0 %v8113
    %v8282 = vpop.f32.mrf.mxu0
    %v8283 = vadd.f32 0.0, %v8282
    %8284 = vmatmul.f32.gmra.mxu0 %v8114
    %v8285 = vpop.f32.mrf.mxu0
    %v8286 = vadd.f32 0.0, %v8285
    %8287 = vmatmul.f32.gmra.mxu0 %v8115
    %v8288 = vpop.f32.mrf.mxu0
    %v8289 = vadd.f32 0.0, %v8288
    %8290 = vmatmul.f32.gmra.mxu0 %v8116
    %v8291 = vpop.f32.mrf.mxu0
    %v8292 = vadd.f32 0.0, %v8291
    %8293 = vmatmul.f32.gmra.mxu0 %v8117
    %v8294 = vpop.f32.mrf.mxu0
    %v8295 = vadd.f32 0.0, %v8294
    %8296 = vmatmul.f32.gmra.mxu0 %v8118
    %v8297 = vpop.f32.mrf.mxu0
    %v8298 = vadd.f32 0.0, %v8297
    %8299 = vmatmul.f32.gmra.mxu0 %v8119
    %v8300 = vpop.f32.mrf.mxu0
    %v8301 = vadd.f32 0.0, %v8300
    %8302 = vmatmul.f32.gmra.mxu0 %v8120
    %v8303 = vpop.f32.mrf.mxu0
    %v8304 = vadd.f32 0.0, %v8303
    %8305 = vmatmul.f32.gmra.mxu0 %v8121
    %v8306 = vpop.f32.mrf.mxu0
    %v8307 = vadd.f32 0.0, %v8306
    %8308 = vmatmul.f32.gmra.mxu0 %v8122
    %v8309 = vpop.f32.mrf.mxu0
    %v8310 = vadd.f32 0.0, %v8309
    %8311 = vmatmul.f32.gmra.mxu0 %v8123
    %v8312 = vpop.f32.mrf.mxu0
    %v8313 = vadd.f32 0.0, %v8312
    %8314 = vmatmul.f32.gmra.mxu0 %v8124
    %v8315 = vpop.f32.mrf.mxu0
    %v8316 = vadd.f32 0.0, %v8315
    %8317 = vmatmul.f32.gmra.mxu0 %v8125
    %v8318 = vpop.f32.mrf.mxu0
    %v8319 = vadd.f32 0.0, %v8318
    %8320 = vmatmul.f32.gmra.mxu0 %v8126
    %v8321 = vpop.f32.mrf.mxu0
    %v8322 = vadd.f32 0.0, %v8321
    %8323 = vmatmul.f32.gmra.mxu0 %v8127
    %v8324 = vpop.f32.mrf.mxu0
    %v8325 = vadd.f32 0.0, %v8324
    %8326 = vmatmul.f32.gmra.mxu0 %v8128
    %v8327 = vpop.f32.mrf.mxu0
    %v8328 = vadd.f32 0.0, %v8327
    %8329 = vmatmul.f32.gmra.mxu0 %v8129
    %v8330 = vpop.f32.mrf.mxu0
    %v8331 = vadd.f32 0.0, %v8330
    %8332 = vmatmul.f32.gmra.mxu0 %v8130
    %v8333 = vpop.f32.mrf.mxu0
    %v8334 = vadd.f32 0.0, %v8333
    %8335 = vmatmul.f32.gmra.mxu0 %v8131
    %v8336 = vpop.f32.mrf.mxu0
    %v8337 = vadd.f32 0.0, %v8336
    %8338 = vmatmul.f32.gmra.mxu0 %v8132
    %v8339 = vpop.f32.mrf.mxu0
    %v8340 = vadd.f32 0.0, %v8339
    %8341 = vmatmul.f32.gmra.mxu0 %v8133
    %v8342 = vpop.f32.mrf.mxu0
    %v8343 = vadd.f32 0.0, %v8342
    %8344 = vmatmul.f32.gmra.mxu0 %v8134
    %v8345 = vpop.f32.mrf.mxu0
    %v8346 = vadd.f32 0.0, %v8345
    %8347 = vmatmul.f32.gmra.mxu0 %v8135
    %v8348 = vpop.f32.mrf.mxu0
    %v8349 = vadd.f32 0.0, %v8348
    %8350 = vmatmul.f32.gmra.mxu0 %v8136
    %v8351 = vpop.f32.mrf.mxu0
    %v8352 = vadd.f32 0.0, %v8351
    %8353 = vmatmul.f32.gmra.mxu0 %v8137
    %v8354 = vpop.f32.mrf.mxu0
    %v8355 = vadd.f32 0.0, %v8354
    %8356 = vmatmul.f32.gmra.mxu0 %v8138
    %v8357 = vpop.f32.mrf.mxu0
    %v8358 = vadd.f32 0.0, %v8357
    %8359 = vmatmul.f32.gmra.mxu0 %v8139
    %v8360 = vpop.f32.mrf.mxu0
    %v8361 = vadd.f32 0.0, %v8360
    %8362 = vmatmul.f32.gmra.mxu0 %v8140
    %v8363 = vpop.f32.mrf.mxu0
    %v8364 = vadd.f32 0.0, %v8363
    %8365 = vmatmul.f32.gmra.mxu0 %v8141
    %v8366 = vpop.f32.mrf.mxu0
    %v8367 = vadd.f32 0.0, %v8366
    %8368 = vmatmul.f32.gmra.mxu0 %v8142
    %v8369 = vpop.f32.mrf.mxu0
    %v8370 = vadd.f32 0.0, %v8369
    %8371 = vmatmul.f32.gmra.mxu0 %v8143
    %v8372 = vpop.f32.mrf.mxu0
    %v8373 = vadd.f32 0.0, %v8372
    %8374 = vmatmul.f32.gmra.mxu0 %v8144
    %v8375 = vpop.f32.mrf.mxu0
    %v8376 = vadd.f32 0.0, %v8375
    %8377 = vmatmul.f32.gmra.mxu0 %v8145
    %v8378 = vpop.f32.mrf.mxu0
    %v8379 = vadd.f32 0.0, %v8378
    %8380 = vmatmul.f32.gmra.mxu0 %v8146
    %v8381 = vpop.f32.mrf.mxu0
    %v8382 = vadd.f32 0.0, %v8381
    %8383 = vmatmul.f32.gmra.mxu0 %v8147
    %v8384 = vpop.f32.mrf.mxu0
    %v8385 = vadd.f32 0.0, %v8384
    %8386 = vmatmul.f32.gmra.mxu0 %v8148
    %v8387 = vpop.f32.mrf.mxu0
    %v8388 = vadd.f32 0.0, %v8387
    %8389 = vmatmul.f32.gmra.mxu0 %v8149
    %v8390 = vpop.f32.mrf.mxu0
    %v8391 = vadd.f32 0.0, %v8390
    %8392 = vmatmul.f32.gmra.mxu0 %v8150
    %v8393 = vpop.f32.mrf.mxu0
    %v8394 = vadd.f32 0.0, %v8393
    %8395 = vmatmul.f32.gmra.mxu0 %v8151
    %v8396 = vpop.f32.mrf.mxu0
    %v8397 = vadd.f32 0.0, %v8396
    %8398 = vmatmul.f32.gmra.mxu0 %v8152
    %v8399 = vpop.f32.mrf.mxu0
    %v8400 = vadd.f32 0.0, %v8399
    %8401 = vmatmul.f32.gmra.mxu0 %v8153
    %v8402 = vpop.f32.mrf.mxu0
    %v8403 = vadd.f32 0.0, %v8402
    %8404 = vmatmul.f32.gmra.mxu0 %v8154
    %v8405 = vpop.f32.mrf.mxu0
    %v8406 = vadd.f32 0.0, %v8405
    %8407 = vmatmul.f32.gmra.mxu0 %v8155
    %v8408 = vpop.f32.mrf.mxu0
    %v8409 = vadd.f32 0.0, %v8408
    %8410 = vmatmul.f32.gmra.mxu0 %v8156
    %v8411 = vpop.f32.mrf.mxu0
    %v8412 = vadd.f32 0.0, %v8411
    %8413 = vmatmul.f32.gmra.mxu0 %v8157
    %v8414 = vpop.f32.mrf.mxu0
    %v8415 = vadd.f32 0.0, %v8414
    %8416 = vmatmul.f32.gmra.mxu0 %v8158
    %v8417 = vpop.f32.mrf.mxu0
    %v8418 = vadd.f32 0.0, %v8417
    %8419 = vmatmul.f32.gmra.mxu0 %v8159
    %v8420 = vpop.f32.mrf.mxu0
    %v8421 = vadd.f32 0.0, %v8420
    %8422 = vmatmul.f32.gmra.mxu0 %v8160
    %v8423 = vpop.f32.mrf.mxu0
    %v8424 = vadd.f32 0.0, %v8423
    %8425 = vmatmul.f32.gmra.mxu0 %v8161
    %v8426 = vpop.f32.mrf.mxu0
    %v8427 = vadd.f32 0.0, %v8426
    %8428 = vmatmul.f32.gmra.mxu0 %v8162
    %v8429 = vpop.f32.mrf.mxu0
    %v8430 = vadd.f32 0.0, %v8429
    %8431 = vmatmul.f32.gmra.mxu0 %v8163
    %v8432 = vpop.f32.mrf.mxu0
    %v8433 = vadd.f32 0.0, %v8432
    %8434 = vmatmul.f32.gmra.mxu0 %v8164
    %v8435 = vpop.f32.mrf.mxu0
    %v8436 = vadd.f32 0.0, %v8435
    %8437 = vdwg.mxu0
    %v8438 = vmul.f32 %v8247, %v166
    %v8439 = vmul.f32 %v8250, %v167
    %v8440 = vmul.f32 %v8253, %v168
    %v8441 = vmul.f32 %v8256, %v169
    %v8442 = vmul.f32 %v8259, %v170
    %v8443 = vmul.f32 %v8262, %v171
    %v8444 = vmul.f32 %v8265, %v172
    %v8445 = vmul.f32 %v8268, %v173
    %v8446 = vmul.f32 %v8271, %v174
    %v8447 = vmul.f32 %v8274, %v175
    %v8448 = vmul.f32 %v8277, %v176
    %v8449 = vmul.f32 %v8280, %v177
    %v8450 = vmul.f32 %v8283, %v178
    %v8451 = vmul.f32 %v8286, %v179
    %v8452 = vmul.f32 %v8289, %v180
    %v8453 = vmul.f32 %v8292, %v181
    %v8454 = vmul.f32 %v8295, %v182
    %v8455 = vmul.f32 %v8298, %v183
    %v8456 = vmul.f32 %v8301, %v184
    %v8457 = vmul.f32 %v8304, %v185
    %v8458 = vmul.f32 %v8307, %v186
    %v8459 = vmul.f32 %v8310, %v187
    %v8460 = vmul.f32 %v8313, %v188
    %v8461 = vmul.f32 %v8316, %v189
    %v8462 = vmul.f32 %v8319, %v190
    %v8463 = vmul.f32 %v8322, %v191
    %v8464 = vmul.f32 %v8325, %v192
    %v8465 = vmul.f32 %v8328, %v193
    %v8466 = vmul.f32 %v8331, %v194
    %v8467 = vmul.f32 %v8334, %v195
    %v8468 = vmul.f32 %v8337, %v196
    %v8469 = vmul.f32 %v8340, %v197
    %v8470 = vmul.f32 %v8343, %v198
    %v8471 = vmul.f32 %v8346, %v199
    %v8472 = vmul.f32 %v8349, %v200
    %v8473 = vmul.f32 %v8352, %v201
    %v8474 = vmul.f32 %v8355, %v202
    %v8475 = vmul.f32 %v8358, %v203
    %v8476 = vmul.f32 %v8361, %v204
    %v8477 = vmul.f32 %v8364, %v205
    %v8478 = vmul.f32 %v8367, %v206
    %v8479 = vmul.f32 %v8370, %v207
    %v8480 = vmul.f32 %v8373, %v208
    %v8481 = vmul.f32 %v8376, %v209
    %v8482 = vmul.f32 %v8379, %v210
    %v8483 = vmul.f32 %v8382, %v211
    %v8484 = vmul.f32 %v8385, %v212
    %v8485 = vmul.f32 %v8388, %v213
    %v8486 = vmul.f32 %v8391, %v214
    %v8487 = vmul.f32 %v8394, %v215
    %v8488 = vmul.f32 %v8397, %v216
    %v8489 = vmul.f32 %v8400, %v217
    %v8490 = vmul.f32 %v8403, %v218
    %v8491 = vmul.f32 %v8406, %v219
    %v8492 = vmul.f32 %v8409, %v220
    %v8493 = vmul.f32 %v8412, %v221
    %v8494 = vmul.f32 %v8415, %v222
    %v8495 = vmul.f32 %v8418, %v223
    %v8496 = vmul.f32 %v8421, %v224
    %v8497 = vmul.f32 %v8424, %v225
    %v8498 = vmul.f32 %v8427, %v226
    %v8499 = vmul.f32 %v8430, %v227
    %v8500 = vmul.f32 %v8433, %v228
    %v8501 = vmul.f32 %v8436, %v229
    %v8502 = vadd.f32 %v8438, %v8454
    %v8503 = vadd.f32 %v8439, %v8455
    %v8504 = vadd.f32 %v8440, %v8456
    %v8505 = vadd.f32 %v8441, %v8457
    %v8506 = vadd.f32 %v8442, %v8458
    %v8507 = vadd.f32 %v8443, %v8459
    %v8508 = vadd.f32 %v8444, %v8460
    %v8509 = vadd.f32 %v8445, %v8461
    %v8510 = vadd.f32 %v8446, %v8462
    %v8511 = vadd.f32 %v8447, %v8463
    %v8512 = vadd.f32 %v8448, %v8464
    %v8513 = vadd.f32 %v8449, %v8465
    %v8514 = vadd.f32 %v8450, %v8466
    %v8515 = vadd.f32 %v8451, %v8467
    %v8516 = vadd.f32 %v8452, %v8468
    %v8517 = vadd.f32 %v8453, %v8469
    %v8518 = vadd.f32 %v8502, %v8470
    %v8519 = vadd.f32 %v8503, %v8471
    %v8520 = vadd.f32 %v8504, %v8472
    %v8521 = vadd.f32 %v8505, %v8473
    %v8522 = vadd.f32 %v8506, %v8474
    %v8523 = vadd.f32 %v8507, %v8475
    %v8524 = vadd.f32 %v8508, %v8476
    %v8525 = vadd.f32 %v8509, %v8477
    %v8526 = vadd.f32 %v8510, %v8478
    %v8527 = vadd.f32 %v8511, %v8479
    %v8528 = vadd.f32 %v8512, %v8480
    %v8529 = vadd.f32 %v8513, %v8481
    %v8530 = vadd.f32 %v8514, %v8482
    %v8531 = vadd.f32 %v8515, %v8483
    %v8532 = vadd.f32 %v8516, %v8484
    %v8533 = vadd.f32 %v8517, %v8485
    %v8534 = vadd.f32 %v8518, %v8486
    %v8535 = vadd.f32 %v8519, %v8487
    %v8536 = vadd.f32 %v8520, %v8488
    %v8537 = vadd.f32 %v8521, %v8489
    %v8538 = vadd.f32 %v8522, %v8490
    %v8539 = vadd.f32 %v8523, %v8491
    %v8540 = vadd.f32 %v8524, %v8492
    %v8541 = vadd.f32 %v8525, %v8493
    %v8542 = vadd.f32 %v8526, %v8494
    %v8543 = vadd.f32 %v8527, %v8495
    %v8544 = vadd.f32 %v8528, %v8496
    %v8545 = vadd.f32 %v8529, %v8497
    %v8546 = vadd.f32 %v8530, %v8498
    %v8547 = vadd.f32 %v8531, %v8499
    %v8548 = vadd.f32 %v8532, %v8500
    %v8549 = vadd.f32 %v8533, %v8501
    %v8551 = vperm.slane %v5344, 0
    %v8554 = vsel %vm334, %v8534, 0
    %v8557 = vsel %vm334, %v8535, 0
    %v8560 = vsel %vm334, %v8536, 0
    %v8563 = vsel %vm334, %v8537, 0
    %v8566 = vsel %vm334, %v8538, 0
    %v8569 = vsel %vm334, %v8539, 0
    %v8572 = vsel %vm334, %v8540, 0
    %v8575 = vsel %vm334, %v8541, 0
    %v8578 = vsel %vm334, %v8542, 0
    %v8581 = vsel %vm334, %v8543, 0
    %v8584 = vsel %vm334, %v8544, 0
    %v8587 = vsel %vm334, %v8545, 0
    %v8590 = vsel %vm334, %v8546, 0
    %v8593 = vsel %vm334, %v8547, 0
    %v8596 = vsel %vm334, %v8548, 0
    %v8599 = vsel %vm334, %v8549, 0
    %8601 = vmatpush.msra.mxu0 0.0
    %8602 = vmatpush.msra.mxu0 0.0
    %8603 = vmatpush.msra.mxu0 0.0
    %8604 = vmatpush.msra.mxu0 0.0
    %8605 = vmatpush.msra.mxu0 0.0
    %8606 = vmatpush.msra.mxu0 0.0
    %8607 = vmatpush.msra.mxu0 0.0
    %8608 = vmatpush.msra.mxu0 0.0
    %8609 = vmatpush.msra.mxu0 0.0
    %8610 = vmatpush.msra.mxu0 0.0
    %8611 = vmatpush.msra.mxu0 0.0
    %8612 = vmatpush.msra.mxu0 0.0
    %8613 = vmatpush.msra.mxu0 %v5343
    %8614 = vmatpush.msra.mxu0 %v5342
    %8615 = vmatpush.msra.mxu0 %v5341
    %8616 = vmatpush.msra.mxu0 %v5340
    %8617 = vmatmul.f32.gmra.mxu0 %v8554
    %v8618 = vpop.f32.mrf.mxu0
    %v8619 = vadd.f32 %v8551, %v8618
    %8620 = vmatmul.f32.gmra.mxu0 %v8557
    %v8621 = vpop.f32.mrf.mxu0
    %v8622 = vadd.f32 %v8551, %v8621
    %8623 = vmatmul.f32.gmra.mxu0 %v8560
    %v8624 = vpop.f32.mrf.mxu0
    %v8625 = vadd.f32 %v8551, %v8624
    %8626 = vmatmul.f32.gmra.mxu0 %v8563
    %v8627 = vpop.f32.mrf.mxu0
    %v8628 = vadd.f32 %v8551, %v8627
    %8629 = vmatmul.f32.gmra.mxu0 %v8566
    %v8630 = vpop.f32.mrf.mxu0
    %v8631 = vadd.f32 %v8551, %v8630
    %8632 = vmatmul.f32.gmra.mxu0 %v8569
    %v8633 = vpop.f32.mrf.mxu0
    %v8634 = vadd.f32 %v8551, %v8633
    %8635 = vmatmul.f32.gmra.mxu0 %v8572
    %v8636 = vpop.f32.mrf.mxu0
    %v8637 = vadd.f32 %v8551, %v8636
    %8638 = vmatmul.f32.gmra.mxu0 %v8575
    %v8639 = vpop.f32.mrf.mxu0
    %v8640 = vadd.f32 %v8551, %v8639
    %8641 = vmatmul.f32.gmra.mxu0 %v8578
    %v8642 = vpop.f32.mrf.mxu0
    %v8643 = vadd.f32 %v8551, %v8642
    %8644 = vmatmul.f32.gmra.mxu0 %v8581
    %v8645 = vpop.f32.mrf.mxu0
    %v8646 = vadd.f32 %v8551, %v8645
    %8647 = vmatmul.f32.gmra.mxu0 %v8584
    %v8648 = vpop.f32.mrf.mxu0
    %v8649 = vadd.f32 %v8551, %v8648
    %8650 = vmatmul.f32.gmra.mxu0 %v8587
    %v8651 = vpop.f32.mrf.mxu0
    %v8652 = vadd.f32 %v8551, %v8651
    %8653 = vmatmul.f32.gmra.mxu0 %v8590
    %v8654 = vpop.f32.mrf.mxu0
    %v8655 = vadd.f32 %v8551, %v8654
    %8656 = vmatmul.f32.gmra.mxu0 %v8593
    %v8657 = vpop.f32.mrf.mxu0
    %v8658 = vadd.f32 %v8551, %v8657
    %8659 = vmatmul.f32.gmra.mxu0 %v8596
    %v8660 = vpop.f32.mrf.mxu0
    %v8661 = vadd.f32 %v8551, %v8660
    %8662 = vmatmul.f32.gmra.mxu0 %v8599
    %v8663 = vpop.f32.mrf.mxu0
    %v8664 = vadd.f32 %v8551, %v8663
    %8665 = vdwg.mxu0
    %v8666 = vsel %vm334, %v8619, 0.0
    %8667 = vadd.xlane.f32.xlu0 %v8666
    %v8668 = vpop.xlane.xlu0 %8667
    %v8669 = vsel %vm334, %v8622, 0.0
    %8670 = vadd.xlane.f32.xlu0 %v8669
    %v8671 = vpop.xlane.xlu0 %8670
    %v8672 = vsel %vm334, %v8625, 0.0
    %8673 = vadd.xlane.f32.xlu0 %v8672
    %v8674 = vpop.xlane.xlu0 %8673
    %v8675 = vsel %vm334, %v8628, 0.0
    %8676 = vadd.xlane.f32.xlu0 %v8675
    %v8677 = vpop.xlane.xlu0 %8676
    %v8678 = vsel %vm334, %v8631, 0.0
    %8679 = vadd.xlane.f32.xlu0 %v8678
    %v8680 = vpop.xlane.xlu0 %8679
    %v8681 = vsel %vm334, %v8634, 0.0
    %8682 = vadd.xlane.f32.xlu0 %v8681
    %v8683 = vpop.xlane.xlu0 %8682
    %v8684 = vsel %vm334, %v8637, 0.0
    %8685 = vadd.xlane.f32.xlu0 %v8684
    %v8686 = vpop.xlane.xlu0 %8685
    %v8687 = vsel %vm334, %v8640, 0.0
    %8688 = vadd.xlane.f32.xlu0 %v8687
    %v8689 = vpop.xlane.xlu0 %8688
    %v8690 = vsel %vm334, %v8643, 0.0
    %8691 = vadd.xlane.f32.xlu0 %v8690
    %v8692 = vpop.xlane.xlu0 %8691
    %v8693 = vsel %vm334, %v8646, 0.0
    %8694 = vadd.xlane.f32.xlu0 %v8693
    %v8695 = vpop.xlane.xlu0 %8694
    %v8696 = vsel %vm334, %v8649, 0.0
    %8697 = vadd.xlane.f32.xlu0 %v8696
    %v8698 = vpop.xlane.xlu0 %8697
    %v8699 = vsel %vm334, %v8652, 0.0
    %8700 = vadd.xlane.f32.xlu0 %v8699
    %v8701 = vpop.xlane.xlu0 %8700
    %v8702 = vsel %vm334, %v8655, 0.0
    %8703 = vadd.xlane.f32.xlu0 %v8702
    %v8704 = vpop.xlane.xlu0 %8703
    %v8705 = vsel %vm334, %v8658, 0.0
    %8706 = vadd.xlane.f32.xlu0 %v8705
    %v8707 = vpop.xlane.xlu0 %8706
    %v8708 = vsel %vm334, %v8661, 0.0
    %8709 = vadd.xlane.f32.xlu0 %v8708
    %v8710 = vpop.xlane.xlu0 %8709
    %v8711 = vsel %vm334, %v8664, 0.0
    %8712 = vadd.xlane.f32.xlu0 %v8711
    %v8713 = vpop.xlane.xlu0 %8712
    %v8714 = vmul.f32 %v8668, %v3681
    %v8715 = vmul.f32 %v8671, %v3681
    %v8716 = vmul.f32 %v8674, %v3681
    %v8717 = vmul.f32 %v8677, %v3681
    %v8718 = vmul.f32 %v8680, %v3681
    %v8719 = vmul.f32 %v8683, %v3681
    %v8720 = vmul.f32 %v8686, %v3681
    %v8721 = vmul.f32 %v8689, %v3681
    %v8722 = vmul.f32 %v8692, %v3681
    %v8723 = vmul.f32 %v8695, %v3681
    %v8724 = vmul.f32 %v8698, %v3681
    %v8725 = vmul.f32 %v8701, %v3681
    %v8726 = vmul.f32 %v8704, %v3681
    %v8727 = vmul.f32 %v8707, %v3681
    %v8728 = vmul.f32 %v8710, %v3681
    %v8729 = vmul.f32 %v8713, %v3681
    %v8730 = vsub.f32 %v8619, %v8714
    %v8731 = vsub.f32 %v8622, %v8715
    %v8732 = vsub.f32 %v8625, %v8716
    %v8733 = vsub.f32 %v8628, %v8717
    %v8734 = vsub.f32 %v8631, %v8718
    %v8735 = vsub.f32 %v8634, %v8719
    %v8736 = vsub.f32 %v8637, %v8720
    %v8737 = vsub.f32 %v8640, %v8721
    %v8738 = vsub.f32 %v8643, %v8722
    %v8739 = vsub.f32 %v8646, %v8723
    %v8740 = vsub.f32 %v8649, %v8724
    %v8741 = vsub.f32 %v8652, %v8725
    %v8742 = vsub.f32 %v8655, %v8726
    %v8743 = vsub.f32 %v8658, %v8727
    %v8744 = vsub.f32 %v8661, %v8728
    %v8745 = vsub.f32 %v8664, %v8729
    %v8746 = vmul.f32 %v8730, %v8730
    %v8747 = vmul.f32 %v8731, %v8731
    %v8748 = vmul.f32 %v8732, %v8732
    %v8749 = vmul.f32 %v8733, %v8733
    %v8750 = vmul.f32 %v8734, %v8734
    %v8751 = vmul.f32 %v8735, %v8735
    %v8752 = vmul.f32 %v8736, %v8736
    %v8753 = vmul.f32 %v8737, %v8737
    %v8754 = vmul.f32 %v8738, %v8738
    %v8755 = vmul.f32 %v8739, %v8739
    %v8756 = vmul.f32 %v8740, %v8740
    %v8757 = vmul.f32 %v8741, %v8741
    %v8758 = vmul.f32 %v8742, %v8742
    %v8759 = vmul.f32 %v8743, %v8743
    %v8760 = vmul.f32 %v8744, %v8744
    %v8761 = vmul.f32 %v8745, %v8745
    %v8762 = vsel %vm334, %v8746, 0.0
    %8763 = vadd.xlane.f32.xlu0 %v8762
    %v8764 = vpop.xlane.xlu0 %8763
    %v8765 = vsel %vm334, %v8747, 0.0
    %8766 = vadd.xlane.f32.xlu0 %v8765
    %v8767 = vpop.xlane.xlu0 %8766
    %v8768 = vsel %vm334, %v8748, 0.0
    %8769 = vadd.xlane.f32.xlu0 %v8768
    %v8770 = vpop.xlane.xlu0 %8769
    %v8771 = vsel %vm334, %v8749, 0.0
    %8772 = vadd.xlane.f32.xlu0 %v8771
    %v8773 = vpop.xlane.xlu0 %8772
    %v8774 = vsel %vm334, %v8750, 0.0
    %8775 = vadd.xlane.f32.xlu0 %v8774
    %v8776 = vpop.xlane.xlu0 %8775
    %v8777 = vsel %vm334, %v8751, 0.0
    %8778 = vadd.xlane.f32.xlu0 %v8777
    %v8779 = vpop.xlane.xlu0 %8778
    %v8780 = vsel %vm334, %v8752, 0.0
    %8781 = vadd.xlane.f32.xlu0 %v8780
    %v8782 = vpop.xlane.xlu0 %8781
    %v8783 = vsel %vm334, %v8753, 0.0
    %8784 = vadd.xlane.f32.xlu0 %v8783
    %v8785 = vpop.xlane.xlu0 %8784
    %v8786 = vsel %vm334, %v8754, 0.0
    %8787 = vadd.xlane.f32.xlu0 %v8786
    %v8788 = vpop.xlane.xlu0 %8787
    %v8789 = vsel %vm334, %v8755, 0.0
    %8790 = vadd.xlane.f32.xlu0 %v8789
    %v8791 = vpop.xlane.xlu0 %8790
    %v8792 = vsel %vm334, %v8756, 0.0
    %8793 = vadd.xlane.f32.xlu0 %v8792
    %v8794 = vpop.xlane.xlu0 %8793
    %v8795 = vsel %vm334, %v8757, 0.0
    %8796 = vadd.xlane.f32.xlu0 %v8795
    %v8797 = vpop.xlane.xlu0 %8796
    %v8798 = vsel %vm334, %v8758, 0.0
    %8799 = vadd.xlane.f32.xlu0 %v8798
    %v8800 = vpop.xlane.xlu0 %8799
    %v8801 = vsel %vm334, %v8759, 0.0
    %8802 = vadd.xlane.f32.xlu0 %v8801
    %v8803 = vpop.xlane.xlu0 %8802
    %v8804 = vsel %vm334, %v8760, 0.0
    %8805 = vadd.xlane.f32.xlu0 %v8804
    %v8806 = vpop.xlane.xlu0 %8805
    %v8807 = vsel %vm334, %v8761, 0.0
    %8808 = vadd.xlane.f32.xlu0 %v8807
    %v8809 = vpop.xlane.xlu0 %8808
    %v8810 = vmul.f32 %v8764, %v3681
    %v8811 = vmul.f32 %v8767, %v3681
    %v8812 = vmul.f32 %v8770, %v3681
    %v8813 = vmul.f32 %v8773, %v3681
    %v8814 = vmul.f32 %v8776, %v3681
    %v8815 = vmul.f32 %v8779, %v3681
    %v8816 = vmul.f32 %v8782, %v3681
    %v8817 = vmul.f32 %v8785, %v3681
    %v8818 = vmul.f32 %v8788, %v3681
    %v8819 = vmul.f32 %v8791, %v3681
    %v8820 = vmul.f32 %v8794, %v3681
    %v8821 = vmul.f32 %v8797, %v3681
    %v8822 = vmul.f32 %v8800, %v3681
    %v8823 = vmul.f32 %v8803, %v3681
    %v8824 = vmul.f32 %v8806, %v3681
    %v8825 = vmul.f32 %v8809, %v3681
    %v8826 = vadd.f32 %v8810, 1e-05
    %v8827 = vadd.f32 %v8811, 1e-05
    %v8828 = vadd.f32 %v8812, 1e-05
    %v8829 = vadd.f32 %v8813, 1e-05
    %v8830 = vadd.f32 %v8814, 1e-05
    %v8831 = vadd.f32 %v8815, 1e-05
    %v8832 = vadd.f32 %v8816, 1e-05
    %v8833 = vadd.f32 %v8817, 1e-05
    %v8834 = vadd.f32 %v8818, 1e-05
    %v8835 = vadd.f32 %v8819, 1e-05
    %v8836 = vadd.f32 %v8820, 1e-05
    %v8837 = vadd.f32 %v8821, 1e-05
    %v8838 = vadd.f32 %v8822, 1e-05
    %v8839 = vadd.f32 %v8823, 1e-05
    %v8840 = vadd.f32 %v8824, 1e-05
    %v8841 = vadd.f32 %v8825, 1e-05
    %v8842 = vrsqrt.pop %v8826
    %v8843 = vmul.f32 %v8842, %v8826
    %v8844 = vmul.f32 %v8843, %v8842
    %v8845 = vmul.f32 0.5, %v8844
    %v8846 = vsub.f32 1.5, %v8845
    %v8847 = vmul.f32 %v8842, %v8846
    %vm8848 = vweird.f32 %v8826
    %vm8849 = vweird.f32 %v8842
    %vm8850 = vmor %vm8848, %vm8849
    %v8851 = vsel %vm8850, %v8842, %v8847
    %v8852 = vrsqrt.pop %v8827
    %v8853 = vmul.f32 %v8852, %v8827
    %v8854 = vmul.f32 %v8853, %v8852
    %v8855 = vmul.f32 0.5, %v8854
    %v8856 = vsub.f32 1.5, %v8855
    %v8857 = vmul.f32 %v8852, %v8856
    %vm8858 = vweird.f32 %v8827
    %vm8859 = vweird.f32 %v8852
    %vm8860 = vmor %vm8858, %vm8859
    %v8861 = vsel %vm8860, %v8852, %v8857
    %v8862 = vrsqrt.pop %v8828
    %v8863 = vmul.f32 %v8862, %v8828
    %v8864 = vmul.f32 %v8863, %v8862
    %v8865 = vmul.f32 0.5, %v8864
    %v8866 = vsub.f32 1.5, %v8865
    %v8867 = vmul.f32 %v8862, %v8866
    %vm8868 = vweird.f32 %v8828
    %vm8869 = vweird.f32 %v8862
    %vm8870 = vmor %vm8868, %vm8869
    %v8871 = vsel %vm8870, %v8862, %v8867
    %v8872 = vrsqrt.pop %v8829
    %v8873 = vmul.f32 %v8872, %v8829
    %v8874 = vmul.f32 %v8873, %v8872
    %v8875 = vmul.f32 0.5, %v8874
    %v8876 = vsub.f32 1.5, %v8875
    %v8877 = vmul.f32 %v8872, %v8876
    %vm8878 = vweird.f32 %v8829
    %vm8879 = vweird.f32 %v8872
    %vm8880 = vmor %vm8878, %vm8879
    %v8881 = vsel %vm8880, %v8872, %v8877
    %v8882 = vrsqrt.pop %v8830
    %v8883 = vmul.f32 %v8882, %v8830
    %v8884 = vmul.f32 %v8883, %v8882
    %v8885 = vmul.f32 0.5, %v8884
    %v8886 = vsub.f32 1.5, %v8885
    %v8887 = vmul.f32 %v8882, %v8886
    %vm8888 = vweird.f32 %v8830
    %vm8889 = vweird.f32 %v8882
    %vm8890 = vmor %vm8888, %vm8889
    %v8891 = vsel %vm8890, %v8882, %v8887
    %v8892 = vrsqrt.pop %v8831
    %v8893 = vmul.f32 %v8892, %v8831
    %v8894 = vmul.f32 %v8893, %v8892
    %v8895 = vmul.f32 0.5, %v8894
    %v8896 = vsub.f32 1.5, %v8895
    %v8897 = vmul.f32 %v8892, %v8896
    %vm8898 = vweird.f32 %v8831
    %vm8899 = vweird.f32 %v8892
    %vm8900 = vmor %vm8898, %vm8899
    %v8901 = vsel %vm8900, %v8892, %v8897
    %v8902 = vrsqrt.pop %v8832
    %v8903 = vmul.f32 %v8902, %v8832
    %v8904 = vmul.f32 %v8903, %v8902
    %v8905 = vmul.f32 0.5, %v8904
    %v8906 = vsub.f32 1.5, %v8905
    %v8907 = vmul.f32 %v8902, %v8906
    %vm8908 = vweird.f32 %v8832
    %vm8909 = vweird.f32 %v8902
    %vm8910 = vmor %vm8908, %vm8909
    %v8911 = vsel %vm8910, %v8902, %v8907
    %v8912 = vrsqrt.pop %v8833
    %v8913 = vmul.f32 %v8912, %v8833
    %v8914 = vmul.f32 %v8913, %v8912
    %v8915 = vmul.f32 0.5, %v8914
    %v8916 = vsub.f32 1.5, %v8915
    %v8917 = vmul.f32 %v8912, %v8916
    %vm8918 = vweird.f32 %v8833
    %vm8919 = vweird.f32 %v8912
    %vm8920 = vmor %vm8918, %vm8919
    %v8921 = vsel %vm8920, %v8912, %v8917
    %v8922 = vrsqrt.pop %v8834
    %v8923 = vmul.f32 %v8922, %v8834
    %v8924 = vmul.f32 %v8923, %v8922
    %v8925 = vmul.f32 0.5, %v8924
    %v8926 = vsub.f32 1.5, %v8925
    %v8927 = vmul.f32 %v8922, %v8926
    %vm8928 = vweird.f32 %v8834
    %vm8929 = vweird.f32 %v8922
    %vm8930 = vmor %vm8928, %vm8929
    %v8931 = vsel %vm8930, %v8922, %v8927
    %v8932 = vrsqrt.pop %v8835
    %v8933 = vmul.f32 %v8932, %v8835
    %v8934 = vmul.f32 %v8933, %v8932
    %v8935 = vmul.f32 0.5, %v8934
    %v8936 = vsub.f32 1.5, %v8935
    %v8937 = vmul.f32 %v8932, %v8936
    %vm8938 = vweird.f32 %v8835
    %vm8939 = vweird.f32 %v8932
    %vm8940 = vmor %vm8938, %vm8939
    %v8941 = vsel %vm8940, %v8932, %v8937
    %v8942 = vrsqrt.pop %v8836
    %v8943 = vmul.f32 %v8942, %v8836
    %v8944 = vmul.f32 %v8943, %v8942
    %v8945 = vmul.f32 0.5, %v8944
    %v8946 = vsub.f32 1.5, %v8945
    %v8947 = vmul.f32 %v8942, %v8946
    %vm8948 = vweird.f32 %v8836
    %vm8949 = vweird.f32 %v8942
    %vm8950 = vmor %vm8948, %vm8949
    %v8951 = vsel %vm8950, %v8942, %v8947
    %v8952 = vrsqrt.pop %v8837
    %v8953 = vmul.f32 %v8952, %v8837
    %v8954 = vmul.f32 %v8953, %v8952
    %v8955 = vmul.f32 0.5, %v8954
    %v8956 = vsub.f32 1.5, %v8955
    %v8957 = vmul.f32 %v8952, %v8956
    %vm8958 = vweird.f32 %v8837
    %vm8959 = vweird.f32 %v8952
    %vm8960 = vmor %vm8958, %vm8959
    %v8961 = vsel %vm8960, %v8952, %v8957
    %v8962 = vrsqrt.pop %v8838
    %v8963 = vmul.f32 %v8962, %v8838
    %v8964 = vmul.f32 %v8963, %v8962
    %v8965 = vmul.f32 0.5, %v8964
    %v8966 = vsub.f32 1.5, %v8965
    %v8967 = vmul.f32 %v8962, %v8966
    %vm8968 = vweird.f32 %v8838
    %vm8969 = vweird.f32 %v8962
    %vm8970 = vmor %vm8968, %vm8969
    %v8971 = vsel %vm8970, %v8962, %v8967
    %v8972 = vrsqrt.pop %v8839
    %v8973 = vmul.f32 %v8972, %v8839
    %v8974 = vmul.f32 %v8973, %v8972
    %v8975 = vmul.f32 0.5, %v8974
    %v8976 = vsub.f32 1.5, %v8975
    %v8977 = vmul.f32 %v8972, %v8976
    %vm8978 = vweird.f32 %v8839
    %vm8979 = vweird.f32 %v8972
    %vm8980 = vmor %vm8978, %vm8979
    %v8981 = vsel %vm8980, %v8972, %v8977
    %v8982 = vrsqrt.pop %v8840
    %v8983 = vmul.f32 %v8982, %v8840
    %v8984 = vmul.f32 %v8983, %v8982
    %v8985 = vmul.f32 0.5, %v8984
    %v8986 = vsub.f32 1.5, %v8985
    %v8987 = vmul.f32 %v8982, %v8986
    %vm8988 = vweird.f32 %v8840
    %vm8989 = vweird.f32 %v8982
    %vm8990 = vmor %vm8988, %vm8989
    %v8991 = vsel %vm8990, %v8982, %v8987
    %v8992 = vrsqrt.pop %v8841
    %v8993 = vmul.f32 %v8992, %v8841
    %v8994 = vmul.f32 %v8993, %v8992
    %v8995 = vmul.f32 0.5, %v8994
    %v8996 = vsub.f32 1.5, %v8995
    %v8997 = vmul.f32 %v8992, %v8996
    %vm8998 = vweird.f32 %v8841
    %vm8999 = vweird.f32 %v8992
    %vm9000 = vmor %vm8998, %vm8999
    %v9001 = vsel %vm9000, %v8992, %v8997
    %v9002 = vmul.f32 %v8730, %v8851
    %v9003 = vmul.f32 %v8731, %v8861
    %v9004 = vmul.f32 %v8732, %v8871
    %v9005 = vmul.f32 %v8733, %v8881
    %v9006 = vmul.f32 %v8734, %v8891
    %v9007 = vmul.f32 %v8735, %v8901
    %v9008 = vmul.f32 %v8736, %v8911
    %v9009 = vmul.f32 %v8737, %v8921
    %v9010 = vmul.f32 %v8738, %v8931
    %v9011 = vmul.f32 %v8739, %v8941
    %v9012 = vmul.f32 %v8740, %v8951
    %v9013 = vmul.f32 %v8741, %v8961
    %v9014 = vmul.f32 %v8742, %v8971
    %v9015 = vmul.f32 %v8743, %v8981
    %v9016 = vmul.f32 %v8744, %v8991
    %v9017 = vmul.f32 %v8745, %v9001
    %v9019 = vperm.slane %v5345, 0
    %v9021 = vmul.f32 %v9002, %v9019
    %v9022 = vmul.f32 %v9003, %v9019
    %v9023 = vmul.f32 %v9004, %v9019
    %v9024 = vmul.f32 %v9005, %v9019
    %v9025 = vmul.f32 %v9006, %v9019
    %v9026 = vmul.f32 %v9007, %v9019
    %v9027 = vmul.f32 %v9008, %v9019
    %v9028 = vmul.f32 %v9009, %v9019
    %v9029 = vmul.f32 %v9010, %v9019
    %v9030 = vmul.f32 %v9011, %v9019
    %v9031 = vmul.f32 %v9012, %v9019
    %v9032 = vmul.f32 %v9013, %v9019
    %v9033 = vmul.f32 %v9014, %v9019
    %v9034 = vmul.f32 %v9015, %v9019
    %v9035 = vmul.f32 %v9016, %v9019
    %v9036 = vmul.f32 %v9017, %v9019
    %v9037 = vadd.f32 %v5254, %v9021
    %v9038 = vadd.f32 %v5255, %v9022
    %v9039 = vadd.f32 %v5256, %v9023
    %v9040 = vadd.f32 %v5257, %v9024
    %v9041 = vadd.f32 %v5258, %v9025
    %v9042 = vadd.f32 %v5259, %v9026
    %v9043 = vadd.f32 %v5260, %v9027
    %v9044 = vadd.f32 %v5261, %v9028
    %v9045 = vadd.f32 %v5262, %v9029
    %v9046 = vadd.f32 %v5263, %v9030
    %v9047 = vadd.f32 %v5264, %v9031
    %v9048 = vadd.f32 %v5265, %v9032
    %v9049 = vadd.f32 %v5266, %v9033
    %v9050 = vadd.f32 %v5267, %v9034
    %v9051 = vadd.f32 %v5268, %v9035
    %v9052 = vadd.f32 %v5269, %v9036
    %v9054 = vperm.slane %v5346, 0
    %v9056 = vadd.f32 %v9037, %v9054
    %v9057 = vadd.f32 %v9038, %v9054
    %v9058 = vadd.f32 %v9039, %v9054
    %v9059 = vadd.f32 %v9040, %v9054
    %v9060 = vadd.f32 %v9041, %v9054
    %v9061 = vadd.f32 %v9042, %v9054
    %v9062 = vadd.f32 %v9043, %v9054
    %v9063 = vadd.f32 %v9044, %v9054
    %v9064 = vadd.f32 %v9045, %v9054
    %v9065 = vadd.f32 %v9046, %v9054
    %v9066 = vadd.f32 %v9047, %v9054
    %v9067 = vadd.f32 %v9048, %v9054
    %v9068 = vadd.f32 %v9049, %v9054
    %v9069 = vadd.f32 %v9050, %v9054
    %v9070 = vadd.f32 %v9051, %v9054
    %v9071 = vadd.f32 %v9052, %v9054
    %v9073 = vperm.slane %v5351, 0
    %v9076 = vsel %vm334, %v9056, 0
    %v9079 = vsel %vm334, %v9057, 0
    %v9082 = vsel %vm334, %v9058, 0
    %v9085 = vsel %vm334, %v9059, 0
    %v9088 = vsel %vm334, %v9060, 0
    %v9091 = vsel %vm334, %v9061, 0
    %v9094 = vsel %vm334, %v9062, 0
    %v9097 = vsel %vm334, %v9063, 0
    %v9100 = vsel %vm334, %v9064, 0
    %v9103 = vsel %vm334, %v9065, 0
    %v9106 = vsel %vm334, %v9066, 0
    %v9109 = vsel %vm334, %v9067, 0
    %v9112 = vsel %vm334, %v9068, 0
    %v9115 = vsel %vm334, %v9069, 0
    %v9118 = vsel %vm334, %v9070, 0
    %v9121 = vsel %vm334, %v9071, 0
    %9123 = vmatpush.msra.mxu0 0.0
    %9124 = vmatpush.msra.mxu0 0.0
    %9125 = vmatpush.msra.mxu0 0.0
    %9126 = vmatpush.msra.mxu0 0.0
    %9127 = vmatpush.msra.mxu0 0.0
    %9128 = vmatpush.msra.mxu0 0.0
    %9129 = vmatpush.msra.mxu0 0.0
    %9130 = vmatpush.msra.mxu0 0.0
    %9131 = vmatpush.msra.mxu0 0.0
    %9132 = vmatpush.msra.mxu0 0.0
    %9133 = vmatpush.msra.mxu0 0.0
    %9134 = vmatpush.msra.mxu0 0.0
    %9135 = vmatpush.msra.mxu0 %v5350
    %9136 = vmatpush.msra.mxu0 %v5349
    %9137 = vmatpush.msra.mxu0 %v5348
    %9138 = vmatpush.msra.mxu0 %v5347
    %9139 = vmatmul.f32.gmra.mxu0 %v9076
    %v9140 = vpop.f32.mrf.mxu0
    %v9141 = vadd.f32 %v9073, %v9140
    %9142 = vmatmul.f32.gmra.mxu0 %v9079
    %v9143 = vpop.f32.mrf.mxu0
    %v9144 = vadd.f32 %v9073, %v9143
    %9145 = vmatmul.f32.gmra.mxu0 %v9082
    %v9146 = vpop.f32.mrf.mxu0
    %v9147 = vadd.f32 %v9073, %v9146
    %9148 = vmatmul.f32.gmra.mxu0 %v9085
    %v9149 = vpop.f32.mrf.mxu0
    %v9150 = vadd.f32 %v9073, %v9149
    %9151 = vmatmul.f32.gmra.mxu0 %v9088
    %v9152 = vpop.f32.mrf.mxu0
    %v9153 = vadd.f32 %v9073, %v9152
    %9154 = vmatmul.f32.gmra.mxu0 %v9091
    %v9155 = vpop.f32.mrf.mxu0
    %v9156 = vadd.f32 %v9073, %v9155
    %9157 = vmatmul.f32.gmra.mxu0 %v9094
    %v9158 = vpop.f32.mrf.mxu0
    %v9159 = vadd.f32 %v9073, %v9158
    %9160 = vmatmul.f32.gmra.mxu0 %v9097
    %v9161 = vpop.f32.mrf.mxu0
    %v9162 = vadd.f32 %v9073, %v9161
    %9163 = vmatmul.f32.gmra.mxu0 %v9100
    %v9164 = vpop.f32.mrf.mxu0
    %v9165 = vadd.f32 %v9073, %v9164
    %9166 = vmatmul.f32.gmra.mxu0 %v9103
    %v9167 = vpop.f32.mrf.mxu0
    %v9168 = vadd.f32 %v9073, %v9167
    %9169 = vmatmul.f32.gmra.mxu0 %v9106
    %v9170 = vpop.f32.mrf.mxu0
    %v9171 = vadd.f32 %v9073, %v9170
    %9172 = vmatmul.f32.gmra.mxu0 %v9109
    %v9173 = vpop.f32.mrf.mxu0
    %v9174 = vadd.f32 %v9073, %v9173
    %9175 = vmatmul.f32.gmra.mxu0 %v9112
    %v9176 = vpop.f32.mrf.mxu0
    %v9177 = vadd.f32 %v9073, %v9176
    %9178 = vmatmul.f32.gmra.mxu0 %v9115
    %v9179 = vpop.f32.mrf.mxu0
    %v9180 = vadd.f32 %v9073, %v9179
    %9181 = vmatmul.f32.gmra.mxu0 %v9118
    %v9182 = vpop.f32.mrf.mxu0
    %v9183 = vadd.f32 %v9073, %v9182
    %9184 = vmatmul.f32.gmra.mxu0 %v9121
    %v9185 = vpop.f32.mrf.mxu0
    %v9186 = vadd.f32 %v9073, %v9185
    %9187 = vdwg.mxu0
    %v9188 = vmul.f32 %v9141, 0.5
    %v9189 = vmul.f32 %v9144, 0.5
    %v9190 = vmul.f32 %v9147, 0.5
    %v9191 = vmul.f32 %v9150, 0.5
    %v9192 = vmul.f32 %v9153, 0.5
    %v9193 = vmul.f32 %v9156, 0.5
    %v9194 = vmul.f32 %v9159, 0.5
    %v9195 = vmul.f32 %v9162, 0.5
    %v9196 = vmul.f32 %v9165, 0.5
    %v9197 = vmul.f32 %v9168, 0.5
    %v9198 = vmul.f32 %v9171, 0.5
    %v9199 = vmul.f32 %v9174, 0.5
    %v9200 = vmul.f32 %v9177, 0.5
    %v9201 = vmul.f32 %v9180, 0.5
    %v9202 = vmul.f32 %v9183, 0.5
    %v9203 = vmul.f32 %v9186, 0.5
    %v9204 = vmul.f32 %v9141, 0.70710677
    %v9205 = vmul.f32 %v9144, 0.70710677
    %v9206 = vmul.f32 %v9147, 0.70710677
    %v9207 = vmul.f32 %v9150, 0.70710677
    %v9208 = vmul.f32 %v9153, 0.70710677
    %v9209 = vmul.f32 %v9156, 0.70710677
    %v9210 = vmul.f32 %v9159, 0.70710677
    %v9211 = vmul.f32 %v9162, 0.70710677
    %v9212 = vmul.f32 %v9165, 0.70710677
    %v9213 = vmul.f32 %v9168, 0.70710677
    %v9214 = vmul.f32 %v9171, 0.70710677
    %v9215 = vmul.f32 %v9174, 0.70710677
    %v9216 = vmul.f32 %v9177, 0.70710677
    %v9217 = vmul.f32 %v9180, 0.70710677
    %v9218 = vmul.f32 %v9183, 0.70710677
    %v9219 = vmul.f32 %v9186, 0.70710677
    %v9220 = vand.u32 2147483647, %v9204
    %v9221 = vand.u32 2147483647, %v9205
    %v9222 = vand.u32 2147483647, %v9206
    %v9223 = vand.u32 2147483647, %v9207
    %v9224 = vand.u32 2147483647, %v9208
    %v9225 = vand.u32 2147483647, %v9209
    %v9226 = vand.u32 2147483647, %v9210
    %v9227 = vand.u32 2147483647, %v9211
    %v9228 = vand.u32 2147483647, %v9212
    %v9229 = vand.u32 2147483647, %v9213
    %v9230 = vand.u32 2147483647, %v9214
    %v9231 = vand.u32 2147483647, %v9215
    %v9232 = vand.u32 2147483647, %v9216
    %v9233 = vand.u32 2147483647, %v9217
    %v9234 = vand.u32 2147483647, %v9218
    %v9235 = vand.u32 2147483647, %v9219
    %v9236 = vmul.f32 %v9220, 0.3275911
    %v9237 = vmul.f32 %v9221, 0.3275911
    %v9238 = vmul.f32 %v9222, 0.3275911
    %v9239 = vmul.f32 %v9223, 0.3275911
    %v9240 = vmul.f32 %v9224, 0.3275911
    %v9241 = vmul.f32 %v9225, 0.3275911
    %v9242 = vmul.f32 %v9226, 0.3275911
    %v9243 = vmul.f32 %v9227, 0.3275911
    %v9244 = vmul.f32 %v9228, 0.3275911
    %v9245 = vmul.f32 %v9229, 0.3275911
    %v9246 = vmul.f32 %v9230, 0.3275911
    %v9247 = vmul.f32 %v9231, 0.3275911
    %v9248 = vmul.f32 %v9232, 0.3275911
    %v9249 = vmul.f32 %v9233, 0.3275911
    %v9250 = vmul.f32 %v9234, 0.3275911
    %v9251 = vmul.f32 %v9235, 0.3275911
    %v9252 = vadd.f32 %v9236, 1.0
    %v9253 = vadd.f32 %v9237, 1.0
    %v9254 = vadd.f32 %v9238, 1.0
    %v9255 = vadd.f32 %v9239, 1.0
    %v9256 = vadd.f32 %v9240, 1.0
    %v9257 = vadd.f32 %v9241, 1.0
    %v9258 = vadd.f32 %v9242, 1.0
    %v9259 = vadd.f32 %v9243, 1.0
    %v9260 = vadd.f32 %v9244, 1.0
    %v9261 = vadd.f32 %v9245, 1.0
    %v9262 = vadd.f32 %v9246, 1.0
    %v9263 = vadd.f32 %v9247, 1.0
    %v9264 = vadd.f32 %v9248, 1.0
    %v9265 = vadd.f32 %v9249, 1.0
    %v9266 = vadd.f32 %v9250, 1.0
    %v9267 = vadd.f32 %v9251, 1.0
    %v9268 = vrcp.pop %v9252
    %v9269 = vmul.f32 %v9252, %v9268
    %v9270 = vsub.f32 1.0, %v9269
    %v9271 = vmul.f32 %v9268, %v9270
    %v9272 = vadd.f32 %v9268, %v9271
    %vm9273 = vweird.f32 %v9252
    %vm9274 = vweird.f32 %v9268
    %vm9275 = vmor %vm9273, %vm9274
    %v9276 = vsel %vm9275, %v9268, %v9272
    %v9277 = vand.u32 2147483647, %v9252
    %vm9278 = vcmp.eq.f32.partialorder %v9277, 8.507059e+37
    %v9279 = vand.u32 %v9252, 2147483648
    %v9280 = vor.u32 1.1754944e-38, %v9279
    %v9281 = vsel %vm9278, %v9280, %v9276
    %v9282 = vmul.f32 1.0, %v9281
    %v9283 = vrcp.pop %v9253
    %v9284 = vmul.f32 %v9253, %v9283
    %v9285 = vsub.f32 1.0, %v9284
    %v9286 = vmul.f32 %v9283, %v9285
    %v9287 = vadd.f32 %v9283, %v9286
    %vm9288 = vweird.f32 %v9253
    %vm9289 = vweird.f32 %v9283
    %vm9290 = vmor %vm9288, %vm9289
    %v9291 = vsel %vm9290, %v9283, %v9287
    %v9292 = vand.u32 2147483647, %v9253
    %vm9293 = vcmp.eq.f32.partialorder %v9292, 8.507059e+37
    %v9294 = vand.u32 %v9253, 2147483648
    %v9295 = vor.u32 1.1754944e-38, %v9294
    %v9296 = vsel %vm9293, %v9295, %v9291
    %v9297 = vmul.f32 1.0, %v9296
    %v9298 = vrcp.pop %v9254
    %v9299 = vmul.f32 %v9254, %v9298
    %v9300 = vsub.f32 1.0, %v9299
    %v9301 = vmul.f32 %v9298, %v9300
    %v9302 = vadd.f32 %v9298, %v9301
    %vm9303 = vweird.f32 %v9254
    %vm9304 = vweird.f32 %v9298
    %vm9305 = vmor %vm9303, %vm9304
    %v9306 = vsel %vm9305, %v9298, %v9302
    %v9307 = vand.u32 2147483647, %v9254
    %vm9308 = vcmp.eq.f32.partialorder %v9307, 8.507059e+37
    %v9309 = vand.u32 %v9254, 2147483648
    %v9310 = vor.u32 1.1754944e-38, %v9309
    %v9311 = vsel %vm9308, %v9310, %v9306
    %v9312 = vmul.f32 1.0, %v9311
    %v9313 = vrcp.pop %v9255
    %v9314 = vmul.f32 %v9255, %v9313
    %v9315 = vsub.f32 1.0, %v9314
    %v9316 = vmul.f32 %v9313, %v9315
    %v9317 = vadd.f32 %v9313, %v9316
    %vm9318 = vweird.f32 %v9255
    %vm9319 = vweird.f32 %v9313
    %vm9320 = vmor %vm9318, %vm9319
    %v9321 = vsel %vm9320, %v9313, %v9317
    %v9322 = vand.u32 2147483647, %v9255
    %vm9323 = vcmp.eq.f32.partialorder %v9322, 8.507059e+37
    %v9324 = vand.u32 %v9255, 2147483648
    %v9325 = vor.u32 1.1754944e-38, %v9324
    %v9326 = vsel %vm9323, %v9325, %v9321
    %v9327 = vmul.f32 1.0, %v9326
    %v9328 = vrcp.pop %v9256
    %v9329 = vmul.f32 %v9256, %v9328
    %v9330 = vsub.f32 1.0, %v9329
    %v9331 = vmul.f32 %v9328, %v9330
    %v9332 = vadd.f32 %v9328, %v9331
    %vm9333 = vweird.f32 %v9256
    %vm9334 = vweird.f32 %v9328
    %vm9335 = vmor %vm9333, %vm9334
    %v9336 = vsel %vm9335, %v9328, %v9332
    %v9337 = vand.u32 2147483647, %v9256
    %vm9338 = vcmp.eq.f32.partialorder %v9337, 8.507059e+37
    %v9339 = vand.u32 %v9256, 2147483648
    %v9340 = vor.u32 1.1754944e-38, %v9339
    %v9341 = vsel %vm9338, %v9340, %v9336
    %v9342 = vmul.f32 1.0, %v9341
    %v9343 = vrcp.pop %v9257
    %v9344 = vmul.f32 %v9257, %v9343
    %v9345 = vsub.f32 1.0, %v9344
    %v9346 = vmul.f32 %v9343, %v9345
    %v9347 = vadd.f32 %v9343, %v9346
    %vm9348 = vweird.f32 %v9257
    %vm9349 = vweird.f32 %v9343
    %vm9350 = vmor %vm9348, %vm9349
    %v9351 = vsel %vm9350, %v9343, %v9347
    %v9352 = vand.u32 2147483647, %v9257
    %vm9353 = vcmp.eq.f32.partialorder %v9352, 8.507059e+37
    %v9354 = vand.u32 %v9257, 2147483648
    %v9355 = vor.u32 1.1754944e-38, %v9354
    %v9356 = vsel %vm9353, %v9355, %v9351
    %v9357 = vmul.f32 1.0, %v9356
    %v9358 = vrcp.pop %v9258
    %v9359 = vmul.f32 %v9258, %v9358
    %v9360 = vsub.f32 1.0, %v9359
    %v9361 = vmul.f32 %v9358, %v9360
    %v9362 = vadd.f32 %v9358, %v9361
    %vm9363 = vweird.f32 %v9258
    %vm9364 = vweird.f32 %v9358
    %vm9365 = vmor %vm9363, %vm9364
    %v9366 = vsel %vm9365, %v9358, %v9362
    %v9367 = vand.u32 2147483647, %v9258
    %vm9368 = vcmp.eq.f32.partialorder %v9367, 8.507059e+37
    %v9369 = vand.u32 %v9258, 2147483648
    %v9370 = vor.u32 1.1754944e-38, %v9369
    %v9371 = vsel %vm9368, %v9370, %v9366
    %v9372 = vmul.f32 1.0, %v9371
    %v9373 = vrcp.pop %v9259
    %v9374 = vmul.f32 %v9259, %v9373
    %v9375 = vsub.f32 1.0, %v9374
    %v9376 = vmul.f32 %v9373, %v9375
    %v9377 = vadd.f32 %v9373, %v9376
    %vm9378 = vweird.f32 %v9259
    %vm9379 = vweird.f32 %v9373
    %vm9380 = vmor %vm9378, %vm9379
    %v9381 = vsel %vm9380, %v9373, %v9377
    %v9382 = vand.u32 2147483647, %v9259
    %vm9383 = vcmp.eq.f32.partialorder %v9382, 8.507059e+37
    %v9384 = vand.u32 %v9259, 2147483648
    %v9385 = vor.u32 1.1754944e-38, %v9384
    %v9386 = vsel %vm9383, %v9385, %v9381
    %v9387 = vmul.f32 1.0, %v9386
    %v9388 = vrcp.pop %v9260
    %v9389 = vmul.f32 %v9260, %v9388
    %v9390 = vsub.f32 1.0, %v9389
    %v9391 = vmul.f32 %v9388, %v9390
    %v9392 = vadd.f32 %v9388, %v9391
    %vm9393 = vweird.f32 %v9260
    %vm9394 = vweird.f32 %v9388
    %vm9395 = vmor %vm9393, %vm9394
    %v9396 = vsel %vm9395, %v9388, %v9392
    %v9397 = vand.u32 2147483647, %v9260
    %vm9398 = vcmp.eq.f32.partialorder %v9397, 8.507059e+37
    %v9399 = vand.u32 %v9260, 2147483648
    %v9400 = vor.u32 1.1754944e-38, %v9399
    %v9401 = vsel %vm9398, %v9400, %v9396
    %v9402 = vmul.f32 1.0, %v9401
    %v9403 = vrcp.pop %v9261
    %v9404 = vmul.f32 %v9261, %v9403
    %v9405 = vsub.f32 1.0, %v9404
    %v9406 = vmul.f32 %v9403, %v9405
    %v9407 = vadd.f32 %v9403, %v9406
    %vm9408 = vweird.f32 %v9261
    %vm9409 = vweird.f32 %v9403
    %vm9410 = vmor %vm9408, %vm9409
    %v9411 = vsel %vm9410, %v9403, %v9407
    %v9412 = vand.u32 2147483647, %v9261
    %vm9413 = vcmp.eq.f32.partialorder %v9412, 8.507059e+37
    %v9414 = vand.u32 %v9261, 2147483648
    %v9415 = vor.u32 1.1754944e-38, %v9414
    %v9416 = vsel %vm9413, %v9415, %v9411
    %v9417 = vmul.f32 1.0, %v9416
    %v9418 = vrcp.pop %v9262
    %v9419 = vmul.f32 %v9262, %v9418
    %v9420 = vsub.f32 1.0, %v9419
    %v9421 = vmul.f32 %v9418, %v9420
    %v9422 = vadd.f32 %v9418, %v9421
    %vm9423 = vweird.f32 %v9262
    %vm9424 = vweird.f32 %v9418
    %vm9425 = vmor %vm9423, %vm9424
    %v9426 = vsel %vm9425, %v9418, %v9422
    %v9427 = vand.u32 2147483647, %v9262
    %vm9428 = vcmp.eq.f32.partialorder %v9427, 8.507059e+37
    %v9429 = vand.u32 %v9262, 2147483648
    %v9430 = vor.u32 1.1754944e-38, %v9429
    %v9431 = vsel %vm9428, %v9430, %v9426
    %v9432 = vmul.f32 1.0, %v9431
    %v9433 = vrcp.pop %v9263
    %v9434 = vmul.f32 %v9263, %v9433
    %v9435 = vsub.f32 1.0, %v9434
    %v9436 = vmul.f32 %v9433, %v9435
    %v9437 = vadd.f32 %v9433, %v9436
    %vm9438 = vweird.f32 %v9263
    %vm9439 = vweird.f32 %v9433
    %vm9440 = vmor %vm9438, %vm9439
    %v9441 = vsel %vm9440, %v9433, %v9437
    %v9442 = vand.u32 2147483647, %v9263
    %vm9443 = vcmp.eq.f32.partialorder %v9442, 8.507059e+37
    %v9444 = vand.u32 %v9263, 2147483648
    %v9445 = vor.u32 1.1754944e-38, %v9444
    %v9446 = vsel %vm9443, %v9445, %v9441
    %v9447 = vmul.f32 1.0, %v9446
    %v9448 = vrcp.pop %v9264
    %v9449 = vmul.f32 %v9264, %v9448
    %v9450 = vsub.f32 1.0, %v9449
    %v9451 = vmul.f32 %v9448, %v9450
    %v9452 = vadd.f32 %v9448, %v9451
    %vm9453 = vweird.f32 %v9264
    %vm9454 = vweird.f32 %v9448
    %vm9455 = vmor %vm9453, %vm9454
    %v9456 = vsel %vm9455, %v9448, %v9452
    %v9457 = vand.u32 2147483647, %v9264
    %vm9458 = vcmp.eq.f32.partialorder %v9457, 8.507059e+37
    %v9459 = vand.u32 %v9264, 2147483648
    %v9460 = vor.u32 1.1754944e-38, %v9459
    %v9461 = vsel %vm9458, %v9460, %v9456
    %v9462 = vmul.f32 1.0, %v9461
    %v9463 = vrcp.pop %v9265
    %v9464 = vmul.f32 %v9265, %v9463
    %v9465 = vsub.f32 1.0, %v9464
    %v9466 = vmul.f32 %v9463, %v9465
    %v9467 = vadd.f32 %v9463, %v9466
    %vm9468 = vweird.f32 %v9265
    %vm9469 = vweird.f32 %v9463
    %vm9470 = vmor %vm9468, %vm9469
    %v9471 = vsel %vm9470, %v9463, %v9467
    %v9472 = vand.u32 2147483647, %v9265
    %vm9473 = vcmp.eq.f32.partialorder %v9472, 8.507059e+37
    %v9474 = vand.u32 %v9265, 2147483648
    %v9475 = vor.u32 1.1754944e-38, %v9474
    %v9476 = vsel %vm9473, %v9475, %v9471
    %v9477 = vmul.f32 1.0, %v9476
    %v9478 = vrcp.pop %v9266
    %v9479 = vmul.f32 %v9266, %v9478
    %v9480 = vsub.f32 1.0, %v9479
    %v9481 = vmul.f32 %v9478, %v9480
    %v9482 = vadd.f32 %v9478, %v9481
    %vm9483 = vweird.f32 %v9266
    %vm9484 = vweird.f32 %v9478
    %vm9485 = vmor %vm9483, %vm9484
    %v9486 = vsel %vm9485, %v9478, %v9482
    %v9487 = vand.u32 2147483647, %v9266
    %vm9488 = vcmp.eq.f32.partialorder %v9487, 8.507059e+37
    %v9489 = vand.u32 %v9266, 2147483648
    %v9490 = vor.u32 1.1754944e-38, %v9489
    %v9491 = vsel %vm9488, %v9490, %v9486
    %v9492 = vmul.f32 1.0, %v9491
    %v9493 = vrcp.pop %v9267
    %v9494 = vmul.f32 %v9267, %v9493
    %v9495 = vsub.f32 1.0, %v9494
    %v9496 = vmul.f32 %v9493, %v9495
    %v9497 = vadd.f32 %v9493, %v9496
    %vm9498 = vweird.f32 %v9267
    %vm9499 = vweird.f32 %v9493
    %vm9500 = vmor %vm9498, %vm9499
    %v9501 = vsel %vm9500, %v9493, %v9497
    %v9502 = vand.u32 2147483647, %v9267
    %vm9503 = vcmp.eq.f32.partialorder %v9502, 8.507059e+37
    %v9504 = vand.u32 %v9267, 2147483648
    %v9505 = vor.u32 1.1754944e-38, %v9504
    %v9506 = vsel %vm9503, %v9505, %v9501
    %v9507 = vmul.f32 1.0, %v9506
    %v9508 = vmul.f32 %v9282, 1.0614054
    %v9509 = vmul.f32 %v9297, 1.0614054
    %v9510 = vmul.f32 %v9312, 1.0614054
    %v9511 = vmul.f32 %v9327, 1.0614054
    %v9512 = vmul.f32 %v9342, 1.0614054
    %v9513 = vmul.f32 %v9357, 1.0614054
    %v9514 = vmul.f32 %v9372, 1.0614054
    %v9515 = vmul.f32 %v9387, 1.0614054
    %v9516 = vmul.f32 %v9402, 1.0614054
    %v9517 = vmul.f32 %v9417, 1.0614054
    %v9518 = vmul.f32 %v9432, 1.0614054
    %v9519 = vmul.f32 %v9447, 1.0614054
    %v9520 = vmul.f32 %v9462, 1.0614054
    %v9521 = vmul.f32 %v9477, 1.0614054
    %v9522 = vmul.f32 %v9492, 1.0614054
    %v9523 = vmul.f32 %v9507, 1.0614054
    %v9524 = vadd.f32 %v9508, -1.4531521
    %v9525 = vadd.f32 %v9509, -1.4531521
    %v9526 = vadd.f32 %v9510, -1.4531521
    %v9527 = vadd.f32 %v9511, -1.4531521
    %v9528 = vadd.f32 %v9512, -1.4531521
    %v9529 = vadd.f32 %v9513, -1.4531521
    %v9530 = vadd.f32 %v9514, -1.4531521
    %v9531 = vadd.f32 %v9515, -1.4531521
    %v9532 = vadd.f32 %v9516, -1.4531521
    %v9533 = vadd.f32 %v9517, -1.4531521
    %v9534 = vadd.f32 %v9518, -1.4531521
    %v9535 = vadd.f32 %v9519, -1.4531521
    %v9536 = vadd.f32 %v9520, -1.4531521
    %v9537 = vadd.f32 %v9521, -1.4531521
    %v9538 = vadd.f32 %v9522, -1.4531521
    %v9539 = vadd.f32 %v9523, -1.4531521
    %v9540 = vmul.f32 %v9282, %v9524
    %v9541 = vmul.f32 %v9297, %v9525
    %v9542 = vmul.f32 %v9312, %v9526
    %v9543 = vmul.f32 %v9327, %v9527
    %v9544 = vmul.f32 %v9342, %v9528
    %v9545 = vmul.f32 %v9357, %v9529
    %v9546 = vmul.f32 %v9372, %v9530
    %v9547 = vmul.f32 %v9387, %v9531
    %v9548 = vmul.f32 %v9402, %v9532
    %v9549 = vmul.f32 %v9417, %v9533
    %v9550 = vmul.f32 %v9432, %v9534
    %v9551 = vmul.f32 %v9447, %v9535
    %v9552 = vmul.f32 %v9462, %v9536
    %v9553 = vmul.f32 %v9477, %v9537
    %v9554 = vmul.f32 %v9492, %v9538
    %v9555 = vmul.f32 %v9507, %v9539
    %v9556 = vadd.f32 %v9540, 1.4214138
    %v9557 = vadd.f32 %v9541, 1.4214138
    %v9558 = vadd.f32 %v9542, 1.4214138
    %v9559 = vadd.f32 %v9543, 1.4214138
    %v9560 = vadd.f32 %v9544, 1.4214138
    %v9561 = vadd.f32 %v9545, 1.4214138
    %v9562 = vadd.f32 %v9546, 1.4214138
    %v9563 = vadd.f32 %v9547, 1.4214138
    %v9564 = vadd.f32 %v9548, 1.4214138
    %v9565 = vadd.f32 %v9549, 1.4214138
    %v9566 = vadd.f32 %v9550, 1.4214138
    %v9567 = vadd.f32 %v9551, 1.4214138
    %v9568 = vadd.f32 %v9552, 1.4214138
    %v9569 = vadd.f32 %v9553, 1.4214138
    %v9570 = vadd.f32 %v9554, 1.4214138
    %v9571 = vadd.f32 %v9555, 1.4214138
    %v9572 = vmul.f32 %v9282, %v9556
    %v9573 = vmul.f32 %v9297, %v9557
    %v9574 = vmul.f32 %v9312, %v9558
    %v9575 = vmul.f32 %v9327, %v9559
    %v9576 = vmul.f32 %v9342, %v9560
    %v9577 = vmul.f32 %v9357, %v9561
    %v9578 = vmul.f32 %v9372, %v9562
    %v9579 = vmul.f32 %v9387, %v9563
    %v9580 = vmul.f32 %v9402, %v9564
    %v9581 = vmul.f32 %v9417, %v9565
    %v9582 = vmul.f32 %v9432, %v9566
    %v9583 = vmul.f32 %v9447, %v9567
    %v9584 = vmul.f32 %v9462, %v9568
    %v9585 = vmul.f32 %v9477, %v9569
    %v9586 = vmul.f32 %v9492, %v9570
    %v9587 = vmul.f32 %v9507, %v9571
    %v9588 = vadd.f32 %v9572, -0.28449672
    %v9589 = vadd.f32 %v9573, -0.28449672
    %v9590 = vadd.f32 %v9574, -0.28449672
    %v9591 = vadd.f32 %v9575, -0.28449672
    %v9592 = vadd.f32 %v9576, -0.28449672
    %v9593 = vadd.f32 %v9577, -0.28449672
    %v9594 = vadd.f32 %v9578, -0.28449672
    %v9595 = vadd.f32 %v9579, -0.28449672
    %v9596 = vadd.f32 %v9580, -0.28449672
    %v9597 = vadd.f32 %v9581, -0.28449672
    %v9598 = vadd.f32 %v9582, -0.28449672
    %v9599 = vadd.f32 %v9583, -0.28449672
    %v9600 = vadd.f32 %v9584, -0.28449672
    %v9601 = vadd.f32 %v9585, -0.28449672
    %v9602 = vadd.f32 %v9586, -0.28449672
    %v9603 = vadd.f32 %v9587, -0.28449672
    %v9604 = vmul.f32 %v9282, %v9588
    %v9605 = vmul.f32 %v9297, %v9589
    %v9606 = vmul.f32 %v9312, %v9590
    %v9607 = vmul.f32 %v9327, %v9591
    %v9608 = vmul.f32 %v9342, %v9592
    %v9609 = vmul.f32 %v9357, %v9593
    %v9610 = vmul.f32 %v9372, %v9594
    %v9611 = vmul.f32 %v9387, %v9595
    %v9612 = vmul.f32 %v9402, %v9596
    %v9613 = vmul.f32 %v9417, %v9597
    %v9614 = vmul.f32 %v9432, %v9598
    %v9615 = vmul.f32 %v9447, %v9599
    %v9616 = vmul.f32 %v9462, %v9600
    %v9617 = vmul.f32 %v9477, %v9601
    %v9618 = vmul.f32 %v9492, %v9602
    %v9619 = vmul.f32 %v9507, %v9603
    %v9620 = vadd.f32 %v9604, 0.2548296
    %v9621 = vadd.f32 %v9605, 0.2548296
    %v9622 = vadd.f32 %v9606, 0.2548296
    %v9623 = vadd.f32 %v9607, 0.2548296
    %v9624 = vadd.f32 %v9608, 0.2548296
    %v9625 = vadd.f32 %v9609, 0.2548296
    %v9626 = vadd.f32 %v9610, 0.2548296
    %v9627 = vadd.f32 %v9611, 0.2548296
    %v9628 = vadd.f32 %v9612, 0.2548296
    %v9629 = vadd.f32 %v9613, 0.2548296
    %v9630 = vadd.f32 %v9614, 0.2548296
    %v9631 = vadd.f32 %v9615, 0.2548296
    %v9632 = vadd.f32 %v9616, 0.2548296
    %v9633 = vadd.f32 %v9617, 0.2548296
    %v9634 = vadd.f32 %v9618, 0.2548296
    %v9635 = vadd.f32 %v9619, 0.2548296
    %v9636 = vmul.f32 %v9282, %v9620
    %v9637 = vmul.f32 %v9297, %v9621
    %v9638 = vmul.f32 %v9312, %v9622
    %v9639 = vmul.f32 %v9327, %v9623
    %v9640 = vmul.f32 %v9342, %v9624
    %v9641 = vmul.f32 %v9357, %v9625
    %v9642 = vmul.f32 %v9372, %v9626
    %v9643 = vmul.f32 %v9387, %v9627
    %v9644 = vmul.f32 %v9402, %v9628
    %v9645 = vmul.f32 %v9417, %v9629
    %v9646 = vmul.f32 %v9432, %v9630
    %v9647 = vmul.f32 %v9447, %v9631
    %v9648 = vmul.f32 %v9462, %v9632
    %v9649 = vmul.f32 %v9477, %v9633
    %v9650 = vmul.f32 %v9492, %v9634
    %v9651 = vmul.f32 %v9507, %v9635
    %v9652 = vsub.f32 0.0, %v9220
    %v9653 = vsub.f32 0.0, %v9221
    %v9654 = vsub.f32 0.0, %v9222
    %v9655 = vsub.f32 0.0, %v9223
    %v9656 = vsub.f32 0.0, %v9224
    %v9657 = vsub.f32 0.0, %v9225
    %v9658 = vsub.f32 0.0, %v9226
    %v9659 = vsub.f32 0.0, %v9227
    %v9660 = vsub.f32 0.0, %v9228
    %v9661 = vsub.f32 0.0, %v9229
    %v9662 = vsub.f32 0.0, %v9230
    %v9663 = vsub.f32 0.0, %v9231
    %v9664 = vsub.f32 0.0, %v9232
    %v9665 = vsub.f32 0.0, %v9233
    %v9666 = vsub.f32 0.0, %v9234
    %v9667 = vsub.f32 0.0, %v9235
    %v9668 = vmul.f32 %v9652, %v9220
    %v9669 = vmul.f32 %v9653, %v9221
    %v9670 = vmul.f32 %v9654, %v9222
    %v9671 = vmul.f32 %v9655, %v9223
    %v9672 = vmul.f32 %v9656, %v9224
    %v9673 = vmul.f32 %v9657, %v9225
    %v9674 = vmul.f32 %v9658, %v9226
    %v9675 = vmul.f32 %v9659, %v9227
    %v9676 = vmul.f32 %v9660, %v9228
    %v9677 = vmul.f32 %v9661, %v9229
    %v9678 = vmul.f32 %v9662, %v9230
    %v9679 = vmul.f32 %v9663, %v9231
    %v9680 = vmul.f32 %v9664, %v9232
    %v9681 = vmul.f32 %v9665, %v9233
    %v9682 = vmul.f32 %v9666, %v9234
    %v9683 = vmul.f32 %v9667, %v9235
    %v9684 = vmul.f32 %v9668, 1.442695
    %v9685 = vpow.pop %v9684
    %v9686 = vmul.f32 %v9669, 1.442695
    %v9687 = vpow.pop %v9686
    %v9688 = vmul.f32 %v9670, 1.442695
    %v9689 = vpow.pop %v9688
    %v9690 = vmul.f32 %v9671, 1.442695
    %v9691 = vpow.pop %v9690
    %v9692 = vmul.f32 %v9672, 1.442695
    %v9693 = vpow.pop %v9692
    %v9694 = vmul.f32 %v9673, 1.442695
    %v9695 = vpow.pop %v9694
    %v9696 = vmul.f32 %v9674, 1.442695
    %v9697 = vpow.pop %v9696
    %v9698 = vmul.f32 %v9675, 1.442695
    %v9699 = vpow.pop %v9698
    %v9700 = vmul.f32 %v9676, 1.442695
    %v9701 = vpow.pop %v9700
    %v9702 = vmul.f32 %v9677, 1.442695
    %v9703 = vpow.pop %v9702
    %v9704 = vmul.f32 %v9678, 1.442695
    %v9705 = vpow.pop %v9704
    %v9706 = vmul.f32 %v9679, 1.442695
    %v9707 = vpow.pop %v9706
    %v9708 = vmul.f32 %v9680, 1.442695
    %v9709 = vpow.pop %v9708
    %v9710 = vmul.f32 %v9681, 1.442695
    %v9711 = vpow.pop %v9710
    %v9712 = vmul.f32 %v9682, 1.442695
    %v9713 = vpow.pop %v9712
    %v9714 = vmul.f32 %v9683, 1.442695
    %v9715 = vpow.pop %v9714
    %v9716 = vmul.f32 %v9636, %v9685
    %v9717 = vmul.f32 %v9637, %v9687
    %v9718 = vmul.f32 %v9638, %v9689
    %v9719 = vmul.f32 %v9639, %v9691
    %v9720 = vmul.f32 %v9640, %v9693
    %v9721 = vmul.f32 %v9641, %v9695
    %v9722 = vmul.f32 %v9642, %v9697
    %v9723 = vmul.f32 %v9643, %v9699
    %v9724 = vmul.f32 %v9644, %v9701
    %v9725 = vmul.f32 %v9645, %v9703
    %v9726 = vmul.f32 %v9646, %v9705
    %v9727 = vmul.f32 %v9647, %v9707
    %v9728 = vmul.f32 %v9648, %v9709
    %v9729 = vmul.f32 %v9649, %v9711
    %v9730 = vmul.f32 %v9650, %v9713
    %v9731 = vmul.f32 %v9651, %v9715
    %v9732 = vsub.f32 1.0, %v9716
    %v9733 = vsub.f32 1.0, %v9717
    %v9734 = vsub.f32 1.0, %v9718
    %v9735 = vsub.f32 1.0, %v9719
    %v9736 = vsub.f32 1.0, %v9720
    %v9737 = vsub.f32 1.0, %v9721
    %v9738 = vsub.f32 1.0, %v9722
    %v9739 = vsub.f32 1.0, %v9723
    %v9740 = vsub.f32 1.0, %v9724
    %v9741 = vsub.f32 1.0, %v9725
    %v9742 = vsub.f32 1.0, %v9726
    %v9743 = vsub.f32 1.0, %v9727
    %v9744 = vsub.f32 1.0, %v9728
    %v9745 = vsub.f32 1.0, %v9729
    %v9746 = vsub.f32 1.0, %v9730
    %v9747 = vsub.f32 1.0, %v9731
    %vm9748 = vcmp.lt.f32.partialorder %v9204, 0.0
    %vm9749 = vcmp.lt.f32.partialorder %v9205, 0.0
    %vm9750 = vcmp.lt.f32.partialorder %v9206, 0.0
    %vm9751 = vcmp.lt.f32.partialorder %v9207, 0.0
    %vm9752 = vcmp.lt.f32.partialorder %v9208, 0.0
    %vm9753 = vcmp.lt.f32.partialorder %v9209, 0.0
    %vm9754 = vcmp.lt.f32.partialorder %v9210, 0.0
    %vm9755 = vcmp.lt.f32.partialorder %v9211, 0.0
    %vm9756 = vcmp.lt.f32.partialorder %v9212, 0.0
    %vm9757 = vcmp.lt.f32.partialorder %v9213, 0.0
    %vm9758 = vcmp.lt.f32.partialorder %v9214, 0.0
    %vm9759 = vcmp.lt.f32.partialorder %v9215, 0.0
    %vm9760 = vcmp.lt.f32.partialorder %v9216, 0.0
    %vm9761 = vcmp.lt.f32.partialorder %v9217, 0.0
    %vm9762 = vcmp.lt.f32.partialorder %v9218, 0.0
    %vm9763 = vcmp.lt.f32.partialorder %v9219, 0.0
    %v9764 = vsub.f32 0.0, %v9732
    %v9765 = vsub.f32 0.0, %v9733
    %v9766 = vsub.f32 0.0, %v9734
    %v9767 = vsub.f32 0.0, %v9735
    %v9768 = vsub.f32 0.0, %v9736
    %v9769 = vsub.f32 0.0, %v9737
    %v9770 = vsub.f32 0.0, %v9738
    %v9771 = vsub.f32 0.0, %v9739
    %v9772 = vsub.f32 0.0, %v9740
    %v9773 = vsub.f32 0.0, %v9741
    %v9774 = vsub.f32 0.0, %v9742
    %v9775 = vsub.f32 0.0, %v9743
    %v9776 = vsub.f32 0.0, %v9744
    %v9777 = vsub.f32 0.0, %v9745
    %v9778 = vsub.f32 0.0, %v9746
    %v9779 = vsub.f32 0.0, %v9747
    %v9780 = vsel %vm9748, %v9764, %v9732
    %v9781 = vsel %vm9749, %v9765, %v9733
    %v9782 = vsel %vm9750, %v9766, %v9734
    %v9783 = vsel %vm9751, %v9767, %v9735
    %v9784 = vsel %vm9752, %v9768, %v9736
    %v9785 = vsel %vm9753, %v9769, %v9737
    %v9786 = vsel %vm9754, %v9770, %v9738
    %v9787 = vsel %vm9755, %v9771, %v9739
    %v9788 = vsel %vm9756, %v9772, %v9740
    %v9789 = vsel %vm9757, %v9773, %v9741
    %v9790 = vsel %vm9758, %v9774, %v9742
    %v9791 = vsel %vm9759, %v9775, %v9743
    %v9792 = vsel %vm9760, %v9776, %v9744
    %v9793 = vsel %vm9761, %v9777, %v9745
    %v9794 = vsel %vm9762, %v9778, %v9746
    %v9795 = vsel %vm9763, %v9779, %v9747
    %v9796 = vadd.f32 %v9780, 1.0
    %v9797 = vadd.f32 %v9781, 1.0
    %v9798 = vadd.f32 %v9782, 1.0
    %v9799 = vadd.f32 %v9783, 1.0
    %v9800 = vadd.f32 %v9784, 1.0
    %v9801 = vadd.f32 %v9785, 1.0
    %v9802 = vadd.f32 %v9786, 1.0
    %v9803 = vadd.f32 %v9787, 1.0
    %v9804 = vadd.f32 %v9788, 1.0
    %v9805 = vadd.f32 %v9789, 1.0
    %v9806 = vadd.f32 %v9790, 1.0
    %v9807 = vadd.f32 %v9791, 1.0
    %v9808 = vadd.f32 %v9792, 1.0
    %v9809 = vadd.f32 %v9793, 1.0
    %v9810 = vadd.f32 %v9794, 1.0
    %v9811 = vadd.f32 %v9795, 1.0
    %v9812 = vmul.f32 %v9188, %v9796
    %v9813 = vmul.f32 %v9189, %v9797
    %v9814 = vmul.f32 %v9190, %v9798
    %v9815 = vmul.f32 %v9191, %v9799
    %v9816 = vmul.f32 %v9192, %v9800
    %v9817 = vmul.f32 %v9193, %v9801
    %v9818 = vmul.f32 %v9194, %v9802
    %v9819 = vmul.f32 %v9195, %v9803
    %v9820 = vmul.f32 %v9196, %v9804
    %v9821 = vmul.f32 %v9197, %v9805
    %v9822 = vmul.f32 %v9198, %v9806
    %v9823 = vmul.f32 %v9199, %v9807
    %v9824 = vmul.f32 %v9200, %v9808
    %v9825 = vmul.f32 %v9201, %v9809
    %v9826 = vmul.f32 %v9202, %v9810
    %v9827 = vmul.f32 %v9203, %v9811
    %v9829 = vperm.slane %v5368, 0
    %9831 = vmatpush.msra.mxu0 %v5367
    %9832 = vmatpush.msra.mxu0 %v5366
    %9833 = vmatpush.msra.mxu0 %v5365
    %9834 = vmatpush.msra.mxu0 %v5364
    %9835 = vmatpush.msra.mxu0 %v5363
    %9836 = vmatpush.msra.mxu0 %v5362
    %9837 = vmatpush.msra.mxu0 %v5361
    %9838 = vmatpush.msra.mxu0 %v5360
    %9839 = vmatpush.msra.mxu0 %v5359
    %9840 = vmatpush.msra.mxu0 %v5358
    %9841 = vmatpush.msra.mxu0 %v5357
    %9842 = vmatpush.msra.mxu0 %v5356
    %9843 = vmatpush.msra.mxu0 %v5355
    %9844 = vmatpush.msra.mxu0 %v5354
    %9845 = vmatpush.msra.mxu0 %v5353
    %9846 = vmatpush.msra.mxu0 %v5352
    %9847 = vmatmul.f32.gmra.mxu0 %v9812
    %v9848 = vpop.f32.mrf.mxu0
    %v9849 = vadd.f32 %v9829, %v9848
    %9850 = vmatmul.f32.gmra.mxu0 %v9813
    %v9851 = vpop.f32.mrf.mxu0
    %v9852 = vadd.f32 %v9829, %v9851
    %9853 = vmatmul.f32.gmra.mxu0 %v9814
    %v9854 = vpop.f32.mrf.mxu0
    %v9855 = vadd.f32 %v9829, %v9854
    %9856 = vmatmul.f32.gmra.mxu0 %v9815
    %v9857 = vpop.f32.mrf.mxu0
    %v9858 = vadd.f32 %v9829, %v9857
    %9859 = vmatmul.f32.gmra.mxu0 %v9816
    %v9860 = vpop.f32.mrf.mxu0
    %v9861 = vadd.f32 %v9829, %v9860
    %9862 = vmatmul.f32.gmra.mxu0 %v9817
    %v9863 = vpop.f32.mrf.mxu0
    %v9864 = vadd.f32 %v9829, %v9863
    %9865 = vmatmul.f32.gmra.mxu0 %v9818
    %v9866 = vpop.f32.mrf.mxu0
    %v9867 = vadd.f32 %v9829, %v9866
    %9868 = vmatmul.f32.gmra.mxu0 %v9819
    %v9869 = vpop.f32.mrf.mxu0
    %v9870 = vadd.f32 %v9829, %v9869
    %9871 = vmatmul.f32.gmra.mxu0 %v9820
    %v9872 = vpop.f32.mrf.mxu0
    %v9873 = vadd.f32 %v9829, %v9872
    %9874 = vmatmul.f32.gmra.mxu0 %v9821
    %v9875 = vpop.f32.mrf.mxu0
    %v9876 = vadd.f32 %v9829, %v9875
    %9877 = vmatmul.f32.gmra.mxu0 %v9822
    %v9878 = vpop.f32.mrf.mxu0
    %v9879 = vadd.f32 %v9829, %v9878
    %9880 = vmatmul.f32.gmra.mxu0 %v9823
    %v9881 = vpop.f32.mrf.mxu0
    %v9882 = vadd.f32 %v9829, %v9881
    %9883 = vmatmul.f32.gmra.mxu0 %v9824
    %v9884 = vpop.f32.mrf.mxu0
    %v9885 = vadd.f32 %v9829, %v9884
    %9886 = vmatmul.f32.gmra.mxu0 %v9825
    %v9887 = vpop.f32.mrf.mxu0
    %v9888 = vadd.f32 %v9829, %v9887
    %9889 = vmatmul.f32.gmra.mxu0 %v9826
    %v9890 = vpop.f32.mrf.mxu0
    %v9891 = vadd.f32 %v9829, %v9890
    %9892 = vmatmul.f32.gmra.mxu0 %v9827
    %v9893 = vpop.f32.mrf.mxu0
    %v9894 = vadd.f32 %v9829, %v9893
    %9895 = vdwg.mxu0
    %v9896 = vsel %vm334, %v9849, 0.0
    %9897 = vadd.xlane.f32.xlu0 %v9896
    %v9898 = vpop.xlane.xlu0 %9897
    %v9899 = vsel %vm334, %v9852, 0.0
    %9900 = vadd.xlane.f32.xlu0 %v9899
    %v9901 = vpop.xlane.xlu0 %9900
    %v9902 = vsel %vm334, %v9855, 0.0
    %9903 = vadd.xlane.f32.xlu0 %v9902
    %v9904 = vpop.xlane.xlu0 %9903
    %v9905 = vsel %vm334, %v9858, 0.0
    %9906 = vadd.xlane.f32.xlu0 %v9905
    %v9907 = vpop.xlane.xlu0 %9906
    %v9908 = vsel %vm334, %v9861, 0.0
    %9909 = vadd.xlane.f32.xlu0 %v9908
    %v9910 = vpop.xlane.xlu0 %9909
    %v9911 = vsel %vm334, %v9864, 0.0
    %9912 = vadd.xlane.f32.xlu0 %v9911
    %v9913 = vpop.xlane.xlu0 %9912
    %v9914 = vsel %vm334, %v9867, 0.0
    %9915 = vadd.xlane.f32.xlu0 %v9914
    %v9916 = vpop.xlane.xlu0 %9915
    %v9917 = vsel %vm334, %v9870, 0.0
    %9918 = vadd.xlane.f32.xlu0 %v9917
    %v9919 = vpop.xlane.xlu0 %9918
    %v9920 = vsel %vm334, %v9873, 0.0
    %9921 = vadd.xlane.f32.xlu0 %v9920
    %v9922 = vpop.xlane.xlu0 %9921
    %v9923 = vsel %vm334, %v9876, 0.0
    %9924 = vadd.xlane.f32.xlu0 %v9923
    %v9925 = vpop.xlane.xlu0 %9924
    %v9926 = vsel %vm334, %v9879, 0.0
    %9927 = vadd.xlane.f32.xlu0 %v9926
    %v9928 = vpop.xlane.xlu0 %9927
    %v9929 = vsel %vm334, %v9882, 0.0
    %9930 = vadd.xlane.f32.xlu0 %v9929
    %v9931 = vpop.xlane.xlu0 %9930
    %v9932 = vsel %vm334, %v9885, 0.0
    %9933 = vadd.xlane.f32.xlu0 %v9932
    %v9934 = vpop.xlane.xlu0 %9933
    %v9935 = vsel %vm334, %v9888, 0.0
    %9936 = vadd.xlane.f32.xlu0 %v9935
    %v9937 = vpop.xlane.xlu0 %9936
    %v9938 = vsel %vm334, %v9891, 0.0
    %9939 = vadd.xlane.f32.xlu0 %v9938
    %v9940 = vpop.xlane.xlu0 %9939
    %v9941 = vsel %vm334, %v9894, 0.0
    %9942 = vadd.xlane.f32.xlu0 %v9941
    %v9943 = vpop.xlane.xlu0 %9942
    %v9944 = vmul.f32 %v9898, %v3681
    %v9945 = vmul.f32 %v9901, %v3681
    %v9946 = vmul.f32 %v9904, %v3681
    %v9947 = vmul.f32 %v9907, %v3681
    %v9948 = vmul.f32 %v9910, %v3681
    %v9949 = vmul.f32 %v9913, %v3681
    %v9950 = vmul.f32 %v9916, %v3681
    %v9951 = vmul.f32 %v9919, %v3681
    %v9952 = vmul.f32 %v9922, %v3681
    %v9953 = vmul.f32 %v9925, %v3681
    %v9954 = vmul.f32 %v9928, %v3681
    %v9955 = vmul.f32 %v9931, %v3681
    %v9956 = vmul.f32 %v9934, %v3681
    %v9957 = vmul.f32 %v9937, %v3681
    %v9958 = vmul.f32 %v9940, %v3681
    %v9959 = vmul.f32 %v9943, %v3681
    %v9960 = vsub.f32 %v9849, %v9944
    %v9961 = vsub.f32 %v9852, %v9945
    %v9962 = vsub.f32 %v9855, %v9946
    %v9963 = vsub.f32 %v9858, %v9947
    %v9964 = vsub.f32 %v9861, %v9948
    %v9965 = vsub.f32 %v9864, %v9949
    %v9966 = vsub.f32 %v9867, %v9950
    %v9967 = vsub.f32 %v9870, %v9951
    %v9968 = vsub.f32 %v9873, %v9952
    %v9969 = vsub.f32 %v9876, %v9953
    %v9970 = vsub.f32 %v9879, %v9954
    %v9971 = vsub.f32 %v9882, %v9955
    %v9972 = vsub.f32 %v9885, %v9956
    %v9973 = vsub.f32 %v9888, %v9957
    %v9974 = vsub.f32 %v9891, %v9958
    %v9975 = vsub.f32 %v9894, %v9959
    %v9976 = vmul.f32 %v9960, %v9960
    %v9977 = vmul.f32 %v9961, %v9961
    %v9978 = vmul.f32 %v9962, %v9962
    %v9979 = vmul.f32 %v9963, %v9963
    %v9980 = vmul.f32 %v9964, %v9964
    %v9981 = vmul.f32 %v9965, %v9965
    %v9982 = vmul.f32 %v9966, %v9966
    %v9983 = vmul.f32 %v9967, %v9967
    %v9984 = vmul.f32 %v9968, %v9968
    %v9985 = vmul.f32 %v9969, %v9969
    %v9986 = vmul.f32 %v9970, %v9970
    %v9987 = vmul.f32 %v9971, %v9971
    %v9988 = vmul.f32 %v9972, %v9972
    %v9989 = vmul.f32 %v9973, %v9973
    %v9990 = vmul.f32 %v9974, %v9974
    %v9991 = vmul.f32 %v9975, %v9975
    %v9992 = vsel %vm334, %v9976, 0.0
    %9993 = vadd.xlane.f32.xlu0 %v9992
    %v9994 = vpop.xlane.xlu0 %9993
    %v9995 = vsel %vm334, %v9977, 0.0
    %9996 = vadd.xlane.f32.xlu0 %v9995
    %v9997 = vpop.xlane.xlu0 %9996
    %v9998 = vsel %vm334, %v9978, 0.0
    %9999 = vadd.xlane.f32.xlu0 %v9998
    %v10000 = vpop.xlane.xlu0 %9999
    %v10001 = vsel %vm334, %v9979, 0.0
    %10002 = vadd.xlane.f32.xlu0 %v10001
    %v10003 = vpop.xlane.xlu0 %10002
    %v10004 = vsel %vm334, %v9980, 0.0
    %10005 = vadd.xlane.f32.xlu0 %v10004
    %v10006 = vpop.xlane.xlu0 %10005
    %v10007 = vsel %vm334, %v9981, 0.0
    %10008 = vadd.xlane.f32.xlu0 %v10007
    %v10009 = vpop.xlane.xlu0 %10008
    %v10010 = vsel %vm334, %v9982, 0.0
    %10011 = vadd.xlane.f32.xlu0 %v10010
    %v10012 = vpop.xlane.xlu0 %10011
    %v10013 = vsel %vm334, %v9983, 0.0
    %10014 = vadd.xlane.f32.xlu0 %v10013
    %v10015 = vpop.xlane.xlu0 %10014
    %v10016 = vsel %vm334, %v9984, 0.0
    %10017 = vadd.xlane.f32.xlu0 %v10016
    %v10018 = vpop.xlane.xlu0 %10017
    %v10019 = vsel %vm334, %v9985, 0.0
    %10020 = vadd.xlane.f32.xlu0 %v10019
    %v10021 = vpop.xlane.xlu0 %10020
    %v10022 = vsel %vm334, %v9986, 0.0
    %10023 = vadd.xlane.f32.xlu0 %v10022
    %v10024 = vpop.xlane.xlu0 %10023
    %v10025 = vsel %vm334, %v9987, 0.0
    %10026 = vadd.xlane.f32.xlu0 %v10025
    %v10027 = vpop.xlane.xlu0 %10026
    %v10028 = vsel %vm334, %v9988, 0.0
    %10029 = vadd.xlane.f32.xlu0 %v10028
    %v10030 = vpop.xlane.xlu0 %10029
    %v10031 = vsel %vm334, %v9989, 0.0
    %10032 = vadd.xlane.f32.xlu0 %v10031
    %v10033 = vpop.xlane.xlu0 %10032
    %v10034 = vsel %vm334, %v9990, 0.0
    %10035 = vadd.xlane.f32.xlu0 %v10034
    %v10036 = vpop.xlane.xlu0 %10035
    %v10037 = vsel %vm334, %v9991, 0.0
    %10038 = vadd.xlane.f32.xlu0 %v10037
    %v10039 = vpop.xlane.xlu0 %10038
    %v10040 = vmul.f32 %v9994, %v3681
    %v10041 = vmul.f32 %v9997, %v3681
    %v10042 = vmul.f32 %v10000, %v3681
    %v10043 = vmul.f32 %v10003, %v3681
    %v10044 = vmul.f32 %v10006, %v3681
    %v10045 = vmul.f32 %v10009, %v3681
    %v10046 = vmul.f32 %v10012, %v3681
    %v10047 = vmul.f32 %v10015, %v3681
    %v10048 = vmul.f32 %v10018, %v3681
    %v10049 = vmul.f32 %v10021, %v3681
    %v10050 = vmul.f32 %v10024, %v3681
    %v10051 = vmul.f32 %v10027, %v3681
    %v10052 = vmul.f32 %v10030, %v3681
    %v10053 = vmul.f32 %v10033, %v3681
    %v10054 = vmul.f32 %v10036, %v3681
    %v10055 = vmul.f32 %v10039, %v3681
    %v10056 = vadd.f32 %v10040, 1e-05
    %v10057 = vadd.f32 %v10041, 1e-05
    %v10058 = vadd.f32 %v10042, 1e-05
    %v10059 = vadd.f32 %v10043, 1e-05
    %v10060 = vadd.f32 %v10044, 1e-05
    %v10061 = vadd.f32 %v10045, 1e-05
    %v10062 = vadd.f32 %v10046, 1e-05
    %v10063 = vadd.f32 %v10047, 1e-05
    %v10064 = vadd.f32 %v10048, 1e-05
    %v10065 = vadd.f32 %v10049, 1e-05
    %v10066 = vadd.f32 %v10050, 1e-05
    %v10067 = vadd.f32 %v10051, 1e-05
    %v10068 = vadd.f32 %v10052, 1e-05
    %v10069 = vadd.f32 %v10053, 1e-05
    %v10070 = vadd.f32 %v10054, 1e-05
    %v10071 = vadd.f32 %v10055, 1e-05
    %v10072 = vrsqrt.pop %v10056
    %v10073 = vmul.f32 %v10072, %v10056
    %v10074 = vmul.f32 %v10073, %v10072
    %v10075 = vmul.f32 0.5, %v10074
    %v10076 = vsub.f32 1.5, %v10075
    %v10077 = vmul.f32 %v10072, %v10076
    %vm10078 = vweird.f32 %v10056
    %vm10079 = vweird.f32 %v10072
    %vm10080 = vmor %vm10078, %vm10079
    %v10081 = vsel %vm10080, %v10072, %v10077
    %v10082 = vrsqrt.pop %v10057
    %v10083 = vmul.f32 %v10082, %v10057
    %v10084 = vmul.f32 %v10083, %v10082
    %v10085 = vmul.f32 0.5, %v10084
    %v10086 = vsub.f32 1.5, %v10085
    %v10087 = vmul.f32 %v10082, %v10086
    %vm10088 = vweird.f32 %v10057
    %vm10089 = vweird.f32 %v10082
    %vm10090 = vmor %vm10088, %vm10089
    %v10091 = vsel %vm10090, %v10082, %v10087
    %v10092 = vrsqrt.pop %v10058
    %v10093 = vmul.f32 %v10092, %v10058
    %v10094 = vmul.f32 %v10093, %v10092
    %v10095 = vmul.f32 0.5, %v10094
    %v10096 = vsub.f32 1.5, %v10095
    %v10097 = vmul.f32 %v10092, %v10096
    %vm10098 = vweird.f32 %v10058
    %vm10099 = vweird.f32 %v10092
    %vm10100 = vmor %vm10098, %vm10099
    %v10101 = vsel %vm10100, %v10092, %v10097
    %v10102 = vrsqrt.pop %v10059
    %v10103 = vmul.f32 %v10102, %v10059
    %v10104 = vmul.f32 %v10103, %v10102
    %v10105 = vmul.f32 0.5, %v10104
    %v10106 = vsub.f32 1.5, %v10105
    %v10107 = vmul.f32 %v10102, %v10106
    %vm10108 = vweird.f32 %v10059
    %vm10109 = vweird.f32 %v10102
    %vm10110 = vmor %vm10108, %vm10109
    %v10111 = vsel %vm10110, %v10102, %v10107
    %v10112 = vrsqrt.pop %v10060
    %v10113 = vmul.f32 %v10112, %v10060
    %v10114 = vmul.f32 %v10113, %v10112
    %v10115 = vmul.f32 0.5, %v10114
    %v10116 = vsub.f32 1.5, %v10115
    %v10117 = vmul.f32 %v10112, %v10116
    %vm10118 = vweird.f32 %v10060
    %vm10119 = vweird.f32 %v10112
    %vm10120 = vmor %vm10118, %vm10119
    %v10121 = vsel %vm10120, %v10112, %v10117
    %v10122 = vrsqrt.pop %v10061
    %v10123 = vmul.f32 %v10122, %v10061
    %v10124 = vmul.f32 %v10123, %v10122
    %v10125 = vmul.f32 0.5, %v10124
    %v10126 = vsub.f32 1.5, %v10125
    %v10127 = vmul.f32 %v10122, %v10126
    %vm10128 = vweird.f32 %v10061
    %vm10129 = vweird.f32 %v10122
    %vm10130 = vmor %vm10128, %vm10129
    %v10131 = vsel %vm10130, %v10122, %v10127
    %v10132 = vrsqrt.pop %v10062
    %v10133 = vmul.f32 %v10132, %v10062
    %v10134 = vmul.f32 %v10133, %v10132
    %v10135 = vmul.f32 0.5, %v10134
    %v10136 = vsub.f32 1.5, %v10135
    %v10137 = vmul.f32 %v10132, %v10136
    %vm10138 = vweird.f32 %v10062
    %vm10139 = vweird.f32 %v10132
    %vm10140 = vmor %vm10138, %vm10139
    %v10141 = vsel %vm10140, %v10132, %v10137
    %v10142 = vrsqrt.pop %v10063
    %v10143 = vmul.f32 %v10142, %v10063
    %v10144 = vmul.f32 %v10143, %v10142
    %v10145 = vmul.f32 0.5, %v10144
    %v10146 = vsub.f32 1.5, %v10145
    %v10147 = vmul.f32 %v10142, %v10146
    %vm10148 = vweird.f32 %v10063
    %vm10149 = vweird.f32 %v10142
    %vm10150 = vmor %vm10148, %vm10149
    %v10151 = vsel %vm10150, %v10142, %v10147
    %v10152 = vrsqrt.pop %v10064
    %v10153 = vmul.f32 %v10152, %v10064
    %v10154 = vmul.f32 %v10153, %v10152
    %v10155 = vmul.f32 0.5, %v10154
    %v10156 = vsub.f32 1.5, %v10155
    %v10157 = vmul.f32 %v10152, %v10156
    %vm10158 = vweird.f32 %v10064
    %vm10159 = vweird.f32 %v10152
    %vm10160 = vmor %vm10158, %vm10159
    %v10161 = vsel %vm10160, %v10152, %v10157
    %v10162 = vrsqrt.pop %v10065
    %v10163 = vmul.f32 %v10162, %v10065
    %v10164 = vmul.f32 %v10163, %v10162
    %v10165 = vmul.f32 0.5, %v10164
    %v10166 = vsub.f32 1.5, %v10165
    %v10167 = vmul.f32 %v10162, %v10166
    %vm10168 = vweird.f32 %v10065
    %vm10169 = vweird.f32 %v10162
    %vm10170 = vmor %vm10168, %vm10169
    %v10171 = vsel %vm10170, %v10162, %v10167
    %v10172 = vrsqrt.pop %v10066
    %v10173 = vmul.f32 %v10172, %v10066
    %v10174 = vmul.f32 %v10173, %v10172
    %v10175 = vmul.f32 0.5, %v10174
    %v10176 = vsub.f32 1.5, %v10175
    %v10177 = vmul.f32 %v10172, %v10176
    %vm10178 = vweird.f32 %v10066
    %vm10179 = vweird.f32 %v10172
    %vm10180 = vmor %vm10178, %vm10179
    %v10181 = vsel %vm10180, %v10172, %v10177
    %v10182 = vrsqrt.pop %v10067
    %v10183 = vmul.f32 %v10182, %v10067
    %v10184 = vmul.f32 %v10183, %v10182
    %v10185 = vmul.f32 0.5, %v10184
    %v10186 = vsub.f32 1.5, %v10185
    %v10187 = vmul.f32 %v10182, %v10186
    %vm10188 = vweird.f32 %v10067
    %vm10189 = vweird.f32 %v10182
    %vm10190 = vmor %vm10188, %vm10189
    %v10191 = vsel %vm10190, %v10182, %v10187
    %v10192 = vrsqrt.pop %v10068
    %v10193 = vmul.f32 %v10192, %v10068
    %v10194 = vmul.f32 %v10193, %v10192
    %v10195 = vmul.f32 0.5, %v10194
    %v10196 = vsub.f32 1.5, %v10195
    %v10197 = vmul.f32 %v10192, %v10196
    %vm10198 = vweird.f32 %v10068
    %vm10199 = vweird.f32 %v10192
    %vm10200 = vmor %vm10198, %vm10199
    %v10201 = vsel %vm10200, %v10192, %v10197
    %v10202 = vrsqrt.pop %v10069
    %v10203 = vmul.f32 %v10202, %v10069
    %v10204 = vmul.f32 %v10203, %v10202
    %v10205 = vmul.f32 0.5, %v10204
    %v10206 = vsub.f32 1.5, %v10205
    %v10207 = vmul.f32 %v10202, %v10206
    %vm10208 = vweird.f32 %v10069
    %vm10209 = vweird.f32 %v10202
    %vm10210 = vmor %vm10208, %vm10209
    %v10211 = vsel %vm10210, %v10202, %v10207
    %v10212 = vrsqrt.pop %v10070
    %v10213 = vmul.f32 %v10212, %v10070
    %v10214 = vmul.f32 %v10213, %v10212
    %v10215 = vmul.f32 0.5, %v10214
    %v10216 = vsub.f32 1.5, %v10215
    %v10217 = vmul.f32 %v10212, %v10216
    %vm10218 = vweird.f32 %v10070
    %vm10219 = vweird.f32 %v10212
    %vm10220 = vmor %vm10218, %vm10219
    %v10221 = vsel %vm10220, %v10212, %v10217
    %v10222 = vrsqrt.pop %v10071
    %v10223 = vmul.f32 %v10222, %v10071
    %v10224 = vmul.f32 %v10223, %v10222
    %v10225 = vmul.f32 0.5, %v10224
    %v10226 = vsub.f32 1.5, %v10225
    %v10227 = vmul.f32 %v10222, %v10226
    %vm10228 = vweird.f32 %v10071
    %vm10229 = vweird.f32 %v10222
    %vm10230 = vmor %vm10228, %vm10229
    %v10231 = vsel %vm10230, %v10222, %v10227
    %v10232 = vmul.f32 %v9960, %v10081
    %v10233 = vmul.f32 %v9961, %v10091
    %v10234 = vmul.f32 %v9962, %v10101
    %v10235 = vmul.f32 %v9963, %v10111
    %v10236 = vmul.f32 %v9964, %v10121
    %v10237 = vmul.f32 %v9965, %v10131
    %v10238 = vmul.f32 %v9966, %v10141
    %v10239 = vmul.f32 %v9967, %v10151
    %v10240 = vmul.f32 %v9968, %v10161
    %v10241 = vmul.f32 %v9969, %v10171
    %v10242 = vmul.f32 %v9970, %v10181
    %v10243 = vmul.f32 %v9971, %v10191
    %v10244 = vmul.f32 %v9972, %v10201
    %v10245 = vmul.f32 %v9973, %v10211
    %v10246 = vmul.f32 %v9974, %v10221
    %v10247 = vmul.f32 %v9975, %v10231
    %v10249 = vperm.slane %v5369, 0
    %v10251 = vmul.f32 %v10232, %v10249
    %v10252 = vmul.f32 %v10233, %v10249
    %v10253 = vmul.f32 %v10234, %v10249
    %v10254 = vmul.f32 %v10235, %v10249
    %v10255 = vmul.f32 %v10236, %v10249
    %v10256 = vmul.f32 %v10237, %v10249
    %v10257 = vmul.f32 %v10238, %v10249
    %v10258 = vmul.f32 %v10239, %v10249
    %v10259 = vmul.f32 %v10240, %v10249
    %v10260 = vmul.f32 %v10241, %v10249
    %v10261 = vmul.f32 %v10242, %v10249
    %v10262 = vmul.f32 %v10243, %v10249
    %v10263 = vmul.f32 %v10244, %v10249
    %v10264 = vmul.f32 %v10245, %v10249
    %v10265 = vmul.f32 %v10246, %v10249
    %v10266 = vmul.f32 %v10247, %v10249
    %v10267 = vadd.f32 %v9056, %v10251
    %v10268 = vadd.f32 %v9057, %v10252
    %v10269 = vadd.f32 %v9058, %v10253
    %v10270 = vadd.f32 %v9059, %v10254
    %v10271 = vadd.f32 %v9060, %v10255
    %v10272 = vadd.f32 %v9061, %v10256
    %v10273 = vadd.f32 %v9062, %v10257
    %v10274 = vadd.f32 %v9063, %v10258
    %v10275 = vadd.f32 %v9064, %v10259
    %v10276 = vadd.f32 %v9065, %v10260
    %v10277 = vadd.f32 %v9066, %v10261
    %v10278 = vadd.f32 %v9067, %v10262
    %v10279 = vadd.f32 %v9068, %v10263
    %v10280 = vadd.f32 %v9069, %v10264
    %v10281 = vadd.f32 %v9070, %v10265
    %v10282 = vadd.f32 %v9071, %v10266
    %v10284 = vperm.slane %v5370, 0
    %v10286 = vadd.f32 %v10267, %v10284
    %v10287 = vadd.f32 %v10268, %v10284
    %v10288 = vadd.f32 %v10269, %v10284
    %v10289 = vadd.f32 %v10270, %v10284
    %v10290 = vadd.f32 %v10271, %v10284
    %v10291 = vadd.f32 %v10272, %v10284
    %v10292 = vadd.f32 %v10273, %v10284
    %v10293 = vadd.f32 %v10274, %v10284
    %v10294 = vadd.f32 %v10275, %v10284
    %v10295 = vadd.f32 %v10276, %v10284
    %v10296 = vadd.f32 %v10277, %v10284
    %v10297 = vadd.f32 %v10278, %v10284
    %v10298 = vadd.f32 %v10279, %v10284
    %v10299 = vadd.f32 %v10280, %v10284
    %v10300 = vadd.f32 %v10281, %v10284
    %v10301 = vadd.f32 %v10282, %v10284
    %10302 = vst.msk [vmem:[%s63] sm:$0xff] %vm334, %v10286
    %10303 = vst.msk [vmem:[%s63 + $0x8] sm:$0xff] %vm334, %v10287
    %10304 = vst.msk [vmem:[%s63 + $0x10] sm:$0xff] %vm334, %v10288
    %10305 = vst.msk [vmem:[%s63 + $0x18] sm:$0xff] %vm334, %v10289
    %10306 = vst.msk [vmem:[%s63 + $0x20] sm:$0xff] %vm334, %v10290
    %10307 = vst.msk [vmem:[%s63 + $0x28] sm:$0xff] %vm334, %v10291
    %10308 = vst.msk [vmem:[%s63 + $0x30] sm:$0xff] %vm334, %v10292
    %10309 = vst.msk [vmem:[%s63 + $0x38] sm:$0xff] %vm334, %v10293
    %10310 = vst.msk [vmem:[%s63 + $0x40] sm:$0xff] %vm334, %v10294
    %10311 = vst.msk [vmem:[%s63 + $0x48] sm:$0xff] %vm334, %v10295
    %10312 = vst.msk [vmem:[%s63 + $0x50] sm:$0xff] %vm334, %v10296
    %10313 = vst.msk [vmem:[%s63 + $0x58] sm:$0xff] %vm334, %v10297
    %10314 = vst.msk [vmem:[%s63 + $0x60] sm:$0xff] %vm334, %v10298
    %10315 = vst.msk [vmem:[%s63 + $0x68] sm:$0xff] %vm334, %v10299
    %10316 = vst.msk [vmem:[%s63 + $0x70] sm:$0xff] %vm334, %v10300
    %10317 = vst.msk [vmem:[%s63 + $0x78] sm:$0xff] %vm334, %v10301
    // Predicated region
    $region130: #{fwd.1} parent=1 // pred_check
      _
    $region131: #{fwd.1} parent=1 // pred_check_branch
      %10319 = sbr.rel (0) target = $region133
    $region132: #{fwd.1} parent=1 // pred_region
      _
    $region133: #{fwd.1} parent=1 // pred_fallthru
      _
    // Predicated region
    $region134: #{fwd.1} parent=1 // pred_check
      _
    $region135: #{fwd.1} parent=1 // pred_check_branch
      %10321 = sbr.rel (0) target = $region137
    $region136: #{fwd.1} parent=1 // pred_region
      _
    $region137: #{fwd.1} parent=1 // pred_fallthru
      _
    %10322 = vsyncpa [#allocation3], 1

</llo_original>
